<compile_context>
chip_gen: v7x
topology: tpu7x:2x2x1
jax: 0.10.0
libtpu: 0.0.40
codegen_flags: <defaults>
</compile_context>

<pallas_src>
import functools

import jax
import jax.numpy as jnp
import numpy as np
from jax.experimental import pallas as pl
from jax.experimental.pallas import tpu as pltpu


TILE_N_MAX = 2048   # point-tile rows; with chunked layer 3 + bf16 weights this
                    # stays well under VMEM limits on v5e/v6e/v7x
C3_CHUNK = 256      # layer-3 output-channel chunk (multiple of 128 lanes)


def _round_up(x, m):
    return ((x + m - 1) // m) * m


def _choose_tiling(n):
    """Pick (tile_n, n_tiles, padded_n) minimizing padding for large N."""
    n_tiles = max(1, -(-n // TILE_N_MAX))          # cdiv
    tile_n = _round_up(-(-n // n_tiles), 8)
    return tile_n, n_tiles, tile_n * n_tiles


# ----------------------------------------------------------------------------
# Kernel 1: fused per-point MLP (3->64->128->1024) + running max over points
# ----------------------------------------------------------------------------
def _point_mlp_max_kernel(x_ref, w1_ref, b1_ref, w2_ref, b2_ref, w3_ref, b3_ref,
                          o_ref, *, relu_last, c3_chunk):
    n = pl.program_id(1)

    x = x_ref[0]                                    # (tile_n, 3) f32
    w1 = w1_ref[0]                                  # (3, 64)    f32

    # Layer 1 (K=3): three broadcast multiply-adds on the VPU instead of a
    # K=3 MXU pass (same vex-slot pushes as K=256 for <1% of the FLOPs).
    h = (x[:, 0:1] * w1[0:1, :]
         + x[:, 1:2] * w1[1:2, :]
         + x[:, 2:3] * w1[2:3, :]) + b1_ref[...]
    h = jnp.maximum(h, 0.0)

    # Layer 2: 64 -> 128 (weights pre-cast to bf16 at init; f32 accumulate).
    h = jnp.dot(h.astype(jnp.bfloat16), w2_ref[...],
                preferred_element_type=jnp.float32) + b2_ref[...]
    h = jnp.maximum(h, 0.0)
    h = h.astype(jnp.bfloat16)

    # Layer 3: 128 -> 1024, chunked over output channels so the full
    # (tile_n, 1024) f32 intermediate is never live at once.
    c3 = o_ref.shape[-1]
    chunk_maxes = []
    for c0 in range(0, c3, c3_chunk):
        h3 = jnp.dot(h, w3_ref[:, c0:c0 + c3_chunk],
                     preferred_element_type=jnp.float32) + b3_ref[:, c0:c0 + c3_chunk]
        if relu_last:
            h3 = jnp.maximum(h3, 0.0)
        chunk_maxes.append(jnp.max(h3, axis=0, keepdims=True))   # (1, chunk)
    tile_max = jnp.concatenate(chunk_maxes, axis=-1)[None]       # (1, 1, C3)

    @pl.when(n == 0)
    def _():
        o_ref[...] = tile_max

    @pl.when(n > 0)
    def _():
        o_ref[...] = jnp.maximum(o_ref[...], tile_max)


def point_mlp_max(xt, w1, b1, w2, b2, w3, b3, *, relu_last, tile_n):
    """xt: (B, Np, 3); w1: (1 or B, 3, 64); returns (B, 1024) = max over points."""
    B, Np, _ = xt.shape
    C1, C2, C3 = w1.shape[-1], w2.shape[-1], w3.shape[-1]
    assert Np % tile_n == 0 and tile_n % 8 == 0
    n_tiles = Np // tile_n
    c3_chunk = C3_CHUNK if C3 % C3_CHUNK == 0 else C3

    per_batch_w1 = w1.shape[0] != 1
    w1_map = (lambda b, n: (b, 0, 0)) if per_batch_w1 else (lambda b, n: (0, 0, 0))

    kernel = functools.partial(_point_mlp_max_kernel,
                               relu_last=relu_last, c3_chunk=c3_chunk)
    out = pl.pallas_call(
        kernel,
        out_shape=jax.ShapeDtypeStruct((B, 1, C3), jnp.float32),
        grid=(B, n_tiles),
        in_specs=[
            pl.BlockSpec((1, tile_n, 3), lambda b, n: (b, n, 0)),
            pl.BlockSpec((1, 3, C1), w1_map),
            pl.BlockSpec((1, C1), lambda b, n: (0, 0)),
            pl.BlockSpec((C1, C2), lambda b, n: (0, 0)),
            pl.BlockSpec((1, C2), lambda b, n: (0, 0)),
            pl.BlockSpec((C2, C3), lambda b, n: (0, 0)),
            pl.BlockSpec((1, C3), lambda b, n: (0, 0)),
        ],
        out_specs=pl.BlockSpec((1, 1, C3), lambda b, n: (b, 0, 0)),
        compiler_params=pltpu.CompilerParams(
            dimension_semantics=("parallel", "arbitrary"),
            vmem_limit_bytes=32 * 1024 * 1024),
    )(xt, w1, b1, w2, b2, w3, b3)
    return out.reshape(B, C3)


# ----------------------------------------------------------------------------
# Kernel 2: STN FC head  (1024 -> 512 -> 256 -> 9, identity folded into bias)
# ----------------------------------------------------------------------------
def _stn_head_kernel(g_ref, w1_ref, b1_ref, w2_ref, b2_ref, w3_ref, b3_ref, o_ref):
    h = jnp.maximum(
        jnp.dot(g_ref[...].astype(jnp.bfloat16), w1_ref[...],
                preferred_element_type=jnp.float32) + b1_ref[...], 0.0)
    h = jnp.maximum(
        jnp.dot(h.astype(jnp.bfloat16), w2_ref[...],
                preferred_element_type=jnp.float32) + b2_ref[...], 0.0)
    o_ref[...] = (jnp.dot(h, w3_ref[...], preferred_element_type=jnp.float32)
                  + b3_ref[...])


def stn_head(g, w1, b1, w2, b2, w3, b3):
    M, K = g.shape
    H1, H2, Cout = w1.shape[1], w2.shape[1], w3.shape[1]
    return pl.pallas_call(
        _stn_head_kernel,
        out_shape=jax.ShapeDtypeStruct((M, Cout), jnp.float32),
        grid=(1,),
        in_specs=[
            pl.BlockSpec((M, K), lambda i: (0, 0)),
            pl.BlockSpec((K, H1), lambda i: (0, 0)),
            pl.BlockSpec((1, H1), lambda i: (0, 0)),
            pl.BlockSpec((H1, H2), lambda i: (0, 0)),
            pl.BlockSpec((1, H2), lambda i: (0, 0)),
            pl.BlockSpec((H2, Cout), lambda i: (0, 0)),
            pl.BlockSpec((1, Cout), lambda i: (0, 0)),
        ],
        out_specs=pl.BlockSpec((M, Cout), lambda i: (0, 0)),
    )(g, w1, b1, w2, b2, w3, b3)


# ----------------------------------------------------------------------------
# Kernel 3: Siamese head  (fc1 -> fc2 per branch, |a-b| -> fc3 -> sigmoid)
# ----------------------------------------------------------------------------
def _siamese_head_kernel(g0_ref, g1_ref, w1_ref, b1_ref, w2_ref, b2_ref,
                         w3_ref, b3_ref, o_ref):
    def branch(g):
        h = jnp.maximum(
            jnp.dot(g.astype(jnp.bfloat16), w1_ref[...],
                    preferred_element_type=jnp.float32) + b1_ref[...], 0.0)
        # dropout(p=0.3) is identity in eval mode
        h = jnp.maximum(
            jnp.dot(h.astype(jnp.bfloat16), w2_ref[...],
                    preferred_element_type=jnp.float32) + b2_ref[...], 0.0)
        return h

    dis = jnp.abs(branch(g0_ref[...]) - branch(g1_ref[...]))
    y = jnp.dot(dis, w3_ref[...], preferred_element_type=jnp.float32) + b3_ref[...]
    o_ref[...] = jax.nn.sigmoid(y)


def siamese_head(g0, g1, w1, b1, w2, b2, w3, b3):
    B, K = g0.shape
    H1, H2, Cout = w1.shape[1], w2.shape[1], w3.shape[1]
    return pl.pallas_call(
        _siamese_head_kernel,
        out_shape=jax.ShapeDtypeStruct((B, Cout), jnp.float32),
        grid=(1,),
        in_specs=[
            pl.BlockSpec((B, K), lambda i: (0, 0)),
            pl.BlockSpec((B, K), lambda i: (0, 0)),
            pl.BlockSpec((K, H1), lambda i: (0, 0)),
            pl.BlockSpec((1, H1), lambda i: (0, 0)),
            pl.BlockSpec((H1, H2), lambda i: (0, 0)),
            pl.BlockSpec((1, H2), lambda i: (0, 0)),
            pl.BlockSpec((H2, Cout), lambda i: (0, 0)),
            pl.BlockSpec((1, Cout), lambda i: (0, 0)),
        ],
        out_specs=pl.BlockSpec((B, Cout), lambda i: (0, 0)),
    )(g0, g1, w1, b1, w2, b2, w3, b3)


# ----------------------------------------------------------------------------
# Parameters: BN (inference mode, fresh stats) folded into the linear weights.
# Large weights pre-cast to bf16 once (operand halves; MXU-native on v6e/v7x).
# ----------------------------------------------------------------------------
def _linear_params(key, cin, cout, *, bn=True, eps=1e-5):
    kw, kb = jax.random.split(key)
    bound = 1.0 / np.sqrt(cin)
    w = jax.random.uniform(kw, (cin, cout), jnp.float32, -bound, bound)
    b = jax.random.uniform(kb, (1, cout), jnp.float32, -bound, bound)
    if bn:
        gamma = jnp.ones((1, cout), jnp.float32)
        beta = jnp.zeros((1, cout), jnp.float32)
        mean = jnp.zeros((1, cout), jnp.float32)
        var = jnp.ones((1, cout), jnp.float32)
        s = gamma / jnp.sqrt(var + eps)
        t = beta - mean * s
        # (x@w + b)*s + t == x@(w*s) + (b*s + t)
        w = w * s
        b = b * s + t
    return w, b


def _to_bf16_w(p):
    w, b = p
    return w.astype(jnp.bfloat16), b   # bias stays f32


def init_params(seed=0):
    key = jax.random.PRNGKey(seed)
    keys = jax.random.split(key, 12)
    p = {}
    # STN3d
    p["stn_c1"] = _linear_params(keys[0], 3, 64)                      # f32 (VPU layer)
    p["stn_c2"] = _to_bf16_w(_linear_params(keys[1], 64, 128))
    p["stn_c3"] = _to_bf16_w(_linear_params(keys[2], 128, 1024))
    p["stn_f1"] = _to_bf16_w(_linear_params(keys[3], 1024, 512))
    p["stn_f2"] = _to_bf16_w(_linear_params(keys[4], 512, 256))
    w, b = _linear_params(keys[5], 256, 9, bn=False)
    iden = jnp.eye(3, dtype=jnp.float32).reshape(1, 9)
    p["stn_f3"] = (w, b + iden)          # fold the 3x3 identity add into the bias
    # PointNetfeat
    p["feat_c1"] = _linear_params(keys[6], 3, 64)                     # f32 (VPU layer)
    p["feat_c2"] = _to_bf16_w(_linear_params(keys[7], 64, 128))
    p["feat_c3"] = _to_bf16_w(_linear_params(keys[8], 128, 1024))
    # Siamese head
    p["fc1"] = _to_bf16_w(_linear_params(keys[9], 1024, 512))
    p["fc2"] = _to_bf16_w(_linear_params(keys[10], 512, 256))
    p["fc3"] = _linear_params(keys[11], 256, 2, bn=False)
    return p


# ----------------------------------------------------------------------------
# Forward pass
# ----------------------------------------------------------------------------
@jax.jit
def pointnet_siamese_forward(params, pc0, pc1):
    B = pc0.shape[0]
    # Run both Siamese branches as one batch through the shared trunk.
    pc = jnp.concatenate([pc0, pc1], axis=0)              # (2B, 3, N)  NCW
    B2, _, N = pc.shape
    xt = jnp.transpose(pc, (0, 2, 1))                     # (2B, N, 3)

    tile_n, _, padded_n = _choose_tiling(N)
    n_pad = padded_n - N
    if n_pad:
        # Edge-replicate the last point: duplicates never change the max-pool.
        xt = jnp.concatenate(
            [xt, jnp.broadcast_to(xt[:, -1:, :], (B2, n_pad, 3))], axis=1)

    # ---- STN3d: fused per-point MLP + max-pool, then FC head -> (2B,3,3) ----
    w1s, b1s = params["stn_c1"]
    g_stn = point_mlp_max(xt, w1s[None], b1s,
                          *params["stn_c2"], *params["stn_c3"],
                          relu_last=True, tile_n=tile_n)              # (2B, 1024)
    t9 = stn_head(g_stn, *params["stn_f1"], *params["stn_f2"], *params["stn_f3"])
    trans = t9.reshape(B2, 3, 3)

    # ---- PointNetfeat: fold trans into conv1 ((x@T)@W1 == x@(T@W1)) ----
    w1f, b1f = params["feat_c1"]
    w1p = jnp.einsum("bij,jk->bik", trans, w1f)                       # (2B, 3, 64)
    g_feat = point_mlp_max(xt, w1p, b1f,
                           *params["feat_c2"], *params["feat_c3"],
                           relu_last=False, tile_n=tile_n)            # (2B, 1024)

    # ---- Siamese head: fc1 -> fc2 -> |a-b| -> fc3 -> sigmoid (one kernel) ----
    g0, g1 = g_feat[:B], g_feat[B:]
    return siamese_head(g0, g1, *params["fc1"], *params["fc2"], *params["fc3"])


# ----------------------------------------------------------------------------
if __name__ == "__main__":
    B, N = 2, 16  # batch, number of points (small test shapes)
    params = init_params(seed=0)

    key = jax.random.PRNGKey(0)
    k0, k1 = jax.random.split(key)
    pc0 = jax.random.normal(k0, (B, 3, N), jnp.float32)  # NCW like PyTorch
    pc1 = jax.random.normal(k1, (B, 3, N), jnp.float32)

    out = pointnet_siamese_forward(params, pc0, pc1)
    out = jax.block_until_ready(out)
    assert out.shape == (B, 2)
    assert bool(jnp.all(jnp.isfinite(out)))
    assert bool(jnp.all((out >= 0.0) & (out <= 1.0)))
    print("KERNEL_OK")
</pallas_src>

<mosaic_0001>
module attributes {stable_mosaic.version = 11 : i64} {
  func.func @_point_mlp_max_kernel(%arg0: i32, %arg1: i32, %arg2: memref<1x16x3xf32, #tpu.memory_space<vmem>>, %arg3: memref<1x3x64xf32, #tpu.memory_space<vmem>>, %arg4: memref<1x64xf32, #tpu.memory_space<vmem>>, %arg5: memref<64x128xbf16, #tpu.memory_space<vmem>>, %arg6: memref<1x128xf32, #tpu.memory_space<vmem>>, %arg7: memref<128x1024xbf16, #tpu.memory_space<vmem>>, %arg8: memref<1x1024xf32, #tpu.memory_space<vmem>>, %arg9: memref<1x1x1024xf32, #tpu.memory_space<vmem>>) attributes {dimension_semantics = [#tpu.dimension_semantics<parallel>, #tpu.dimension_semantics<arbitrary>], iteration_bounds = array<i64: 4, 1>, scalar_prefetch = 0 : i64, scratch_operands = 0 : i64, tpu.core_type = #tpu.core_type<tc>, window_params = [{transform_indices = @transform_0, window_bounds = array<i64: 1, 16, 3>}, {pipeline_mode = #tpu.pipeline_mode<synchronous>, transform_indices = @transform_1, window_bounds = array<i64: 1, 3, 64>}, {pipeline_mode = #tpu.pipeline_mode<synchronous>, transform_indices = @transform_2, window_bounds = array<i64: 1, 64>}, {pipeline_mode = #tpu.pipeline_mode<synchronous>, transform_indices = @transform_3, window_bounds = array<i64: 64, 128>}, {pipeline_mode = #tpu.pipeline_mode<synchronous>, transform_indices = @transform_4, window_bounds = array<i64: 1, 128>}, {pipeline_mode = #tpu.pipeline_mode<synchronous>, transform_indices = @transform_5, window_bounds = array<i64: 128, 1024>}, {pipeline_mode = #tpu.pipeline_mode<synchronous>, transform_indices = @transform_6, window_bounds = array<i64: 1, 1024>}, {transform_indices = @transform_7, window_bounds = array<i64: 1, 1, 1024>}]} {
    %c0 = arith.constant 0 : index
    %c0_0 = arith.constant 0 : index
    %c0_1 = arith.constant 0 : index
    %0 = vector.load %arg2[%c0, %c0_0, %c0_1] : memref<1x16x3xf32, #tpu.memory_space<vmem>>, vector<1x16x3xf32>
    %1 = vector.shape_cast %0 : vector<1x16x3xf32> to vector<16x3xf32>
    %c0_2 = arith.constant 0 : index
    %c0_3 = arith.constant 0 : index
    %c0_4 = arith.constant 0 : index
    %2 = vector.load %arg3[%c0_2, %c0_3, %c0_4] : memref<1x3x64xf32, #tpu.memory_space<vmem>>, vector<1x3x64xf32>
    %3 = vector.shape_cast %2 : vector<1x3x64xf32> to vector<3x64xf32>
    %4 = vector.extract_strided_slice %1 {offsets = [0, 0], sizes = [16, 1], strides = [1, 1]} : vector<16x3xf32> to vector<16x1xf32>
    %5 = vector.extract_strided_slice %3 {offsets = [0, 0], sizes = [1, 64], strides = [1, 1]} : vector<3x64xf32> to vector<1x64xf32>
    %6 = vector.broadcast %4 : vector<16x1xf32> to vector<16x64xf32>
    %7 = vector.broadcast %5 : vector<1x64xf32> to vector<16x64xf32>
    %8 = arith.mulf %6, %7 : vector<16x64xf32>
    %9 = vector.extract_strided_slice %1 {offsets = [0, 1], sizes = [16, 1], strides = [1, 1]} : vector<16x3xf32> to vector<16x1xf32>
    %10 = vector.extract_strided_slice %3 {offsets = [1, 0], sizes = [1, 64], strides = [1, 1]} : vector<3x64xf32> to vector<1x64xf32>
    %11 = vector.broadcast %9 : vector<16x1xf32> to vector<16x64xf32>
    %12 = vector.broadcast %10 : vector<1x64xf32> to vector<16x64xf32>
    %13 = arith.mulf %11, %12 : vector<16x64xf32>
    %14 = arith.addf %8, %13 : vector<16x64xf32>
    %15 = vector.extract_strided_slice %1 {offsets = [0, 2], sizes = [16, 1], strides = [1, 1]} : vector<16x3xf32> to vector<16x1xf32>
    %16 = vector.extract_strided_slice %3 {offsets = [2, 0], sizes = [1, 64], strides = [1, 1]} : vector<3x64xf32> to vector<1x64xf32>
    %17 = vector.broadcast %15 : vector<16x1xf32> to vector<16x64xf32>
    %18 = vector.broadcast %16 : vector<1x64xf32> to vector<16x64xf32>
    %19 = arith.mulf %17, %18 : vector<16x64xf32>
    %20 = arith.addf %14, %19 : vector<16x64xf32>
    %c0_5 = arith.constant 0 : index
    %c0_6 = arith.constant 0 : index
    %21 = vector.load %arg4[%c0_5, %c0_6] : memref<1x64xf32, #tpu.memory_space<vmem>>, vector<1x64xf32>
    %22 = vector.broadcast %21 : vector<1x64xf32> to vector<16x64xf32>
    %23 = arith.addf %20, %22 : vector<16x64xf32>
    %cst = arith.constant 0.000000e+00 : f32
    %24 = vector.broadcast %cst : f32 to vector<16x64xf32>
    %25 = arith.maximumf %23, %24 : vector<16x64xf32>
    %26 = arith.truncf %25 : vector<16x64xf32> to vector<16x64xbf16>
    %c0_7 = arith.constant 0 : index
    %c0_8 = arith.constant 0 : index
    %27 = vector.load %arg5[%c0_7, %c0_8] : memref<64x128xbf16, #tpu.memory_space<vmem>>, vector<64x128xbf16>
    %cst_9 = arith.constant dense<0.000000e+00> : vector<16x128xf32>
    %28 = tpu.matmul %26, %27, %cst_9 {dimension_numbers = #tpu.dot_dimension_numbers<[1], [0], [0], [1], [0, 0, 1, 1], [], []>} : vector<16x64xbf16>, vector<64x128xbf16>, vector<16x128xf32> -> vector<16x128xf32>
    %c0_10 = arith.constant 0 : index
    %c0_11 = arith.constant 0 : index
    %29 = vector.load %arg6[%c0_10, %c0_11] : memref<1x128xf32, #tpu.memory_space<vmem>>, vector<1x128xf32>
    %30 = vector.broadcast %29 : vector<1x128xf32> to vector<16x128xf32>
    %31 = arith.addf %28, %30 : vector<16x128xf32>
    %cst_12 = arith.constant 0.000000e+00 : f32
    %32 = vector.broadcast %cst_12 : f32 to vector<16x128xf32>
    %33 = arith.maximumf %31, %32 : vector<16x128xf32>
    %34 = arith.truncf %33 : vector<16x128xf32> to vector<16x128xbf16>
    %c0_13 = arith.constant 0 : index
    %c0_14 = arith.constant 0 : index
    %35 = vector.load %arg7[%c0_13, %c0_14] : memref<128x1024xbf16, #tpu.memory_space<vmem>>, vector<128x256xbf16>
    %cst_15 = arith.constant dense<0.000000e+00> : vector<16x256xf32>
    %36 = tpu.matmul %34, %35, %cst_15 {dimension_numbers = #tpu.dot_dimension_numbers<[1], [0], [0], [1], [0, 0, 1, 1], [], []>} : vector<16x128xbf16>, vector<128x256xbf16>, vector<16x256xf32> -> vector<16x256xf32>
    %c0_16 = arith.constant 0 : index
    %c0_17 = arith.constant 0 : index
    %37 = vector.load %arg8[%c0_16, %c0_17] : memref<1x1024xf32, #tpu.memory_space<vmem>>, vector<1x256xf32>
    %38 = vector.broadcast %37 : vector<1x256xf32> to vector<16x256xf32>
    %39 = arith.addf %36, %38 : vector<16x256xf32>
    %cst_18 = arith.constant 0.000000e+00 : f32
    %40 = vector.broadcast %cst_18 : f32 to vector<16x256xf32>
    %41 = arith.maximumf %39, %40 : vector<16x256xf32>
    %cst_19 = arith.constant dense<0xFF800000> : vector<256xf32>
    %42 = vector.multi_reduction <maximumf>, %41, %cst_19 [0] : vector<16x256xf32> to vector<256xf32>
    %43 = vector.shape_cast %42 : vector<256xf32> to vector<1x256xf32>
    %c0_20 = arith.constant 0 : index
    %c256 = arith.constant 256 : index
    %44 = vector.load %arg7[%c0_20, %c256] : memref<128x1024xbf16, #tpu.memory_space<vmem>>, vector<128x256xbf16>
    %cst_21 = arith.constant dense<0.000000e+00> : vector<16x256xf32>
    %45 = tpu.matmul %34, %44, %cst_21 {dimension_numbers = #tpu.dot_dimension_numbers<[1], [0], [0], [1], [0, 0, 1, 1], [], []>} : vector<16x128xbf16>, vector<128x256xbf16>, vector<16x256xf32> -> vector<16x256xf32>
    %c0_22 = arith.constant 0 : index
    %c256_23 = arith.constant 256 : index
    %46 = vector.load %arg8[%c0_22, %c256_23] : memref<1x1024xf32, #tpu.memory_space<vmem>>, vector<1x256xf32>
    %47 = vector.broadcast %46 : vector<1x256xf32> to vector<16x256xf32>
    %48 = arith.addf %45, %47 : vector<16x256xf32>
    %cst_24 = arith.constant 0.000000e+00 : f32
    %49 = vector.broadcast %cst_24 : f32 to vector<16x256xf32>
    %50 = arith.maximumf %48, %49 : vector<16x256xf32>
    %cst_25 = arith.constant dense<0xFF800000> : vector<256xf32>
    %51 = vector.multi_reduction <maximumf>, %50, %cst_25 [0] : vector<16x256xf32> to vector<256xf32>
    %52 = vector.shape_cast %51 : vector<256xf32> to vector<1x256xf32>
    %c0_26 = arith.constant 0 : index
    %c512 = arith.constant 512 : index
    %53 = vector.load %arg7[%c0_26, %c512] : memref<128x1024xbf16, #tpu.memory_space<vmem>>, vector<128x256xbf16>
    %cst_27 = arith.constant dense<0.000000e+00> : vector<16x256xf32>
    %54 = tpu.matmul %34, %53, %cst_27 {dimension_numbers = #tpu.dot_dimension_numbers<[1], [0], [0], [1], [0, 0, 1, 1], [], []>} : vector<16x128xbf16>, vector<128x256xbf16>, vector<16x256xf32> -> vector<16x256xf32>
    %c0_28 = arith.constant 0 : index
    %c512_29 = arith.constant 512 : index
    %55 = vector.load %arg8[%c0_28, %c512_29] : memref<1x1024xf32, #tpu.memory_space<vmem>>, vector<1x256xf32>
    %56 = vector.broadcast %55 : vector<1x256xf32> to vector<16x256xf32>
    %57 = arith.addf %54, %56 : vector<16x256xf32>
    %cst_30 = arith.constant 0.000000e+00 : f32
    %58 = vector.broadcast %cst_30 : f32 to vector<16x256xf32>
    %59 = arith.maximumf %57, %58 : vector<16x256xf32>
    %cst_31 = arith.constant dense<0xFF800000> : vector<256xf32>
    %60 = vector.multi_reduction <maximumf>, %59, %cst_31 [0] : vector<16x256xf32> to vector<256xf32>
    %61 = vector.shape_cast %60 : vector<256xf32> to vector<1x256xf32>
    %c0_32 = arith.constant 0 : index
    %c768 = arith.constant 768 : index
    %62 = vector.load %arg7[%c0_32, %c768] : memref<128x1024xbf16, #tpu.memory_space<vmem>>, vector<128x256xbf16>
    %cst_33 = arith.constant dense<0.000000e+00> : vector<16x256xf32>
    %63 = tpu.matmul %34, %62, %cst_33 {dimension_numbers = #tpu.dot_dimension_numbers<[1], [0], [0], [1], [0, 0, 1, 1], [], []>} : vector<16x128xbf16>, vector<128x256xbf16>, vector<16x256xf32> -> vector<16x256xf32>
    %c0_34 = arith.constant 0 : index
    %c768_35 = arith.constant 768 : index
    %64 = vector.load %arg8[%c0_34, %c768_35] : memref<1x1024xf32, #tpu.memory_space<vmem>>, vector<1x256xf32>
    %65 = vector.broadcast %64 : vector<1x256xf32> to vector<16x256xf32>
    %66 = arith.addf %63, %65 : vector<16x256xf32>
    %cst_36 = arith.constant 0.000000e+00 : f32
    %67 = vector.broadcast %cst_36 : f32 to vector<16x256xf32>
    %68 = arith.maximumf %66, %67 : vector<16x256xf32>
    %cst_37 = arith.constant dense<0xFF800000> : vector<256xf32>
    %69 = vector.multi_reduction <maximumf>, %68, %cst_37 [0] : vector<16x256xf32> to vector<256xf32>
    %70 = vector.shape_cast %69 : vector<256xf32> to vector<1x256xf32>
    %71 = tpu.concatenate %43, %52, %61, %70 in 1 : vector<1x256xf32>, vector<1x256xf32>, vector<1x256xf32>, vector<1x256xf32> -> vector<1x1024xf32>
    %72 = vector.shape_cast %71 : vector<1x1024xf32> to vector<1x1x1024xf32>
    %c0_i32 = arith.constant 0 : i32
    %73 = arith.cmpi eq, %arg1, %c0_i32 : i32
    %74 = arith.extui %73 : i1 to i32
    %c0_i32_38 = arith.constant 0 : i32
    %75 = arith.cmpi ne, %74, %c0_i32_38 : i32
    scf.if %75 {
      %c0_41 = arith.constant 0 : index
      %c0_42 = arith.constant 0 : index
      %c0_43 = arith.constant 0 : index
      %79 = vector.load %arg9[%c0_41, %c0_42, %c0_43] : memref<1x1x1024xf32, #tpu.memory_space<vmem>>, vector<1x1x1024xf32>
      tpu.vector_store %arg9[%c0_41, %c0_42, %c0_43], %72 {strides = array<i32>} : memref<1x1x1024xf32, #tpu.memory_space<vmem>>, vector<1x1x1024xf32>,
    } else {
    }
    %c0_i32_39 = arith.constant 0 : i32
    %76 = arith.cmpi sgt, %arg1, %c0_i32_39 : i32
    %77 = arith.extui %76 : i1 to i32
    %c0_i32_40 = arith.constant 0 : i32
    %78 = arith.cmpi ne, %77, %c0_i32_40 : i32
    scf.if %78 {
      %c0_41 = arith.constant 0 : index
      %c0_42 = arith.constant 0 : index
      %c0_43 = arith.constant 0 : index
      %79 = vector.load %arg9[%c0_41, %c0_42, %c0_43] : memref<1x1x1024xf32, #tpu.memory_space<vmem>>, vector<1x1x1024xf32>
      %80 = arith.maximumf %79, %72 : vector<1x1x1024xf32>
      %c0_44 = arith.constant 0 : index
      %c0_45 = arith.constant 0 : index
      %c0_46 = arith.constant 0 : index
      %81 = vector.load %arg9[%c0_44, %c0_45, %c0_46] : memref<1x1x1024xf32, #tpu.memory_space<vmem>>, vector<1x1x1024xf32>
      tpu.vector_store %arg9[%c0_44, %c0_45, %c0_46], %80 {strides = array<i32>} : memref<1x1x1024xf32, #tpu.memory_space<vmem>>, vector<1x1x1024xf32>,
    } else {
    }
    return
  }
  func.func @transform_0(%arg0: i32, %arg1: i32) -> (i32, i32, i32) {
    %c0_i32 = arith.constant 0 : i32
    %c0_i32_0 = arith.constant 0 : i32
    return %arg0, %arg1, %c0_i32 : i32, i32, i32
  }
  func.func @transform_1(%arg0: i32, %arg1: i32) -> (i32, i32, i32) {
    %c0_i32 = arith.constant 0 : i32
    %c0_i32_0 = arith.constant 0 : i32
    %c0_i32_1 = arith.constant 0 : i32
    %c0_i32_2 = arith.constant 0 : i32
    return %c0_i32, %c0_i32_0, %c0_i32_1 : i32, i32, i32
  }
  func.func @transform_2(%arg0: i32, %arg1: i32) -> (i32, i32) {
    %c0_i32 = arith.constant 0 : i32
    %c0_i32_0 = arith.constant 0 : i32
    %c0_i32_1 = arith.constant 0 : i32
    return %c0_i32, %c0_i32_0 : i32, i32
  }
  func.func @transform_3(%arg0: i32, %arg1: i32) -> (i32, i32) {
    %c0_i32 = arith.constant 0 : i32
    %c0_i32_0 = arith.constant 0 : i32
    %c0_i32_1 = arith.constant 0 : i32
    return %c0_i32, %c0_i32_0 : i32, i32
  }
  func.func @transform_4(%arg0: i32, %arg1: i32) -> (i32, i32) {
    %c0_i32 = arith.constant 0 : i32
    %c0_i32_0 = arith.constant 0 : i32
    %c0_i32_1 = arith.constant 0 : i32
    return %c0_i32, %c0_i32_0 : i32, i32
  }
  func.func @transform_5(%arg0: i32, %arg1: i32) -> (i32, i32) {
    %c0_i32 = arith.constant 0 : i32
    %c0_i32_0 = arith.constant 0 : i32
    %c0_i32_1 = arith.constant 0 : i32
    return %c0_i32, %c0_i32_0 : i32, i32
  }
  func.func @transform_6(%arg0: i32, %arg1: i32) -> (i32, i32) {
    %c0_i32 = arith.constant 0 : i32
    %c0_i32_0 = arith.constant 0 : i32
    %c0_i32_1 = arith.constant 0 : i32
    return %c0_i32, %c0_i32_0 : i32, i32
  }
  func.func @transform_7(%arg0: i32, %arg1: i32) -> (i32, i32, i32) {
    %c0_i32 = arith.constant 0 : i32
    %c0_i32_0 = arith.constant 0 : i32
    %c0_i32_1 = arith.constant 0 : i32
    return %arg0, %c0_i32, %c0_i32_0 : i32, i32, i32
  }
}

module attributes {stable_mosaic.version = 11 : i64} {
  func.func @_stn_head_kernel(%arg0: i32, %arg1: memref<4x1024xf32, #tpu.memory_space<vmem>>, %arg2: memref<1024x512xbf16, #tpu.memory_space<vmem>>, %arg3: memref<1x512xf32, #tpu.memory_space<vmem>>, %arg4: memref<512x256xbf16, #tpu.memory_space<vmem>>, %arg5: memref<1x256xf32, #tpu.memory_space<vmem>>, %arg6: memref<256x9xf32, #tpu.memory_space<vmem>>, %arg7: memref<1x9xf32, #tpu.memory_space<vmem>>, %arg8: memref<4x9xf32, #tpu.memory_space<vmem>>) attributes {dimension_semantics = [#tpu.dimension_semantics<arbitrary>], iteration_bounds = array<i64: 1>, scalar_prefetch = 0 : i64, scratch_operands = 0 : i64, tpu.core_type = #tpu.core_type<tc>, window_params = [{pipeline_mode = #tpu.pipeline_mode<synchronous>, transform_indices = @transform_0, window_bounds = array<i64: 4, 1024>}, {pipeline_mode = #tpu.pipeline_mode<synchronous>, transform_indices = @transform_1, window_bounds = array<i64: 1024, 512>}, {pipeline_mode = #tpu.pipeline_mode<synchronous>, transform_indices = @transform_2, window_bounds = array<i64: 1, 512>}, {pipeline_mode = #tpu.pipeline_mode<synchronous>, transform_indices = @transform_3, window_bounds = array<i64: 512, 256>}, {pipeline_mode = #tpu.pipeline_mode<synchronous>, transform_indices = @transform_4, window_bounds = array<i64: 1, 256>}, {pipeline_mode = #tpu.pipeline_mode<synchronous>, transform_indices = @transform_5, window_bounds = array<i64: 256, 9>}, {pipeline_mode = #tpu.pipeline_mode<synchronous>, transform_indices = @transform_6, window_bounds = array<i64: 1, 9>}, {pipeline_mode = #tpu.pipeline_mode<synchronous>, transform_indices = @transform_7, window_bounds = array<i64: 4, 9>}]} {
    %c0 = arith.constant 0 : index
    %c0_0 = arith.constant 0 : index
    %0 = vector.load %arg1[%c0, %c0_0] : memref<4x1024xf32, #tpu.memory_space<vmem>>, vector<4x1024xf32>
    %1 = arith.truncf %0 : vector<4x1024xf32> to vector<4x1024xbf16>
    %c0_1 = arith.constant 0 : index
    %c0_2 = arith.constant 0 : index
    %2 = vector.load %arg2[%c0_1, %c0_2] : memref<1024x512xbf16, #tpu.memory_space<vmem>>, vector<1024x512xbf16>
    %cst = arith.constant dense<0.000000e+00> : vector<4x512xf32>
    %3 = tpu.matmul %1, %2, %cst {dimension_numbers = #tpu.dot_dimension_numbers<[1], [0], [0], [1], [0, 0, 1, 1], [], []>} : vector<4x1024xbf16>, vector<1024x512xbf16>, vector<4x512xf32> -> vector<4x512xf32>
    %c0_3 = arith.constant 0 : index
    %c0_4 = arith.constant 0 : index
    %4 = vector.load %arg3[%c0_3, %c0_4] : memref<1x512xf32, #tpu.memory_space<vmem>>, vector<1x512xf32>
    %5 = vector.broadcast %4 : vector<1x512xf32> to vector<4x512xf32>
    %6 = arith.addf %3, %5 : vector<4x512xf32>
    %cst_5 = arith.constant 0.000000e+00 : f32
    %7 = vector.broadcast %cst_5 : f32 to vector<4x512xf32>
    %8 = arith.maximumf %6, %7 : vector<4x512xf32>
    %9 = arith.truncf %8 : vector<4x512xf32> to vector<4x512xbf16>
    %c0_6 = arith.constant 0 : index
    %c0_7 = arith.constant 0 : index
    %10 = vector.load %arg4[%c0_6, %c0_7] : memref<512x256xbf16, #tpu.memory_space<vmem>>, vector<512x256xbf16>
    %cst_8 = arith.constant dense<0.000000e+00> : vector<4x256xf32>
    %11 = tpu.matmul %9, %10, %cst_8 {dimension_numbers = #tpu.dot_dimension_numbers<[1], [0], [0], [1], [0, 0, 1, 1], [], []>} : vector<4x512xbf16>, vector<512x256xbf16>, vector<4x256xf32> -> vector<4x256xf32>
    %c0_9 = arith.constant 0 : index
    %c0_10 = arith.constant 0 : index
    %12 = vector.load %arg5[%c0_9, %c0_10] : memref<1x256xf32, #tpu.memory_space<vmem>>, vector<1x256xf32>
    %13 = vector.broadcast %12 : vector<1x256xf32> to vector<4x256xf32>
    %14 = arith.addf %11, %13 : vector<4x256xf32>
    %cst_11 = arith.constant 0.000000e+00 : f32
    %15 = vector.broadcast %cst_11 : f32 to vector<4x256xf32>
    %16 = arith.maximumf %14, %15 : vector<4x256xf32>
    %c0_12 = arith.constant 0 : index
    %c0_13 = arith.constant 0 : index
    %17 = vector.load %arg6[%c0_12, %c0_13] : memref<256x9xf32, #tpu.memory_space<vmem>>, vector<256x9xf32>
    %cst_14 = arith.constant dense<0.000000e+00> : vector<4x9xf32>
    %18 = tpu.matmul %16, %17, %cst_14 {dimension_numbers = #tpu.dot_dimension_numbers<[1], [0], [0], [1], [0, 0, 1, 1], [], []>} : vector<4x256xf32>, vector<256x9xf32>, vector<4x9xf32> -> vector<4x9xf32>
    %c0_15 = arith.constant 0 : index
    %c0_16 = arith.constant 0 : index
    %19 = vector.load %arg7[%c0_15, %c0_16] : memref<1x9xf32, #tpu.memory_space<vmem>>, vector<1x9xf32>
    %20 = vector.broadcast %19 : vector<1x9xf32> to vector<4x9xf32>
    %21 = arith.addf %18, %20 : vector<4x9xf32>
    %c0_17 = arith.constant 0 : index
    %c0_18 = arith.constant 0 : index
    %22 = vector.load %arg8[%c0_17, %c0_18] : memref<4x9xf32, #tpu.memory_space<vmem>>, vector<4x9xf32>
    tpu.vector_store %arg8[%c0_17, %c0_18], %21 {strides = array<i32>} : memref<4x9xf32, #tpu.memory_space<vmem>>, vector<4x9xf32>,
    return
  }
  func.func @transform_0(%arg0: i32) -> (i32, i32) {
    %c0_i32 = arith.constant 0 : i32
    %c0_i32_0 = arith.constant 0 : i32
    %c0_i32_1 = arith.constant 0 : i32
    return %c0_i32, %c0_i32_0 : i32, i32
  }
  func.func @transform_1(%arg0: i32) -> (i32, i32) {
    %c0_i32 = arith.constant 0 : i32
    %c0_i32_0 = arith.constant 0 : i32
    %c0_i32_1 = arith.constant 0 : i32
    return %c0_i32, %c0_i32_0 : i32, i32
  }
  func.func @transform_2(%arg0: i32) -> (i32, i32) {
    %c0_i32 = arith.constant 0 : i32
    %c0_i32_0 = arith.constant 0 : i32
    %c0_i32_1 = arith.constant 0 : i32
    return %c0_i32, %c0_i32_0 : i32, i32
  }
  func.func @transform_3(%arg0: i32) -> (i32, i32) {
    %c0_i32 = arith.constant 0 : i32
    %c0_i32_0 = arith.constant 0 : i32
    %c0_i32_1 = arith.constant 0 : i32
    return %c0_i32, %c0_i32_0 : i32, i32
  }
  func.func @transform_4(%arg0: i32) -> (i32, i32) {
    %c0_i32 = arith.constant 0 : i32
    %c0_i32_0 = arith.constant 0 : i32
    %c0_i32_1 = arith.constant 0 : i32
    return %c0_i32, %c0_i32_0 : i32, i32
  }
  func.func @transform_5(%arg0: i32) -> (i32, i32) {
    %c0_i32 = arith.constant 0 : i32
    %c0_i32_0 = arith.constant 0 : i32
    %c0_i32_1 = arith.constant 0 : i32
    return %c0_i32, %c0_i32_0 : i32, i32
  }
  func.func @transform_6(%arg0: i32) -> (i32, i32) {
    %c0_i32 = arith.constant 0 : i32
    %c0_i32_0 = arith.constant 0 : i32
    %c0_i32_1 = arith.constant 0 : i32
    return %c0_i32, %c0_i32_0 : i32, i32
  }
  func.func @transform_7(%arg0: i32) -> (i32, i32) {
    %c0_i32 = arith.constant 0 : i32
    %c0_i32_0 = arith.constant 0 : i32
    %c0_i32_1 = arith.constant 0 : i32
    return %c0_i32, %c0_i32_0 : i32, i32
  }
}

module attributes {stable_mosaic.version = 11 : i64} {
  func.func @_point_mlp_max_kernel(%arg0: i32, %arg1: i32, %arg2: memref<1x16x3xf32, #tpu.memory_space<vmem>>, %arg3: memref<1x3x64xf32, #tpu.memory_space<vmem>>, %arg4: memref<1x64xf32, #tpu.memory_space<vmem>>, %arg5: memref<64x128xbf16, #tpu.memory_space<vmem>>, %arg6: memref<1x128xf32, #tpu.memory_space<vmem>>, %arg7: memref<128x1024xbf16, #tpu.memory_space<vmem>>, %arg8: memref<1x1024xf32, #tpu.memory_space<vmem>>, %arg9: memref<1x1x1024xf32, #tpu.memory_space<vmem>>) attributes {dimension_semantics = [#tpu.dimension_semantics<parallel>, #tpu.dimension_semantics<arbitrary>], iteration_bounds = array<i64: 4, 1>, scalar_prefetch = 0 : i64, scratch_operands = 0 : i64, tpu.core_type = #tpu.core_type<tc>, window_params = [{transform_indices = @transform_0, window_bounds = array<i64: 1, 16, 3>}, {transform_indices = @transform_1, window_bounds = array<i64: 1, 3, 64>}, {pipeline_mode = #tpu.pipeline_mode<synchronous>, transform_indices = @transform_2, window_bounds = array<i64: 1, 64>}, {pipeline_mode = #tpu.pipeline_mode<synchronous>, transform_indices = @transform_3, window_bounds = array<i64: 64, 128>}, {pipeline_mode = #tpu.pipeline_mode<synchronous>, transform_indices = @transform_4, window_bounds = array<i64: 1, 128>}, {pipeline_mode = #tpu.pipeline_mode<synchronous>, transform_indices = @transform_5, window_bounds = array<i64: 128, 1024>}, {pipeline_mode = #tpu.pipeline_mode<synchronous>, transform_indices = @transform_6, window_bounds = array<i64: 1, 1024>}, {transform_indices = @transform_7, window_bounds = array<i64: 1, 1, 1024>}]} {
    %c0 = arith.constant 0 : index
    %c0_0 = arith.constant 0 : index
    %c0_1 = arith.constant 0 : index
    %0 = vector.load %arg2[%c0, %c0_0, %c0_1] : memref<1x16x3xf32, #tpu.memory_space<vmem>>, vector<1x16x3xf32>
    %1 = vector.shape_cast %0 : vector<1x16x3xf32> to vector<16x3xf32>
    %c0_2 = arith.constant 0 : index
    %c0_3 = arith.constant 0 : index
    %c0_4 = arith.constant 0 : index
    %2 = vector.load %arg3[%c0_2, %c0_3, %c0_4] : memref<1x3x64xf32, #tpu.memory_space<vmem>>, vector<1x3x64xf32>
    %3 = vector.shape_cast %2 : vector<1x3x64xf32> to vector<3x64xf32>
    %4 = vector.extract_strided_slice %1 {offsets = [0, 0], sizes = [16, 1], strides = [1, 1]} : vector<16x3xf32> to vector<16x1xf32>
    %5 = vector.extract_strided_slice %3 {offsets = [0, 0], sizes = [1, 64], strides = [1, 1]} : vector<3x64xf32> to vector<1x64xf32>
    %6 = vector.broadcast %4 : vector<16x1xf32> to vector<16x64xf32>
    %7 = vector.broadcast %5 : vector<1x64xf32> to vector<16x64xf32>
    %8 = arith.mulf %6, %7 : vector<16x64xf32>
    %9 = vector.extract_strided_slice %1 {offsets = [0, 1], sizes = [16, 1], strides = [1, 1]} : vector<16x3xf32> to vector<16x1xf32>
    %10 = vector.extract_strided_slice %3 {offsets = [1, 0], sizes = [1, 64], strides = [1, 1]} : vector<3x64xf32> to vector<1x64xf32>
    %11 = vector.broadcast %9 : vector<16x1xf32> to vector<16x64xf32>
    %12 = vector.broadcast %10 : vector<1x64xf32> to vector<16x64xf32>
    %13 = arith.mulf %11, %12 : vector<16x64xf32>
    %14 = arith.addf %8, %13 : vector<16x64xf32>
    %15 = vector.extract_strided_slice %1 {offsets = [0, 2], sizes = [16, 1], strides = [1, 1]} : vector<16x3xf32> to vector<16x1xf32>
    %16 = vector.extract_strided_slice %3 {offsets = [2, 0], sizes = [1, 64], strides = [1, 1]} : vector<3x64xf32> to vector<1x64xf32>
    %17 = vector.broadcast %15 : vector<16x1xf32> to vector<16x64xf32>
    %18 = vector.broadcast %16 : vector<1x64xf32> to vector<16x64xf32>
    %19 = arith.mulf %17, %18 : vector<16x64xf32>
    %20 = arith.addf %14, %19 : vector<16x64xf32>
    %c0_5 = arith.constant 0 : index
    %c0_6 = arith.constant 0 : index
    %21 = vector.load %arg4[%c0_5, %c0_6] : memref<1x64xf32, #tpu.memory_space<vmem>>, vector<1x64xf32>
    %22 = vector.broadcast %21 : vector<1x64xf32> to vector<16x64xf32>
    %23 = arith.addf %20, %22 : vector<16x64xf32>
    %cst = arith.constant 0.000000e+00 : f32
    %24 = vector.broadcast %cst : f32 to vector<16x64xf32>
    %25 = arith.maximumf %23, %24 : vector<16x64xf32>
    %26 = arith.truncf %25 : vector<16x64xf32> to vector<16x64xbf16>
    %c0_7 = arith.constant 0 : index
    %c0_8 = arith.constant 0 : index
    %27 = vector.load %arg5[%c0_7, %c0_8] : memref<64x128xbf16, #tpu.memory_space<vmem>>, vector<64x128xbf16>
    %cst_9 = arith.constant dense<0.000000e+00> : vector<16x128xf32>
    %28 = tpu.matmul %26, %27, %cst_9 {dimension_numbers = #tpu.dot_dimension_numbers<[1], [0], [0], [1], [0, 0, 1, 1], [], []>} : vector<16x64xbf16>, vector<64x128xbf16>, vector<16x128xf32> -> vector<16x128xf32>
    %c0_10 = arith.constant 0 : index
    %c0_11 = arith.constant 0 : index
    %29 = vector.load %arg6[%c0_10, %c0_11] : memref<1x128xf32, #tpu.memory_space<vmem>>, vector<1x128xf32>
    %30 = vector.broadcast %29 : vector<1x128xf32> to vector<16x128xf32>
    %31 = arith.addf %28, %30 : vector<16x128xf32>
    %cst_12 = arith.constant 0.000000e+00 : f32
    %32 = vector.broadcast %cst_12 : f32 to vector<16x128xf32>
    %33 = arith.maximumf %31, %32 : vector<16x128xf32>
    %34 = arith.truncf %33 : vector<16x128xf32> to vector<16x128xbf16>
    %c0_13 = arith.constant 0 : index
    %c0_14 = arith.constant 0 : index
    %35 = vector.load %arg7[%c0_13, %c0_14] : memref<128x1024xbf16, #tpu.memory_space<vmem>>, vector<128x256xbf16>
    %cst_15 = arith.constant dense<0.000000e+00> : vector<16x256xf32>
    %36 = tpu.matmul %34, %35, %cst_15 {dimension_numbers = #tpu.dot_dimension_numbers<[1], [0], [0], [1], [0, 0, 1, 1], [], []>} : vector<16x128xbf16>, vector<128x256xbf16>, vector<16x256xf32> -> vector<16x256xf32>
    %c0_16 = arith.constant 0 : index
    %c0_17 = arith.constant 0 : index
    %37 = vector.load %arg8[%c0_16, %c0_17] : memref<1x1024xf32, #tpu.memory_space<vmem>>, vector<1x256xf32>
    %38 = vector.broadcast %37 : vector<1x256xf32> to vector<16x256xf32>
    %39 = arith.addf %36, %38 : vector<16x256xf32>
    %cst_18 = arith.constant dense<0xFF800000> : vector<256xf32>
    %40 = vector.multi_reduction <maximumf>, %39, %cst_18 [0] : vector<16x256xf32> to vector<256xf32>
    %41 = vector.shape_cast %40 : vector<256xf32> to vector<1x256xf32>
    %c0_19 = arith.constant 0 : index
    %c256 = arith.constant 256 : index
    %42 = vector.load %arg7[%c0_19, %c256] : memref<128x1024xbf16, #tpu.memory_space<vmem>>, vector<128x256xbf16>
    %cst_20 = arith.constant dense<0.000000e+00> : vector<16x256xf32>
    %43 = tpu.matmul %34, %42, %cst_20 {dimension_numbers = #tpu.dot_dimension_numbers<[1], [0], [0], [1], [0, 0, 1, 1], [], []>} : vector<16x128xbf16>, vector<128x256xbf16>, vector<16x256xf32> -> vector<16x256xf32>
    %c0_21 = arith.constant 0 : index
    %c256_22 = arith.constant 256 : index
    %44 = vector.load %arg8[%c0_21, %c256_22] : memref<1x1024xf32, #tpu.memory_space<vmem>>, vector<1x256xf32>
    %45 = vector.broadcast %44 : vector<1x256xf32> to vector<16x256xf32>
    %46 = arith.addf %43, %45 : vector<16x256xf32>
    %cst_23 = arith.constant dense<0xFF800000> : vector<256xf32>
    %47 = vector.multi_reduction <maximumf>, %46, %cst_23 [0] : vector<16x256xf32> to vector<256xf32>
    %48 = vector.shape_cast %47 : vector<256xf32> to vector<1x256xf32>
    %c0_24 = arith.constant 0 : index
    %c512 = arith.constant 512 : index
    %49 = vector.load %arg7[%c0_24, %c512] : memref<128x1024xbf16, #tpu.memory_space<vmem>>, vector<128x256xbf16>
    %cst_25 = arith.constant dense<0.000000e+00> : vector<16x256xf32>
    %50 = tpu.matmul %34, %49, %cst_25 {dimension_numbers = #tpu.dot_dimension_numbers<[1], [0], [0], [1], [0, 0, 1, 1], [], []>} : vector<16x128xbf16>, vector<128x256xbf16>, vector<16x256xf32> -> vector<16x256xf32>
    %c0_26 = arith.constant 0 : index
    %c512_27 = arith.constant 512 : index
    %51 = vector.load %arg8[%c0_26, %c512_27] : memref<1x1024xf32, #tpu.memory_space<vmem>>, vector<1x256xf32>
    %52 = vector.broadcast %51 : vector<1x256xf32> to vector<16x256xf32>
    %53 = arith.addf %50, %52 : vector<16x256xf32>
    %cst_28 = arith.constant dense<0xFF800000> : vector<256xf32>
    %54 = vector.multi_reduction <maximumf>, %53, %cst_28 [0] : vector<16x256xf32> to vector<256xf32>
    %55 = vector.shape_cast %54 : vector<256xf32> to vector<1x256xf32>
    %c0_29 = arith.constant 0 : index
    %c768 = arith.constant 768 : index
    %56 = vector.load %arg7[%c0_29, %c768] : memref<128x1024xbf16, #tpu.memory_space<vmem>>, vector<128x256xbf16>
    %cst_30 = arith.constant dense<0.000000e+00> : vector<16x256xf32>
    %57 = tpu.matmul %34, %56, %cst_30 {dimension_numbers = #tpu.dot_dimension_numbers<[1], [0], [0], [1], [0, 0, 1, 1], [], []>} : vector<16x128xbf16>, vector<128x256xbf16>, vector<16x256xf32> -> vector<16x256xf32>
    %c0_31 = arith.constant 0 : index
    %c768_32 = arith.constant 768 : index
    %58 = vector.load %arg8[%c0_31, %c768_32] : memref<1x1024xf32, #tpu.memory_space<vmem>>, vector<1x256xf32>
    %59 = vector.broadcast %58 : vector<1x256xf32> to vector<16x256xf32>
    %60 = arith.addf %57, %59 : vector<16x256xf32>
    %cst_33 = arith.constant dense<0xFF800000> : vector<256xf32>
    %61 = vector.multi_reduction <maximumf>, %60, %cst_33 [0] : vector<16x256xf32> to vector<256xf32>
    %62 = vector.shape_cast %61 : vector<256xf32> to vector<1x256xf32>
    %63 = tpu.concatenate %41, %48, %55, %62 in 1 : vector<1x256xf32>, vector<1x256xf32>, vector<1x256xf32>, vector<1x256xf32> -> vector<1x1024xf32>
    %64 = vector.shape_cast %63 : vector<1x1024xf32> to vector<1x1x1024xf32>
    %c0_i32 = arith.constant 0 : i32
    %65 = arith.cmpi eq, %arg1, %c0_i32 : i32
    %66 = arith.extui %65 : i1 to i32
    %c0_i32_34 = arith.constant 0 : i32
    %67 = arith.cmpi ne, %66, %c0_i32_34 : i32
    scf.if %67 {
      %c0_37 = arith.constant 0 : index
      %c0_38 = arith.constant 0 : index
      %c0_39 = arith.constant 0 : index
      %71 = vector.load %arg9[%c0_37, %c0_38, %c0_39] : memref<1x1x1024xf32, #tpu.memory_space<vmem>>, vector<1x1x1024xf32>
      tpu.vector_store %arg9[%c0_37, %c0_38, %c0_39], %64 {strides = array<i32>} : memref<1x1x1024xf32, #tpu.memory_space<vmem>>, vector<1x1x1024xf32>,
    } else {
    }
    %c0_i32_35 = arith.constant 0 : i32
    %68 = arith.cmpi sgt, %arg1, %c0_i32_35 : i32
    %69 = arith.extui %68 : i1 to i32
    %c0_i32_36 = arith.constant 0 : i32
    %70 = arith.cmpi ne, %69, %c0_i32_36 : i32
    scf.if %70 {
      %c0_37 = arith.constant 0 : index
      %c0_38 = arith.constant 0 : index
      %c0_39 = arith.constant 0 : index
      %71 = vector.load %arg9[%c0_37, %c0_38, %c0_39] : memref<1x1x1024xf32, #tpu.memory_space<vmem>>, vector<1x1x1024xf32>
      %72 = arith.maximumf %71, %64 : vector<1x1x1024xf32>
      %c0_40 = arith.constant 0 : index
      %c0_41 = arith.constant 0 : index
      %c0_42 = arith.constant 0 : index
      %73 = vector.load %arg9[%c0_40, %c0_41, %c0_42] : memref<1x1x1024xf32, #tpu.memory_space<vmem>>, vector<1x1x1024xf32>
      tpu.vector_store %arg9[%c0_40, %c0_41, %c0_42], %72 {strides = array<i32>} : memref<1x1x1024xf32, #tpu.memory_space<vmem>>, vector<1x1x1024xf32>,
    } else {
    }
    return
  }
  func.func @transform_0(%arg0: i32, %arg1: i32) -> (i32, i32, i32) {
    %c0_i32 = arith.constant 0 : i32
    %c0_i32_0 = arith.constant 0 : i32
    return %arg0, %arg1, %c0_i32 : i32, i32, i32
  }
  func.func @transform_1(%arg0: i32, %arg1: i32) -> (i32, i32, i32) {
    %c0_i32 = arith.constant 0 : i32
    %c0_i32_0 = arith.constant 0 : i32
    %c0_i32_1 = arith.constant 0 : i32
    return %arg0, %c0_i32, %c0_i32_0 : i32, i32, i32
  }
  func.func @transform_2(%arg0: i32, %arg1: i32) -> (i32, i32) {
    %c0_i32 = arith.constant 0 : i32
    %c0_i32_0 = arith.constant 0 : i32
    %c0_i32_1 = arith.constant 0 : i32
    return %c0_i32, %c0_i32_0 : i32, i32
  }
  func.func @transform_3(%arg0: i32, %arg1: i32) -> (i32, i32) {
    %c0_i32 = arith.constant 0 : i32
    %c0_i32_0 = arith.constant 0 : i32
    %c0_i32_1 = arith.constant 0 : i32
    return %c0_i32, %c0_i32_0 : i32, i32
  }
  func.func @transform_4(%arg0: i32, %arg1: i32) -> (i32, i32) {
    %c0_i32 = arith.constant 0 : i32
    %c0_i32_0 = arith.constant 0 : i32
    %c0_i32_1 = arith.constant 0 : i32
    return %c0_i32, %c0_i32_0 : i32, i32
  }
  func.func @transform_5(%arg0: i32, %arg1: i32) -> (i32, i32) {
    %c0_i32 = arith.constant 0 : i32
    %c0_i32_0 = arith.constant 0 : i32
    %c0_i32_1 = arith.constant 0 : i32
    return %c0_i32, %c0_i32_0 : i32, i32
  }
  func.func @transform_6(%arg0: i32, %arg1: i32) -> (i32, i32) {
    %c0_i32 = arith.constant 0 : i32
    %c0_i32_0 = arith.constant 0 : i32
    %c0_i32_1 = arith.constant 0 : i32
    return %c0_i32, %c0_i32_0 : i32, i32
  }
  func.func @transform_7(%arg0: i32, %arg1: i32) -> (i32, i32, i32) {
    %c0_i32 = arith.constant 0 : i32
    %c0_i32_0 = arith.constant 0 : i32
    %c0_i32_1 = arith.constant 0 : i32
    return %arg0, %c0_i32, %c0_i32_0 : i32, i32, i32
  }
}

module attributes {stable_mosaic.version = 11 : i64} {
  func.func @_siamese_head_kernel(%arg0: i32, %arg1: memref<2x1024xf32, #tpu.memory_space<vmem>>, %arg2: memref<2x1024xf32, #tpu.memory_space<vmem>>, %arg3: memref<1024x512xbf16, #tpu.memory_space<vmem>>, %arg4: memref<1x512xf32, #tpu.memory_space<vmem>>, %arg5: memref<512x256xbf16, #tpu.memory_space<vmem>>, %arg6: memref<1x256xf32, #tpu.memory_space<vmem>>, %arg7: memref<256x2xf32, #tpu.memory_space<vmem>>, %arg8: memref<1x2xf32, #tpu.memory_space<vmem>>, %arg9: memref<2x2xf32, #tpu.memory_space<vmem>>) attributes {dimension_semantics = [#tpu.dimension_semantics<arbitrary>], iteration_bounds = array<i64: 1>, scalar_prefetch = 0 : i64, scratch_operands = 0 : i64, tpu.core_type = #tpu.core_type<tc>, window_params = [{pipeline_mode = #tpu.pipeline_mode<synchronous>, transform_indices = @transform_0, window_bounds = array<i64: 2, 1024>}, {pipeline_mode = #tpu.pipeline_mode<synchronous>, transform_indices = @transform_1, window_bounds = array<i64: 2, 1024>}, {pipeline_mode = #tpu.pipeline_mode<synchronous>, transform_indices = @transform_2, window_bounds = array<i64: 1024, 512>}, {pipeline_mode = #tpu.pipeline_mode<synchronous>, transform_indices = @transform_3, window_bounds = array<i64: 1, 512>}, {pipeline_mode = #tpu.pipeline_mode<synchronous>, transform_indices = @transform_4, window_bounds = array<i64: 512, 256>}, {pipeline_mode = #tpu.pipeline_mode<synchronous>, transform_indices = @transform_5, window_bounds = array<i64: 1, 256>}, {pipeline_mode = #tpu.pipeline_mode<synchronous>, transform_indices = @transform_6, window_bounds = array<i64: 256, 2>}, {pipeline_mode = #tpu.pipeline_mode<synchronous>, transform_indices = @transform_7, window_bounds = array<i64: 1, 2>}, {pipeline_mode = #tpu.pipeline_mode<synchronous>, transform_indices = @transform_8, window_bounds = array<i64: 2, 2>}]} {
    %c0 = arith.constant 0 : index
    %c0_0 = arith.constant 0 : index
    %0 = vector.load %arg1[%c0, %c0_0] : memref<2x1024xf32, #tpu.memory_space<vmem>>, vector<2x1024xf32>
    %1 = arith.truncf %0 : vector<2x1024xf32> to vector<2x1024xbf16>
    %c0_1 = arith.constant 0 : index
    %c0_2 = arith.constant 0 : index
    %2 = vector.load %arg3[%c0_1, %c0_2] : memref<1024x512xbf16, #tpu.memory_space<vmem>>, vector<1024x512xbf16>
    %cst = arith.constant dense<0.000000e+00> : vector<2x512xf32>
    %3 = tpu.matmul %1, %2, %cst {dimension_numbers = #tpu.dot_dimension_numbers<[1], [0], [0], [1], [0, 0, 1, 1], [], []>} : vector<2x1024xbf16>, vector<1024x512xbf16>, vector<2x512xf32> -> vector<2x512xf32>
    %c0_3 = arith.constant 0 : index
    %c0_4 = arith.constant 0 : index
    %4 = vector.load %arg4[%c0_3, %c0_4] : memref<1x512xf32, #tpu.memory_space<vmem>>, vector<1x512xf32>
    %5 = vector.broadcast %4 : vector<1x512xf32> to vector<2x512xf32>
    %6 = arith.addf %3, %5 : vector<2x512xf32>
    %cst_5 = arith.constant 0.000000e+00 : f32
    %7 = vector.broadcast %cst_5 : f32 to vector<2x512xf32>
    %8 = arith.maximumf %6, %7 : vector<2x512xf32>
    %9 = arith.truncf %8 : vector<2x512xf32> to vector<2x512xbf16>
    %c0_6 = arith.constant 0 : index
    %c0_7 = arith.constant 0 : index
    %10 = vector.load %arg5[%c0_6, %c0_7] : memref<512x256xbf16, #tpu.memory_space<vmem>>, vector<512x256xbf16>
    %cst_8 = arith.constant dense<0.000000e+00> : vector<2x256xf32>
    %11 = tpu.matmul %9, %10, %cst_8 {dimension_numbers = #tpu.dot_dimension_numbers<[1], [0], [0], [1], [0, 0, 1, 1], [], []>} : vector<2x512xbf16>, vector<512x256xbf16>, vector<2x256xf32> -> vector<2x256xf32>
    %c0_9 = arith.constant 0 : index
    %c0_10 = arith.constant 0 : index
    %12 = vector.load %arg6[%c0_9, %c0_10] : memref<1x256xf32, #tpu.memory_space<vmem>>, vector<1x256xf32>
    %13 = vector.broadcast %12 : vector<1x256xf32> to vector<2x256xf32>
    %14 = arith.addf %11, %13 : vector<2x256xf32>
    %cst_11 = arith.constant 0.000000e+00 : f32
    %15 = vector.broadcast %cst_11 : f32 to vector<2x256xf32>
    %16 = arith.maximumf %14, %15 : vector<2x256xf32>
    %c0_12 = arith.constant 0 : index
    %c0_13 = arith.constant 0 : index
    %17 = vector.load %arg2[%c0_12, %c0_13] : memref<2x1024xf32, #tpu.memory_space<vmem>>, vector<2x1024xf32>
    %18 = arith.truncf %17 : vector<2x1024xf32> to vector<2x1024xbf16>
    %c0_14 = arith.constant 0 : index
    %c0_15 = arith.constant 0 : index
    %19 = vector.load %arg3[%c0_14, %c0_15] : memref<1024x512xbf16, #tpu.memory_space<vmem>>, vector<1024x512xbf16>
    %cst_16 = arith.constant dense<0.000000e+00> : vector<2x512xf32>
    %20 = tpu.matmul %18, %19, %cst_16 {dimension_numbers = #tpu.dot_dimension_numbers<[1], [0], [0], [1], [0, 0, 1, 1], [], []>} : vector<2x1024xbf16>, vector<1024x512xbf16>, vector<2x512xf32> -> vector<2x512xf32>
    %c0_17 = arith.constant 0 : index
    %c0_18 = arith.constant 0 : index
    %21 = vector.load %arg4[%c0_17, %c0_18] : memref<1x512xf32, #tpu.memory_space<vmem>>, vector<1x512xf32>
    %22 = vector.broadcast %21 : vector<1x512xf32> to vector<2x512xf32>
    %23 = arith.addf %20, %22 : vector<2x512xf32>
    %cst_19 = arith.constant 0.000000e+00 : f32
    %24 = vector.broadcast %cst_19 : f32 to vector<2x512xf32>
    %25 = arith.maximumf %23, %24 : vector<2x512xf32>
    %26 = arith.truncf %25 : vector<2x512xf32> to vector<2x512xbf16>
    %c0_20 = arith.constant 0 : index
    %c0_21 = arith.constant 0 : index
    %27 = vector.load %arg5[%c0_20, %c0_21] : memref<512x256xbf16, #tpu.memory_space<vmem>>, vector<512x256xbf16>
    %cst_22 = arith.constant dense<0.000000e+00> : vector<2x256xf32>
    %28 = tpu.matmul %26, %27, %cst_22 {dimension_numbers = #tpu.dot_dimension_numbers<[1], [0], [0], [1], [0, 0, 1, 1], [], []>} : vector<2x512xbf16>, vector<512x256xbf16>, vector<2x256xf32> -> vector<2x256xf32>
    %c0_23 = arith.constant 0 : index
    %c0_24 = arith.constant 0 : index
    %29 = vector.load %arg6[%c0_23, %c0_24] : memref<1x256xf32, #tpu.memory_space<vmem>>, vector<1x256xf32>
    %30 = vector.broadcast %29 : vector<1x256xf32> to vector<2x256xf32>
    %31 = arith.addf %28, %30 : vector<2x256xf32>
    %cst_25 = arith.constant 0.000000e+00 : f32
    %32 = vector.broadcast %cst_25 : f32 to vector<2x256xf32>
    %33 = arith.maximumf %31, %32 : vector<2x256xf32>
    %34 = arith.subf %16, %33 : vector<2x256xf32>
    %35 = math.absf %34 : vector<2x256xf32>
    %c0_26 = arith.constant 0 : index
    %c0_27 = arith.constant 0 : index
    %36 = vector.load %arg7[%c0_26, %c0_27] : memref<256x2xf32, #tpu.memory_space<vmem>>, vector<256x2xf32>
    %cst_28 = arith.constant dense<0.000000e+00> : vector<2x2xf32>
    %37 = tpu.matmul %35, %36, %cst_28 {dimension_numbers = #tpu.dot_dimension_numbers<[1], [0], [0], [1], [0, 0, 1, 1], [], []>} : vector<2x256xf32>, vector<256x2xf32>, vector<2x2xf32> -> vector<2x2xf32>
    %c0_29 = arith.constant 0 : index
    %c0_30 = arith.constant 0 : index
    %38 = vector.load %arg8[%c0_29, %c0_30] : memref<1x2xf32, #tpu.memory_space<vmem>>, vector<1x2xf32>
    %39 = vector.broadcast %38 : vector<1x2xf32> to vector<2x2xf32>
    %40 = arith.addf %37, %39 : vector<2x2xf32>
    %41 = arith.negf %40 : vector<2x2xf32>
    %42 = math.exp %41 : vector<2x2xf32>
    %cst_31 = arith.constant 1.000000e+00 : f32
    %43 = vector.broadcast %cst_31 : f32 to vector<2x2xf32>
    %44 = arith.addf %43, %42 : vector<2x2xf32>
    %45 = arith.divf %43, %44 : vector<2x2xf32>
    %c0_32 = arith.constant 0 : index
    %c0_33 = arith.constant 0 : index
    %46 = vector.load %arg9[%c0_32, %c0_33] : memref<2x2xf32, #tpu.memory_space<vmem>>, vector<2x2xf32>
    tpu.vector_store %arg9[%c0_32, %c0_33], %45 {strides = array<i32>} : memref<2x2xf32, #tpu.memory_space<vmem>>, vector<2x2xf32>,
    return
  }
  func.func @transform_0(%arg0: i32) -> (i32, i32) {
    %c0_i32 = arith.constant 0 : i32
    %c0_i32_0 = arith.constant 0 : i32
    %c0_i32_1 = arith.constant 0 : i32
    return %c0_i32, %c0_i32_0 : i32, i32
  }
  func.func @transform_1(%arg0: i32) -> (i32, i32) {
    %c0_i32 = arith.constant 0 : i32
    %c0_i32_0 = arith.constant 0 : i32
    %c0_i32_1 = arith.constant 0 : i32
    return %c0_i32, %c0_i32_0 : i32, i32
  }
  func.func @transform_2(%arg0: i32) -> (i32, i32) {
    %c0_i32 = arith.constant 0 : i32
    %c0_i32_0 = arith.constant 0 : i32
    %c0_i32_1 = arith.constant 0 : i32
    return %c0_i32, %c0_i32_0 : i32, i32
  }
  func.func @transform_3(%arg0: i32) -> (i32, i32) {
    %c0_i32 = arith.constant 0 : i32
    %c0_i32_0 = arith.constant 0 : i32
    %c0_i32_1 = arith.constant 0 : i32
    return %c0_i32, %c0_i32_0 : i32, i32
  }
  func.func @transform_4(%arg0: i32) -> (i32, i32) {
    %c0_i32 = arith.constant 0 : i32
    %c0_i32_0 = arith.constant 0 : i32
    %c0_i32_1 = arith.constant 0 : i32
    return %c0_i32, %c0_i32_0 : i32, i32
  }
  func.func @transform_5(%arg0: i32) -> (i32, i32) {
    %c0_i32 = arith.constant 0 : i32
    %c0_i32_0 = arith.constant 0 : i32
    %c0_i32_1 = arith.constant 0 : i32
    return %c0_i32, %c0_i32_0 : i32, i32
  }
  func.func @transform_6(%arg0: i32) -> (i32, i32) {
    %c0_i32 = arith.constant 0 : i32
    %c0_i32_0 = arith.constant 0 : i32
    %c0_i32_1 = arith.constant 0 : i32
    return %c0_i32, %c0_i32_0 : i32, i32
  }
  func.func @transform_7(%arg0: i32) -> (i32, i32) {
    %c0_i32 = arith.constant 0 : i32
    %c0_i32_0 = arith.constant 0 : i32
    %c0_i32_1 = arith.constant 0 : i32
    return %c0_i32, %c0_i32_0 : i32, i32
  }
  func.func @transform_8(%arg0: i32) -> (i32, i32) {
    %c0_i32 = arith.constant 0 : i32
    %c0_i32_0 = arith.constant 0 : i32
    %c0_i32_1 = arith.constant 0 : i32
    return %c0_i32, %c0_i32_0 : i32, i32
  }
}

</mosaic_0001>

<llo_original>
// kernel: pointnet_siamese_forward.4
$region0: #{pointnet_siamese_forward.4}
  #allocation0 [shape = 'u32[]', space=smem, size = 0x4, offset = 0x4, fixed_abs, tag = 'smem constant byte address 0x4 - core index']
  #allocation1 [shape = 'u32[144,128]{1,0:T(1,128)}', space=vmem, size = 0x12000, scoped, tag = 'internal scratch']
  %s0 = inlined_call_operand.vmem [shape: f32[4,16,3], index: 0, kind: input, shape index: {}]
  %s1 = inlined_call_operand.vmem [shape: f32[1,3,64], index: 1, kind: input, shape index: {}]
  %s2 = inlined_call_operand.vmem [shape: f32[1,64], index: 2, kind: input, shape index: {}]
  %s3 = inlined_call_operand.vmem [shape: bf16[64,128], index: 3, kind: input, shape index: {}]
  %s4 = inlined_call_operand.vmem [shape: f32[1,128], index: 4, kind: input, shape index: {}]
  %s5 = inlined_call_operand.hbm [shape: bf16[128,1024], index: 5, kind: input, shape index: {}]
  %s6 = inlined_call_operand.vmem [shape: f32[1,1024], index: 6, kind: input, shape index: {}]
  %s7 = inlined_call_operand.vmem [shape: f32[4,1,1024], index: 7, kind: output, shape index: {}]
  %s8 = sld [smem:[#allocation0]]
  $region73: #{pointnet_siamese_forward.4} parent=0
    _
  %s10 = ssub.s32 1, %s8
  %s11 = scalar_select 0, %s10, %s8
  $region1: #{pointnet_siamese_forward.4} parent=0
    #allocation2 [shape = 'u8[262144]{0}', space=vmem, size = 0x40000, scoped, tag = 'input window, operand 5, single buffered']
    #allocation3 [shape = 's32[2]{0}', space=sflag, size = 0x8, scoped, tag = 'scoped memory for pointnet_siamese_forward.4']
    %12 = vsyncpa [#allocation3], 0
    loop: start=0, step=1, limit=6
    $region2: #{pointnet_siamese_forward.4} parent=1 // loop_pre_header
      _
    $region3: #{pointnet_siamese_forward.4} parent=1 // loop_header
      %s14 = sphi 0, %s18
      %p15 = scmp.ge.s32.totalorder %s14, 6
      %s21 = sphi 0, %s33
      %s22 = sphi 0, %s29
      %s23 = sphi 0, %s21
      %s24 = sphi 0, %s22
      %s25 = sphi 0, %s23
      %s26 = sphi 0, %s24
      %s38 = sphi 0, %s40
      %s41 = sphi 0, %s38
      %s42 = sphi 0, %s41
      %s58 = sphi 0, %s42
      %s62 = sphi 0, %s62
      %s64 = sphi 0, %s62
      %s65 = sphi 0, %s64
      %s79 = sphi 0, %s65
      %s83 = sphi 0, %s83
      %s85 = sphi 0, %s83
      %s86 = sphi 0, %s85
      %s100 = sphi 0, %s86
      %s104 = sphi 0, %s104
      %s106 = sphi 0, %s104
      %s107 = sphi 0, %s106
      %s121 = sphi 0, %s107
      %s125 = sphi 0, %s125
      %s127 = sphi 0, %s125
      %s128 = sphi 0, %s127
      %s142 = sphi 0, %s128
      %s146 = sphi 0, %s146
      %s148 = sphi 0, %s146
      %s149 = sphi 0, %s148
      %s163 = sphi 0, %s149
      %s167 = sphi 0, %s167
      %s169 = sphi 0, %s167
      %s170 = sphi 0, %s169
      %s184 = sphi 0, %s170
      %s190 = sphi 0, %s192
      %s193 = sphi 0, %s190
      %s194 = sphi 0, %s193
      %s210 = sphi 0, %s194
    $region4: #{pointnet_siamese_forward.4} parent=1 // loop_header_branch
      %17 = sbr.rel (%p15) target = $region8
    $region5: #{pointnet_siamese_forward.4} parent=1 // loop_body
      %s19 = ssub.s32 %s14, 1
      %s20 = ssub.s32 %s14, 2
      %s27 = sadd.s32 1, %s22
      %p28 = scmp.ge.s32.totalorder %s27, 1
      %s29 = scalar_select %p28, 0, %s27
      %s30 = sadd.s32 1, %s21
      %s31 = scalar_select %p28, %s30, %s21
      %p32 = scmp.ge.s32.totalorder %s31, 4
      %s33 = scalar_select %p32, 0, %s31
      %s34 = ssub.s32 %s21, %s33
      %s35 = ssub.s32 %s22, %s29
      %s36 = sor.u32 %s34, %s35
      %p37 = scmp.eq.s32.totalorder %s36, 0
      %s39 = sadd.s32 %s38, 1
      %s40 = scalar_select %p37, %s38, %s39
      %p43 = pneg %p37
      %p44 = scmp.eq.s32.totalorder %s14, 3
      %p45 = por %p43, %p44
      %p46 = scmp.ne.s32.totalorder %s38, %s41
      %p47 = scmp.eq.s32.totalorder %s14, 0
      %p48 = por %p46, %p47
      %p49 = scmp.ne.s32.totalorder %s38, %s41
      %p50 = scmp.eq.s32.totalorder %s19, 3
      %p51 = por %p49, %p50
      %p52 = scmp.ne.s32.totalorder %s41, %s42
      %p53 = scmp.eq.s32.totalorder %s19, 0
      %p54 = por %p52, %p53
      %p55 = scmp.ne.s32.totalorder %s41, %s42
      %p56 = scmp.eq.s32.totalorder %s20, 3
      %p57 = por %p55, %p56
      %p59 = scmp.ne.s32.totalorder %s42, %s58
      %p60 = scmp.eq.s32.totalorder %s20, 0
      %p61 = por %p59, %p60
      %s63 = sadd.s32 %s62, 1
      %p66 = scmp.eq.s32.totalorder %s14, 3
      %p67 = scmp.ne.s32.totalorder %s62, %s64
      %p68 = scmp.eq.s32.totalorder %s14, 0
      %p69 = por %p67, %p68
      %p70 = scmp.ne.s32.totalorder %s62, %s64
      %p71 = scmp.eq.s32.totalorder %s19, 3
      %p72 = por %p70, %p71
      %p73 = scmp.ne.s32.totalorder %s64, %s65
      %p74 = scmp.eq.s32.totalorder %s19, 0
      %p75 = por %p73, %p74
      %p76 = scmp.ne.s32.totalorder %s64, %s65
      %p77 = scmp.eq.s32.totalorder %s20, 3
      %p78 = por %p76, %p77
      %p80 = scmp.ne.s32.totalorder %s65, %s79
      %p81 = scmp.eq.s32.totalorder %s20, 0
      %p82 = por %p80, %p81
      %s84 = sadd.s32 %s83, 1
      %p87 = scmp.eq.s32.totalorder %s14, 3
      %p88 = scmp.ne.s32.totalorder %s83, %s85
      %p89 = scmp.eq.s32.totalorder %s14, 0
      %p90 = por %p88, %p89
      %p91 = scmp.ne.s32.totalorder %s83, %s85
      %p92 = scmp.eq.s32.totalorder %s19, 3
      %p93 = por %p91, %p92
      %p94 = scmp.ne.s32.totalorder %s85, %s86
      %p95 = scmp.eq.s32.totalorder %s19, 0
      %p96 = por %p94, %p95
      %p97 = scmp.ne.s32.totalorder %s85, %s86
      %p98 = scmp.eq.s32.totalorder %s20, 3
      %p99 = por %p97, %p98
      %p101 = scmp.ne.s32.totalorder %s86, %s100
      %p102 = scmp.eq.s32.totalorder %s20, 0
      %p103 = por %p101, %p102
      %s105 = sadd.s32 %s104, 1
      %p108 = scmp.eq.s32.totalorder %s14, 3
      %p109 = scmp.ne.s32.totalorder %s104, %s106
      %p110 = scmp.eq.s32.totalorder %s14, 0
      %p111 = por %p109, %p110
      %p112 = scmp.ne.s32.totalorder %s104, %s106
      %p113 = scmp.eq.s32.totalorder %s19, 3
      %p114 = por %p112, %p113
      %p115 = scmp.ne.s32.totalorder %s106, %s107
      %p116 = scmp.eq.s32.totalorder %s19, 0
      %p117 = por %p115, %p116
      %p118 = scmp.ne.s32.totalorder %s106, %s107
      %p119 = scmp.eq.s32.totalorder %s20, 3
      %p120 = por %p118, %p119
      %p122 = scmp.ne.s32.totalorder %s107, %s121
      %p123 = scmp.eq.s32.totalorder %s20, 0
      %p124 = por %p122, %p123
      %s126 = sadd.s32 %s125, 1
      %p129 = scmp.eq.s32.totalorder %s14, 3
      %p130 = scmp.ne.s32.totalorder %s125, %s127
      %p131 = scmp.eq.s32.totalorder %s14, 0
      %p132 = por %p130, %p131
      %p133 = scmp.ne.s32.totalorder %s125, %s127
      %p134 = scmp.eq.s32.totalorder %s19, 3
      %p135 = por %p133, %p134
      %p136 = scmp.ne.s32.totalorder %s127, %s128
      %p137 = scmp.eq.s32.totalorder %s19, 0
      %p138 = por %p136, %p137
      %p139 = scmp.ne.s32.totalorder %s127, %s128
      %p140 = scmp.eq.s32.totalorder %s20, 3
      %p141 = por %p139, %p140
      %p143 = scmp.ne.s32.totalorder %s128, %s142
      %p144 = scmp.eq.s32.totalorder %s20, 0
      %p145 = por %p143, %p144
      %s147 = sadd.s32 %s146, 1
      %p150 = scmp.eq.s32.totalorder %s14, 3
      %p151 = scmp.ne.s32.totalorder %s146, %s148
      %p152 = scmp.eq.s32.totalorder %s14, 0
      %p153 = por %p151, %p152
      %p154 = scmp.ne.s32.totalorder %s146, %s148
      %p155 = scmp.eq.s32.totalorder %s19, 3
      %p156 = por %p154, %p155
      %p157 = scmp.ne.s32.totalorder %s148, %s149
      %p158 = scmp.eq.s32.totalorder %s19, 0
      %p159 = por %p157, %p158
      %p160 = scmp.ne.s32.totalorder %s148, %s149
      %p161 = scmp.eq.s32.totalorder %s20, 3
      %p162 = por %p160, %p161
      %p164 = scmp.ne.s32.totalorder %s149, %s163
      %p165 = scmp.eq.s32.totalorder %s20, 0
      %p166 = por %p164, %p165
      %s168 = sadd.s32 %s167, 1
      %p171 = scmp.eq.s32.totalorder %s14, 3
      %p172 = scmp.ne.s32.totalorder %s167, %s169
      %p173 = scmp.eq.s32.totalorder %s14, 0
      %p174 = por %p172, %p173
      %p175 = scmp.ne.s32.totalorder %s167, %s169
      %p176 = scmp.eq.s32.totalorder %s19, 3
      %p177 = por %p175, %p176
      %p178 = scmp.ne.s32.totalorder %s169, %s170
      %p179 = scmp.eq.s32.totalorder %s19, 0
      %p180 = por %p178, %p179
      %p181 = scmp.ne.s32.totalorder %s169, %s170
      %p182 = scmp.eq.s32.totalorder %s20, 3
      %p183 = por %p181, %p182
      %p185 = scmp.ne.s32.totalorder %s170, %s184
      %p186 = scmp.eq.s32.totalorder %s20, 0
      %p187 = por %p185, %p186
      %s188 = ssub.s32 %s21, %s33
      %p189 = scmp.eq.s32.totalorder %s188, 0
      %s191 = sadd.s32 %s190, 1
      %s192 = scalar_select %p189, %s190, %s191
      %p195 = pneg %p189
      %p196 = scmp.eq.s32.totalorder %s14, 3
      %p197 = por %p195, %p196
      %p198 = scmp.ne.s32.totalorder %s190, %s193
      %p199 = scmp.eq.s32.totalorder %s14, 0
      %p200 = por %p198, %p199
      %p201 = scmp.ne.s32.totalorder %s190, %s193
      %p202 = scmp.eq.s32.totalorder %s19, 3
      %p203 = por %p201, %p202
      %p204 = scmp.ne.s32.totalorder %s193, %s194
      %p205 = scmp.eq.s32.totalorder %s19, 0
      %p206 = por %p204, %p205
      %p207 = scmp.ne.s32.totalorder %s193, %s194
      %p208 = scmp.eq.s32.totalorder %s20, 3
      %p209 = por %p207, %p208
      %p211 = scmp.ne.s32.totalorder %s194, %s210
      %p212 = scmp.eq.s32.totalorder %s20, 0
      %p213 = por %p211, %p212
      %p214 = scmp.le.s32.totalorder 1, %s14
      %p215 = scmp.lt.s32.totalorder %s14, 5
      %p216 = pnand %p214, %p215
      %p217 = pneg %p216
      // Predicated region
      $region9: #{pointnet_siamese_forward.4} parent=5 // pred_check
        _
      $region10: #{pointnet_siamese_forward.4} parent=5 // pred_check_branch
        %219 = sbr.rel (%p216) target = $region12
      $region11: #{pointnet_siamese_forward.4} parent=5 // pred_region
        %s220 = ssub.s32 %s14, 1
        // Predicated region
        $region13: #{pointnet_siamese_forward.4} parent=11 // pred_check
          %p221 = pneg %p75
        $region14: #{pointnet_siamese_forward.4} parent=11 // pred_check_branch
          %223 = sbr.rel (%p221) target = $region16
        $region15: #{pointnet_siamese_forward.4} parent=11 // pred_region
          _
        $region16: #{pointnet_siamese_forward.4} parent=11 // pred_fallthru
          _
        // Predicated region
        $region17: #{pointnet_siamese_forward.4} parent=11 // pred_check
          %p224 = pneg %p96
        $region18: #{pointnet_siamese_forward.4} parent=11 // pred_check_branch
          %226 = sbr.rel (%p224) target = $region20
        $region19: #{pointnet_siamese_forward.4} parent=11 // pred_region
          _
        $region20: #{pointnet_siamese_forward.4} parent=11 // pred_fallthru
          _
        // Predicated region
        $region21: #{pointnet_siamese_forward.4} parent=11 // pred_check
          %p227 = pneg %p117
        $region22: #{pointnet_siamese_forward.4} parent=11 // pred_check_branch
          %229 = sbr.rel (%p227) target = $region24
        $region23: #{pointnet_siamese_forward.4} parent=11 // pred_region
          _
        $region24: #{pointnet_siamese_forward.4} parent=11 // pred_fallthru
          _
        // Predicated region
        $region25: #{pointnet_siamese_forward.4} parent=11 // pred_check
          %p230 = pneg %p138
        $region26: #{pointnet_siamese_forward.4} parent=11 // pred_check_branch
          %232 = sbr.rel (%p230) target = $region28
        $region27: #{pointnet_siamese_forward.4} parent=11 // pred_region
          _
        $region28: #{pointnet_siamese_forward.4} parent=11 // pred_fallthru
          _
        // Predicated region
        $region29: #{pointnet_siamese_forward.4} parent=11 // pred_check
          %p233 = pneg %p159
        $region30: #{pointnet_siamese_forward.4} parent=11 // pred_check_branch
          %235 = sbr.rel (%p233) target = $region32
        $region31: #{pointnet_siamese_forward.4} parent=11 // pred_region
          %s237 = ssub.s32 8192, 8192
          %238 = vsyncadd [#allocation3], %s237
          %s239 = sshll.u32 [#allocation2], 4
          %s240 = int_to_ptr.vmem [resolvable:$true] %s239
          %245 = dma.hbm_to_vmem [thread:$0]  %s5, 8192, %s240, [#allocation3], 512, 512, 32
        $region32: #{pointnet_siamese_forward.4} parent=11 // pred_fallthru
          _
        // Predicated region
        $region33: #{pointnet_siamese_forward.4} parent=11 // pred_check
          %p246 = pneg %p180
        $region34: #{pointnet_siamese_forward.4} parent=11 // pred_check_branch
          %248 = sbr.rel (%p246) target = $region36
        $region35: #{pointnet_siamese_forward.4} parent=11 // pred_region
          _
        $region36: #{pointnet_siamese_forward.4} parent=11 // pred_fallthru
          _
      $region12: #{pointnet_siamese_forward.4} parent=5 // pred_fallthru
        _
      %p249 = scmp.lt.s32.totalorder %s14, 4
      // Predicated region
      $region37: #{pointnet_siamese_forward.4} parent=5 // pred_check
        %p250 = pneg %p249
      $region38: #{pointnet_siamese_forward.4} parent=5 // pred_check_branch
        %252 = sbr.rel (%p250) target = $region40
      $region39: #{pointnet_siamese_forward.4} parent=5 // pred_region
        // Predicated region
        $region41: #{pointnet_siamese_forward.4} parent=39 // pred_check
          %p253 = pneg %p48
        $region42: #{pointnet_siamese_forward.4} parent=39 // pred_check_branch
          %255 = sbr.rel (%p253) target = $region44
        $region43: #{pointnet_siamese_forward.4} parent=39 // pred_region
          %s256 = smul.u32 2, %s22
          %p257 = scmp.lt.s32.totalorder %s21, 3
          %s258 = scalar_select %p257, %s21, 3
          %p259 = scmp.lt.s32.totalorder %s256, 1
          %s260 = scalar_select %p259, %s256, 1
          %s261 = smul.addr %s258, 2
          %s262 = sadd.s32 %s260, %s261
          %s263 = smul.addr %s262, 8
          %s264 = scalar_lea.vmem %s0, %s263
          %s265 = smul.u32 2, %s22
        $region44: #{pointnet_siamese_forward.4} parent=39 // pred_fallthru
          _
      $region40: #{pointnet_siamese_forward.4} parent=5 // pred_fallthru
        _
      %p266 = scmp.le.s32.totalorder 1, %s14
      %p267 = scmp.lt.s32.totalorder %s14, 5
      %p268 = pnand %p266, %p267
      %p269 = pneg %p268
      // Predicated region
      $region45: #{pointnet_siamese_forward.4} parent=5 // pred_check
        _
      $region46: #{pointnet_siamese_forward.4} parent=5 // pred_check_branch
        %271 = sbr.rel (%p268) target = $region48
      $region47: #{pointnet_siamese_forward.4} parent=5 // pred_region
        %s272 = ssub.s32 %s14, 1
        // Predicated region
        $region49: #{pointnet_siamese_forward.4} parent=47 // pred_check
          %p273 = pneg %p159
        $region50: #{pointnet_siamese_forward.4} parent=47 // pred_check_branch
          %275 = sbr.rel (%p273) target = $region52
        $region51: #{pointnet_siamese_forward.4} parent=47 // pred_region
          %276 = dma.done [#allocation3], 8192
        $region52: #{pointnet_siamese_forward.4} parent=47 // pred_fallthru
          _
        %s277 = smul.u32 2, %s24
        %p278 = scmp.lt.s32.totalorder %s23, 3
        %s279 = scalar_select %p278, %s23, 3
        %p280 = scmp.lt.s32.totalorder %s277, 1
        %s281 = scalar_select %p280, %s277, 1
        %s282 = smul.addr %s279, 2
        %s283 = sadd.s32 %s281, %s282
        %s284 = smul.addr %s283, 8
        %s285 = scalar_lea.vmem %s0, %s284
        %p286 = pneg %p54
        %p287 = pneg %p51
        %p288 = pneg %p75
        %p289 = pneg %p72
        %p290 = pneg %p96
        %p291 = pneg %p93
        %p292 = pneg %p117
        %p293 = pneg %p114
        %p294 = pneg %p138
        %p295 = pneg %p135
        %p296 = pneg %p159
        %p297 = pneg %p156
        %p298 = pneg %p180
        %p299 = pneg %p177
        %p300 = pneg %p206
        %p301 = pneg %p203
        %p302 = scmp.lt.s32.totalorder %s23, 3
        %s303 = scalar_select %p302, %s23, 3
        %s304 = smul.addr %s303, 8
        %s305 = scalar_lea.vmem %s7, %s304
        %s306 = smul.u32 2, %s24
        %p307 = scmp.lt.s32.totalorder %s23, 3
        %s308 = scalar_select %p307, %s23, 3
        %p309 = scmp.lt.s32.totalorder %s306, 1
        %s310 = scalar_select %p309, %s306, 1
        %s311 = smul.addr %s308, 2
        %s312 = sadd.s32 %s310, %s311
        %s313 = smul.addr %s312, 8
        %s314 = scalar_lea.vmem %s0, %s313
        %s315 = smul.u32 2, %s24
        %p316 = scmp.lt.s32.totalorder %s23, 3
        %s317 = scalar_select %p316, %s23, 3
        %s318 = smul.addr %s317, 8
        %s319 = scalar_lea.vmem %s7, %s318
        %v321 = vld [vmem:[%s314] sm:$0xff]
        %v322 = vld [vmem:[%s314 + $0x8] sm:$0xff]
        %v323 = vld [vmem:[%s1] sm:$0x7]
        %325 = vset.pattern.permute.xlu0 0
        %326 = vperm.xlu0 %325, %v321
        %v327 = vpop.permute.xlu0 %326
        %330 = vset.pattern.permute.xlu0 0
        %331 = vperm.xlu0 %330, %v322
        %v332 = vpop.permute.xlu0 %331
        %v334 = vlaneseq
        %v335 = vshrl.u32 %v334, 7
        %v336 = vsub.s32 0, %v335
        %v337 = vrot.slane %v323, %v336
        %v338 = vmul.f32 %v327, %v337
        %v339 = vmul.f32 %v332, %v337
        %340 = vset.pattern.permute.xlu0 1
        %341 = vperm.xlu0 %340, %v321
        %v342 = vpop.permute.xlu0 %341
        %344 = vset.pattern.permute.xlu0 1
        %345 = vperm.xlu0 %344, %v322
        %v346 = vpop.permute.xlu0 %345
        %v348 = vlaneseq
        %v349 = vshrl.u32 %v348, 7
        %v350 = vsub.s32 1, %v349
        %v351 = vrot.slane %v323, %v350
        %v352 = vmul.f32 %v342, %v351
        %v353 = vmul.f32 %v346, %v351
        %v354 = vadd.f32 %v338, %v352
        %v355 = vadd.f32 %v339, %v353
        %356 = vset.pattern.permute.xlu0 2
        %357 = vperm.xlu0 %356, %v321
        %v358 = vpop.permute.xlu0 %357
        %360 = vset.pattern.permute.xlu0 2
        %361 = vperm.xlu0 %360, %v322
        %v362 = vpop.permute.xlu0 %361
        %v364 = vlaneseq
        %v365 = vshrl.u32 %v364, 7
        %v366 = vsub.s32 2, %v365
        %v367 = vrot.slane %v323, %v366
        %v368 = vmul.f32 %v358, %v367
        %v369 = vmul.f32 %v362, %v367
        %v370 = vadd.f32 %v354, %v368
        %v371 = vadd.f32 %v355, %v369
        %v372 = vld [vmem:[%s2] sm:$0x1]
        %v374 = vlaneseq
        %v375 = vshrl.u32 %v374, 7
        %v376 = vsub.s32 0, %v375
        %v377 = vrot.slane %v372, %v376
        %v379 = vadd.f32 %v370, %v377
        %v380 = vadd.f32 %v371, %v377
        %v381 = vmax.f32 %v379, 0.0
        %v382 = vmax.f32 %v380, 0.0
        %v383 = vpack.c.bf16 %v382, %v381
        %v384 = vld [vmem:[%s3] sm:$0xf]
        %v385 = vld [vmem:[%s3 + $0x4] sm:$0xf]
        %v386 = vld [vmem:[%s3 + $0x8] sm:$0xf]
        %v387 = vld [vmem:[%s3 + $0xc] sm:$0xf]
        %v388 = vld [vmem:[%s3 + $0x10] sm:$0xf]
        %v389 = vld [vmem:[%s3 + $0x14] sm:$0xf]
        %v390 = vld [vmem:[%s3 + $0x18] sm:$0xf]
        %v391 = vld [vmem:[%s3 + $0x1c] sm:$0xf]
        %v392 = vld [vmem:[%s4] sm:$0x1]
        %v394 = vlaneseq
        %v395 = vshrl.u32 %v394, 7
        %v396 = vsub.s32 0, %v395
        %v397 = vrot.slane %v392, %v396
        %v407 = vunpack.c.l.b16 %v384
        %v408 = vunpack.c.l.b16 %v385
        %v409 = vunpack.c.l.b16 %v386
        %v410 = vunpack.c.l.b16 %v387
        %v411 = vunpack.c.l.b16 %v388
        %v412 = vunpack.c.l.b16 %v389
        %v413 = vunpack.c.l.b16 %v390
        %v414 = vunpack.c.l.b16 %v391
        %v415 = vpack.c.b16 %v408, %v407
        %v416 = vpack.c.b16 %v410, %v409
        %v417 = vpack.c.b16 %v412, %v411
        %v418 = vpack.c.b16 %v414, %v413
        %vm423 = vcmask 523264
        %v425 = vsel %vm423, %v383, 0
        %427 = vmatprep.subr.bf16.mxu0 0
        %428 = vmatpush1.bf16.msra.mxu0 %v415
        %429 = vmatprep.subr.bf16.mxu0 0
        %430 = vmatpush1.bf16.msra.mxu0 %v416
        %431 = vmatprep.subr.bf16.mxu0 0
        %432 = vmatpush1.bf16.msra.mxu0 %v417
        %433 = vmatprep.subr.bf16.mxu0 0
        %434 = vmatpush1.bf16.msra.mxu0 %v418
        %435 = vmatprep.subr.bf16.mxu0 0
        %436 = vmatpush1.bf16.msra.mxu0 0
        %437 = vmatprep.subr.bf16.mxu0 0
        %438 = vmatpush1.bf16.msra.mxu0 0
        %439 = vmatprep.subr.bf16.mxu0 0
        %440 = vmatpush1.bf16.msra.mxu0 0
        %441 = vmatprep.subr.bf16.mxu0 0
        %442 = vmatpush1.bf16.msra.mxu0 0
        %443 = vmatprep.subr.bf16.mxu0 0
        %444 = vmatpush1.bf16.msra.mxu0 0
        %445 = vmatprep.subr.bf16.mxu0 0
        %446 = vmatpush1.bf16.msra.mxu0 0
        %447 = vmatprep.subr.bf16.mxu0 0
        %448 = vmatpush1.bf16.msra.mxu0 0
        %449 = vmatprep.subr.bf16.mxu0 0
        %450 = vmatpush1.bf16.msra.mxu0 0
        %451 = vmatprep.subr.bf16.mxu0 0
        %452 = vmatpush1.bf16.msra.mxu0 0
        %453 = vmatprep.subr.bf16.mxu0 0
        %454 = vmatpush1.bf16.msra.mxu0 0
        %455 = vmatprep.subr.bf16.mxu0 0
        %456 = vmatpush1.bf16.msra.mxu0 0
        %457 = vmatprep.subr.bf16.mxu0 0
        %458 = vmatpush1.bf16.msra.mxu0 0
        %459 = vmatprep.mubr.bf16.mxu0 0
        %460 = vmatmul.mubr.bf16.gmra.mrb[0].mxu0 %v425
        %v461 = vpop.f32.mrb[0].mxu0
        %v462 = vadd.f32 %v397, %v461
        %v463 = vpop.f32.mrb[0].mxu0
        %v464 = vpop.f32.mrb[0].mxu0
        %v465 = vadd.f32 %v397, %v464
        %v466 = vpop.f32.mrb[0].mxu0
        %467 = vdwg.mxu0
        %v468 = vmax.f32 %v462, 0.0
        %v469 = vmax.f32 %v465, 0.0
        %v470 = vpack.c.bf16 %v469, %v468
        %v471 = vld [vmem:[#allocation2] sm:$0xff]
        %v472 = vld [vmem:[#allocation2 + $0x20] sm:$0xff]
        %v473 = vld [vmem:[#allocation2 + $0x40] sm:$0xff]
        %v474 = vld [vmem:[#allocation2 + $0x60] sm:$0xff]
        %v475 = vld [vmem:[#allocation2 + $0x80] sm:$0xff]
        %v476 = vld [vmem:[#allocation2 + $0xa0] sm:$0xff]
        %v477 = vld [vmem:[#allocation2 + $0xc0] sm:$0xff]
        %v478 = vld [vmem:[#allocation2 + $0xe0] sm:$0xff]
        %v479 = vld [vmem:[#allocation2 + $0x100] sm:$0xff]
        %v480 = vld [vmem:[#allocation2 + $0x120] sm:$0xff]
        %v481 = vld [vmem:[#allocation2 + $0x140] sm:$0xff]
        %v482 = vld [vmem:[#allocation2 + $0x160] sm:$0xff]
        %v483 = vld [vmem:[#allocation2 + $0x180] sm:$0xff]
        %v484 = vld [vmem:[#allocation2 + $0x1a0] sm:$0xff]
        %v485 = vld [vmem:[#allocation2 + $0x1c0] sm:$0xff]
        %v486 = vld [vmem:[#allocation2 + $0x1e0] sm:$0xff]
        %v487 = vld [vmem:[%s6] sm:$0x3]
        %v489 = vlaneseq
        %v490 = vshrl.u32 %v489, 7
        %v491 = vsub.s32 0, %v490
        %v492 = vrot.slane %v487, %v491
        %v493 = vlaneseq
        %v494 = vshrl.u32 %v493, 7
        %v495 = vsub.s32 1, %v494
        %v496 = vrot.slane %v487, %v495
        %v515 = vunpack.c.l.b16 %v471
        %v516 = vunpack.c.h.b16 %v471
        %v517 = vunpack.c.l.b16 %v472
        %v518 = vunpack.c.h.b16 %v472
        %v519 = vunpack.c.l.b16 %v473
        %v520 = vunpack.c.h.b16 %v473
        %v521 = vunpack.c.l.b16 %v474
        %v522 = vunpack.c.h.b16 %v474
        %v523 = vunpack.c.l.b16 %v475
        %v524 = vunpack.c.h.b16 %v475
        %v525 = vunpack.c.l.b16 %v476
        %v526 = vunpack.c.h.b16 %v476
        %v527 = vunpack.c.l.b16 %v477
        %v528 = vunpack.c.h.b16 %v477
        %v529 = vunpack.c.l.b16 %v478
        %v530 = vunpack.c.h.b16 %v478
        %v531 = vunpack.c.l.b16 %v479
        %v532 = vunpack.c.h.b16 %v479
        %v533 = vunpack.c.l.b16 %v480
        %v534 = vunpack.c.h.b16 %v480
        %v535 = vunpack.c.l.b16 %v481
        %v536 = vunpack.c.h.b16 %v481
        %v537 = vunpack.c.l.b16 %v482
        %v538 = vunpack.c.h.b16 %v482
        %v539 = vunpack.c.l.b16 %v483
        %v540 = vunpack.c.h.b16 %v483
        %v541 = vunpack.c.l.b16 %v484
        %v542 = vunpack.c.h.b16 %v484
        %v543 = vunpack.c.l.b16 %v485
        %v544 = vunpack.c.h.b16 %v485
        %v545 = vunpack.c.l.b16 %v486
        %v546 = vunpack.c.h.b16 %v486
        %v547 = vpack.c.b16 %v517, %v515
        %v548 = vpack.c.b16 %v518, %v516
        %v549 = vpack.c.b16 %v521, %v519
        %v550 = vpack.c.b16 %v522, %v520
        %v551 = vpack.c.b16 %v525, %v523
        %v552 = vpack.c.b16 %v526, %v524
        %v553 = vpack.c.b16 %v529, %v527
        %v554 = vpack.c.b16 %v530, %v528
        %v555 = vpack.c.b16 %v533, %v531
        %v556 = vpack.c.b16 %v534, %v532
        %v557 = vpack.c.b16 %v537, %v535
        %v558 = vpack.c.b16 %v538, %v536
        %v559 = vpack.c.b16 %v541, %v539
        %v560 = vpack.c.b16 %v542, %v540
        %v561 = vpack.c.b16 %v545, %v543
        %v562 = vpack.c.b16 %v546, %v544
        %579 = vmatprep.subr.bf16.mxu0 %v548
        %580 = vmatpush1.bf16.msra.mxu0 %v547
        %581 = vmatprep.subr.bf16.mxu0 %v550
        %582 = vmatpush1.bf16.msra.mxu0 %v549
        %583 = vmatprep.subr.bf16.mxu0 %v552
        %584 = vmatpush1.bf16.msra.mxu0 %v551
        %585 = vmatprep.subr.bf16.mxu0 %v554
        %586 = vmatpush1.bf16.msra.mxu0 %v553
        %587 = vmatprep.subr.bf16.mxu0 %v556
        %588 = vmatpush1.bf16.msra.mxu0 %v555
        %589 = vmatprep.subr.bf16.mxu0 %v558
        %590 = vmatpush1.bf16.msra.mxu0 %v557
        %591 = vmatprep.subr.bf16.mxu0 %v560
        %592 = vmatpush1.bf16.msra.mxu0 %v559
        %593 = vmatprep.subr.bf16.mxu0 %v562
        %594 = vmatpush1.bf16.msra.mxu0 %v561
        %595 = vmatprep.subr.bf16.mxu0 0
        %596 = vmatpush1.bf16.msra.mxu0 0
        %597 = vmatprep.subr.bf16.mxu0 0
        %598 = vmatpush1.bf16.msra.mxu0 0
        %599 = vmatprep.subr.bf16.mxu0 0
        %600 = vmatpush1.bf16.msra.mxu0 0
        %601 = vmatprep.subr.bf16.mxu0 0
        %602 = vmatpush1.bf16.msra.mxu0 0
        %603 = vmatprep.subr.bf16.mxu0 0
        %604 = vmatpush1.bf16.msra.mxu0 0
        %605 = vmatprep.subr.bf16.mxu0 0
        %606 = vmatpush1.bf16.msra.mxu0 0
        %607 = vmatprep.subr.bf16.mxu0 0
        %608 = vmatpush1.bf16.msra.mxu0 0
        %609 = vmatprep.subr.bf16.mxu0 0
        %610 = vmatpush1.bf16.msra.mxu0 0
        %611 = vmatprep.mubr.bf16.mxu0 0
        %612 = vmatmul.mubr.bf16.gmra.mrb[0].mxu0 %v470
        %v613 = vpop.f32.mrb[0].mxu0
        %v614 = vadd.f32 %v492, %v613
        %v615 = vpop.f32.mrb[0].mxu0
        %v616 = vadd.f32 %v496, %v615
        %v617 = vpop.f32.mrb[0].mxu0
        %v618 = vadd.f32 %v492, %v617
        %v619 = vpop.f32.mrb[0].mxu0
        %v620 = vadd.f32 %v496, %v619
        %621 = vdwg.mxu0
        %v622 = vmax.f32 %v614, 0.0
        %v623 = vmax.f32 %v616, 0.0
        %v624 = vmax.f32 %v618, 0.0
        %v625 = vmax.f32 %v620, 0.0
        %v626 = vmax.f32 %v622, %v624
        %v627 = vrot.slane %v626, 4
        %v628 = vmax.f32 %v626, %v627
        %v629 = vrot.slane %v628, 2
        %v630 = vmax.f32 %v628, %v629
        %v631 = vrot.slane %v630, 1
        %v632 = vmax.f32 %v630, %v631
        %v633 = vmax.f32 %v623, %v625
        %v634 = vrot.slane %v633, 4
        %v635 = vmax.f32 %v633, %v634
        %v636 = vrot.slane %v635, 2
        %v637 = vmax.f32 %v635, %v636
        %v638 = vrot.slane %v637, 1
        %v639 = vmax.f32 %v637, %v638
        %v640 = vld [vmem:[#allocation2 + $0x8] sm:$0xff]
        %v641 = vld [vmem:[#allocation2 + $0x28] sm:$0xff]
        %v642 = vld [vmem:[#allocation2 + $0x48] sm:$0xff]
        %v643 = vld [vmem:[#allocation2 + $0x68] sm:$0xff]
        %v644 = vld [vmem:[#allocation2 + $0x88] sm:$0xff]
        %v645 = vld [vmem:[#allocation2 + $0xa8] sm:$0xff]
        %v646 = vld [vmem:[#allocation2 + $0xc8] sm:$0xff]
        %v647 = vld [vmem:[#allocation2 + $0xe8] sm:$0xff]
        %v648 = vld [vmem:[#allocation2 + $0x108] sm:$0xff]
        %v649 = vld [vmem:[#allocation2 + $0x128] sm:$0xff]
        %v650 = vld [vmem:[#allocation2 + $0x148] sm:$0xff]
        %v651 = vld [vmem:[#allocation2 + $0x168] sm:$0xff]
        %v652 = vld [vmem:[#allocation2 + $0x188] sm:$0xff]
        %v653 = vld [vmem:[#allocation2 + $0x1a8] sm:$0xff]
        %v654 = vld [vmem:[#allocation2 + $0x1c8] sm:$0xff]
        %v655 = vld [vmem:[#allocation2 + $0x1e8] sm:$0xff]
        %v656 = vld [vmem:[%s6 + $0x2] sm:$0x3]
        %v658 = vlaneseq
        %v659 = vshrl.u32 %v658, 7
        %v660 = vsub.s32 0, %v659
        %v661 = vrot.slane %v656, %v660
        %v662 = vlaneseq
        %v663 = vshrl.u32 %v662, 7
        %v664 = vsub.s32 1, %v663
        %v665 = vrot.slane %v656, %v664
        %v684 = vunpack.c.l.b16 %v640
        %v685 = vunpack.c.h.b16 %v640
        %v686 = vunpack.c.l.b16 %v641
        %v687 = vunpack.c.h.b16 %v641
        %v688 = vunpack.c.l.b16 %v642
        %v689 = vunpack.c.h.b16 %v642
        %v690 = vunpack.c.l.b16 %v643
        %v691 = vunpack.c.h.b16 %v643
        %v692 = vunpack.c.l.b16 %v644
        %v693 = vunpack.c.h.b16 %v644
        %v694 = vunpack.c.l.b16 %v645
        %v695 = vunpack.c.h.b16 %v645
        %v696 = vunpack.c.l.b16 %v646
        %v697 = vunpack.c.h.b16 %v646
        %v698 = vunpack.c.l.b16 %v647
        %v699 = vunpack.c.h.b16 %v647
        %v700 = vunpack.c.l.b16 %v648
        %v701 = vunpack.c.h.b16 %v648
        %v702 = vunpack.c.l.b16 %v649
        %v703 = vunpack.c.h.b16 %v649
        %v704 = vunpack.c.l.b16 %v650
        %v705 = vunpack.c.h.b16 %v650
        %v706 = vunpack.c.l.b16 %v651
        %v707 = vunpack.c.h.b16 %v651
        %v708 = vunpack.c.l.b16 %v652
        %v709 = vunpack.c.h.b16 %v652
        %v710 = vunpack.c.l.b16 %v653
        %v711 = vunpack.c.h.b16 %v653
        %v712 = vunpack.c.l.b16 %v654
        %v713 = vunpack.c.h.b16 %v654
        %v714 = vunpack.c.l.b16 %v655
        %v715 = vunpack.c.h.b16 %v655
        %v716 = vpack.c.b16 %v686, %v684
        %v717 = vpack.c.b16 %v687, %v685
        %v718 = vpack.c.b16 %v690, %v688
        %v719 = vpack.c.b16 %v691, %v689
        %v720 = vpack.c.b16 %v694, %v692
        %v721 = vpack.c.b16 %v695, %v693
        %v722 = vpack.c.b16 %v698, %v696
        %v723 = vpack.c.b16 %v699, %v697
        %v724 = vpack.c.b16 %v702, %v700
        %v725 = vpack.c.b16 %v703, %v701
        %v726 = vpack.c.b16 %v706, %v704
        %v727 = vpack.c.b16 %v707, %v705
        %v728 = vpack.c.b16 %v710, %v708
        %v729 = vpack.c.b16 %v711, %v709
        %v730 = vpack.c.b16 %v714, %v712
        %v731 = vpack.c.b16 %v715, %v713
        %748 = vmatprep.subr.bf16.mxu0 %v717
        %749 = vmatpush1.bf16.msra.mxu0 %v716
        %750 = vmatprep.subr.bf16.mxu0 %v719
        %751 = vmatpush1.bf16.msra.mxu0 %v718
        %752 = vmatprep.subr.bf16.mxu0 %v721
        %753 = vmatpush1.bf16.msra.mxu0 %v720
        %754 = vmatprep.subr.bf16.mxu0 %v723
        %755 = vmatpush1.bf16.msra.mxu0 %v722
        %756 = vmatprep.subr.bf16.mxu0 %v725
        %757 = vmatpush1.bf16.msra.mxu0 %v724
        %758 = vmatprep.subr.bf16.mxu0 %v727
        %759 = vmatpush1.bf16.msra.mxu0 %v726
        %760 = vmatprep.subr.bf16.mxu0 %v729
        %761 = vmatpush1.bf16.msra.mxu0 %v728
        %762 = vmatprep.subr.bf16.mxu0 %v731
        %763 = vmatpush1.bf16.msra.mxu0 %v730
        %764 = vmatprep.subr.bf16.mxu0 0
        %765 = vmatpush1.bf16.msra.mxu0 0
        %766 = vmatprep.subr.bf16.mxu0 0
        %767 = vmatpush1.bf16.msra.mxu0 0
        %768 = vmatprep.subr.bf16.mxu0 0
        %769 = vmatpush1.bf16.msra.mxu0 0
        %770 = vmatprep.subr.bf16.mxu0 0
        %771 = vmatpush1.bf16.msra.mxu0 0
        %772 = vmatprep.subr.bf16.mxu0 0
        %773 = vmatpush1.bf16.msra.mxu0 0
        %774 = vmatprep.subr.bf16.mxu0 0
        %775 = vmatpush1.bf16.msra.mxu0 0
        %776 = vmatprep.subr.bf16.mxu0 0
        %777 = vmatpush1.bf16.msra.mxu0 0
        %778 = vmatprep.subr.bf16.mxu0 0
        %779 = vmatpush1.bf16.msra.mxu0 0
        %780 = vmatprep.mubr.bf16.mxu0 0
        %781 = vmatmul.mubr.bf16.gmra.mrb[0].mxu0 %v470
        %v782 = vpop.f32.mrb[0].mxu0
        %v783 = vadd.f32 %v661, %v782
        %v784 = vpop.f32.mrb[0].mxu0
        %v785 = vadd.f32 %v665, %v784
        %v786 = vpop.f32.mrb[0].mxu0
        %v787 = vadd.f32 %v661, %v786
        %v788 = vpop.f32.mrb[0].mxu0
        %v789 = vadd.f32 %v665, %v788
        %790 = vdwg.mxu0
        %v791 = vmax.f32 %v783, 0.0
        %v792 = vmax.f32 %v785, 0.0
        %v793 = vmax.f32 %v787, 0.0
        %v794 = vmax.f32 %v789, 0.0
        %v795 = vmax.f32 %v791, %v793
        %v796 = vrot.slane %v795, 4
        %v797 = vmax.f32 %v795, %v796
        %v798 = vrot.slane %v797, 2
        %v799 = vmax.f32 %v797, %v798
        %v800 = vrot.slane %v799, 1
        %v801 = vmax.f32 %v799, %v800
        %v802 = vmax.f32 %v792, %v794
        %v803 = vrot.slane %v802, 4
        %v804 = vmax.f32 %v802, %v803
        %v805 = vrot.slane %v804, 2
        %v806 = vmax.f32 %v804, %v805
        %v807 = vrot.slane %v806, 1
        %v808 = vmax.f32 %v806, %v807
        %v809 = vld [vmem:[#allocation2 + $0x10] sm:$0xff]
        %v810 = vld [vmem:[#allocation2 + $0x30] sm:$0xff]
        %v811 = vld [vmem:[#allocation2 + $0x50] sm:$0xff]
        %v812 = vld [vmem:[#allocation2 + $0x70] sm:$0xff]
        %v813 = vld [vmem:[#allocation2 + $0x90] sm:$0xff]
        %v814 = vld [vmem:[#allocation2 + $0xb0] sm:$0xff]
        %v815 = vld [vmem:[#allocation2 + $0xd0] sm:$0xff]
        %v816 = vld [vmem:[#allocation2 + $0xf0] sm:$0xff]
        %v817 = vld [vmem:[#allocation2 + $0x110] sm:$0xff]
        %v818 = vld [vmem:[#allocation2 + $0x130] sm:$0xff]
        %v819 = vld [vmem:[#allocation2 + $0x150] sm:$0xff]
        %v820 = vld [vmem:[#allocation2 + $0x170] sm:$0xff]
        %v821 = vld [vmem:[#allocation2 + $0x190] sm:$0xff]
        %v822 = vld [vmem:[#allocation2 + $0x1b0] sm:$0xff]
        %v823 = vld [vmem:[#allocation2 + $0x1d0] sm:$0xff]
        %v824 = vld [vmem:[#allocation2 + $0x1f0] sm:$0xff]
        %v825 = vld [vmem:[%s6 + $0x4] sm:$0x3]
        %v827 = vlaneseq
        %v828 = vshrl.u32 %v827, 7
        %v829 = vsub.s32 0, %v828
        %v830 = vrot.slane %v825, %v829
        %v831 = vlaneseq
        %v832 = vshrl.u32 %v831, 7
        %v833 = vsub.s32 1, %v832
        %v834 = vrot.slane %v825, %v833
        %v853 = vunpack.c.l.b16 %v809
        %v854 = vunpack.c.h.b16 %v809
        %v855 = vunpack.c.l.b16 %v810
        %v856 = vunpack.c.h.b16 %v810
        %v857 = vunpack.c.l.b16 %v811
        %v858 = vunpack.c.h.b16 %v811
        %v859 = vunpack.c.l.b16 %v812
        %v860 = vunpack.c.h.b16 %v812
        %v861 = vunpack.c.l.b16 %v813
        %v862 = vunpack.c.h.b16 %v813
        %v863 = vunpack.c.l.b16 %v814
        %v864 = vunpack.c.h.b16 %v814
        %v865 = vunpack.c.l.b16 %v815
        %v866 = vunpack.c.h.b16 %v815
        %v867 = vunpack.c.l.b16 %v816
        %v868 = vunpack.c.h.b16 %v816
        %v869 = vunpack.c.l.b16 %v817
        %v870 = vunpack.c.h.b16 %v817
        %v871 = vunpack.c.l.b16 %v818
        %v872 = vunpack.c.h.b16 %v818
        %v873 = vunpack.c.l.b16 %v819
        %v874 = vunpack.c.h.b16 %v819
        %v875 = vunpack.c.l.b16 %v820
        %v876 = vunpack.c.h.b16 %v820
        %v877 = vunpack.c.l.b16 %v821
        %v878 = vunpack.c.h.b16 %v821
        %v879 = vunpack.c.l.b16 %v822
        %v880 = vunpack.c.h.b16 %v822
        %v881 = vunpack.c.l.b16 %v823
        %v882 = vunpack.c.h.b16 %v823
        %v883 = vunpack.c.l.b16 %v824
        %v884 = vunpack.c.h.b16 %v824
        %v885 = vpack.c.b16 %v855, %v853
        %v886 = vpack.c.b16 %v856, %v854
        %v887 = vpack.c.b16 %v859, %v857
        %v888 = vpack.c.b16 %v860, %v858
        %v889 = vpack.c.b16 %v863, %v861
        %v890 = vpack.c.b16 %v864, %v862
        %v891 = vpack.c.b16 %v867, %v865
        %v892 = vpack.c.b16 %v868, %v866
        %v893 = vpack.c.b16 %v871, %v869
        %v894 = vpack.c.b16 %v872, %v870
        %v895 = vpack.c.b16 %v875, %v873
        %v896 = vpack.c.b16 %v876, %v874
        %v897 = vpack.c.b16 %v879, %v877
        %v898 = vpack.c.b16 %v880, %v878
        %v899 = vpack.c.b16 %v883, %v881
        %v900 = vpack.c.b16 %v884, %v882
        %917 = vmatprep.subr.bf16.mxu0 %v886
        %918 = vmatpush1.bf16.msra.mxu0 %v885
        %919 = vmatprep.subr.bf16.mxu0 %v888
        %920 = vmatpush1.bf16.msra.mxu0 %v887
        %921 = vmatprep.subr.bf16.mxu0 %v890
        %922 = vmatpush1.bf16.msra.mxu0 %v889
        %923 = vmatprep.subr.bf16.mxu0 %v892
        %924 = vmatpush1.bf16.msra.mxu0 %v891
        %925 = vmatprep.subr.bf16.mxu0 %v894
        %926 = vmatpush1.bf16.msra.mxu0 %v893
        %927 = vmatprep.subr.bf16.mxu0 %v896
        %928 = vmatpush1.bf16.msra.mxu0 %v895
        %929 = vmatprep.subr.bf16.mxu0 %v898
        %930 = vmatpush1.bf16.msra.mxu0 %v897
        %931 = vmatprep.subr.bf16.mxu0 %v900
        %932 = vmatpush1.bf16.msra.mxu0 %v899
        %933 = vmatprep.subr.bf16.mxu0 0
        %934 = vmatpush1.bf16.msra.mxu0 0
        %935 = vmatprep.subr.bf16.mxu0 0
        %936 = vmatpush1.bf16.msra.mxu0 0
        %937 = vmatprep.subr.bf16.mxu0 0
        %938 = vmatpush1.bf16.msra.mxu0 0
        %939 = vmatprep.subr.bf16.mxu0 0
        %940 = vmatpush1.bf16.msra.mxu0 0
        %941 = vmatprep.subr.bf16.mxu0 0
        %942 = vmatpush1.bf16.msra.mxu0 0
        %943 = vmatprep.subr.bf16.mxu0 0
        %944 = vmatpush1.bf16.msra.mxu0 0
        %945 = vmatprep.subr.bf16.mxu0 0
        %946 = vmatpush1.bf16.msra.mxu0 0
        %947 = vmatprep.subr.bf16.mxu0 0
        %948 = vmatpush1.bf16.msra.mxu0 0
        %949 = vmatprep.mubr.bf16.mxu0 0
        %950 = vmatmul.mubr.bf16.gmra.mrb[0].mxu0 %v470
        %v951 = vpop.f32.mrb[0].mxu0
        %v952 = vadd.f32 %v830, %v951
        %v953 = vpop.f32.mrb[0].mxu0
        %v954 = vadd.f32 %v834, %v953
        %v955 = vpop.f32.mrb[0].mxu0
        %v956 = vadd.f32 %v830, %v955
        %v957 = vpop.f32.mrb[0].mxu0
        %v958 = vadd.f32 %v834, %v957
        %959 = vdwg.mxu0
        %v960 = vmax.f32 %v952, 0.0
        %v961 = vmax.f32 %v954, 0.0
        %v962 = vmax.f32 %v956, 0.0
        %v963 = vmax.f32 %v958, 0.0
        %v964 = vmax.f32 %v960, %v962
        %v965 = vrot.slane %v964, 4
        %v966 = vmax.f32 %v964, %v965
        %v967 = vrot.slane %v966, 2
        %v968 = vmax.f32 %v966, %v967
        %v969 = vrot.slane %v968, 1
        %v970 = vmax.f32 %v968, %v969
        %v971 = vmax.f32 %v961, %v963
        %v972 = vrot.slane %v971, 4
        %v973 = vmax.f32 %v971, %v972
        %v974 = vrot.slane %v973, 2
        %v975 = vmax.f32 %v973, %v974
        %v976 = vrot.slane %v975, 1
        %v977 = vmax.f32 %v975, %v976
        %v978 = vld [vmem:[#allocation2 + $0x18] sm:$0xff]
        %v979 = vld [vmem:[#allocation2 + $0x38] sm:$0xff]
        %v980 = vld [vmem:[#allocation2 + $0x58] sm:$0xff]
        %v981 = vld [vmem:[#allocation2 + $0x78] sm:$0xff]
        %v982 = vld [vmem:[#allocation2 + $0x98] sm:$0xff]
        %v983 = vld [vmem:[#allocation2 + $0xb8] sm:$0xff]
        %v984 = vld [vmem:[#allocation2 + $0xd8] sm:$0xff]
        %v985 = vld [vmem:[#allocation2 + $0xf8] sm:$0xff]
        %v986 = vld [vmem:[#allocation2 + $0x118] sm:$0xff]
        %v987 = vld [vmem:[#allocation2 + $0x138] sm:$0xff]
        %v988 = vld [vmem:[#allocation2 + $0x158] sm:$0xff]
        %v989 = vld [vmem:[#allocation2 + $0x178] sm:$0xff]
        %v990 = vld [vmem:[#allocation2 + $0x198] sm:$0xff]
        %v991 = vld [vmem:[#allocation2 + $0x1b8] sm:$0xff]
        %v992 = vld [vmem:[#allocation2 + $0x1d8] sm:$0xff]
        %v993 = vld [vmem:[#allocation2 + $0x1f8] sm:$0xff]
        %v994 = vld [vmem:[%s6 + $0x6] sm:$0x3]
        %v996 = vlaneseq
        %v997 = vshrl.u32 %v996, 7
        %v998 = vsub.s32 0, %v997
        %v999 = vrot.slane %v994, %v998
        %v1000 = vlaneseq
        %v1001 = vshrl.u32 %v1000, 7
        %v1002 = vsub.s32 1, %v1001
        %v1003 = vrot.slane %v994, %v1002
        %v1022 = vunpack.c.l.b16 %v978
        %v1023 = vunpack.c.h.b16 %v978
        %v1024 = vunpack.c.l.b16 %v979
        %v1025 = vunpack.c.h.b16 %v979
        %v1026 = vunpack.c.l.b16 %v980
        %v1027 = vunpack.c.h.b16 %v980
        %v1028 = vunpack.c.l.b16 %v981
        %v1029 = vunpack.c.h.b16 %v981
        %v1030 = vunpack.c.l.b16 %v982
        %v1031 = vunpack.c.h.b16 %v982
        %v1032 = vunpack.c.l.b16 %v983
        %v1033 = vunpack.c.h.b16 %v983
        %v1034 = vunpack.c.l.b16 %v984
        %v1035 = vunpack.c.h.b16 %v984
        %v1036 = vunpack.c.l.b16 %v985
        %v1037 = vunpack.c.h.b16 %v985
        %v1038 = vunpack.c.l.b16 %v986
        %v1039 = vunpack.c.h.b16 %v986
        %v1040 = vunpack.c.l.b16 %v987
        %v1041 = vunpack.c.h.b16 %v987
        %v1042 = vunpack.c.l.b16 %v988
        %v1043 = vunpack.c.h.b16 %v988
        %v1044 = vunpack.c.l.b16 %v989
        %v1045 = vunpack.c.h.b16 %v989
        %v1046 = vunpack.c.l.b16 %v990
        %v1047 = vunpack.c.h.b16 %v990
        %v1048 = vunpack.c.l.b16 %v991
        %v1049 = vunpack.c.h.b16 %v991
        %v1050 = vunpack.c.l.b16 %v992
        %v1051 = vunpack.c.h.b16 %v992
        %v1052 = vunpack.c.l.b16 %v993
        %v1053 = vunpack.c.h.b16 %v993
        %v1054 = vpack.c.b16 %v1024, %v1022
        %v1055 = vpack.c.b16 %v1025, %v1023
        %v1056 = vpack.c.b16 %v1028, %v1026
        %v1057 = vpack.c.b16 %v1029, %v1027
        %v1058 = vpack.c.b16 %v1032, %v1030
        %v1059 = vpack.c.b16 %v1033, %v1031
        %v1060 = vpack.c.b16 %v1036, %v1034
        %v1061 = vpack.c.b16 %v1037, %v1035
        %v1062 = vpack.c.b16 %v1040, %v1038
        %v1063 = vpack.c.b16 %v1041, %v1039
        %v1064 = vpack.c.b16 %v1044, %v1042
        %v1065 = vpack.c.b16 %v1045, %v1043
        %v1066 = vpack.c.b16 %v1048, %v1046
        %v1067 = vpack.c.b16 %v1049, %v1047
        %v1068 = vpack.c.b16 %v1052, %v1050
        %v1069 = vpack.c.b16 %v1053, %v1051
        %1086 = vmatprep.subr.bf16.mxu0 %v1055
        %1087 = vmatpush1.bf16.msra.mxu0 %v1054
        %1088 = vmatprep.subr.bf16.mxu0 %v1057
        %1089 = vmatpush1.bf16.msra.mxu0 %v1056
        %1090 = vmatprep.subr.bf16.mxu0 %v1059
        %1091 = vmatpush1.bf16.msra.mxu0 %v1058
        %1092 = vmatprep.subr.bf16.mxu0 %v1061
        %1093 = vmatpush1.bf16.msra.mxu0 %v1060
        %1094 = vmatprep.subr.bf16.mxu0 %v1063
        %1095 = vmatpush1.bf16.msra.mxu0 %v1062
        %1096 = vmatprep.subr.bf16.mxu0 %v1065
        %1097 = vmatpush1.bf16.msra.mxu0 %v1064
        %1098 = vmatprep.subr.bf16.mxu0 %v1067
        %1099 = vmatpush1.bf16.msra.mxu0 %v1066
        %1100 = vmatprep.subr.bf16.mxu0 %v1069
        %1101 = vmatpush1.bf16.msra.mxu0 %v1068
        %1102 = vmatprep.subr.bf16.mxu0 0
        %1103 = vmatpush1.bf16.msra.mxu0 0
        %1104 = vmatprep.subr.bf16.mxu0 0
        %1105 = vmatpush1.bf16.msra.mxu0 0
        %1106 = vmatprep.subr.bf16.mxu0 0
        %1107 = vmatpush1.bf16.msra.mxu0 0
        %1108 = vmatprep.subr.bf16.mxu0 0
        %1109 = vmatpush1.bf16.msra.mxu0 0
        %1110 = vmatprep.subr.bf16.mxu0 0
        %1111 = vmatpush1.bf16.msra.mxu0 0
        %1112 = vmatprep.subr.bf16.mxu0 0
        %1113 = vmatpush1.bf16.msra.mxu0 0
        %1114 = vmatprep.subr.bf16.mxu0 0
        %1115 = vmatpush1.bf16.msra.mxu0 0
        %1116 = vmatprep.subr.bf16.mxu0 0
        %1117 = vmatpush1.bf16.msra.mxu0 0
        %1118 = vmatprep.mubr.bf16.mxu0 0
        %1119 = vmatmul.mubr.bf16.gmra.mrb[0].mxu0 %v470
        %v1120 = vpop.f32.mrb[0].mxu0
        %v1121 = vadd.f32 %v999, %v1120
        %v1122 = vpop.f32.mrb[0].mxu0
        %v1123 = vadd.f32 %v1003, %v1122
        %v1124 = vpop.f32.mrb[0].mxu0
        %v1125 = vadd.f32 %v999, %v1124
        %v1126 = vpop.f32.mrb[0].mxu0
        %v1127 = vadd.f32 %v1003, %v1126
        %1128 = vdwg.mxu0
        %v1129 = vmax.f32 %v1121, 0.0
        %v1130 = vmax.f32 %v1123, 0.0
        %v1131 = vmax.f32 %v1125, 0.0
        %v1132 = vmax.f32 %v1127, 0.0
        %v1133 = vmax.f32 %v1129, %v1131
        %v1134 = vrot.slane %v1133, 4
        %v1135 = vmax.f32 %v1133, %v1134
        %v1136 = vrot.slane %v1135, 2
        %v1137 = vmax.f32 %v1135, %v1136
        %v1138 = vrot.slane %v1137, 1
        %v1139 = vmax.f32 %v1137, %v1138
        %v1140 = vmax.f32 %v1130, %v1132
        %v1141 = vrot.slane %v1140, 4
        %v1142 = vmax.f32 %v1140, %v1141
        %v1143 = vrot.slane %v1142, 2
        %v1144 = vmax.f32 %v1142, %v1143
        %v1145 = vrot.slane %v1144, 1
        %v1146 = vmax.f32 %v1144, %v1145
        %p1147 = scmp.eq.s32.totalorder %s24, 0
        // Predicated region
        $region53: #{pointnet_siamese_forward.4} parent=47 // pred_check
          %p1148 = pneg %p1147
        $region54: #{pointnet_siamese_forward.4} parent=47 // pred_check_branch
          %1150 = sbr.rel (%p1148) target = $region56
        $region55: #{pointnet_siamese_forward.4} parent=47 // pred_region
          %v1159 = vcombine.low %v632, %v639
          %v1160 = vcombine.low %v801, %v808
          %v1161 = vcombine.low %v970, %v977
          %v1162 = vcombine.low %v1139, %v1146
          %v1164 = vunpack.c.l.s4 1966171168
          %v1165 = vunpack.c.0.s8 %v1164
          %v1166 = vlaneseq
          %v1167 = vshrl.u32 %v1166, 7
          %v1168 = vsub.s32 %v1165, %v1167
          %v1169 = vrot.slane %v1159, %v1168
          %v1171 = vunpack.c.l.s4 1966171168
          %v1172 = vunpack.c.0.s8 %v1171
          %v1173 = vlaneseq
          %v1174 = vshrl.u32 %v1173, 7
          %v1175 = vsub.s32 %v1172, %v1174
          %v1176 = vrot.slane %v1160, %v1175
          %v1178 = vunpack.c.l.s4 1966171168
          %v1179 = vunpack.c.0.s8 %v1178
          %v1180 = vlaneseq
          %v1181 = vshrl.u32 %v1180, 7
          %v1182 = vsub.s32 %v1179, %v1181
          %v1183 = vrot.slane %v1161, %v1182
          %v1185 = vunpack.c.l.s4 1966171168
          %v1186 = vunpack.c.0.s8 %v1185
          %v1187 = vlaneseq
          %v1188 = vshrl.u32 %v1187, 7
          %v1189 = vsub.s32 %v1186, %v1188
          %v1190 = vrot.slane %v1162, %v1189
          %v1191 = vcombine.low %v1169, %v1176
          %v1192 = vcombine.low %v1183, %v1190
          %v1194 = vunpack.c.l.s4 1966171168
          %v1195 = vunpack.c.0.s8 %v1194
          %v1196 = vlaneseq
          %v1197 = vshrl.u32 %v1196, 7
          %v1198 = vsub.s32 %v1195, %v1197
          %v1199 = vrot.slane %v1191, %v1198
          %v1201 = vunpack.c.l.s4 1966171168
          %v1202 = vunpack.c.0.s8 %v1201
          %v1203 = vlaneseq
          %v1204 = vshrl.u32 %v1203, 7
          %v1205 = vsub.s32 %v1202, %v1204
          %v1206 = vrot.slane %v1192, %v1205
          %v1207 = vcombine.low %v1199, %v1206
          %1209 = vst [vmem:[%s319] sm:$0xff] %v1207
        $region56: #{pointnet_siamese_forward.4} parent=47 // pred_fallthru
          _
        %p1210 = scmp.gt.s32.totalorder %s24, 0
        // Predicated region
        $region57: #{pointnet_siamese_forward.4} parent=47 // pred_check
          %p1211 = pneg %p1210
        $region58: #{pointnet_siamese_forward.4} parent=47 // pred_check_branch
          %1213 = sbr.rel (%p1211) target = $region60
        $region59: #{pointnet_siamese_forward.4} parent=47 // pred_region
          %v1214 = vld [vmem:[%s319] sm:$0xff]
          %v1223 = vcombine.low %v632, %v639
          %v1224 = vcombine.low %v801, %v808
          %v1225 = vcombine.low %v970, %v977
          %v1226 = vcombine.low %v1139, %v1146
          %v1228 = vunpack.c.l.s4 1966171168
          %v1229 = vunpack.c.0.s8 %v1228
          %v1230 = vlaneseq
          %v1231 = vshrl.u32 %v1230, 7
          %v1232 = vsub.s32 %v1229, %v1231
          %v1233 = vrot.slane %v1223, %v1232
          %v1235 = vunpack.c.l.s4 1966171168
          %v1236 = vunpack.c.0.s8 %v1235
          %v1237 = vlaneseq
          %v1238 = vshrl.u32 %v1237, 7
          %v1239 = vsub.s32 %v1236, %v1238
          %v1240 = vrot.slane %v1224, %v1239
          %v1242 = vunpack.c.l.s4 1966171168
          %v1243 = vunpack.c.0.s8 %v1242
          %v1244 = vlaneseq
          %v1245 = vshrl.u32 %v1244, 7
          %v1246 = vsub.s32 %v1243, %v1245
          %v1247 = vrot.slane %v1225, %v1246
          %v1249 = vunpack.c.l.s4 1966171168
          %v1250 = vunpack.c.0.s8 %v1249
          %v1251 = vlaneseq
          %v1252 = vshrl.u32 %v1251, 7
          %v1253 = vsub.s32 %v1250, %v1252
          %v1254 = vrot.slane %v1226, %v1253
          %v1255 = vcombine.low %v1233, %v1240
          %v1256 = vcombine.low %v1247, %v1254
          %v1258 = vunpack.c.l.s4 1966171168
          %v1259 = vunpack.c.0.s8 %v1258
          %v1260 = vlaneseq
          %v1261 = vshrl.u32 %v1260, 7
          %v1262 = vsub.s32 %v1259, %v1261
          %v1263 = vrot.slane %v1255, %v1262
          %v1265 = vunpack.c.l.s4 1966171168
          %v1266 = vunpack.c.0.s8 %v1265
          %v1267 = vlaneseq
          %v1268 = vshrl.u32 %v1267, 7
          %v1269 = vsub.s32 %v1266, %v1268
          %v1270 = vrot.slane %v1256, %v1269
          %v1271 = vcombine.low %v1263, %v1270
          %v1273 = vmax.f32 %v1214, %v1271
          %1274 = vst [vmem:[%s319] sm:$0xff] %v1273
        $region60: #{pointnet_siamese_forward.4} parent=47 // pred_fallthru
          _
        %p1275 = scmp.lt.s32.totalorder %s23, 3
        %s1276 = scalar_select %p1275, %s23, 3
        %s1277 = smul.addr %s1276, 8
        %s1278 = scalar_lea.vmem %s7, %s1277
        // Predicated region
        $region61: #{pointnet_siamese_forward.4} parent=47 // pred_check
          %p1279 = pneg %p203
        $region62: #{pointnet_siamese_forward.4} parent=47 // pred_check_branch
          %1281 = sbr.rel (%p1279) target = $region64
        $region63: #{pointnet_siamese_forward.4} parent=47 // pred_region
          _
        $region64: #{pointnet_siamese_forward.4} parent=47 // pred_fallthru
          _
      $region48: #{pointnet_siamese_forward.4} parent=5 // pred_fallthru
        _
      %p1282 = scmp.le.s32.totalorder 2, %s14
      // Predicated region
      $region65: #{pointnet_siamese_forward.4} parent=5 // pred_check
        %p1283 = pneg %p1282
      $region66: #{pointnet_siamese_forward.4} parent=5 // pred_check_branch
        %1285 = sbr.rel (%p1283) target = $region68
      $region67: #{pointnet_siamese_forward.4} parent=5 // pred_region
        %s1286 = ssub.s32 %s14, 2
        // Predicated region
        $region69: #{pointnet_siamese_forward.4} parent=67 // pred_check
          %p1287 = pneg %p209
        $region70: #{pointnet_siamese_forward.4} parent=67 // pred_check_branch
          %1289 = sbr.rel (%p1287) target = $region72
        $region71: #{pointnet_siamese_forward.4} parent=67 // pred_region
          %p1290 = scmp.lt.s32.totalorder %s25, 3
          %s1291 = scalar_select %p1290, %s25, 3
          %s1292 = smul.addr %s1291, 8
          %s1293 = scalar_lea.vmem %s7, %s1292
        $region72: #{pointnet_siamese_forward.4} parent=67 // pred_fallthru
          _
      $region68: #{pointnet_siamese_forward.4} parent=5 // pred_fallthru
        _
    $region6: #{pointnet_siamese_forward.4} parent=1 // loop_footer
      %s18 = sadd.s32 1, %s14
    $region7: #{pointnet_siamese_forward.4} parent=1 // loop_footer_branch
      %13 = sbr.rel target = $region3
    $region8: #{pointnet_siamese_forward.4} parent=1 // loop_exit
      _
    %1294 = vsyncpa [#allocation3], 1
    %s1295 = scalar_lea.sflag [#allocation3], 1
    %1296 = vsyncpa %s1295, 1

// kernel: pointnet_siamese_forward.6
$region0: #{pointnet_siamese_forward.6}
  #allocation0 [shape = 'u32[]', space=smem, size = 0x4, offset = 0x4, fixed_abs, tag = 'smem constant byte address 0x4 - core index']
  #allocation1 [shape = 'u32[144,128]{1,0:T(1,128)}', space=vmem, size = 0x12000, scoped, tag = 'internal scratch']
  %s0 = inlined_call_operand.vmem [shape: f32[4,16,3], index: 0, kind: input, shape index: {}]
  %s1 = inlined_call_operand.vmem [shape: f32[4,3,64], index: 1, kind: input, shape index: {}]
  %s2 = inlined_call_operand.vmem [shape: f32[1,64], index: 2, kind: input, shape index: {}]
  %s3 = inlined_call_operand.vmem [shape: bf16[64,128], index: 3, kind: input, shape index: {}]
  %s4 = inlined_call_operand.vmem [shape: f32[1,128], index: 4, kind: input, shape index: {}]
  %s5 = inlined_call_operand.vmem [shape: bf16[128,1024], index: 5, kind: input, shape index: {}]
  %s6 = inlined_call_operand.vmem [shape: f32[1,1024], index: 6, kind: input, shape index: {}]
  %s7 = inlined_call_operand.vmem [shape: f32[4,1,1024], index: 7, kind: output, shape index: {}]
  %s8 = sld [smem:[#allocation0]]
  $region69: #{pointnet_siamese_forward.6} parent=0
    _
  %s10 = ssub.s32 1, %s8
  %s11 = scalar_select 0, %s10, %s8
  loop: start=0, step=1, limit=6
  $region2: #{pointnet_siamese_forward.6} parent=0 // loop_pre_header
    _
  $region3: #{pointnet_siamese_forward.6} parent=0 // loop_header
    %s13 = sphi 0, %s17
    %p14 = scmp.ge.s32.totalorder %s13, 6
    %s20 = sphi 0, %s32
    %s21 = sphi 0, %s28
    %s22 = sphi 0, %s20
    %s23 = sphi 0, %s21
    %s24 = sphi 0, %s22
    %s25 = sphi 0, %s23
    %s37 = sphi 0, %s39
    %s40 = sphi 0, %s37
    %s41 = sphi 0, %s40
    %s57 = sphi 0, %s41
    %s63 = sphi 0, %s65
    %s66 = sphi 0, %s63
    %s67 = sphi 0, %s66
    %s83 = sphi 0, %s67
    %s87 = sphi 0, %s87
    %s89 = sphi 0, %s87
    %s90 = sphi 0, %s89
    %s104 = sphi 0, %s90
    %s108 = sphi 0, %s108
    %s110 = sphi 0, %s108
    %s111 = sphi 0, %s110
    %s125 = sphi 0, %s111
    %s129 = sphi 0, %s129
    %s131 = sphi 0, %s129
    %s132 = sphi 0, %s131
    %s146 = sphi 0, %s132
    %s150 = sphi 0, %s150
    %s152 = sphi 0, %s150
    %s153 = sphi 0, %s152
    %s167 = sphi 0, %s153
    %s171 = sphi 0, %s171
    %s173 = sphi 0, %s171
    %s174 = sphi 0, %s173
    %s188 = sphi 0, %s174
    %s194 = sphi 0, %s196
    %s197 = sphi 0, %s194
    %s198 = sphi 0, %s197
    %s214 = sphi 0, %s198
  $region4: #{pointnet_siamese_forward.6} parent=0 // loop_header_branch
    %16 = sbr.rel (%p14) target = $region8
  $region5: #{pointnet_siamese_forward.6} parent=0 // loop_body
    %s18 = ssub.s32 %s13, 1
    %s19 = ssub.s32 %s13, 2
    %s26 = sadd.s32 1, %s21
    %p27 = scmp.ge.s32.totalorder %s26, 1
    %s28 = scalar_select %p27, 0, %s26
    %s29 = sadd.s32 1, %s20
    %s30 = scalar_select %p27, %s29, %s20
    %p31 = scmp.ge.s32.totalorder %s30, 4
    %s32 = scalar_select %p31, 0, %s30
    %s33 = ssub.s32 %s20, %s32
    %s34 = ssub.s32 %s21, %s28
    %s35 = sor.u32 %s33, %s34
    %p36 = scmp.eq.s32.totalorder %s35, 0
    %s38 = sadd.s32 %s37, 1
    %s39 = scalar_select %p36, %s37, %s38
    %p42 = pneg %p36
    %p43 = scmp.eq.s32.totalorder %s13, 3
    %p44 = por %p42, %p43
    %p45 = scmp.ne.s32.totalorder %s37, %s40
    %p46 = scmp.eq.s32.totalorder %s13, 0
    %p47 = por %p45, %p46
    %p48 = scmp.ne.s32.totalorder %s37, %s40
    %p49 = scmp.eq.s32.totalorder %s18, 3
    %p50 = por %p48, %p49
    %p51 = scmp.ne.s32.totalorder %s40, %s41
    %p52 = scmp.eq.s32.totalorder %s18, 0
    %p53 = por %p51, %p52
    %p54 = scmp.ne.s32.totalorder %s40, %s41
    %p55 = scmp.eq.s32.totalorder %s19, 3
    %p56 = por %p54, %p55
    %p58 = scmp.ne.s32.totalorder %s41, %s57
    %p59 = scmp.eq.s32.totalorder %s19, 0
    %p60 = por %p58, %p59
    %s61 = ssub.s32 %s20, %s32
    %p62 = scmp.eq.s32.totalorder %s61, 0
    %s64 = sadd.s32 %s63, 1
    %s65 = scalar_select %p62, %s63, %s64
    %p68 = pneg %p62
    %p69 = scmp.eq.s32.totalorder %s13, 3
    %p70 = por %p68, %p69
    %p71 = scmp.ne.s32.totalorder %s63, %s66
    %p72 = scmp.eq.s32.totalorder %s13, 0
    %p73 = por %p71, %p72
    %p74 = scmp.ne.s32.totalorder %s63, %s66
    %p75 = scmp.eq.s32.totalorder %s18, 3
    %p76 = por %p74, %p75
    %p77 = scmp.ne.s32.totalorder %s66, %s67
    %p78 = scmp.eq.s32.totalorder %s18, 0
    %p79 = por %p77, %p78
    %p80 = scmp.ne.s32.totalorder %s66, %s67
    %p81 = scmp.eq.s32.totalorder %s19, 3
    %p82 = por %p80, %p81
    %p84 = scmp.ne.s32.totalorder %s67, %s83
    %p85 = scmp.eq.s32.totalorder %s19, 0
    %p86 = por %p84, %p85
    %s88 = sadd.s32 %s87, 1
    %p91 = scmp.eq.s32.totalorder %s13, 3
    %p92 = scmp.ne.s32.totalorder %s87, %s89
    %p93 = scmp.eq.s32.totalorder %s13, 0
    %p94 = por %p92, %p93
    %p95 = scmp.ne.s32.totalorder %s87, %s89
    %p96 = scmp.eq.s32.totalorder %s18, 3
    %p97 = por %p95, %p96
    %p98 = scmp.ne.s32.totalorder %s89, %s90
    %p99 = scmp.eq.s32.totalorder %s18, 0
    %p100 = por %p98, %p99
    %p101 = scmp.ne.s32.totalorder %s89, %s90
    %p102 = scmp.eq.s32.totalorder %s19, 3
    %p103 = por %p101, %p102
    %p105 = scmp.ne.s32.totalorder %s90, %s104
    %p106 = scmp.eq.s32.totalorder %s19, 0
    %p107 = por %p105, %p106
    %s109 = sadd.s32 %s108, 1
    %p112 = scmp.eq.s32.totalorder %s13, 3
    %p113 = scmp.ne.s32.totalorder %s108, %s110
    %p114 = scmp.eq.s32.totalorder %s13, 0
    %p115 = por %p113, %p114
    %p116 = scmp.ne.s32.totalorder %s108, %s110
    %p117 = scmp.eq.s32.totalorder %s18, 3
    %p118 = por %p116, %p117
    %p119 = scmp.ne.s32.totalorder %s110, %s111
    %p120 = scmp.eq.s32.totalorder %s18, 0
    %p121 = por %p119, %p120
    %p122 = scmp.ne.s32.totalorder %s110, %s111
    %p123 = scmp.eq.s32.totalorder %s19, 3
    %p124 = por %p122, %p123
    %p126 = scmp.ne.s32.totalorder %s111, %s125
    %p127 = scmp.eq.s32.totalorder %s19, 0
    %p128 = por %p126, %p127
    %s130 = sadd.s32 %s129, 1
    %p133 = scmp.eq.s32.totalorder %s13, 3
    %p134 = scmp.ne.s32.totalorder %s129, %s131
    %p135 = scmp.eq.s32.totalorder %s13, 0
    %p136 = por %p134, %p135
    %p137 = scmp.ne.s32.totalorder %s129, %s131
    %p138 = scmp.eq.s32.totalorder %s18, 3
    %p139 = por %p137, %p138
    %p140 = scmp.ne.s32.totalorder %s131, %s132
    %p141 = scmp.eq.s32.totalorder %s18, 0
    %p142 = por %p140, %p141
    %p143 = scmp.ne.s32.totalorder %s131, %s132
    %p144 = scmp.eq.s32.totalorder %s19, 3
    %p145 = por %p143, %p144
    %p147 = scmp.ne.s32.totalorder %s132, %s146
    %p148 = scmp.eq.s32.totalorder %s19, 0
    %p149 = por %p147, %p148
    %s151 = sadd.s32 %s150, 1
    %p154 = scmp.eq.s32.totalorder %s13, 3
    %p155 = scmp.ne.s32.totalorder %s150, %s152
    %p156 = scmp.eq.s32.totalorder %s13, 0
    %p157 = por %p155, %p156
    %p158 = scmp.ne.s32.totalorder %s150, %s152
    %p159 = scmp.eq.s32.totalorder %s18, 3
    %p160 = por %p158, %p159
    %p161 = scmp.ne.s32.totalorder %s152, %s153
    %p162 = scmp.eq.s32.totalorder %s18, 0
    %p163 = por %p161, %p162
    %p164 = scmp.ne.s32.totalorder %s152, %s153
    %p165 = scmp.eq.s32.totalorder %s19, 3
    %p166 = por %p164, %p165
    %p168 = scmp.ne.s32.totalorder %s153, %s167
    %p169 = scmp.eq.s32.totalorder %s19, 0
    %p170 = por %p168, %p169
    %s172 = sadd.s32 %s171, 1
    %p175 = scmp.eq.s32.totalorder %s13, 3
    %p176 = scmp.ne.s32.totalorder %s171, %s173
    %p177 = scmp.eq.s32.totalorder %s13, 0
    %p178 = por %p176, %p177
    %p179 = scmp.ne.s32.totalorder %s171, %s173
    %p180 = scmp.eq.s32.totalorder %s18, 3
    %p181 = por %p179, %p180
    %p182 = scmp.ne.s32.totalorder %s173, %s174
    %p183 = scmp.eq.s32.totalorder %s18, 0
    %p184 = por %p182, %p183
    %p185 = scmp.ne.s32.totalorder %s173, %s174
    %p186 = scmp.eq.s32.totalorder %s19, 3
    %p187 = por %p185, %p186
    %p189 = scmp.ne.s32.totalorder %s174, %s188
    %p190 = scmp.eq.s32.totalorder %s19, 0
    %p191 = por %p189, %p190
    %s192 = ssub.s32 %s20, %s32
    %p193 = scmp.eq.s32.totalorder %s192, 0
    %s195 = sadd.s32 %s194, 1
    %s196 = scalar_select %p193, %s194, %s195
    %p199 = pneg %p193
    %p200 = scmp.eq.s32.totalorder %s13, 3
    %p201 = por %p199, %p200
    %p202 = scmp.ne.s32.totalorder %s194, %s197
    %p203 = scmp.eq.s32.totalorder %s13, 0
    %p204 = por %p202, %p203
    %p205 = scmp.ne.s32.totalorder %s194, %s197
    %p206 = scmp.eq.s32.totalorder %s18, 3
    %p207 = por %p205, %p206
    %p208 = scmp.ne.s32.totalorder %s197, %s198
    %p209 = scmp.eq.s32.totalorder %s18, 0
    %p210 = por %p208, %p209
    %p211 = scmp.ne.s32.totalorder %s197, %s198
    %p212 = scmp.eq.s32.totalorder %s19, 3
    %p213 = por %p211, %p212
    %p215 = scmp.ne.s32.totalorder %s198, %s214
    %p216 = scmp.eq.s32.totalorder %s19, 0
    %p217 = por %p215, %p216
    %p218 = scmp.le.s32.totalorder 1, %s13
    %p219 = scmp.lt.s32.totalorder %s13, 5
    %p220 = pnand %p218, %p219
    %p221 = pneg %p220
    // Predicated region
    $region9: #{pointnet_siamese_forward.6} parent=5 // pred_check
      _
    $region10: #{pointnet_siamese_forward.6} parent=5 // pred_check_branch
      %223 = sbr.rel (%p220) target = $region12
    $region11: #{pointnet_siamese_forward.6} parent=5 // pred_region
      %s224 = ssub.s32 %s13, 1
      // Predicated region
      $region13: #{pointnet_siamese_forward.6} parent=11 // pred_check
        %p225 = pneg %p100
      $region14: #{pointnet_siamese_forward.6} parent=11 // pred_check_branch
        %227 = sbr.rel (%p225) target = $region16
      $region15: #{pointnet_siamese_forward.6} parent=11 // pred_region
        _
      $region16: #{pointnet_siamese_forward.6} parent=11 // pred_fallthru
        _
      // Predicated region
      $region17: #{pointnet_siamese_forward.6} parent=11 // pred_check
        %p228 = pneg %p121
      $region18: #{pointnet_siamese_forward.6} parent=11 // pred_check_branch
        %230 = sbr.rel (%p228) target = $region20
      $region19: #{pointnet_siamese_forward.6} parent=11 // pred_region
        _
      $region20: #{pointnet_siamese_forward.6} parent=11 // pred_fallthru
        _
      // Predicated region
      $region21: #{pointnet_siamese_forward.6} parent=11 // pred_check
        %p231 = pneg %p142
      $region22: #{pointnet_siamese_forward.6} parent=11 // pred_check_branch
        %233 = sbr.rel (%p231) target = $region24
      $region23: #{pointnet_siamese_forward.6} parent=11 // pred_region
        _
      $region24: #{pointnet_siamese_forward.6} parent=11 // pred_fallthru
        _
      // Predicated region
      $region25: #{pointnet_siamese_forward.6} parent=11 // pred_check
        %p234 = pneg %p163
      $region26: #{pointnet_siamese_forward.6} parent=11 // pred_check_branch
        %236 = sbr.rel (%p234) target = $region28
      $region27: #{pointnet_siamese_forward.6} parent=11 // pred_region
        _
      $region28: #{pointnet_siamese_forward.6} parent=11 // pred_fallthru
        _
      // Predicated region
      $region29: #{pointnet_siamese_forward.6} parent=11 // pred_check
        %p237 = pneg %p184
      $region30: #{pointnet_siamese_forward.6} parent=11 // pred_check_branch
        %239 = sbr.rel (%p237) target = $region32
      $region31: #{pointnet_siamese_forward.6} parent=11 // pred_region
        _
      $region32: #{pointnet_siamese_forward.6} parent=11 // pred_fallthru
        _
    $region12: #{pointnet_siamese_forward.6} parent=5 // pred_fallthru
      _
    %p240 = scmp.lt.s32.totalorder %s13, 4
    // Predicated region
    $region33: #{pointnet_siamese_forward.6} parent=5 // pred_check
      %p241 = pneg %p240
    $region34: #{pointnet_siamese_forward.6} parent=5 // pred_check_branch
      %243 = sbr.rel (%p241) target = $region36
    $region35: #{pointnet_siamese_forward.6} parent=5 // pred_region
      // Predicated region
      $region37: #{pointnet_siamese_forward.6} parent=35 // pred_check
        %p244 = pneg %p47
      $region38: #{pointnet_siamese_forward.6} parent=35 // pred_check_branch
        %246 = sbr.rel (%p244) target = $region40
      $region39: #{pointnet_siamese_forward.6} parent=35 // pred_region
        %s247 = smul.u32 2, %s21
        %p248 = scmp.lt.s32.totalorder %s20, 3
        %s249 = scalar_select %p248, %s20, 3
        %p250 = scmp.lt.s32.totalorder %s247, 1
        %s251 = scalar_select %p250, %s247, 1
        %s252 = smul.addr %s249, 2
        %s253 = sadd.s32 %s251, %s252
        %s254 = smul.addr %s253, 8
        %s255 = scalar_lea.vmem %s0, %s254
        %s256 = smul.u32 2, %s21
      $region40: #{pointnet_siamese_forward.6} parent=35 // pred_fallthru
        _
      // Predicated region
      $region41: #{pointnet_siamese_forward.6} parent=35 // pred_check
        %p257 = pneg %p73
      $region42: #{pointnet_siamese_forward.6} parent=35 // pred_check_branch
        %259 = sbr.rel (%p257) target = $region44
      $region43: #{pointnet_siamese_forward.6} parent=35 // pred_region
        %p260 = scmp.lt.s32.totalorder %s20, 3
        %s261 = scalar_select %p260, %s20, 3
        %s262 = smul.addr %s261, 4
        %s263 = scalar_lea.vmem %s1, %s262
      $region44: #{pointnet_siamese_forward.6} parent=35 // pred_fallthru
        _
    $region36: #{pointnet_siamese_forward.6} parent=5 // pred_fallthru
      _
    %p264 = scmp.le.s32.totalorder 1, %s13
    %p265 = scmp.lt.s32.totalorder %s13, 5
    %p266 = pnand %p264, %p265
    %p267 = pneg %p266
    // Predicated region
    $region45: #{pointnet_siamese_forward.6} parent=5 // pred_check
      _
    $region46: #{pointnet_siamese_forward.6} parent=5 // pred_check_branch
      %269 = sbr.rel (%p266) target = $region48
    $region47: #{pointnet_siamese_forward.6} parent=5 // pred_region
      %s270 = ssub.s32 %s13, 1
      %s271 = smul.u32 2, %s23
      %p272 = scmp.lt.s32.totalorder %s22, 3
      %s273 = scalar_select %p272, %s22, 3
      %p274 = scmp.lt.s32.totalorder %s271, 1
      %s275 = scalar_select %p274, %s271, 1
      %s276 = smul.addr %s273, 2
      %s277 = sadd.s32 %s275, %s276
      %s278 = smul.addr %s277, 8
      %s279 = scalar_lea.vmem %s0, %s278
      %p280 = pneg %p53
      %p281 = pneg %p50
      %p282 = scmp.lt.s32.totalorder %s22, 3
      %s283 = scalar_select %p282, %s22, 3
      %s284 = smul.addr %s283, 4
      %s285 = scalar_lea.vmem %s1, %s284
      %p286 = pneg %p79
      %p287 = pneg %p76
      %p288 = pneg %p100
      %p289 = pneg %p97
      %p290 = pneg %p121
      %p291 = pneg %p118
      %p292 = pneg %p142
      %p293 = pneg %p139
      %p294 = pneg %p163
      %p295 = pneg %p160
      %p296 = pneg %p184
      %p297 = pneg %p181
      %p298 = pneg %p210
      %p299 = pneg %p207
      %p300 = scmp.lt.s32.totalorder %s22, 3
      %s301 = scalar_select %p300, %s22, 3
      %s302 = smul.addr %s301, 8
      %s303 = scalar_lea.vmem %s7, %s302
      %s304 = smul.u32 2, %s23
      %p305 = scmp.lt.s32.totalorder %s22, 3
      %s306 = scalar_select %p305, %s22, 3
      %p307 = scmp.lt.s32.totalorder %s304, 1
      %s308 = scalar_select %p307, %s304, 1
      %s309 = smul.addr %s306, 2
      %s310 = sadd.s32 %s308, %s309
      %s311 = smul.addr %s310, 8
      %s312 = scalar_lea.vmem %s0, %s311
      %s313 = smul.u32 2, %s23
      %p314 = scmp.lt.s32.totalorder %s22, 3
      %s315 = scalar_select %p314, %s22, 3
      %s316 = smul.addr %s315, 4
      %s317 = scalar_lea.vmem %s1, %s316
      %p318 = scmp.lt.s32.totalorder %s22, 3
      %s319 = scalar_select %p318, %s22, 3
      %s320 = smul.addr %s319, 8
      %s321 = scalar_lea.vmem %s7, %s320
      %v323 = vld [vmem:[%s312] sm:$0xff]
      %v324 = vld [vmem:[%s312 + $0x8] sm:$0xff]
      %v325 = vld [vmem:[%s317] sm:$0x7]
      %327 = vset.pattern.permute.xlu0 0
      %328 = vperm.xlu0 %327, %v323
      %v329 = vpop.permute.xlu0 %328
      %332 = vset.pattern.permute.xlu0 0
      %333 = vperm.xlu0 %332, %v324
      %v334 = vpop.permute.xlu0 %333
      %v336 = vlaneseq
      %v337 = vshrl.u32 %v336, 7
      %v338 = vsub.s32 0, %v337
      %v339 = vrot.slane %v325, %v338
      %v340 = vmul.f32 %v329, %v339
      %v341 = vmul.f32 %v334, %v339
      %342 = vset.pattern.permute.xlu0 1
      %343 = vperm.xlu0 %342, %v323
      %v344 = vpop.permute.xlu0 %343
      %346 = vset.pattern.permute.xlu0 1
      %347 = vperm.xlu0 %346, %v324
      %v348 = vpop.permute.xlu0 %347
      %v350 = vlaneseq
      %v351 = vshrl.u32 %v350, 7
      %v352 = vsub.s32 1, %v351
      %v353 = vrot.slane %v325, %v352
      %v354 = vmul.f32 %v344, %v353
      %v355 = vmul.f32 %v348, %v353
      %v356 = vadd.f32 %v340, %v354
      %v357 = vadd.f32 %v341, %v355
      %358 = vset.pattern.permute.xlu0 2
      %359 = vperm.xlu0 %358, %v323
      %v360 = vpop.permute.xlu0 %359
      %362 = vset.pattern.permute.xlu0 2
      %363 = vperm.xlu0 %362, %v324
      %v364 = vpop.permute.xlu0 %363
      %v366 = vlaneseq
      %v367 = vshrl.u32 %v366, 7
      %v368 = vsub.s32 2, %v367
      %v369 = vrot.slane %v325, %v368
      %v370 = vmul.f32 %v360, %v369
      %v371 = vmul.f32 %v364, %v369
      %v372 = vadd.f32 %v356, %v370
      %v373 = vadd.f32 %v357, %v371
      %v374 = vld [vmem:[%s2] sm:$0x1]
      %v376 = vlaneseq
      %v377 = vshrl.u32 %v376, 7
      %v378 = vsub.s32 0, %v377
      %v379 = vrot.slane %v374, %v378
      %v381 = vadd.f32 %v372, %v379
      %v382 = vadd.f32 %v373, %v379
      %v383 = vmax.f32 %v381, 0.0
      %v384 = vmax.f32 %v382, 0.0
      %v385 = vpack.c.bf16 %v384, %v383
      %v386 = vld [vmem:[%s3] sm:$0xf]
      %v387 = vld [vmem:[%s3 + $0x4] sm:$0xf]
      %v388 = vld [vmem:[%s3 + $0x8] sm:$0xf]
      %v389 = vld [vmem:[%s3 + $0xc] sm:$0xf]
      %v390 = vld [vmem:[%s3 + $0x10] sm:$0xf]
      %v391 = vld [vmem:[%s3 + $0x14] sm:$0xf]
      %v392 = vld [vmem:[%s3 + $0x18] sm:$0xf]
      %v393 = vld [vmem:[%s3 + $0x1c] sm:$0xf]
      %v394 = vld [vmem:[%s4] sm:$0x1]
      %v396 = vlaneseq
      %v397 = vshrl.u32 %v396, 7
      %v398 = vsub.s32 0, %v397
      %v399 = vrot.slane %v394, %v398
      %v409 = vunpack.c.l.b16 %v386
      %v410 = vunpack.c.l.b16 %v387
      %v411 = vunpack.c.l.b16 %v388
      %v412 = vunpack.c.l.b16 %v389
      %v413 = vunpack.c.l.b16 %v390
      %v414 = vunpack.c.l.b16 %v391
      %v415 = vunpack.c.l.b16 %v392
      %v416 = vunpack.c.l.b16 %v393
      %v417 = vpack.c.b16 %v410, %v409
      %v418 = vpack.c.b16 %v412, %v411
      %v419 = vpack.c.b16 %v414, %v413
      %v420 = vpack.c.b16 %v416, %v415
      %vm425 = vcmask 523264
      %v427 = vsel %vm425, %v385, 0
      %429 = vmatprep.subr.bf16.mxu0 0
      %430 = vmatpush1.bf16.msra.mxu0 %v417
      %431 = vmatprep.subr.bf16.mxu0 0
      %432 = vmatpush1.bf16.msra.mxu0 %v418
      %433 = vmatprep.subr.bf16.mxu0 0
      %434 = vmatpush1.bf16.msra.mxu0 %v419
      %435 = vmatprep.subr.bf16.mxu0 0
      %436 = vmatpush1.bf16.msra.mxu0 %v420
      %437 = vmatprep.subr.bf16.mxu0 0
      %438 = vmatpush1.bf16.msra.mxu0 0
      %439 = vmatprep.subr.bf16.mxu0 0
      %440 = vmatpush1.bf16.msra.mxu0 0
      %441 = vmatprep.subr.bf16.mxu0 0
      %442 = vmatpush1.bf16.msra.mxu0 0
      %443 = vmatprep.subr.bf16.mxu0 0
      %444 = vmatpush1.bf16.msra.mxu0 0
      %445 = vmatprep.subr.bf16.mxu0 0
      %446 = vmatpush1.bf16.msra.mxu0 0
      %447 = vmatprep.subr.bf16.mxu0 0
      %448 = vmatpush1.bf16.msra.mxu0 0
      %449 = vmatprep.subr.bf16.mxu0 0
      %450 = vmatpush1.bf16.msra.mxu0 0
      %451 = vmatprep.subr.bf16.mxu0 0
      %452 = vmatpush1.bf16.msra.mxu0 0
      %453 = vmatprep.subr.bf16.mxu0 0
      %454 = vmatpush1.bf16.msra.mxu0 0
      %455 = vmatprep.subr.bf16.mxu0 0
      %456 = vmatpush1.bf16.msra.mxu0 0
      %457 = vmatprep.subr.bf16.mxu0 0
      %458 = vmatpush1.bf16.msra.mxu0 0
      %459 = vmatprep.subr.bf16.mxu0 0
      %460 = vmatpush1.bf16.msra.mxu0 0
      %461 = vmatprep.mubr.bf16.mxu0 0
      %462 = vmatmul.mubr.bf16.gmra.mrb[0].mxu0 %v427
      %v463 = vpop.f32.mrb[0].mxu0
      %v464 = vadd.f32 %v399, %v463
      %v465 = vpop.f32.mrb[0].mxu0
      %v466 = vpop.f32.mrb[0].mxu0
      %v467 = vadd.f32 %v399, %v466
      %v468 = vpop.f32.mrb[0].mxu0
      %469 = vdwg.mxu0
      %v470 = vmax.f32 %v464, 0.0
      %v471 = vmax.f32 %v467, 0.0
      %v472 = vpack.c.bf16 %v471, %v470
      %v473 = vld [vmem:[%s5] sm:$0xff]
      %v474 = vld [vmem:[%s5 + $0x20] sm:$0xff]
      %v475 = vld [vmem:[%s5 + $0x40] sm:$0xff]
      %v476 = vld [vmem:[%s5 + $0x60] sm:$0xff]
      %v477 = vld [vmem:[%s5 + $0x80] sm:$0xff]
      %v478 = vld [vmem:[%s5 + $0xa0] sm:$0xff]
      %v479 = vld [vmem:[%s5 + $0xc0] sm:$0xff]
      %v480 = vld [vmem:[%s5 + $0xe0] sm:$0xff]
      %v481 = vld [vmem:[%s5 + $0x100] sm:$0xff]
      %v482 = vld [vmem:[%s5 + $0x120] sm:$0xff]
      %v483 = vld [vmem:[%s5 + $0x140] sm:$0xff]
      %v484 = vld [vmem:[%s5 + $0x160] sm:$0xff]
      %v485 = vld [vmem:[%s5 + $0x180] sm:$0xff]
      %v486 = vld [vmem:[%s5 + $0x1a0] sm:$0xff]
      %v487 = vld [vmem:[%s5 + $0x1c0] sm:$0xff]
      %v488 = vld [vmem:[%s5 + $0x1e0] sm:$0xff]
      %v489 = vld [vmem:[%s6] sm:$0x3]
      %v491 = vlaneseq
      %v492 = vshrl.u32 %v491, 7
      %v493 = vsub.s32 0, %v492
      %v494 = vrot.slane %v489, %v493
      %v495 = vlaneseq
      %v496 = vshrl.u32 %v495, 7
      %v497 = vsub.s32 1, %v496
      %v498 = vrot.slane %v489, %v497
      %v517 = vunpack.c.l.b16 %v473
      %v518 = vunpack.c.h.b16 %v473
      %v519 = vunpack.c.l.b16 %v474
      %v520 = vunpack.c.h.b16 %v474
      %v521 = vunpack.c.l.b16 %v475
      %v522 = vunpack.c.h.b16 %v475
      %v523 = vunpack.c.l.b16 %v476
      %v524 = vunpack.c.h.b16 %v476
      %v525 = vunpack.c.l.b16 %v477
      %v526 = vunpack.c.h.b16 %v477
      %v527 = vunpack.c.l.b16 %v478
      %v528 = vunpack.c.h.b16 %v478
      %v529 = vunpack.c.l.b16 %v479
      %v530 = vunpack.c.h.b16 %v479
      %v531 = vunpack.c.l.b16 %v480
      %v532 = vunpack.c.h.b16 %v480
      %v533 = vunpack.c.l.b16 %v481
      %v534 = vunpack.c.h.b16 %v481
      %v535 = vunpack.c.l.b16 %v482
      %v536 = vunpack.c.h.b16 %v482
      %v537 = vunpack.c.l.b16 %v483
      %v538 = vunpack.c.h.b16 %v483
      %v539 = vunpack.c.l.b16 %v484
      %v540 = vunpack.c.h.b16 %v484
      %v541 = vunpack.c.l.b16 %v485
      %v542 = vunpack.c.h.b16 %v485
      %v543 = vunpack.c.l.b16 %v486
      %v544 = vunpack.c.h.b16 %v486
      %v545 = vunpack.c.l.b16 %v487
      %v546 = vunpack.c.h.b16 %v487
      %v547 = vunpack.c.l.b16 %v488
      %v548 = vunpack.c.h.b16 %v488
      %v549 = vpack.c.b16 %v519, %v517
      %v550 = vpack.c.b16 %v520, %v518
      %v551 = vpack.c.b16 %v523, %v521
      %v552 = vpack.c.b16 %v524, %v522
      %v553 = vpack.c.b16 %v527, %v525
      %v554 = vpack.c.b16 %v528, %v526
      %v555 = vpack.c.b16 %v531, %v529
      %v556 = vpack.c.b16 %v532, %v530
      %v557 = vpack.c.b16 %v535, %v533
      %v558 = vpack.c.b16 %v536, %v534
      %v559 = vpack.c.b16 %v539, %v537
      %v560 = vpack.c.b16 %v540, %v538
      %v561 = vpack.c.b16 %v543, %v541
      %v562 = vpack.c.b16 %v544, %v542
      %v563 = vpack.c.b16 %v547, %v545
      %v564 = vpack.c.b16 %v548, %v546
      %581 = vmatprep.subr.bf16.mxu0 %v550
      %582 = vmatpush1.bf16.msra.mxu0 %v549
      %583 = vmatprep.subr.bf16.mxu0 %v552
      %584 = vmatpush1.bf16.msra.mxu0 %v551
      %585 = vmatprep.subr.bf16.mxu0 %v554
      %586 = vmatpush1.bf16.msra.mxu0 %v553
      %587 = vmatprep.subr.bf16.mxu0 %v556
      %588 = vmatpush1.bf16.msra.mxu0 %v555
      %589 = vmatprep.subr.bf16.mxu0 %v558
      %590 = vmatpush1.bf16.msra.mxu0 %v557
      %591 = vmatprep.subr.bf16.mxu0 %v560
      %592 = vmatpush1.bf16.msra.mxu0 %v559
      %593 = vmatprep.subr.bf16.mxu0 %v562
      %594 = vmatpush1.bf16.msra.mxu0 %v561
      %595 = vmatprep.subr.bf16.mxu0 %v564
      %596 = vmatpush1.bf16.msra.mxu0 %v563
      %597 = vmatprep.subr.bf16.mxu0 0
      %598 = vmatpush1.bf16.msra.mxu0 0
      %599 = vmatprep.subr.bf16.mxu0 0
      %600 = vmatpush1.bf16.msra.mxu0 0
      %601 = vmatprep.subr.bf16.mxu0 0
      %602 = vmatpush1.bf16.msra.mxu0 0
      %603 = vmatprep.subr.bf16.mxu0 0
      %604 = vmatpush1.bf16.msra.mxu0 0
      %605 = vmatprep.subr.bf16.mxu0 0
      %606 = vmatpush1.bf16.msra.mxu0 0
      %607 = vmatprep.subr.bf16.mxu0 0
      %608 = vmatpush1.bf16.msra.mxu0 0
      %609 = vmatprep.subr.bf16.mxu0 0
      %610 = vmatpush1.bf16.msra.mxu0 0
      %611 = vmatprep.subr.bf16.mxu0 0
      %612 = vmatpush1.bf16.msra.mxu0 0
      %613 = vmatprep.mubr.bf16.mxu0 0
      %614 = vmatmul.mubr.bf16.gmra.mrb[0].mxu0 %v472
      %v615 = vpop.f32.mrb[0].mxu0
      %v616 = vadd.f32 %v494, %v615
      %v617 = vpop.f32.mrb[0].mxu0
      %v618 = vadd.f32 %v498, %v617
      %v619 = vpop.f32.mrb[0].mxu0
      %v620 = vadd.f32 %v494, %v619
      %v621 = vpop.f32.mrb[0].mxu0
      %v622 = vadd.f32 %v498, %v621
      %623 = vdwg.mxu0
      %v624 = vmax.f32 %v616, %v620
      %v625 = vrot.slane %v624, 4
      %v626 = vmax.f32 %v624, %v625
      %v627 = vrot.slane %v626, 2
      %v628 = vmax.f32 %v626, %v627
      %v629 = vrot.slane %v628, 1
      %v630 = vmax.f32 %v628, %v629
      %v631 = vmax.f32 %v618, %v622
      %v632 = vrot.slane %v631, 4
      %v633 = vmax.f32 %v631, %v632
      %v634 = vrot.slane %v633, 2
      %v635 = vmax.f32 %v633, %v634
      %v636 = vrot.slane %v635, 1
      %v637 = vmax.f32 %v635, %v636
      %v638 = vld [vmem:[%s5 + $0x8] sm:$0xff]
      %v639 = vld [vmem:[%s5 + $0x28] sm:$0xff]
      %v640 = vld [vmem:[%s5 + $0x48] sm:$0xff]
      %v641 = vld [vmem:[%s5 + $0x68] sm:$0xff]
      %v642 = vld [vmem:[%s5 + $0x88] sm:$0xff]
      %v643 = vld [vmem:[%s5 + $0xa8] sm:$0xff]
      %v644 = vld [vmem:[%s5 + $0xc8] sm:$0xff]
      %v645 = vld [vmem:[%s5 + $0xe8] sm:$0xff]
      %v646 = vld [vmem:[%s5 + $0x108] sm:$0xff]
      %v647 = vld [vmem:[%s5 + $0x128] sm:$0xff]
      %v648 = vld [vmem:[%s5 + $0x148] sm:$0xff]
      %v649 = vld [vmem:[%s5 + $0x168] sm:$0xff]
      %v650 = vld [vmem:[%s5 + $0x188] sm:$0xff]
      %v651 = vld [vmem:[%s5 + $0x1a8] sm:$0xff]
      %v652 = vld [vmem:[%s5 + $0x1c8] sm:$0xff]
      %v653 = vld [vmem:[%s5 + $0x1e8] sm:$0xff]
      %v654 = vld [vmem:[%s6 + $0x2] sm:$0x3]
      %v656 = vlaneseq
      %v657 = vshrl.u32 %v656, 7
      %v658 = vsub.s32 0, %v657
      %v659 = vrot.slane %v654, %v658
      %v660 = vlaneseq
      %v661 = vshrl.u32 %v660, 7
      %v662 = vsub.s32 1, %v661
      %v663 = vrot.slane %v654, %v662
      %v682 = vunpack.c.l.b16 %v638
      %v683 = vunpack.c.h.b16 %v638
      %v684 = vunpack.c.l.b16 %v639
      %v685 = vunpack.c.h.b16 %v639
      %v686 = vunpack.c.l.b16 %v640
      %v687 = vunpack.c.h.b16 %v640
      %v688 = vunpack.c.l.b16 %v641
      %v689 = vunpack.c.h.b16 %v641
      %v690 = vunpack.c.l.b16 %v642
      %v691 = vunpack.c.h.b16 %v642
      %v692 = vunpack.c.l.b16 %v643
      %v693 = vunpack.c.h.b16 %v643
      %v694 = vunpack.c.l.b16 %v644
      %v695 = vunpack.c.h.b16 %v644
      %v696 = vunpack.c.l.b16 %v645
      %v697 = vunpack.c.h.b16 %v645
      %v698 = vunpack.c.l.b16 %v646
      %v699 = vunpack.c.h.b16 %v646
      %v700 = vunpack.c.l.b16 %v647
      %v701 = vunpack.c.h.b16 %v647
      %v702 = vunpack.c.l.b16 %v648
      %v703 = vunpack.c.h.b16 %v648
      %v704 = vunpack.c.l.b16 %v649
      %v705 = vunpack.c.h.b16 %v649
      %v706 = vunpack.c.l.b16 %v650
      %v707 = vunpack.c.h.b16 %v650
      %v708 = vunpack.c.l.b16 %v651
      %v709 = vunpack.c.h.b16 %v651
      %v710 = vunpack.c.l.b16 %v652
      %v711 = vunpack.c.h.b16 %v652
      %v712 = vunpack.c.l.b16 %v653
      %v713 = vunpack.c.h.b16 %v653
      %v714 = vpack.c.b16 %v684, %v682
      %v715 = vpack.c.b16 %v685, %v683
      %v716 = vpack.c.b16 %v688, %v686
      %v717 = vpack.c.b16 %v689, %v687
      %v718 = vpack.c.b16 %v692, %v690
      %v719 = vpack.c.b16 %v693, %v691
      %v720 = vpack.c.b16 %v696, %v694
      %v721 = vpack.c.b16 %v697, %v695
      %v722 = vpack.c.b16 %v700, %v698
      %v723 = vpack.c.b16 %v701, %v699
      %v724 = vpack.c.b16 %v704, %v702
      %v725 = vpack.c.b16 %v705, %v703
      %v726 = vpack.c.b16 %v708, %v706
      %v727 = vpack.c.b16 %v709, %v707
      %v728 = vpack.c.b16 %v712, %v710
      %v729 = vpack.c.b16 %v713, %v711
      %746 = vmatprep.subr.bf16.mxu0 %v715
      %747 = vmatpush1.bf16.msra.mxu0 %v714
      %748 = vmatprep.subr.bf16.mxu0 %v717
      %749 = vmatpush1.bf16.msra.mxu0 %v716
      %750 = vmatprep.subr.bf16.mxu0 %v719
      %751 = vmatpush1.bf16.msra.mxu0 %v718
      %752 = vmatprep.subr.bf16.mxu0 %v721
      %753 = vmatpush1.bf16.msra.mxu0 %v720
      %754 = vmatprep.subr.bf16.mxu0 %v723
      %755 = vmatpush1.bf16.msra.mxu0 %v722
      %756 = vmatprep.subr.bf16.mxu0 %v725
      %757 = vmatpush1.bf16.msra.mxu0 %v724
      %758 = vmatprep.subr.bf16.mxu0 %v727
      %759 = vmatpush1.bf16.msra.mxu0 %v726
      %760 = vmatprep.subr.bf16.mxu0 %v729
      %761 = vmatpush1.bf16.msra.mxu0 %v728
      %762 = vmatprep.subr.bf16.mxu0 0
      %763 = vmatpush1.bf16.msra.mxu0 0
      %764 = vmatprep.subr.bf16.mxu0 0
      %765 = vmatpush1.bf16.msra.mxu0 0
      %766 = vmatprep.subr.bf16.mxu0 0
      %767 = vmatpush1.bf16.msra.mxu0 0
      %768 = vmatprep.subr.bf16.mxu0 0
      %769 = vmatpush1.bf16.msra.mxu0 0
      %770 = vmatprep.subr.bf16.mxu0 0
      %771 = vmatpush1.bf16.msra.mxu0 0
      %772 = vmatprep.subr.bf16.mxu0 0
      %773 = vmatpush1.bf16.msra.mxu0 0
      %774 = vmatprep.subr.bf16.mxu0 0
      %775 = vmatpush1.bf16.msra.mxu0 0
      %776 = vmatprep.subr.bf16.mxu0 0
      %777 = vmatpush1.bf16.msra.mxu0 0
      %778 = vmatprep.mubr.bf16.mxu0 0
      %779 = vmatmul.mubr.bf16.gmra.mrb[0].mxu0 %v472
      %v780 = vpop.f32.mrb[0].mxu0
      %v781 = vadd.f32 %v659, %v780
      %v782 = vpop.f32.mrb[0].mxu0
      %v783 = vadd.f32 %v663, %v782
      %v784 = vpop.f32.mrb[0].mxu0
      %v785 = vadd.f32 %v659, %v784
      %v786 = vpop.f32.mrb[0].mxu0
      %v787 = vadd.f32 %v663, %v786
      %788 = vdwg.mxu0
      %v789 = vmax.f32 %v781, %v785
      %v790 = vrot.slane %v789, 4
      %v791 = vmax.f32 %v789, %v790
      %v792 = vrot.slane %v791, 2
      %v793 = vmax.f32 %v791, %v792
      %v794 = vrot.slane %v793, 1
      %v795 = vmax.f32 %v793, %v794
      %v796 = vmax.f32 %v783, %v787
      %v797 = vrot.slane %v796, 4
      %v798 = vmax.f32 %v796, %v797
      %v799 = vrot.slane %v798, 2
      %v800 = vmax.f32 %v798, %v799
      %v801 = vrot.slane %v800, 1
      %v802 = vmax.f32 %v800, %v801
      %v803 = vld [vmem:[%s5 + $0x10] sm:$0xff]
      %v804 = vld [vmem:[%s5 + $0x30] sm:$0xff]
      %v805 = vld [vmem:[%s5 + $0x50] sm:$0xff]
      %v806 = vld [vmem:[%s5 + $0x70] sm:$0xff]
      %v807 = vld [vmem:[%s5 + $0x90] sm:$0xff]
      %v808 = vld [vmem:[%s5 + $0xb0] sm:$0xff]
      %v809 = vld [vmem:[%s5 + $0xd0] sm:$0xff]
      %v810 = vld [vmem:[%s5 + $0xf0] sm:$0xff]
      %v811 = vld [vmem:[%s5 + $0x110] sm:$0xff]
      %v812 = vld [vmem:[%s5 + $0x130] sm:$0xff]
      %v813 = vld [vmem:[%s5 + $0x150] sm:$0xff]
      %v814 = vld [vmem:[%s5 + $0x170] sm:$0xff]
      %v815 = vld [vmem:[%s5 + $0x190] sm:$0xff]
      %v816 = vld [vmem:[%s5 + $0x1b0] sm:$0xff]
      %v817 = vld [vmem:[%s5 + $0x1d0] sm:$0xff]
      %v818 = vld [vmem:[%s5 + $0x1f0] sm:$0xff]
      %v819 = vld [vmem:[%s6 + $0x4] sm:$0x3]
      %v821 = vlaneseq
      %v822 = vshrl.u32 %v821, 7
      %v823 = vsub.s32 0, %v822
      %v824 = vrot.slane %v819, %v823
      %v825 = vlaneseq
      %v826 = vshrl.u32 %v825, 7
      %v827 = vsub.s32 1, %v826
      %v828 = vrot.slane %v819, %v827
      %v847 = vunpack.c.l.b16 %v803
      %v848 = vunpack.c.h.b16 %v803
      %v849 = vunpack.c.l.b16 %v804
      %v850 = vunpack.c.h.b16 %v804
      %v851 = vunpack.c.l.b16 %v805
      %v852 = vunpack.c.h.b16 %v805
      %v853 = vunpack.c.l.b16 %v806
      %v854 = vunpack.c.h.b16 %v806
      %v855 = vunpack.c.l.b16 %v807
      %v856 = vunpack.c.h.b16 %v807
      %v857 = vunpack.c.l.b16 %v808
      %v858 = vunpack.c.h.b16 %v808
      %v859 = vunpack.c.l.b16 %v809
      %v860 = vunpack.c.h.b16 %v809
      %v861 = vunpack.c.l.b16 %v810
      %v862 = vunpack.c.h.b16 %v810
      %v863 = vunpack.c.l.b16 %v811
      %v864 = vunpack.c.h.b16 %v811
      %v865 = vunpack.c.l.b16 %v812
      %v866 = vunpack.c.h.b16 %v812
      %v867 = vunpack.c.l.b16 %v813
      %v868 = vunpack.c.h.b16 %v813
      %v869 = vunpack.c.l.b16 %v814
      %v870 = vunpack.c.h.b16 %v814
      %v871 = vunpack.c.l.b16 %v815
      %v872 = vunpack.c.h.b16 %v815
      %v873 = vunpack.c.l.b16 %v816
      %v874 = vunpack.c.h.b16 %v816
      %v875 = vunpack.c.l.b16 %v817
      %v876 = vunpack.c.h.b16 %v817
      %v877 = vunpack.c.l.b16 %v818
      %v878 = vunpack.c.h.b16 %v818
      %v879 = vpack.c.b16 %v849, %v847
      %v880 = vpack.c.b16 %v850, %v848
      %v881 = vpack.c.b16 %v853, %v851
      %v882 = vpack.c.b16 %v854, %v852
      %v883 = vpack.c.b16 %v857, %v855
      %v884 = vpack.c.b16 %v858, %v856
      %v885 = vpack.c.b16 %v861, %v859
      %v886 = vpack.c.b16 %v862, %v860
      %v887 = vpack.c.b16 %v865, %v863
      %v888 = vpack.c.b16 %v866, %v864
      %v889 = vpack.c.b16 %v869, %v867
      %v890 = vpack.c.b16 %v870, %v868
      %v891 = vpack.c.b16 %v873, %v871
      %v892 = vpack.c.b16 %v874, %v872
      %v893 = vpack.c.b16 %v877, %v875
      %v894 = vpack.c.b16 %v878, %v876
      %911 = vmatprep.subr.bf16.mxu0 %v880
      %912 = vmatpush1.bf16.msra.mxu0 %v879
      %913 = vmatprep.subr.bf16.mxu0 %v882
      %914 = vmatpush1.bf16.msra.mxu0 %v881
      %915 = vmatprep.subr.bf16.mxu0 %v884
      %916 = vmatpush1.bf16.msra.mxu0 %v883
      %917 = vmatprep.subr.bf16.mxu0 %v886
      %918 = vmatpush1.bf16.msra.mxu0 %v885
      %919 = vmatprep.subr.bf16.mxu0 %v888
      %920 = vmatpush1.bf16.msra.mxu0 %v887
      %921 = vmatprep.subr.bf16.mxu0 %v890
      %922 = vmatpush1.bf16.msra.mxu0 %v889
      %923 = vmatprep.subr.bf16.mxu0 %v892
      %924 = vmatpush1.bf16.msra.mxu0 %v891
      %925 = vmatprep.subr.bf16.mxu0 %v894
      %926 = vmatpush1.bf16.msra.mxu0 %v893
      %927 = vmatprep.subr.bf16.mxu0 0
      %928 = vmatpush1.bf16.msra.mxu0 0
      %929 = vmatprep.subr.bf16.mxu0 0
      %930 = vmatpush1.bf16.msra.mxu0 0
      %931 = vmatprep.subr.bf16.mxu0 0
      %932 = vmatpush1.bf16.msra.mxu0 0
      %933 = vmatprep.subr.bf16.mxu0 0
      %934 = vmatpush1.bf16.msra.mxu0 0
      %935 = vmatprep.subr.bf16.mxu0 0
      %936 = vmatpush1.bf16.msra.mxu0 0
      %937 = vmatprep.subr.bf16.mxu0 0
      %938 = vmatpush1.bf16.msra.mxu0 0
      %939 = vmatprep.subr.bf16.mxu0 0
      %940 = vmatpush1.bf16.msra.mxu0 0
      %941 = vmatprep.subr.bf16.mxu0 0
      %942 = vmatpush1.bf16.msra.mxu0 0
      %943 = vmatprep.mubr.bf16.mxu0 0
      %944 = vmatmul.mubr.bf16.gmra.mrb[0].mxu0 %v472
      %v945 = vpop.f32.mrb[0].mxu0
      %v946 = vadd.f32 %v824, %v945
      %v947 = vpop.f32.mrb[0].mxu0
      %v948 = vadd.f32 %v828, %v947
      %v949 = vpop.f32.mrb[0].mxu0
      %v950 = vadd.f32 %v824, %v949
      %v951 = vpop.f32.mrb[0].mxu0
      %v952 = vadd.f32 %v828, %v951
      %953 = vdwg.mxu0
      %v954 = vmax.f32 %v946, %v950
      %v955 = vrot.slane %v954, 4
      %v956 = vmax.f32 %v954, %v955
      %v957 = vrot.slane %v956, 2
      %v958 = vmax.f32 %v956, %v957
      %v959 = vrot.slane %v958, 1
      %v960 = vmax.f32 %v958, %v959
      %v961 = vmax.f32 %v948, %v952
      %v962 = vrot.slane %v961, 4
      %v963 = vmax.f32 %v961, %v962
      %v964 = vrot.slane %v963, 2
      %v965 = vmax.f32 %v963, %v964
      %v966 = vrot.slane %v965, 1
      %v967 = vmax.f32 %v965, %v966
      %v968 = vld [vmem:[%s5 + $0x18] sm:$0xff]
      %v969 = vld [vmem:[%s5 + $0x38] sm:$0xff]
      %v970 = vld [vmem:[%s5 + $0x58] sm:$0xff]
      %v971 = vld [vmem:[%s5 + $0x78] sm:$0xff]
      %v972 = vld [vmem:[%s5 + $0x98] sm:$0xff]
      %v973 = vld [vmem:[%s5 + $0xb8] sm:$0xff]
      %v974 = vld [vmem:[%s5 + $0xd8] sm:$0xff]
      %v975 = vld [vmem:[%s5 + $0xf8] sm:$0xff]
      %v976 = vld [vmem:[%s5 + $0x118] sm:$0xff]
      %v977 = vld [vmem:[%s5 + $0x138] sm:$0xff]
      %v978 = vld [vmem:[%s5 + $0x158] sm:$0xff]
      %v979 = vld [vmem:[%s5 + $0x178] sm:$0xff]
      %v980 = vld [vmem:[%s5 + $0x198] sm:$0xff]
      %v981 = vld [vmem:[%s5 + $0x1b8] sm:$0xff]
      %v982 = vld [vmem:[%s5 + $0x1d8] sm:$0xff]
      %v983 = vld [vmem:[%s5 + $0x1f8] sm:$0xff]
      %v984 = vld [vmem:[%s6 + $0x6] sm:$0x3]
      %v986 = vlaneseq
      %v987 = vshrl.u32 %v986, 7
      %v988 = vsub.s32 0, %v987
      %v989 = vrot.slane %v984, %v988
      %v990 = vlaneseq
      %v991 = vshrl.u32 %v990, 7
      %v992 = vsub.s32 1, %v991
      %v993 = vrot.slane %v984, %v992
      %v1012 = vunpack.c.l.b16 %v968
      %v1013 = vunpack.c.h.b16 %v968
      %v1014 = vunpack.c.l.b16 %v969
      %v1015 = vunpack.c.h.b16 %v969
      %v1016 = vunpack.c.l.b16 %v970
      %v1017 = vunpack.c.h.b16 %v970
      %v1018 = vunpack.c.l.b16 %v971
      %v1019 = vunpack.c.h.b16 %v971
      %v1020 = vunpack.c.l.b16 %v972
      %v1021 = vunpack.c.h.b16 %v972
      %v1022 = vunpack.c.l.b16 %v973
      %v1023 = vunpack.c.h.b16 %v973
      %v1024 = vunpack.c.l.b16 %v974
      %v1025 = vunpack.c.h.b16 %v974
      %v1026 = vunpack.c.l.b16 %v975
      %v1027 = vunpack.c.h.b16 %v975
      %v1028 = vunpack.c.l.b16 %v976
      %v1029 = vunpack.c.h.b16 %v976
      %v1030 = vunpack.c.l.b16 %v977
      %v1031 = vunpack.c.h.b16 %v977
      %v1032 = vunpack.c.l.b16 %v978
      %v1033 = vunpack.c.h.b16 %v978
      %v1034 = vunpack.c.l.b16 %v979
      %v1035 = vunpack.c.h.b16 %v979
      %v1036 = vunpack.c.l.b16 %v980
      %v1037 = vunpack.c.h.b16 %v980
      %v1038 = vunpack.c.l.b16 %v981
      %v1039 = vunpack.c.h.b16 %v981
      %v1040 = vunpack.c.l.b16 %v982
      %v1041 = vunpack.c.h.b16 %v982
      %v1042 = vunpack.c.l.b16 %v983
      %v1043 = vunpack.c.h.b16 %v983
      %v1044 = vpack.c.b16 %v1014, %v1012
      %v1045 = vpack.c.b16 %v1015, %v1013
      %v1046 = vpack.c.b16 %v1018, %v1016
      %v1047 = vpack.c.b16 %v1019, %v1017
      %v1048 = vpack.c.b16 %v1022, %v1020
      %v1049 = vpack.c.b16 %v1023, %v1021
      %v1050 = vpack.c.b16 %v1026, %v1024
      %v1051 = vpack.c.b16 %v1027, %v1025
      %v1052 = vpack.c.b16 %v1030, %v1028
      %v1053 = vpack.c.b16 %v1031, %v1029
      %v1054 = vpack.c.b16 %v1034, %v1032
      %v1055 = vpack.c.b16 %v1035, %v1033
      %v1056 = vpack.c.b16 %v1038, %v1036
      %v1057 = vpack.c.b16 %v1039, %v1037
      %v1058 = vpack.c.b16 %v1042, %v1040
      %v1059 = vpack.c.b16 %v1043, %v1041
      %1076 = vmatprep.subr.bf16.mxu0 %v1045
      %1077 = vmatpush1.bf16.msra.mxu0 %v1044
      %1078 = vmatprep.subr.bf16.mxu0 %v1047
      %1079 = vmatpush1.bf16.msra.mxu0 %v1046
      %1080 = vmatprep.subr.bf16.mxu0 %v1049
      %1081 = vmatpush1.bf16.msra.mxu0 %v1048
      %1082 = vmatprep.subr.bf16.mxu0 %v1051
      %1083 = vmatpush1.bf16.msra.mxu0 %v1050
      %1084 = vmatprep.subr.bf16.mxu0 %v1053
      %1085 = vmatpush1.bf16.msra.mxu0 %v1052
      %1086 = vmatprep.subr.bf16.mxu0 %v1055
      %1087 = vmatpush1.bf16.msra.mxu0 %v1054
      %1088 = vmatprep.subr.bf16.mxu0 %v1057
      %1089 = vmatpush1.bf16.msra.mxu0 %v1056
      %1090 = vmatprep.subr.bf16.mxu0 %v1059
      %1091 = vmatpush1.bf16.msra.mxu0 %v1058
      %1092 = vmatprep.subr.bf16.mxu0 0
      %1093 = vmatpush1.bf16.msra.mxu0 0
      %1094 = vmatprep.subr.bf16.mxu0 0
      %1095 = vmatpush1.bf16.msra.mxu0 0
      %1096 = vmatprep.subr.bf16.mxu0 0
      %1097 = vmatpush1.bf16.msra.mxu0 0
      %1098 = vmatprep.subr.bf16.mxu0 0
      %1099 = vmatpush1.bf16.msra.mxu0 0
      %1100 = vmatprep.subr.bf16.mxu0 0
      %1101 = vmatpush1.bf16.msra.mxu0 0
      %1102 = vmatprep.subr.bf16.mxu0 0
      %1103 = vmatpush1.bf16.msra.mxu0 0
      %1104 = vmatprep.subr.bf16.mxu0 0
      %1105 = vmatpush1.bf16.msra.mxu0 0
      %1106 = vmatprep.subr.bf16.mxu0 0
      %1107 = vmatpush1.bf16.msra.mxu0 0
      %1108 = vmatprep.mubr.bf16.mxu0 0
      %1109 = vmatmul.mubr.bf16.gmra.mrb[0].mxu0 %v472
      %v1110 = vpop.f32.mrb[0].mxu0
      %v1111 = vadd.f32 %v989, %v1110
      %v1112 = vpop.f32.mrb[0].mxu0
      %v1113 = vadd.f32 %v993, %v1112
      %v1114 = vpop.f32.mrb[0].mxu0
      %v1115 = vadd.f32 %v989, %v1114
      %v1116 = vpop.f32.mrb[0].mxu0
      %v1117 = vadd.f32 %v993, %v1116
      %1118 = vdwg.mxu0
      %v1119 = vmax.f32 %v1111, %v1115
      %v1120 = vrot.slane %v1119, 4
      %v1121 = vmax.f32 %v1119, %v1120
      %v1122 = vrot.slane %v1121, 2
      %v1123 = vmax.f32 %v1121, %v1122
      %v1124 = vrot.slane %v1123, 1
      %v1125 = vmax.f32 %v1123, %v1124
      %v1126 = vmax.f32 %v1113, %v1117
      %v1127 = vrot.slane %v1126, 4
      %v1128 = vmax.f32 %v1126, %v1127
      %v1129 = vrot.slane %v1128, 2
      %v1130 = vmax.f32 %v1128, %v1129
      %v1131 = vrot.slane %v1130, 1
      %v1132 = vmax.f32 %v1130, %v1131
      %p1133 = scmp.eq.s32.totalorder %s23, 0
      // Predicated region
      $region49: #{pointnet_siamese_forward.6} parent=47 // pred_check
        %p1134 = pneg %p1133
      $region50: #{pointnet_siamese_forward.6} parent=47 // pred_check_branch
        %1136 = sbr.rel (%p1134) target = $region52
      $region51: #{pointnet_siamese_forward.6} parent=47 // pred_region
        %v1145 = vcombine.low %v630, %v637
        %v1146 = vcombine.low %v795, %v802
        %v1147 = vcombine.low %v960, %v967
        %v1148 = vcombine.low %v1125, %v1132
        %v1150 = vunpack.c.l.s4 1966171168
        %v1151 = vunpack.c.0.s8 %v1150
        %v1152 = vlaneseq
        %v1153 = vshrl.u32 %v1152, 7
        %v1154 = vsub.s32 %v1151, %v1153
        %v1155 = vrot.slane %v1145, %v1154
        %v1157 = vunpack.c.l.s4 1966171168
        %v1158 = vunpack.c.0.s8 %v1157
        %v1159 = vlaneseq
        %v1160 = vshrl.u32 %v1159, 7
        %v1161 = vsub.s32 %v1158, %v1160
        %v1162 = vrot.slane %v1146, %v1161
        %v1164 = vunpack.c.l.s4 1966171168
        %v1165 = vunpack.c.0.s8 %v1164
        %v1166 = vlaneseq
        %v1167 = vshrl.u32 %v1166, 7
        %v1168 = vsub.s32 %v1165, %v1167
        %v1169 = vrot.slane %v1147, %v1168
        %v1171 = vunpack.c.l.s4 1966171168
        %v1172 = vunpack.c.0.s8 %v1171
        %v1173 = vlaneseq
        %v1174 = vshrl.u32 %v1173, 7
        %v1175 = vsub.s32 %v1172, %v1174
        %v1176 = vrot.slane %v1148, %v1175
        %v1177 = vcombine.low %v1155, %v1162
        %v1178 = vcombine.low %v1169, %v1176
        %v1180 = vunpack.c.l.s4 1966171168
        %v1181 = vunpack.c.0.s8 %v1180
        %v1182 = vlaneseq
        %v1183 = vshrl.u32 %v1182, 7
        %v1184 = vsub.s32 %v1181, %v1183
        %v1185 = vrot.slane %v1177, %v1184
        %v1187 = vunpack.c.l.s4 1966171168
        %v1188 = vunpack.c.0.s8 %v1187
        %v1189 = vlaneseq
        %v1190 = vshrl.u32 %v1189, 7
        %v1191 = vsub.s32 %v1188, %v1190
        %v1192 = vrot.slane %v1178, %v1191
        %v1193 = vcombine.low %v1185, %v1192
        %1195 = vst [vmem:[%s321] sm:$0xff] %v1193
      $region52: #{pointnet_siamese_forward.6} parent=47 // pred_fallthru
        _
      %p1196 = scmp.gt.s32.totalorder %s23, 0
      // Predicated region
      $region53: #{pointnet_siamese_forward.6} parent=47 // pred_check
        %p1197 = pneg %p1196
      $region54: #{pointnet_siamese_forward.6} parent=47 // pred_check_branch
        %1199 = sbr.rel (%p1197) target = $region56
      $region55: #{pointnet_siamese_forward.6} parent=47 // pred_region
        %v1200 = vld [vmem:[%s321] sm:$0xff]
        %v1209 = vcombine.low %v630, %v637
        %v1210 = vcombine.low %v795, %v802
        %v1211 = vcombine.low %v960, %v967
        %v1212 = vcombine.low %v1125, %v1132
        %v1214 = vunpack.c.l.s4 1966171168
        %v1215 = vunpack.c.0.s8 %v1214
        %v1216 = vlaneseq
        %v1217 = vshrl.u32 %v1216, 7
        %v1218 = vsub.s32 %v1215, %v1217
        %v1219 = vrot.slane %v1209, %v1218
        %v1221 = vunpack.c.l.s4 1966171168
        %v1222 = vunpack.c.0.s8 %v1221
        %v1223 = vlaneseq
        %v1224 = vshrl.u32 %v1223, 7
        %v1225 = vsub.s32 %v1222, %v1224
        %v1226 = vrot.slane %v1210, %v1225
        %v1228 = vunpack.c.l.s4 1966171168
        %v1229 = vunpack.c.0.s8 %v1228
        %v1230 = vlaneseq
        %v1231 = vshrl.u32 %v1230, 7
        %v1232 = vsub.s32 %v1229, %v1231
        %v1233 = vrot.slane %v1211, %v1232
        %v1235 = vunpack.c.l.s4 1966171168
        %v1236 = vunpack.c.0.s8 %v1235
        %v1237 = vlaneseq
        %v1238 = vshrl.u32 %v1237, 7
        %v1239 = vsub.s32 %v1236, %v1238
        %v1240 = vrot.slane %v1212, %v1239
        %v1241 = vcombine.low %v1219, %v1226
        %v1242 = vcombine.low %v1233, %v1240
        %v1244 = vunpack.c.l.s4 1966171168
        %v1245 = vunpack.c.0.s8 %v1244
        %v1246 = vlaneseq
        %v1247 = vshrl.u32 %v1246, 7
        %v1248 = vsub.s32 %v1245, %v1247
        %v1249 = vrot.slane %v1241, %v1248
        %v1251 = vunpack.c.l.s4 1966171168
        %v1252 = vunpack.c.0.s8 %v1251
        %v1253 = vlaneseq
        %v1254 = vshrl.u32 %v1253, 7
        %v1255 = vsub.s32 %v1252, %v1254
        %v1256 = vrot.slane %v1242, %v1255
        %v1257 = vcombine.low %v1249, %v1256
        %v1259 = vmax.f32 %v1200, %v1257
        %1260 = vst [vmem:[%s321] sm:$0xff] %v1259
      $region56: #{pointnet_siamese_forward.6} parent=47 // pred_fallthru
        _
      %p1261 = scmp.lt.s32.totalorder %s22, 3
      %s1262 = scalar_select %p1261, %s22, 3
      %s1263 = smul.addr %s1262, 8
      %s1264 = scalar_lea.vmem %s7, %s1263
      // Predicated region
      $region57: #{pointnet_siamese_forward.6} parent=47 // pred_check
        %p1265 = pneg %p207
      $region58: #{pointnet_siamese_forward.6} parent=47 // pred_check_branch
        %1267 = sbr.rel (%p1265) target = $region60
      $region59: #{pointnet_siamese_forward.6} parent=47 // pred_region
        _
      $region60: #{pointnet_siamese_forward.6} parent=47 // pred_fallthru
        _
    $region48: #{pointnet_siamese_forward.6} parent=5 // pred_fallthru
      _
    %p1268 = scmp.le.s32.totalorder 2, %s13
    // Predicated region
    $region61: #{pointnet_siamese_forward.6} parent=5 // pred_check
      %p1269 = pneg %p1268
    $region62: #{pointnet_siamese_forward.6} parent=5 // pred_check_branch
      %1271 = sbr.rel (%p1269) target = $region64
    $region63: #{pointnet_siamese_forward.6} parent=5 // pred_region
      %s1272 = ssub.s32 %s13, 2
      // Predicated region
      $region65: #{pointnet_siamese_forward.6} parent=63 // pred_check
        %p1273 = pneg %p213
      $region66: #{pointnet_siamese_forward.6} parent=63 // pred_check_branch
        %1275 = sbr.rel (%p1273) target = $region68
      $region67: #{pointnet_siamese_forward.6} parent=63 // pred_region
        %p1276 = scmp.lt.s32.totalorder %s24, 3
        %s1277 = scalar_select %p1276, %s24, 3
        %s1278 = smul.addr %s1277, 8
        %s1279 = scalar_lea.vmem %s7, %s1278
      $region68: #{pointnet_siamese_forward.6} parent=63 // pred_fallthru
        _
    $region64: #{pointnet_siamese_forward.6} parent=5 // pred_fallthru
      _
  $region6: #{pointnet_siamese_forward.6} parent=0 // loop_footer
    %s17 = sadd.s32 1, %s13
  $region7: #{pointnet_siamese_forward.6} parent=0 // loop_footer_branch
    %12 = sbr.rel target = $region3
  $region8: #{pointnet_siamese_forward.6} parent=0 // loop_exit
    _

// kernel: pointnet_siamese_forward.5
$region0: #{pointnet_siamese_forward.5}
  #allocation0 [shape = 'u32[]', space=smem, size = 0x4, offset = 0x4, fixed_abs, tag = 'smem constant byte address 0x4 - core index']
  #allocation1 [shape = 'u32[144,128]{1,0:T(1,128)}', space=vmem, size = 0x12000, scoped, tag = 'internal scratch']
  %s0 = inlined_call_operand.vmem [shape: f32[4,1024], index: 0, kind: input, shape index: {}]
  %s1 = inlined_call_operand.hbm [shape: bf16[1024,512], index: 1, kind: input, shape index: {}]
  %s2 = inlined_call_operand.vmem [shape: f32[1,512], index: 2, kind: input, shape index: {}]
  %s3 = inlined_call_operand.vmem [shape: bf16[512,256], index: 3, kind: input, shape index: {}]
  %s4 = inlined_call_operand.vmem [shape: f32[1,256], index: 4, kind: input, shape index: {}]
  %s5 = inlined_call_operand.vmem [shape: f32[256,9], index: 5, kind: input, shape index: {}]
  %s6 = inlined_call_operand.vmem [shape: f32[1,9], index: 6, kind: input, shape index: {}]
  %s7 = inlined_call_operand.vmem [shape: f32[4,9], index: 7, kind: output, shape index: {}]
  %s8 = sld [smem:[#allocation0]]
  $region42: #{pointnet_siamese_forward.5} parent=0
    _
  %s10 = ssub.s32 1, %s8
  %s11 = scalar_select 0, %s10, %s8
  $region1: #{pointnet_siamese_forward.5} parent=0
    #allocation2 [shape = 'u8[1048576]{0}', space=vmem, size = 0x100000, scoped, tag = 'input window, operand 1, single buffered']
    #allocation3 [shape = 's32[1]{0}', space=sflag, size = 0x4, scoped, tag = 'scoped memory for pointnet_siamese_forward.5']
    %12 = vsyncpa [#allocation3], 0
    // Predicated region
    $region2: #{pointnet_siamese_forward.5} parent=1 // pred_check
      _
    $region3: #{pointnet_siamese_forward.5} parent=1 // pred_check_branch
      %14 = sbr.rel (0) target = $region5
    $region4: #{pointnet_siamese_forward.5} parent=1 // pred_region
      _
    $region5: #{pointnet_siamese_forward.5} parent=1 // pred_fallthru
      _
    // Predicated region
    $region6: #{pointnet_siamese_forward.5} parent=1 // pred_check
      _
    $region7: #{pointnet_siamese_forward.5} parent=1 // pred_check_branch
      %16 = sbr.rel (0) target = $region9
    $region8: #{pointnet_siamese_forward.5} parent=1 // pred_region
      %s18 = ssub.s32 32768, 32768
      %19 = vsyncadd [#allocation3], %s18
      %s20 = sshll.u32 [#allocation2], 4
      %s21 = int_to_ptr.vmem [resolvable:$true] %s20
      %26 = dma.hbm_to_vmem [thread:$0]  %s1, 32768, %s21, [#allocation3], 256, 256, 16
    $region9: #{pointnet_siamese_forward.5} parent=1 // pred_fallthru
      _
    // Predicated region
    $region10: #{pointnet_siamese_forward.5} parent=1 // pred_check
      _
    $region11: #{pointnet_siamese_forward.5} parent=1 // pred_check_branch
      %28 = sbr.rel (0) target = $region13
    $region12: #{pointnet_siamese_forward.5} parent=1 // pred_region
      _
    $region13: #{pointnet_siamese_forward.5} parent=1 // pred_fallthru
      _
    // Predicated region
    $region14: #{pointnet_siamese_forward.5} parent=1 // pred_check
      _
    $region15: #{pointnet_siamese_forward.5} parent=1 // pred_check_branch
      %30 = sbr.rel (0) target = $region17
    $region16: #{pointnet_siamese_forward.5} parent=1 // pred_region
      _
    $region17: #{pointnet_siamese_forward.5} parent=1 // pred_fallthru
      _
    // Predicated region
    $region18: #{pointnet_siamese_forward.5} parent=1 // pred_check
      _
    $region19: #{pointnet_siamese_forward.5} parent=1 // pred_check_branch
      %32 = sbr.rel (0) target = $region21
    $region20: #{pointnet_siamese_forward.5} parent=1 // pred_region
      _
    $region21: #{pointnet_siamese_forward.5} parent=1 // pred_fallthru
      _
    // Predicated region
    $region22: #{pointnet_siamese_forward.5} parent=1 // pred_check
      _
    $region23: #{pointnet_siamese_forward.5} parent=1 // pred_check_branch
      %34 = sbr.rel (0) target = $region25
    $region24: #{pointnet_siamese_forward.5} parent=1 // pred_region
      _
    $region25: #{pointnet_siamese_forward.5} parent=1 // pred_fallthru
      _
    // Predicated region
    $region26: #{pointnet_siamese_forward.5} parent=1 // pred_check
      _
    $region27: #{pointnet_siamese_forward.5} parent=1 // pred_check_branch
      %36 = sbr.rel (0) target = $region29
    $region28: #{pointnet_siamese_forward.5} parent=1 // pred_region
      _
    $region29: #{pointnet_siamese_forward.5} parent=1 // pred_fallthru
      _
    // Predicated region
    $region30: #{pointnet_siamese_forward.5} parent=1 // pred_check
      _
    $region31: #{pointnet_siamese_forward.5} parent=1 // pred_check_branch
      %38 = sbr.rel (0) target = $region33
    $region32: #{pointnet_siamese_forward.5} parent=1 // pred_region
      %39 = dma.done [#allocation3], 32768
    $region33: #{pointnet_siamese_forward.5} parent=1 // pred_fallthru
      _
    %v40 = vld [vmem:[%s0] sm:$0xff]
    %v41 = vld [vmem:[%s0 + $0x8] sm:$0xff]
    %v42 = vld [vmem:[%s0 + $0x10] sm:$0xff]
    %v43 = vld [vmem:[%s0 + $0x18] sm:$0xff]
    %v48 = vcombine.high %v40, %v40
    %v49 = vcombine.high %v41, %v41
    %v50 = vcombine.high %v42, %v42
    %v51 = vcombine.high %v43, %v43
    %v56 = vpack.c.bf16 %v40, %v40
    %v57 = vpack.c.bf16 %v48, %v48
    %v58 = vpack.c.bf16 %v41, %v41
    %v59 = vpack.c.bf16 %v49, %v49
    %v60 = vpack.c.bf16 %v42, %v42
    %v61 = vpack.c.bf16 %v50, %v50
    %v62 = vpack.c.bf16 %v43, %v43
    %v63 = vpack.c.bf16 %v51, %v51
    %v64 = vld [vmem:[#allocation2] sm:$0xff]
    %v65 = vld [vmem:[#allocation2 + $0x8] sm:$0xff]
    %v66 = vld [vmem:[#allocation2 + $0x10] sm:$0xff]
    %v67 = vld [vmem:[#allocation2 + $0x18] sm:$0xff]
    %v68 = vld [vmem:[#allocation2 + $0x20] sm:$0xff]
    %v69 = vld [vmem:[#allocation2 + $0x28] sm:$0xff]
    %v70 = vld [vmem:[#allocation2 + $0x30] sm:$0xff]
    %v71 = vld [vmem:[#allocation2 + $0x38] sm:$0xff]
    %v72 = vld [vmem:[#allocation2 + $0x40] sm:$0xff]
    %v73 = vld [vmem:[#allocation2 + $0x48] sm:$0xff]
    %v74 = vld [vmem:[#allocation2 + $0x50] sm:$0xff]
    %v75 = vld [vmem:[#allocation2 + $0x58] sm:$0xff]
    %v76 = vld [vmem:[#allocation2 + $0x60] sm:$0xff]
    %v77 = vld [vmem:[#allocation2 + $0x68] sm:$0xff]
    %v78 = vld [vmem:[#allocation2 + $0x70] sm:$0xff]
    %v79 = vld [vmem:[#allocation2 + $0x78] sm:$0xff]
    %v80 = vld [vmem:[#allocation2 + $0x80] sm:$0xff]
    %v81 = vld [vmem:[#allocation2 + $0x88] sm:$0xff]
    %v82 = vld [vmem:[#allocation2 + $0x90] sm:$0xff]
    %v83 = vld [vmem:[#allocation2 + $0x98] sm:$0xff]
    %v84 = vld [vmem:[#allocation2 + $0xa0] sm:$0xff]
    %v85 = vld [vmem:[#allocation2 + $0xa8] sm:$0xff]
    %v86 = vld [vmem:[#allocation2 + $0xb0] sm:$0xff]
    %v87 = vld [vmem:[#allocation2 + $0xb8] sm:$0xff]
    %v88 = vld [vmem:[#allocation2 + $0xc0] sm:$0xff]
    %v89 = vld [vmem:[#allocation2 + $0xc8] sm:$0xff]
    %v90 = vld [vmem:[#allocation2 + $0xd0] sm:$0xff]
    %v91 = vld [vmem:[#allocation2 + $0xd8] sm:$0xff]
    %v92 = vld [vmem:[#allocation2 + $0xe0] sm:$0xff]
    %v93 = vld [vmem:[#allocation2 + $0xe8] sm:$0xff]
    %v94 = vld [vmem:[#allocation2 + $0xf0] sm:$0xff]
    %v95 = vld [vmem:[#allocation2 + $0xf8] sm:$0xff]
    %v96 = vld [vmem:[#allocation2 + $0x100] sm:$0xff]
    %v97 = vld [vmem:[#allocation2 + $0x108] sm:$0xff]
    %v98 = vld [vmem:[#allocation2 + $0x110] sm:$0xff]
    %v99 = vld [vmem:[#allocation2 + $0x118] sm:$0xff]
    %v100 = vld [vmem:[#allocation2 + $0x120] sm:$0xff]
    %v101 = vld [vmem:[#allocation2 + $0x128] sm:$0xff]
    %v102 = vld [vmem:[#allocation2 + $0x130] sm:$0xff]
    %v103 = vld [vmem:[#allocation2 + $0x138] sm:$0xff]
    %v104 = vld [vmem:[#allocation2 + $0x140] sm:$0xff]
    %v105 = vld [vmem:[#allocation2 + $0x148] sm:$0xff]
    %v106 = vld [vmem:[#allocation2 + $0x150] sm:$0xff]
    %v107 = vld [vmem:[#allocation2 + $0x158] sm:$0xff]
    %v108 = vld [vmem:[#allocation2 + $0x160] sm:$0xff]
    %v109 = vld [vmem:[#allocation2 + $0x168] sm:$0xff]
    %v110 = vld [vmem:[#allocation2 + $0x170] sm:$0xff]
    %v111 = vld [vmem:[#allocation2 + $0x178] sm:$0xff]
    %v112 = vld [vmem:[#allocation2 + $0x180] sm:$0xff]
    %v113 = vld [vmem:[#allocation2 + $0x188] sm:$0xff]
    %v114 = vld [vmem:[#allocation2 + $0x190] sm:$0xff]
    %v115 = vld [vmem:[#allocation2 + $0x198] sm:$0xff]
    %v116 = vld [vmem:[#allocation2 + $0x1a0] sm:$0xff]
    %v117 = vld [vmem:[#allocation2 + $0x1a8] sm:$0xff]
    %v118 = vld [vmem:[#allocation2 + $0x1b0] sm:$0xff]
    %v119 = vld [vmem:[#allocation2 + $0x1b8] sm:$0xff]
    %v120 = vld [vmem:[#allocation2 + $0x1c0] sm:$0xff]
    %v121 = vld [vmem:[#allocation2 + $0x1c8] sm:$0xff]
    %v122 = vld [vmem:[#allocation2 + $0x1d0] sm:$0xff]
    %v123 = vld [vmem:[#allocation2 + $0x1d8] sm:$0xff]
    %v124 = vld [vmem:[#allocation2 + $0x1e0] sm:$0xff]
    %v125 = vld [vmem:[#allocation2 + $0x1e8] sm:$0xff]
    %v126 = vld [vmem:[#allocation2 + $0x1f0] sm:$0xff]
    %v127 = vld [vmem:[#allocation2 + $0x1f8] sm:$0xff]
    %v128 = vld [vmem:[#allocation2 + $0x200] sm:$0xff]
    %v129 = vld [vmem:[#allocation2 + $0x208] sm:$0xff]
    %v130 = vld [vmem:[#allocation2 + $0x210] sm:$0xff]
    %v131 = vld [vmem:[#allocation2 + $0x218] sm:$0xff]
    %v132 = vld [vmem:[#allocation2 + $0x220] sm:$0xff]
    %v133 = vld [vmem:[#allocation2 + $0x228] sm:$0xff]
    %v134 = vld [vmem:[#allocation2 + $0x230] sm:$0xff]
    %v135 = vld [vmem:[#allocation2 + $0x238] sm:$0xff]
    %v136 = vld [vmem:[#allocation2 + $0x240] sm:$0xff]
    %v137 = vld [vmem:[#allocation2 + $0x248] sm:$0xff]
    %v138 = vld [vmem:[#allocation2 + $0x250] sm:$0xff]
    %v139 = vld [vmem:[#allocation2 + $0x258] sm:$0xff]
    %v140 = vld [vmem:[#allocation2 + $0x260] sm:$0xff]
    %v141 = vld [vmem:[#allocation2 + $0x268] sm:$0xff]
    %v142 = vld [vmem:[#allocation2 + $0x270] sm:$0xff]
    %v143 = vld [vmem:[#allocation2 + $0x278] sm:$0xff]
    %v144 = vld [vmem:[#allocation2 + $0x280] sm:$0xff]
    %v145 = vld [vmem:[#allocation2 + $0x288] sm:$0xff]
    %v146 = vld [vmem:[#allocation2 + $0x290] sm:$0xff]
    %v147 = vld [vmem:[#allocation2 + $0x298] sm:$0xff]
    %v148 = vld [vmem:[#allocation2 + $0x2a0] sm:$0xff]
    %v149 = vld [vmem:[#allocation2 + $0x2a8] sm:$0xff]
    %v150 = vld [vmem:[#allocation2 + $0x2b0] sm:$0xff]
    %v151 = vld [vmem:[#allocation2 + $0x2b8] sm:$0xff]
    %v152 = vld [vmem:[#allocation2 + $0x2c0] sm:$0xff]
    %v153 = vld [vmem:[#allocation2 + $0x2c8] sm:$0xff]
    %v154 = vld [vmem:[#allocation2 + $0x2d0] sm:$0xff]
    %v155 = vld [vmem:[#allocation2 + $0x2d8] sm:$0xff]
    %v156 = vld [vmem:[#allocation2 + $0x2e0] sm:$0xff]
    %v157 = vld [vmem:[#allocation2 + $0x2e8] sm:$0xff]
    %v158 = vld [vmem:[#allocation2 + $0x2f0] sm:$0xff]
    %v159 = vld [vmem:[#allocation2 + $0x2f8] sm:$0xff]
    %v160 = vld [vmem:[#allocation2 + $0x300] sm:$0xff]
    %v161 = vld [vmem:[#allocation2 + $0x308] sm:$0xff]
    %v162 = vld [vmem:[#allocation2 + $0x310] sm:$0xff]
    %v163 = vld [vmem:[#allocation2 + $0x318] sm:$0xff]
    %v164 = vld [vmem:[#allocation2 + $0x320] sm:$0xff]
    %v165 = vld [vmem:[#allocation2 + $0x328] sm:$0xff]
    %v166 = vld [vmem:[#allocation2 + $0x330] sm:$0xff]
    %v167 = vld [vmem:[#allocation2 + $0x338] sm:$0xff]
    %v168 = vld [vmem:[#allocation2 + $0x340] sm:$0xff]
    %v169 = vld [vmem:[#allocation2 + $0x348] sm:$0xff]
    %v170 = vld [vmem:[#allocation2 + $0x350] sm:$0xff]
    %v171 = vld [vmem:[#allocation2 + $0x358] sm:$0xff]
    %v172 = vld [vmem:[#allocation2 + $0x360] sm:$0xff]
    %v173 = vld [vmem:[#allocation2 + $0x368] sm:$0xff]
    %v174 = vld [vmem:[#allocation2 + $0x370] sm:$0xff]
    %v175 = vld [vmem:[#allocation2 + $0x378] sm:$0xff]
    %v176 = vld [vmem:[#allocation2 + $0x380] sm:$0xff]
    %v177 = vld [vmem:[#allocation2 + $0x388] sm:$0xff]
    %v178 = vld [vmem:[#allocation2 + $0x390] sm:$0xff]
    %v179 = vld [vmem:[#allocation2 + $0x398] sm:$0xff]
    %v180 = vld [vmem:[#allocation2 + $0x3a0] sm:$0xff]
    %v181 = vld [vmem:[#allocation2 + $0x3a8] sm:$0xff]
    %v182 = vld [vmem:[#allocation2 + $0x3b0] sm:$0xff]
    %v183 = vld [vmem:[#allocation2 + $0x3b8] sm:$0xff]
    %v184 = vld [vmem:[#allocation2 + $0x3c0] sm:$0xff]
    %v185 = vld [vmem:[#allocation2 + $0x3c8] sm:$0xff]
    %v186 = vld [vmem:[#allocation2 + $0x3d0] sm:$0xff]
    %v187 = vld [vmem:[#allocation2 + $0x3d8] sm:$0xff]
    %v188 = vld [vmem:[#allocation2 + $0x3e0] sm:$0xff]
    %v189 = vld [vmem:[#allocation2 + $0x3e8] sm:$0xff]
    %v190 = vld [vmem:[#allocation2 + $0x3f0] sm:$0xff]
    %v191 = vld [vmem:[#allocation2 + $0x3f8] sm:$0xff]
    %v192 = vld [vmem:[#allocation2 + $0x400] sm:$0xff]
    %v193 = vld [vmem:[#allocation2 + $0x408] sm:$0xff]
    %v194 = vld [vmem:[#allocation2 + $0x410] sm:$0xff]
    %v195 = vld [vmem:[#allocation2 + $0x418] sm:$0xff]
    %v196 = vld [vmem:[#allocation2 + $0x420] sm:$0xff]
    %v197 = vld [vmem:[#allocation2 + $0x428] sm:$0xff]
    %v198 = vld [vmem:[#allocation2 + $0x430] sm:$0xff]
    %v199 = vld [vmem:[#allocation2 + $0x438] sm:$0xff]
    %v200 = vld [vmem:[#allocation2 + $0x440] sm:$0xff]
    %v201 = vld [vmem:[#allocation2 + $0x448] sm:$0xff]
    %v202 = vld [vmem:[#allocation2 + $0x450] sm:$0xff]
    %v203 = vld [vmem:[#allocation2 + $0x458] sm:$0xff]
    %v204 = vld [vmem:[#allocation2 + $0x460] sm:$0xff]
    %v205 = vld [vmem:[#allocation2 + $0x468] sm:$0xff]
    %v206 = vld [vmem:[#allocation2 + $0x470] sm:$0xff]
    %v207 = vld [vmem:[#allocation2 + $0x478] sm:$0xff]
    %v208 = vld [vmem:[#allocation2 + $0x480] sm:$0xff]
    %v209 = vld [vmem:[#allocation2 + $0x488] sm:$0xff]
    %v210 = vld [vmem:[#allocation2 + $0x490] sm:$0xff]
    %v211 = vld [vmem:[#allocation2 + $0x498] sm:$0xff]
    %v212 = vld [vmem:[#allocation2 + $0x4a0] sm:$0xff]
    %v213 = vld [vmem:[#allocation2 + $0x4a8] sm:$0xff]
    %v214 = vld [vmem:[#allocation2 + $0x4b0] sm:$0xff]
    %v215 = vld [vmem:[#allocation2 + $0x4b8] sm:$0xff]
    %v216 = vld [vmem:[#allocation2 + $0x4c0] sm:$0xff]
    %v217 = vld [vmem:[#allocation2 + $0x4c8] sm:$0xff]
    %v218 = vld [vmem:[#allocation2 + $0x4d0] sm:$0xff]
    %v219 = vld [vmem:[#allocation2 + $0x4d8] sm:$0xff]
    %v220 = vld [vmem:[#allocation2 + $0x4e0] sm:$0xff]
    %v221 = vld [vmem:[#allocation2 + $0x4e8] sm:$0xff]
    %v222 = vld [vmem:[#allocation2 + $0x4f0] sm:$0xff]
    %v223 = vld [vmem:[#allocation2 + $0x4f8] sm:$0xff]
    %v224 = vld [vmem:[#allocation2 + $0x500] sm:$0xff]
    %v225 = vld [vmem:[#allocation2 + $0x508] sm:$0xff]
    %v226 = vld [vmem:[#allocation2 + $0x510] sm:$0xff]
    %v227 = vld [vmem:[#allocation2 + $0x518] sm:$0xff]
    %v228 = vld [vmem:[#allocation2 + $0x520] sm:$0xff]
    %v229 = vld [vmem:[#allocation2 + $0x528] sm:$0xff]
    %v230 = vld [vmem:[#allocation2 + $0x530] sm:$0xff]
    %v231 = vld [vmem:[#allocation2 + $0x538] sm:$0xff]
    %v232 = vld [vmem:[#allocation2 + $0x540] sm:$0xff]
    %v233 = vld [vmem:[#allocation2 + $0x548] sm:$0xff]
    %v234 = vld [vmem:[#allocation2 + $0x550] sm:$0xff]
    %v235 = vld [vmem:[#allocation2 + $0x558] sm:$0xff]
    %v236 = vld [vmem:[#allocation2 + $0x560] sm:$0xff]
    %v237 = vld [vmem:[#allocation2 + $0x568] sm:$0xff]
    %v238 = vld [vmem:[#allocation2 + $0x570] sm:$0xff]
    %v239 = vld [vmem:[#allocation2 + $0x578] sm:$0xff]
    %v240 = vld [vmem:[#allocation2 + $0x580] sm:$0xff]
    %v241 = vld [vmem:[#allocation2 + $0x588] sm:$0xff]
    %v242 = vld [vmem:[#allocation2 + $0x590] sm:$0xff]
    %v243 = vld [vmem:[#allocation2 + $0x598] sm:$0xff]
    %v244 = vld [vmem:[#allocation2 + $0x5a0] sm:$0xff]
    %v245 = vld [vmem:[#allocation2 + $0x5a8] sm:$0xff]
    %v246 = vld [vmem:[#allocation2 + $0x5b0] sm:$0xff]
    %v247 = vld [vmem:[#allocation2 + $0x5b8] sm:$0xff]
    %v248 = vld [vmem:[#allocation2 + $0x5c0] sm:$0xff]
    %v249 = vld [vmem:[#allocation2 + $0x5c8] sm:$0xff]
    %v250 = vld [vmem:[#allocation2 + $0x5d0] sm:$0xff]
    %v251 = vld [vmem:[#allocation2 + $0x5d8] sm:$0xff]
    %v252 = vld [vmem:[#allocation2 + $0x5e0] sm:$0xff]
    %v253 = vld [vmem:[#allocation2 + $0x5e8] sm:$0xff]
    %v254 = vld [vmem:[#allocation2 + $0x5f0] sm:$0xff]
    %v255 = vld [vmem:[#allocation2 + $0x5f8] sm:$0xff]
    %v256 = vld [vmem:[#allocation2 + $0x600] sm:$0xff]
    %v257 = vld [vmem:[#allocation2 + $0x608] sm:$0xff]
    %v258 = vld [vmem:[#allocation2 + $0x610] sm:$0xff]
    %v259 = vld [vmem:[#allocation2 + $0x618] sm:$0xff]
    %v260 = vld [vmem:[#allocation2 + $0x620] sm:$0xff]
    %v261 = vld [vmem:[#allocation2 + $0x628] sm:$0xff]
    %v262 = vld [vmem:[#allocation2 + $0x630] sm:$0xff]
    %v263 = vld [vmem:[#allocation2 + $0x638] sm:$0xff]
    %v264 = vld [vmem:[#allocation2 + $0x640] sm:$0xff]
    %v265 = vld [vmem:[#allocation2 + $0x648] sm:$0xff]
    %v266 = vld [vmem:[#allocation2 + $0x650] sm:$0xff]
    %v267 = vld [vmem:[#allocation2 + $0x658] sm:$0xff]
    %v268 = vld [vmem:[#allocation2 + $0x660] sm:$0xff]
    %v269 = vld [vmem:[#allocation2 + $0x668] sm:$0xff]
    %v270 = vld [vmem:[#allocation2 + $0x670] sm:$0xff]
    %v271 = vld [vmem:[#allocation2 + $0x678] sm:$0xff]
    %v272 = vld [vmem:[#allocation2 + $0x680] sm:$0xff]
    %v273 = vld [vmem:[#allocation2 + $0x688] sm:$0xff]
    %v274 = vld [vmem:[#allocation2 + $0x690] sm:$0xff]
    %v275 = vld [vmem:[#allocation2 + $0x698] sm:$0xff]
    %v276 = vld [vmem:[#allocation2 + $0x6a0] sm:$0xff]
    %v277 = vld [vmem:[#allocation2 + $0x6a8] sm:$0xff]
    %v278 = vld [vmem:[#allocation2 + $0x6b0] sm:$0xff]
    %v279 = vld [vmem:[#allocation2 + $0x6b8] sm:$0xff]
    %v280 = vld [vmem:[#allocation2 + $0x6c0] sm:$0xff]
    %v281 = vld [vmem:[#allocation2 + $0x6c8] sm:$0xff]
    %v282 = vld [vmem:[#allocation2 + $0x6d0] sm:$0xff]
    %v283 = vld [vmem:[#allocation2 + $0x6d8] sm:$0xff]
    %v284 = vld [vmem:[#allocation2 + $0x6e0] sm:$0xff]
    %v285 = vld [vmem:[#allocation2 + $0x6e8] sm:$0xff]
    %v286 = vld [vmem:[#allocation2 + $0x6f0] sm:$0xff]
    %v287 = vld [vmem:[#allocation2 + $0x6f8] sm:$0xff]
    %v288 = vld [vmem:[#allocation2 + $0x700] sm:$0xff]
    %v289 = vld [vmem:[#allocation2 + $0x708] sm:$0xff]
    %v290 = vld [vmem:[#allocation2 + $0x710] sm:$0xff]
    %v291 = vld [vmem:[#allocation2 + $0x718] sm:$0xff]
    %v292 = vld [vmem:[#allocation2 + $0x720] sm:$0xff]
    %v293 = vld [vmem:[#allocation2 + $0x728] sm:$0xff]
    %v294 = vld [vmem:[#allocation2 + $0x730] sm:$0xff]
    %v295 = vld [vmem:[#allocation2 + $0x738] sm:$0xff]
    %v296 = vld [vmem:[#allocation2 + $0x740] sm:$0xff]
    %v297 = vld [vmem:[#allocation2 + $0x748] sm:$0xff]
    %v298 = vld [vmem:[#allocation2 + $0x750] sm:$0xff]
    %v299 = vld [vmem:[#allocation2 + $0x758] sm:$0xff]
    %v300 = vld [vmem:[#allocation2 + $0x760] sm:$0xff]
    %v301 = vld [vmem:[#allocation2 + $0x768] sm:$0xff]
    %v302 = vld [vmem:[#allocation2 + $0x770] sm:$0xff]
    %v303 = vld [vmem:[#allocation2 + $0x778] sm:$0xff]
    %v304 = vld [vmem:[#allocation2 + $0x780] sm:$0xff]
    %v305 = vld [vmem:[#allocation2 + $0x788] sm:$0xff]
    %v306 = vld [vmem:[#allocation2 + $0x790] sm:$0xff]
    %v307 = vld [vmem:[#allocation2 + $0x798] sm:$0xff]
    %v308 = vld [vmem:[#allocation2 + $0x7a0] sm:$0xff]
    %v309 = vld [vmem:[#allocation2 + $0x7a8] sm:$0xff]
    %v310 = vld [vmem:[#allocation2 + $0x7b0] sm:$0xff]
    %v311 = vld [vmem:[#allocation2 + $0x7b8] sm:$0xff]
    %v312 = vld [vmem:[#allocation2 + $0x7c0] sm:$0xff]
    %v313 = vld [vmem:[#allocation2 + $0x7c8] sm:$0xff]
    %v314 = vld [vmem:[#allocation2 + $0x7d0] sm:$0xff]
    %v315 = vld [vmem:[#allocation2 + $0x7d8] sm:$0xff]
    %v316 = vld [vmem:[#allocation2 + $0x7e0] sm:$0xff]
    %v317 = vld [vmem:[#allocation2 + $0x7e8] sm:$0xff]
    %v318 = vld [vmem:[#allocation2 + $0x7f0] sm:$0xff]
    %v319 = vld [vmem:[#allocation2 + $0x7f8] sm:$0xff]
    %v320 = vld [vmem:[%s2] sm:$0xf]
    %v322 = vlaneseq
    %v323 = vshrl.u32 %v322, 7
    %v324 = vsub.s32 0, %v323
    %v325 = vrot.slane %v320, %v324
    %v326 = vlaneseq
    %v327 = vshrl.u32 %v326, 7
    %v328 = vsub.s32 1, %v327
    %v329 = vrot.slane %v320, %v328
    %v330 = vlaneseq
    %v331 = vshrl.u32 %v330, 7
    %v332 = vsub.s32 2, %v331
    %v333 = vrot.slane %v320, %v332
    %v334 = vlaneseq
    %v335 = vshrl.u32 %v334, 7
    %v336 = vsub.s32 3, %v335
    %v337 = vrot.slane %v320, %v336
    %v598 = vunpack.c.l.b16 %v64
    %v599 = vunpack.c.h.b16 %v64
    %v600 = vunpack.c.l.b16 %v65
    %v601 = vunpack.c.h.b16 %v65
    %v602 = vunpack.c.l.b16 %v66
    %v603 = vunpack.c.h.b16 %v66
    %v604 = vunpack.c.l.b16 %v67
    %v605 = vunpack.c.h.b16 %v67
    %v606 = vunpack.c.l.b16 %v68
    %v607 = vunpack.c.h.b16 %v68
    %v608 = vunpack.c.l.b16 %v69
    %v609 = vunpack.c.h.b16 %v69
    %v610 = vunpack.c.l.b16 %v70
    %v611 = vunpack.c.h.b16 %v70
    %v612 = vunpack.c.l.b16 %v71
    %v613 = vunpack.c.h.b16 %v71
    %v614 = vunpack.c.l.b16 %v72
    %v615 = vunpack.c.h.b16 %v72
    %v616 = vunpack.c.l.b16 %v73
    %v617 = vunpack.c.h.b16 %v73
    %v618 = vunpack.c.l.b16 %v74
    %v619 = vunpack.c.h.b16 %v74
    %v620 = vunpack.c.l.b16 %v75
    %v621 = vunpack.c.h.b16 %v75
    %v622 = vunpack.c.l.b16 %v76
    %v623 = vunpack.c.h.b16 %v76
    %v624 = vunpack.c.l.b16 %v77
    %v625 = vunpack.c.h.b16 %v77
    %v626 = vunpack.c.l.b16 %v78
    %v627 = vunpack.c.h.b16 %v78
    %v628 = vunpack.c.l.b16 %v79
    %v629 = vunpack.c.h.b16 %v79
    %v630 = vunpack.c.l.b16 %v80
    %v631 = vunpack.c.h.b16 %v80
    %v632 = vunpack.c.l.b16 %v81
    %v633 = vunpack.c.h.b16 %v81
    %v634 = vunpack.c.l.b16 %v82
    %v635 = vunpack.c.h.b16 %v82
    %v636 = vunpack.c.l.b16 %v83
    %v637 = vunpack.c.h.b16 %v83
    %v638 = vunpack.c.l.b16 %v84
    %v639 = vunpack.c.h.b16 %v84
    %v640 = vunpack.c.l.b16 %v85
    %v641 = vunpack.c.h.b16 %v85
    %v642 = vunpack.c.l.b16 %v86
    %v643 = vunpack.c.h.b16 %v86
    %v644 = vunpack.c.l.b16 %v87
    %v645 = vunpack.c.h.b16 %v87
    %v646 = vunpack.c.l.b16 %v88
    %v647 = vunpack.c.h.b16 %v88
    %v648 = vunpack.c.l.b16 %v89
    %v649 = vunpack.c.h.b16 %v89
    %v650 = vunpack.c.l.b16 %v90
    %v651 = vunpack.c.h.b16 %v90
    %v652 = vunpack.c.l.b16 %v91
    %v653 = vunpack.c.h.b16 %v91
    %v654 = vunpack.c.l.b16 %v92
    %v655 = vunpack.c.h.b16 %v92
    %v656 = vunpack.c.l.b16 %v93
    %v657 = vunpack.c.h.b16 %v93
    %v658 = vunpack.c.l.b16 %v94
    %v659 = vunpack.c.h.b16 %v94
    %v660 = vunpack.c.l.b16 %v95
    %v661 = vunpack.c.h.b16 %v95
    %v662 = vunpack.c.l.b16 %v96
    %v663 = vunpack.c.h.b16 %v96
    %v664 = vunpack.c.l.b16 %v97
    %v665 = vunpack.c.h.b16 %v97
    %v666 = vunpack.c.l.b16 %v98
    %v667 = vunpack.c.h.b16 %v98
    %v668 = vunpack.c.l.b16 %v99
    %v669 = vunpack.c.h.b16 %v99
    %v670 = vunpack.c.l.b16 %v100
    %v671 = vunpack.c.h.b16 %v100
    %v672 = vunpack.c.l.b16 %v101
    %v673 = vunpack.c.h.b16 %v101
    %v674 = vunpack.c.l.b16 %v102
    %v675 = vunpack.c.h.b16 %v102
    %v676 = vunpack.c.l.b16 %v103
    %v677 = vunpack.c.h.b16 %v103
    %v678 = vunpack.c.l.b16 %v104
    %v679 = vunpack.c.h.b16 %v104
    %v680 = vunpack.c.l.b16 %v105
    %v681 = vunpack.c.h.b16 %v105
    %v682 = vunpack.c.l.b16 %v106
    %v683 = vunpack.c.h.b16 %v106
    %v684 = vunpack.c.l.b16 %v107
    %v685 = vunpack.c.h.b16 %v107
    %v686 = vunpack.c.l.b16 %v108
    %v687 = vunpack.c.h.b16 %v108
    %v688 = vunpack.c.l.b16 %v109
    %v689 = vunpack.c.h.b16 %v109
    %v690 = vunpack.c.l.b16 %v110
    %v691 = vunpack.c.h.b16 %v110
    %v692 = vunpack.c.l.b16 %v111
    %v693 = vunpack.c.h.b16 %v111
    %v694 = vunpack.c.l.b16 %v112
    %v695 = vunpack.c.h.b16 %v112
    %v696 = vunpack.c.l.b16 %v113
    %v697 = vunpack.c.h.b16 %v113
    %v698 = vunpack.c.l.b16 %v114
    %v699 = vunpack.c.h.b16 %v114
    %v700 = vunpack.c.l.b16 %v115
    %v701 = vunpack.c.h.b16 %v115
    %v702 = vunpack.c.l.b16 %v116
    %v703 = vunpack.c.h.b16 %v116
    %v704 = vunpack.c.l.b16 %v117
    %v705 = vunpack.c.h.b16 %v117
    %v706 = vunpack.c.l.b16 %v118
    %v707 = vunpack.c.h.b16 %v118
    %v708 = vunpack.c.l.b16 %v119
    %v709 = vunpack.c.h.b16 %v119
    %v710 = vunpack.c.l.b16 %v120
    %v711 = vunpack.c.h.b16 %v120
    %v712 = vunpack.c.l.b16 %v121
    %v713 = vunpack.c.h.b16 %v121
    %v714 = vunpack.c.l.b16 %v122
    %v715 = vunpack.c.h.b16 %v122
    %v716 = vunpack.c.l.b16 %v123
    %v717 = vunpack.c.h.b16 %v123
    %v718 = vunpack.c.l.b16 %v124
    %v719 = vunpack.c.h.b16 %v124
    %v720 = vunpack.c.l.b16 %v125
    %v721 = vunpack.c.h.b16 %v125
    %v722 = vunpack.c.l.b16 %v126
    %v723 = vunpack.c.h.b16 %v126
    %v724 = vunpack.c.l.b16 %v127
    %v725 = vunpack.c.h.b16 %v127
    %v726 = vunpack.c.l.b16 %v128
    %v727 = vunpack.c.h.b16 %v128
    %v728 = vunpack.c.l.b16 %v129
    %v729 = vunpack.c.h.b16 %v129
    %v730 = vunpack.c.l.b16 %v130
    %v731 = vunpack.c.h.b16 %v130
    %v732 = vunpack.c.l.b16 %v131
    %v733 = vunpack.c.h.b16 %v131
    %v734 = vunpack.c.l.b16 %v132
    %v735 = vunpack.c.h.b16 %v132
    %v736 = vunpack.c.l.b16 %v133
    %v737 = vunpack.c.h.b16 %v133
    %v738 = vunpack.c.l.b16 %v134
    %v739 = vunpack.c.h.b16 %v134
    %v740 = vunpack.c.l.b16 %v135
    %v741 = vunpack.c.h.b16 %v135
    %v742 = vunpack.c.l.b16 %v136
    %v743 = vunpack.c.h.b16 %v136
    %v744 = vunpack.c.l.b16 %v137
    %v745 = vunpack.c.h.b16 %v137
    %v746 = vunpack.c.l.b16 %v138
    %v747 = vunpack.c.h.b16 %v138
    %v748 = vunpack.c.l.b16 %v139
    %v749 = vunpack.c.h.b16 %v139
    %v750 = vunpack.c.l.b16 %v140
    %v751 = vunpack.c.h.b16 %v140
    %v752 = vunpack.c.l.b16 %v141
    %v753 = vunpack.c.h.b16 %v141
    %v754 = vunpack.c.l.b16 %v142
    %v755 = vunpack.c.h.b16 %v142
    %v756 = vunpack.c.l.b16 %v143
    %v757 = vunpack.c.h.b16 %v143
    %v758 = vunpack.c.l.b16 %v144
    %v759 = vunpack.c.h.b16 %v144
    %v760 = vunpack.c.l.b16 %v145
    %v761 = vunpack.c.h.b16 %v145
    %v762 = vunpack.c.l.b16 %v146
    %v763 = vunpack.c.h.b16 %v146
    %v764 = vunpack.c.l.b16 %v147
    %v765 = vunpack.c.h.b16 %v147
    %v766 = vunpack.c.l.b16 %v148
    %v767 = vunpack.c.h.b16 %v148
    %v768 = vunpack.c.l.b16 %v149
    %v769 = vunpack.c.h.b16 %v149
    %v770 = vunpack.c.l.b16 %v150
    %v771 = vunpack.c.h.b16 %v150
    %v772 = vunpack.c.l.b16 %v151
    %v773 = vunpack.c.h.b16 %v151
    %v774 = vunpack.c.l.b16 %v152
    %v775 = vunpack.c.h.b16 %v152
    %v776 = vunpack.c.l.b16 %v153
    %v777 = vunpack.c.h.b16 %v153
    %v778 = vunpack.c.l.b16 %v154
    %v779 = vunpack.c.h.b16 %v154
    %v780 = vunpack.c.l.b16 %v155
    %v781 = vunpack.c.h.b16 %v155
    %v782 = vunpack.c.l.b16 %v156
    %v783 = vunpack.c.h.b16 %v156
    %v784 = vunpack.c.l.b16 %v157
    %v785 = vunpack.c.h.b16 %v157
    %v786 = vunpack.c.l.b16 %v158
    %v787 = vunpack.c.h.b16 %v158
    %v788 = vunpack.c.l.b16 %v159
    %v789 = vunpack.c.h.b16 %v159
    %v790 = vunpack.c.l.b16 %v160
    %v791 = vunpack.c.h.b16 %v160
    %v792 = vunpack.c.l.b16 %v161
    %v793 = vunpack.c.h.b16 %v161
    %v794 = vunpack.c.l.b16 %v162
    %v795 = vunpack.c.h.b16 %v162
    %v796 = vunpack.c.l.b16 %v163
    %v797 = vunpack.c.h.b16 %v163
    %v798 = vunpack.c.l.b16 %v164
    %v799 = vunpack.c.h.b16 %v164
    %v800 = vunpack.c.l.b16 %v165
    %v801 = vunpack.c.h.b16 %v165
    %v802 = vunpack.c.l.b16 %v166
    %v803 = vunpack.c.h.b16 %v166
    %v804 = vunpack.c.l.b16 %v167
    %v805 = vunpack.c.h.b16 %v167
    %v806 = vunpack.c.l.b16 %v168
    %v807 = vunpack.c.h.b16 %v168
    %v808 = vunpack.c.l.b16 %v169
    %v809 = vunpack.c.h.b16 %v169
    %v810 = vunpack.c.l.b16 %v170
    %v811 = vunpack.c.h.b16 %v170
    %v812 = vunpack.c.l.b16 %v171
    %v813 = vunpack.c.h.b16 %v171
    %v814 = vunpack.c.l.b16 %v172
    %v815 = vunpack.c.h.b16 %v172
    %v816 = vunpack.c.l.b16 %v173
    %v817 = vunpack.c.h.b16 %v173
    %v818 = vunpack.c.l.b16 %v174
    %v819 = vunpack.c.h.b16 %v174
    %v820 = vunpack.c.l.b16 %v175
    %v821 = vunpack.c.h.b16 %v175
    %v822 = vunpack.c.l.b16 %v176
    %v823 = vunpack.c.h.b16 %v176
    %v824 = vunpack.c.l.b16 %v177
    %v825 = vunpack.c.h.b16 %v177
    %v826 = vunpack.c.l.b16 %v178
    %v827 = vunpack.c.h.b16 %v178
    %v828 = vunpack.c.l.b16 %v179
    %v829 = vunpack.c.h.b16 %v179
    %v830 = vunpack.c.l.b16 %v180
    %v831 = vunpack.c.h.b16 %v180
    %v832 = vunpack.c.l.b16 %v181
    %v833 = vunpack.c.h.b16 %v181
    %v834 = vunpack.c.l.b16 %v182
    %v835 = vunpack.c.h.b16 %v182
    %v836 = vunpack.c.l.b16 %v183
    %v837 = vunpack.c.h.b16 %v183
    %v838 = vunpack.c.l.b16 %v184
    %v839 = vunpack.c.h.b16 %v184
    %v840 = vunpack.c.l.b16 %v185
    %v841 = vunpack.c.h.b16 %v185
    %v842 = vunpack.c.l.b16 %v186
    %v843 = vunpack.c.h.b16 %v186
    %v844 = vunpack.c.l.b16 %v187
    %v845 = vunpack.c.h.b16 %v187
    %v846 = vunpack.c.l.b16 %v188
    %v847 = vunpack.c.h.b16 %v188
    %v848 = vunpack.c.l.b16 %v189
    %v849 = vunpack.c.h.b16 %v189
    %v850 = vunpack.c.l.b16 %v190
    %v851 = vunpack.c.h.b16 %v190
    %v852 = vunpack.c.l.b16 %v191
    %v853 = vunpack.c.h.b16 %v191
    %v854 = vunpack.c.l.b16 %v192
    %v855 = vunpack.c.h.b16 %v192
    %v856 = vunpack.c.l.b16 %v193
    %v857 = vunpack.c.h.b16 %v193
    %v858 = vunpack.c.l.b16 %v194
    %v859 = vunpack.c.h.b16 %v194
    %v860 = vunpack.c.l.b16 %v195
    %v861 = vunpack.c.h.b16 %v195
    %v862 = vunpack.c.l.b16 %v196
    %v863 = vunpack.c.h.b16 %v196
    %v864 = vunpack.c.l.b16 %v197
    %v865 = vunpack.c.h.b16 %v197
    %v866 = vunpack.c.l.b16 %v198
    %v867 = vunpack.c.h.b16 %v198
    %v868 = vunpack.c.l.b16 %v199
    %v869 = vunpack.c.h.b16 %v199
    %v870 = vunpack.c.l.b16 %v200
    %v871 = vunpack.c.h.b16 %v200
    %v872 = vunpack.c.l.b16 %v201
    %v873 = vunpack.c.h.b16 %v201
    %v874 = vunpack.c.l.b16 %v202
    %v875 = vunpack.c.h.b16 %v202
    %v876 = vunpack.c.l.b16 %v203
    %v877 = vunpack.c.h.b16 %v203
    %v878 = vunpack.c.l.b16 %v204
    %v879 = vunpack.c.h.b16 %v204
    %v880 = vunpack.c.l.b16 %v205
    %v881 = vunpack.c.h.b16 %v205
    %v882 = vunpack.c.l.b16 %v206
    %v883 = vunpack.c.h.b16 %v206
    %v884 = vunpack.c.l.b16 %v207
    %v885 = vunpack.c.h.b16 %v207
    %v886 = vunpack.c.l.b16 %v208
    %v887 = vunpack.c.h.b16 %v208
    %v888 = vunpack.c.l.b16 %v209
    %v889 = vunpack.c.h.b16 %v209
    %v890 = vunpack.c.l.b16 %v210
    %v891 = vunpack.c.h.b16 %v210
    %v892 = vunpack.c.l.b16 %v211
    %v893 = vunpack.c.h.b16 %v211
    %v894 = vunpack.c.l.b16 %v212
    %v895 = vunpack.c.h.b16 %v212
    %v896 = vunpack.c.l.b16 %v213
    %v897 = vunpack.c.h.b16 %v213
    %v898 = vunpack.c.l.b16 %v214
    %v899 = vunpack.c.h.b16 %v214
    %v900 = vunpack.c.l.b16 %v215
    %v901 = vunpack.c.h.b16 %v215
    %v902 = vunpack.c.l.b16 %v216
    %v903 = vunpack.c.h.b16 %v216
    %v904 = vunpack.c.l.b16 %v217
    %v905 = vunpack.c.h.b16 %v217
    %v906 = vunpack.c.l.b16 %v218
    %v907 = vunpack.c.h.b16 %v218
    %v908 = vunpack.c.l.b16 %v219
    %v909 = vunpack.c.h.b16 %v219
    %v910 = vunpack.c.l.b16 %v220
    %v911 = vunpack.c.h.b16 %v220
    %v912 = vunpack.c.l.b16 %v221
    %v913 = vunpack.c.h.b16 %v221
    %v914 = vunpack.c.l.b16 %v222
    %v915 = vunpack.c.h.b16 %v222
    %v916 = vunpack.c.l.b16 %v223
    %v917 = vunpack.c.h.b16 %v223
    %v918 = vunpack.c.l.b16 %v224
    %v919 = vunpack.c.h.b16 %v224
    %v920 = vunpack.c.l.b16 %v225
    %v921 = vunpack.c.h.b16 %v225
    %v922 = vunpack.c.l.b16 %v226
    %v923 = vunpack.c.h.b16 %v226
    %v924 = vunpack.c.l.b16 %v227
    %v925 = vunpack.c.h.b16 %v227
    %v926 = vunpack.c.l.b16 %v228
    %v927 = vunpack.c.h.b16 %v228
    %v928 = vunpack.c.l.b16 %v229
    %v929 = vunpack.c.h.b16 %v229
    %v930 = vunpack.c.l.b16 %v230
    %v931 = vunpack.c.h.b16 %v230
    %v932 = vunpack.c.l.b16 %v231
    %v933 = vunpack.c.h.b16 %v231
    %v934 = vunpack.c.l.b16 %v232
    %v935 = vunpack.c.h.b16 %v232
    %v936 = vunpack.c.l.b16 %v233
    %v937 = vunpack.c.h.b16 %v233
    %v938 = vunpack.c.l.b16 %v234
    %v939 = vunpack.c.h.b16 %v234
    %v940 = vunpack.c.l.b16 %v235
    %v941 = vunpack.c.h.b16 %v235
    %v942 = vunpack.c.l.b16 %v236
    %v943 = vunpack.c.h.b16 %v236
    %v944 = vunpack.c.l.b16 %v237
    %v945 = vunpack.c.h.b16 %v237
    %v946 = vunpack.c.l.b16 %v238
    %v947 = vunpack.c.h.b16 %v238
    %v948 = vunpack.c.l.b16 %v239
    %v949 = vunpack.c.h.b16 %v239
    %v950 = vunpack.c.l.b16 %v240
    %v951 = vunpack.c.h.b16 %v240
    %v952 = vunpack.c.l.b16 %v241
    %v953 = vunpack.c.h.b16 %v241
    %v954 = vunpack.c.l.b16 %v242
    %v955 = vunpack.c.h.b16 %v242
    %v956 = vunpack.c.l.b16 %v243
    %v957 = vunpack.c.h.b16 %v243
    %v958 = vunpack.c.l.b16 %v244
    %v959 = vunpack.c.h.b16 %v244
    %v960 = vunpack.c.l.b16 %v245
    %v961 = vunpack.c.h.b16 %v245
    %v962 = vunpack.c.l.b16 %v246
    %v963 = vunpack.c.h.b16 %v246
    %v964 = vunpack.c.l.b16 %v247
    %v965 = vunpack.c.h.b16 %v247
    %v966 = vunpack.c.l.b16 %v248
    %v967 = vunpack.c.h.b16 %v248
    %v968 = vunpack.c.l.b16 %v249
    %v969 = vunpack.c.h.b16 %v249
    %v970 = vunpack.c.l.b16 %v250
    %v971 = vunpack.c.h.b16 %v250
    %v972 = vunpack.c.l.b16 %v251
    %v973 = vunpack.c.h.b16 %v251
    %v974 = vunpack.c.l.b16 %v252
    %v975 = vunpack.c.h.b16 %v252
    %v976 = vunpack.c.l.b16 %v253
    %v977 = vunpack.c.h.b16 %v253
    %v978 = vunpack.c.l.b16 %v254
    %v979 = vunpack.c.h.b16 %v254
    %v980 = vunpack.c.l.b16 %v255
    %v981 = vunpack.c.h.b16 %v255
    %v982 = vunpack.c.l.b16 %v256
    %v983 = vunpack.c.h.b16 %v256
    %v984 = vunpack.c.l.b16 %v257
    %v985 = vunpack.c.h.b16 %v257
    %v986 = vunpack.c.l.b16 %v258
    %v987 = vunpack.c.h.b16 %v258
    %v988 = vunpack.c.l.b16 %v259
    %v989 = vunpack.c.h.b16 %v259
    %v990 = vunpack.c.l.b16 %v260
    %v991 = vunpack.c.h.b16 %v260
    %v992 = vunpack.c.l.b16 %v261
    %v993 = vunpack.c.h.b16 %v261
    %v994 = vunpack.c.l.b16 %v262
    %v995 = vunpack.c.h.b16 %v262
    %v996 = vunpack.c.l.b16 %v263
    %v997 = vunpack.c.h.b16 %v263
    %v998 = vunpack.c.l.b16 %v264
    %v999 = vunpack.c.h.b16 %v264
    %v1000 = vunpack.c.l.b16 %v265
    %v1001 = vunpack.c.h.b16 %v265
    %v1002 = vunpack.c.l.b16 %v266
    %v1003 = vunpack.c.h.b16 %v266
    %v1004 = vunpack.c.l.b16 %v267
    %v1005 = vunpack.c.h.b16 %v267
    %v1006 = vunpack.c.l.b16 %v268
    %v1007 = vunpack.c.h.b16 %v268
    %v1008 = vunpack.c.l.b16 %v269
    %v1009 = vunpack.c.h.b16 %v269
    %v1010 = vunpack.c.l.b16 %v270
    %v1011 = vunpack.c.h.b16 %v270
    %v1012 = vunpack.c.l.b16 %v271
    %v1013 = vunpack.c.h.b16 %v271
    %v1014 = vunpack.c.l.b16 %v272
    %v1015 = vunpack.c.h.b16 %v272
    %v1016 = vunpack.c.l.b16 %v273
    %v1017 = vunpack.c.h.b16 %v273
    %v1018 = vunpack.c.l.b16 %v274
    %v1019 = vunpack.c.h.b16 %v274
    %v1020 = vunpack.c.l.b16 %v275
    %v1021 = vunpack.c.h.b16 %v275
    %v1022 = vunpack.c.l.b16 %v276
    %v1023 = vunpack.c.h.b16 %v276
    %v1024 = vunpack.c.l.b16 %v277
    %v1025 = vunpack.c.h.b16 %v277
    %v1026 = vunpack.c.l.b16 %v278
    %v1027 = vunpack.c.h.b16 %v278
    %v1028 = vunpack.c.l.b16 %v279
    %v1029 = vunpack.c.h.b16 %v279
    %v1030 = vunpack.c.l.b16 %v280
    %v1031 = vunpack.c.h.b16 %v280
    %v1032 = vunpack.c.l.b16 %v281
    %v1033 = vunpack.c.h.b16 %v281
    %v1034 = vunpack.c.l.b16 %v282
    %v1035 = vunpack.c.h.b16 %v282
    %v1036 = vunpack.c.l.b16 %v283
    %v1037 = vunpack.c.h.b16 %v283
    %v1038 = vunpack.c.l.b16 %v284
    %v1039 = vunpack.c.h.b16 %v284
    %v1040 = vunpack.c.l.b16 %v285
    %v1041 = vunpack.c.h.b16 %v285
    %v1042 = vunpack.c.l.b16 %v286
    %v1043 = vunpack.c.h.b16 %v286
    %v1044 = vunpack.c.l.b16 %v287
    %v1045 = vunpack.c.h.b16 %v287
    %v1046 = vunpack.c.l.b16 %v288
    %v1047 = vunpack.c.h.b16 %v288
    %v1048 = vunpack.c.l.b16 %v289
    %v1049 = vunpack.c.h.b16 %v289
    %v1050 = vunpack.c.l.b16 %v290
    %v1051 = vunpack.c.h.b16 %v290
    %v1052 = vunpack.c.l.b16 %v291
    %v1053 = vunpack.c.h.b16 %v291
    %v1054 = vunpack.c.l.b16 %v292
    %v1055 = vunpack.c.h.b16 %v292
    %v1056 = vunpack.c.l.b16 %v293
    %v1057 = vunpack.c.h.b16 %v293
    %v1058 = vunpack.c.l.b16 %v294
    %v1059 = vunpack.c.h.b16 %v294
    %v1060 = vunpack.c.l.b16 %v295
    %v1061 = vunpack.c.h.b16 %v295
    %v1062 = vunpack.c.l.b16 %v296
    %v1063 = vunpack.c.h.b16 %v296
    %v1064 = vunpack.c.l.b16 %v297
    %v1065 = vunpack.c.h.b16 %v297
    %v1066 = vunpack.c.l.b16 %v298
    %v1067 = vunpack.c.h.b16 %v298
    %v1068 = vunpack.c.l.b16 %v299
    %v1069 = vunpack.c.h.b16 %v299
    %v1070 = vunpack.c.l.b16 %v300
    %v1071 = vunpack.c.h.b16 %v300
    %v1072 = vunpack.c.l.b16 %v301
    %v1073 = vunpack.c.h.b16 %v301
    %v1074 = vunpack.c.l.b16 %v302
    %v1075 = vunpack.c.h.b16 %v302
    %v1076 = vunpack.c.l.b16 %v303
    %v1077 = vunpack.c.h.b16 %v303
    %v1078 = vunpack.c.l.b16 %v304
    %v1079 = vunpack.c.h.b16 %v304
    %v1080 = vunpack.c.l.b16 %v305
    %v1081 = vunpack.c.h.b16 %v305
    %v1082 = vunpack.c.l.b16 %v306
    %v1083 = vunpack.c.h.b16 %v306
    %v1084 = vunpack.c.l.b16 %v307
    %v1085 = vunpack.c.h.b16 %v307
    %v1086 = vunpack.c.l.b16 %v308
    %v1087 = vunpack.c.h.b16 %v308
    %v1088 = vunpack.c.l.b16 %v309
    %v1089 = vunpack.c.h.b16 %v309
    %v1090 = vunpack.c.l.b16 %v310
    %v1091 = vunpack.c.h.b16 %v310
    %v1092 = vunpack.c.l.b16 %v311
    %v1093 = vunpack.c.h.b16 %v311
    %v1094 = vunpack.c.l.b16 %v312
    %v1095 = vunpack.c.h.b16 %v312
    %v1096 = vunpack.c.l.b16 %v313
    %v1097 = vunpack.c.h.b16 %v313
    %v1098 = vunpack.c.l.b16 %v314
    %v1099 = vunpack.c.h.b16 %v314
    %v1100 = vunpack.c.l.b16 %v315
    %v1101 = vunpack.c.h.b16 %v315
    %v1102 = vunpack.c.l.b16 %v316
    %v1103 = vunpack.c.h.b16 %v316
    %v1104 = vunpack.c.l.b16 %v317
    %v1105 = vunpack.c.h.b16 %v317
    %v1106 = vunpack.c.l.b16 %v318
    %v1107 = vunpack.c.h.b16 %v318
    %v1108 = vunpack.c.l.b16 %v319
    %v1109 = vunpack.c.h.b16 %v319
    %v1110 = vpack.c.b16 %v602, %v598
    %v1111 = vpack.c.b16 %v603, %v599
    %v1112 = vpack.c.b16 %v604, %v600
    %v1113 = vpack.c.b16 %v605, %v601
    %v1114 = vpack.c.b16 %v610, %v606
    %v1115 = vpack.c.b16 %v611, %v607
    %v1116 = vpack.c.b16 %v612, %v608
    %v1117 = vpack.c.b16 %v613, %v609
    %v1118 = vpack.c.b16 %v618, %v614
    %v1119 = vpack.c.b16 %v619, %v615
    %v1120 = vpack.c.b16 %v620, %v616
    %v1121 = vpack.c.b16 %v621, %v617
    %v1122 = vpack.c.b16 %v626, %v622
    %v1123 = vpack.c.b16 %v627, %v623
    %v1124 = vpack.c.b16 %v628, %v624
    %v1125 = vpack.c.b16 %v629, %v625
    %v1126 = vpack.c.b16 %v634, %v630
    %v1127 = vpack.c.b16 %v635, %v631
    %v1128 = vpack.c.b16 %v636, %v632
    %v1129 = vpack.c.b16 %v637, %v633
    %v1130 = vpack.c.b16 %v642, %v638
    %v1131 = vpack.c.b16 %v643, %v639
    %v1132 = vpack.c.b16 %v644, %v640
    %v1133 = vpack.c.b16 %v645, %v641
    %v1134 = vpack.c.b16 %v650, %v646
    %v1135 = vpack.c.b16 %v651, %v647
    %v1136 = vpack.c.b16 %v652, %v648
    %v1137 = vpack.c.b16 %v653, %v649
    %v1138 = vpack.c.b16 %v658, %v654
    %v1139 = vpack.c.b16 %v659, %v655
    %v1140 = vpack.c.b16 %v660, %v656
    %v1141 = vpack.c.b16 %v661, %v657
    %v1142 = vpack.c.b16 %v666, %v662
    %v1143 = vpack.c.b16 %v667, %v663
    %v1144 = vpack.c.b16 %v668, %v664
    %v1145 = vpack.c.b16 %v669, %v665
    %v1146 = vpack.c.b16 %v674, %v670
    %v1147 = vpack.c.b16 %v675, %v671
    %v1148 = vpack.c.b16 %v676, %v672
    %v1149 = vpack.c.b16 %v677, %v673
    %v1150 = vpack.c.b16 %v682, %v678
    %v1151 = vpack.c.b16 %v683, %v679
    %v1152 = vpack.c.b16 %v684, %v680
    %v1153 = vpack.c.b16 %v685, %v681
    %v1154 = vpack.c.b16 %v690, %v686
    %v1155 = vpack.c.b16 %v691, %v687
    %v1156 = vpack.c.b16 %v692, %v688
    %v1157 = vpack.c.b16 %v693, %v689
    %v1158 = vpack.c.b16 %v698, %v694
    %v1159 = vpack.c.b16 %v699, %v695
    %v1160 = vpack.c.b16 %v700, %v696
    %v1161 = vpack.c.b16 %v701, %v697
    %v1162 = vpack.c.b16 %v706, %v702
    %v1163 = vpack.c.b16 %v707, %v703
    %v1164 = vpack.c.b16 %v708, %v704
    %v1165 = vpack.c.b16 %v709, %v705
    %v1166 = vpack.c.b16 %v714, %v710
    %v1167 = vpack.c.b16 %v715, %v711
    %v1168 = vpack.c.b16 %v716, %v712
    %v1169 = vpack.c.b16 %v717, %v713
    %v1170 = vpack.c.b16 %v722, %v718
    %v1171 = vpack.c.b16 %v723, %v719
    %v1172 = vpack.c.b16 %v724, %v720
    %v1173 = vpack.c.b16 %v725, %v721
    %v1174 = vpack.c.b16 %v730, %v726
    %v1175 = vpack.c.b16 %v731, %v727
    %v1176 = vpack.c.b16 %v732, %v728
    %v1177 = vpack.c.b16 %v733, %v729
    %v1178 = vpack.c.b16 %v738, %v734
    %v1179 = vpack.c.b16 %v739, %v735
    %v1180 = vpack.c.b16 %v740, %v736
    %v1181 = vpack.c.b16 %v741, %v737
    %v1182 = vpack.c.b16 %v746, %v742
    %v1183 = vpack.c.b16 %v747, %v743
    %v1184 = vpack.c.b16 %v748, %v744
    %v1185 = vpack.c.b16 %v749, %v745
    %v1186 = vpack.c.b16 %v754, %v750
    %v1187 = vpack.c.b16 %v755, %v751
    %v1188 = vpack.c.b16 %v756, %v752
    %v1189 = vpack.c.b16 %v757, %v753
    %v1190 = vpack.c.b16 %v762, %v758
    %v1191 = vpack.c.b16 %v763, %v759
    %v1192 = vpack.c.b16 %v764, %v760
    %v1193 = vpack.c.b16 %v765, %v761
    %v1194 = vpack.c.b16 %v770, %v766
    %v1195 = vpack.c.b16 %v771, %v767
    %v1196 = vpack.c.b16 %v772, %v768
    %v1197 = vpack.c.b16 %v773, %v769
    %v1198 = vpack.c.b16 %v778, %v774
    %v1199 = vpack.c.b16 %v779, %v775
    %v1200 = vpack.c.b16 %v780, %v776
    %v1201 = vpack.c.b16 %v781, %v777
    %v1202 = vpack.c.b16 %v786, %v782
    %v1203 = vpack.c.b16 %v787, %v783
    %v1204 = vpack.c.b16 %v788, %v784
    %v1205 = vpack.c.b16 %v789, %v785
    %v1206 = vpack.c.b16 %v794, %v790
    %v1207 = vpack.c.b16 %v795, %v791
    %v1208 = vpack.c.b16 %v796, %v792
    %v1209 = vpack.c.b16 %v797, %v793
    %v1210 = vpack.c.b16 %v802, %v798
    %v1211 = vpack.c.b16 %v803, %v799
    %v1212 = vpack.c.b16 %v804, %v800
    %v1213 = vpack.c.b16 %v805, %v801
    %v1214 = vpack.c.b16 %v810, %v806
    %v1215 = vpack.c.b16 %v811, %v807
    %v1216 = vpack.c.b16 %v812, %v808
    %v1217 = vpack.c.b16 %v813, %v809
    %v1218 = vpack.c.b16 %v818, %v814
    %v1219 = vpack.c.b16 %v819, %v815
    %v1220 = vpack.c.b16 %v820, %v816
    %v1221 = vpack.c.b16 %v821, %v817
    %v1222 = vpack.c.b16 %v826, %v822
    %v1223 = vpack.c.b16 %v827, %v823
    %v1224 = vpack.c.b16 %v828, %v824
    %v1225 = vpack.c.b16 %v829, %v825
    %v1226 = vpack.c.b16 %v834, %v830
    %v1227 = vpack.c.b16 %v835, %v831
    %v1228 = vpack.c.b16 %v836, %v832
    %v1229 = vpack.c.b16 %v837, %v833
    %v1230 = vpack.c.b16 %v842, %v838
    %v1231 = vpack.c.b16 %v843, %v839
    %v1232 = vpack.c.b16 %v844, %v840
    %v1233 = vpack.c.b16 %v845, %v841
    %v1234 = vpack.c.b16 %v850, %v846
    %v1235 = vpack.c.b16 %v851, %v847
    %v1236 = vpack.c.b16 %v852, %v848
    %v1237 = vpack.c.b16 %v853, %v849
    %v1238 = vpack.c.b16 %v858, %v854
    %v1239 = vpack.c.b16 %v859, %v855
    %v1240 = vpack.c.b16 %v860, %v856
    %v1241 = vpack.c.b16 %v861, %v857
    %v1242 = vpack.c.b16 %v866, %v862
    %v1243 = vpack.c.b16 %v867, %v863
    %v1244 = vpack.c.b16 %v868, %v864
    %v1245 = vpack.c.b16 %v869, %v865
    %v1246 = vpack.c.b16 %v874, %v870
    %v1247 = vpack.c.b16 %v875, %v871
    %v1248 = vpack.c.b16 %v876, %v872
    %v1249 = vpack.c.b16 %v877, %v873
    %v1250 = vpack.c.b16 %v882, %v878
    %v1251 = vpack.c.b16 %v883, %v879
    %v1252 = vpack.c.b16 %v884, %v880
    %v1253 = vpack.c.b16 %v885, %v881
    %v1254 = vpack.c.b16 %v890, %v886
    %v1255 = vpack.c.b16 %v891, %v887
    %v1256 = vpack.c.b16 %v892, %v888
    %v1257 = vpack.c.b16 %v893, %v889
    %v1258 = vpack.c.b16 %v898, %v894
    %v1259 = vpack.c.b16 %v899, %v895
    %v1260 = vpack.c.b16 %v900, %v896
    %v1261 = vpack.c.b16 %v901, %v897
    %v1262 = vpack.c.b16 %v906, %v902
    %v1263 = vpack.c.b16 %v907, %v903
    %v1264 = vpack.c.b16 %v908, %v904
    %v1265 = vpack.c.b16 %v909, %v905
    %v1266 = vpack.c.b16 %v914, %v910
    %v1267 = vpack.c.b16 %v915, %v911
    %v1268 = vpack.c.b16 %v916, %v912
    %v1269 = vpack.c.b16 %v917, %v913
    %v1270 = vpack.c.b16 %v922, %v918
    %v1271 = vpack.c.b16 %v923, %v919
    %v1272 = vpack.c.b16 %v924, %v920
    %v1273 = vpack.c.b16 %v925, %v921
    %v1274 = vpack.c.b16 %v930, %v926
    %v1275 = vpack.c.b16 %v931, %v927
    %v1276 = vpack.c.b16 %v932, %v928
    %v1277 = vpack.c.b16 %v933, %v929
    %v1278 = vpack.c.b16 %v938, %v934
    %v1279 = vpack.c.b16 %v939, %v935
    %v1280 = vpack.c.b16 %v940, %v936
    %v1281 = vpack.c.b16 %v941, %v937
    %v1282 = vpack.c.b16 %v946, %v942
    %v1283 = vpack.c.b16 %v947, %v943
    %v1284 = vpack.c.b16 %v948, %v944
    %v1285 = vpack.c.b16 %v949, %v945
    %v1286 = vpack.c.b16 %v954, %v950
    %v1287 = vpack.c.b16 %v955, %v951
    %v1288 = vpack.c.b16 %v956, %v952
    %v1289 = vpack.c.b16 %v957, %v953
    %v1290 = vpack.c.b16 %v962, %v958
    %v1291 = vpack.c.b16 %v963, %v959
    %v1292 = vpack.c.b16 %v964, %v960
    %v1293 = vpack.c.b16 %v965, %v961
    %v1294 = vpack.c.b16 %v970, %v966
    %v1295 = vpack.c.b16 %v971, %v967
    %v1296 = vpack.c.b16 %v972, %v968
    %v1297 = vpack.c.b16 %v973, %v969
    %v1298 = vpack.c.b16 %v978, %v974
    %v1299 = vpack.c.b16 %v979, %v975
    %v1300 = vpack.c.b16 %v980, %v976
    %v1301 = vpack.c.b16 %v981, %v977
    %v1302 = vpack.c.b16 %v986, %v982
    %v1303 = vpack.c.b16 %v987, %v983
    %v1304 = vpack.c.b16 %v988, %v984
    %v1305 = vpack.c.b16 %v989, %v985
    %v1306 = vpack.c.b16 %v994, %v990
    %v1307 = vpack.c.b16 %v995, %v991
    %v1308 = vpack.c.b16 %v996, %v992
    %v1309 = vpack.c.b16 %v997, %v993
    %v1310 = vpack.c.b16 %v1002, %v998
    %v1311 = vpack.c.b16 %v1003, %v999
    %v1312 = vpack.c.b16 %v1004, %v1000
    %v1313 = vpack.c.b16 %v1005, %v1001
    %v1314 = vpack.c.b16 %v1010, %v1006
    %v1315 = vpack.c.b16 %v1011, %v1007
    %v1316 = vpack.c.b16 %v1012, %v1008
    %v1317 = vpack.c.b16 %v1013, %v1009
    %v1318 = vpack.c.b16 %v1018, %v1014
    %v1319 = vpack.c.b16 %v1019, %v1015
    %v1320 = vpack.c.b16 %v1020, %v1016
    %v1321 = vpack.c.b16 %v1021, %v1017
    %v1322 = vpack.c.b16 %v1026, %v1022
    %v1323 = vpack.c.b16 %v1027, %v1023
    %v1324 = vpack.c.b16 %v1028, %v1024
    %v1325 = vpack.c.b16 %v1029, %v1025
    %v1326 = vpack.c.b16 %v1034, %v1030
    %v1327 = vpack.c.b16 %v1035, %v1031
    %v1328 = vpack.c.b16 %v1036, %v1032
    %v1329 = vpack.c.b16 %v1037, %v1033
    %v1330 = vpack.c.b16 %v1042, %v1038
    %v1331 = vpack.c.b16 %v1043, %v1039
    %v1332 = vpack.c.b16 %v1044, %v1040
    %v1333 = vpack.c.b16 %v1045, %v1041
    %v1334 = vpack.c.b16 %v1050, %v1046
    %v1335 = vpack.c.b16 %v1051, %v1047
    %v1336 = vpack.c.b16 %v1052, %v1048
    %v1337 = vpack.c.b16 %v1053, %v1049
    %v1338 = vpack.c.b16 %v1058, %v1054
    %v1339 = vpack.c.b16 %v1059, %v1055
    %v1340 = vpack.c.b16 %v1060, %v1056
    %v1341 = vpack.c.b16 %v1061, %v1057
    %v1342 = vpack.c.b16 %v1066, %v1062
    %v1343 = vpack.c.b16 %v1067, %v1063
    %v1344 = vpack.c.b16 %v1068, %v1064
    %v1345 = vpack.c.b16 %v1069, %v1065
    %v1346 = vpack.c.b16 %v1074, %v1070
    %v1347 = vpack.c.b16 %v1075, %v1071
    %v1348 = vpack.c.b16 %v1076, %v1072
    %v1349 = vpack.c.b16 %v1077, %v1073
    %v1350 = vpack.c.b16 %v1082, %v1078
    %v1351 = vpack.c.b16 %v1083, %v1079
    %v1352 = vpack.c.b16 %v1084, %v1080
    %v1353 = vpack.c.b16 %v1085, %v1081
    %v1354 = vpack.c.b16 %v1090, %v1086
    %v1355 = vpack.c.b16 %v1091, %v1087
    %v1356 = vpack.c.b16 %v1092, %v1088
    %v1357 = vpack.c.b16 %v1093, %v1089
    %v1358 = vpack.c.b16 %v1098, %v1094
    %v1359 = vpack.c.b16 %v1099, %v1095
    %v1360 = vpack.c.b16 %v1100, %v1096
    %v1361 = vpack.c.b16 %v1101, %v1097
    %v1362 = vpack.c.b16 %v1106, %v1102
    %v1363 = vpack.c.b16 %v1107, %v1103
    %v1364 = vpack.c.b16 %v1108, %v1104
    %v1365 = vpack.c.b16 %v1109, %v1105
    %1622 = vmatprep.subr.bf16.mxu0 %v1111
    %1623 = vmatpush1.bf16.msra.mxu0 %v1110
    %1624 = vmatprep.subr.bf16.mxu0 %v1115
    %1625 = vmatpush1.bf16.msra.mxu0 %v1114
    %1626 = vmatprep.subr.bf16.mxu0 %v1119
    %1627 = vmatpush1.bf16.msra.mxu0 %v1118
    %1628 = vmatprep.subr.bf16.mxu0 %v1123
    %1629 = vmatpush1.bf16.msra.mxu0 %v1122
    %1630 = vmatprep.subr.bf16.mxu0 %v1127
    %1631 = vmatpush1.bf16.msra.mxu0 %v1126
    %1632 = vmatprep.subr.bf16.mxu0 %v1131
    %1633 = vmatpush1.bf16.msra.mxu0 %v1130
    %1634 = vmatprep.subr.bf16.mxu0 %v1135
    %1635 = vmatpush1.bf16.msra.mxu0 %v1134
    %1636 = vmatprep.subr.bf16.mxu0 %v1139
    %1637 = vmatpush1.bf16.msra.mxu0 %v1138
    %1638 = vmatprep.subr.bf16.mxu0 %v1143
    %1639 = vmatpush1.bf16.msra.mxu0 %v1142
    %1640 = vmatprep.subr.bf16.mxu0 %v1147
    %1641 = vmatpush1.bf16.msra.mxu0 %v1146
    %1642 = vmatprep.subr.bf16.mxu0 %v1151
    %1643 = vmatpush1.bf16.msra.mxu0 %v1150
    %1644 = vmatprep.subr.bf16.mxu0 %v1155
    %1645 = vmatpush1.bf16.msra.mxu0 %v1154
    %1646 = vmatprep.subr.bf16.mxu0 %v1159
    %1647 = vmatpush1.bf16.msra.mxu0 %v1158
    %1648 = vmatprep.subr.bf16.mxu0 %v1163
    %1649 = vmatpush1.bf16.msra.mxu0 %v1162
    %1650 = vmatprep.subr.bf16.mxu0 %v1167
    %1651 = vmatpush1.bf16.msra.mxu0 %v1166
    %1652 = vmatprep.subr.bf16.mxu0 %v1171
    %1653 = vmatpush1.bf16.msra.mxu0 %v1170
    %1654 = vmatprep.mubr.bf16.mxu0 %v57
    %1655 = vmatmul.mubr.bf16.gmra.mrb[0].mxu0 %v56
    %v1656 = vpop.f32.mrb[0].mxu0
    %v1657 = vadd.f32 %v325, %v1656
    %v1658 = vpop.f32.mrb[0].mxu0
    %v1659 = vadd.f32 %v329, %v1658
    %v1660 = vpop.f32.mrb[0].mxu0
    %v1661 = vpop.f32.mrb[0].mxu0
    %1662 = vdwg.mxu0
    %1663 = vmatprep.subr.bf16.mxu0 %v1175
    %1664 = vmatpush1.bf16.msra.mxu0 %v1174
    %1665 = vmatprep.subr.bf16.mxu0 %v1179
    %1666 = vmatpush1.bf16.msra.mxu0 %v1178
    %1667 = vmatprep.subr.bf16.mxu0 %v1183
    %1668 = vmatpush1.bf16.msra.mxu0 %v1182
    %1669 = vmatprep.subr.bf16.mxu0 %v1187
    %1670 = vmatpush1.bf16.msra.mxu0 %v1186
    %1671 = vmatprep.subr.bf16.mxu0 %v1191
    %1672 = vmatpush1.bf16.msra.mxu0 %v1190
    %1673 = vmatprep.subr.bf16.mxu0 %v1195
    %1674 = vmatpush1.bf16.msra.mxu0 %v1194
    %1675 = vmatprep.subr.bf16.mxu0 %v1199
    %1676 = vmatpush1.bf16.msra.mxu0 %v1198
    %1677 = vmatprep.subr.bf16.mxu0 %v1203
    %1678 = vmatpush1.bf16.msra.mxu0 %v1202
    %1679 = vmatprep.subr.bf16.mxu0 %v1207
    %1680 = vmatpush1.bf16.msra.mxu0 %v1206
    %1681 = vmatprep.subr.bf16.mxu0 %v1211
    %1682 = vmatpush1.bf16.msra.mxu0 %v1210
    %1683 = vmatprep.subr.bf16.mxu0 %v1215
    %1684 = vmatpush1.bf16.msra.mxu0 %v1214
    %1685 = vmatprep.subr.bf16.mxu0 %v1219
    %1686 = vmatpush1.bf16.msra.mxu0 %v1218
    %1687 = vmatprep.subr.bf16.mxu0 %v1223
    %1688 = vmatpush1.bf16.msra.mxu0 %v1222
    %1689 = vmatprep.subr.bf16.mxu0 %v1227
    %1690 = vmatpush1.bf16.msra.mxu0 %v1226
    %1691 = vmatprep.subr.bf16.mxu0 %v1231
    %1692 = vmatpush1.bf16.msra.mxu0 %v1230
    %1693 = vmatprep.subr.bf16.mxu0 %v1235
    %1694 = vmatpush1.bf16.msra.mxu0 %v1234
    %1695 = vmatprep.mubr.bf16.mxu0 %v59
    %1696 = vmatmul.mubr.bf16.gmra.mrb[0].mxu0 %v58
    %v1697 = vpop.f32.mrb[0].mxu0
    %v1698 = vadd.f32 %v1657, %v1697
    %v1699 = vpop.f32.mrb[0].mxu0
    %v1700 = vadd.f32 %v1659, %v1699
    %v1701 = vpop.f32.mrb[0].mxu0
    %v1702 = vpop.f32.mrb[0].mxu0
    %1703 = vdwg.mxu0
    %1704 = vmatprep.subr.bf16.mxu0 %v1239
    %1705 = vmatpush1.bf16.msra.mxu0 %v1238
    %1706 = vmatprep.subr.bf16.mxu0 %v1243
    %1707 = vmatpush1.bf16.msra.mxu0 %v1242
    %1708 = vmatprep.subr.bf16.mxu0 %v1247
    %1709 = vmatpush1.bf16.msra.mxu0 %v1246
    %1710 = vmatprep.subr.bf16.mxu0 %v1251
    %1711 = vmatpush1.bf16.msra.mxu0 %v1250
    %1712 = vmatprep.subr.bf16.mxu0 %v1255
    %1713 = vmatpush1.bf16.msra.mxu0 %v1254
    %1714 = vmatprep.subr.bf16.mxu0 %v1259
    %1715 = vmatpush1.bf16.msra.mxu0 %v1258
    %1716 = vmatprep.subr.bf16.mxu0 %v1263
    %1717 = vmatpush1.bf16.msra.mxu0 %v1262
    %1718 = vmatprep.subr.bf16.mxu0 %v1267
    %1719 = vmatpush1.bf16.msra.mxu0 %v1266
    %1720 = vmatprep.subr.bf16.mxu0 %v1271
    %1721 = vmatpush1.bf16.msra.mxu0 %v1270
    %1722 = vmatprep.subr.bf16.mxu0 %v1275
    %1723 = vmatpush1.bf16.msra.mxu0 %v1274
    %1724 = vmatprep.subr.bf16.mxu0 %v1279
    %1725 = vmatpush1.bf16.msra.mxu0 %v1278
    %1726 = vmatprep.subr.bf16.mxu0 %v1283
    %1727 = vmatpush1.bf16.msra.mxu0 %v1282
    %1728 = vmatprep.subr.bf16.mxu0 %v1287
    %1729 = vmatpush1.bf16.msra.mxu0 %v1286
    %1730 = vmatprep.subr.bf16.mxu0 %v1291
    %1731 = vmatpush1.bf16.msra.mxu0 %v1290
    %1732 = vmatprep.subr.bf16.mxu0 %v1295
    %1733 = vmatpush1.bf16.msra.mxu0 %v1294
    %1734 = vmatprep.subr.bf16.mxu0 %v1299
    %1735 = vmatpush1.bf16.msra.mxu0 %v1298
    %1736 = vmatprep.mubr.bf16.mxu0 %v61
    %1737 = vmatmul.mubr.bf16.gmra.mrb[0].mxu0 %v60
    %v1738 = vpop.f32.mrb[0].mxu0
    %v1739 = vadd.f32 %v1698, %v1738
    %v1740 = vpop.f32.mrb[0].mxu0
    %v1741 = vadd.f32 %v1700, %v1740
    %v1742 = vpop.f32.mrb[0].mxu0
    %v1743 = vpop.f32.mrb[0].mxu0
    %1744 = vdwg.mxu0
    %1745 = vmatprep.subr.bf16.mxu0 %v1303
    %1746 = vmatpush1.bf16.msra.mxu0 %v1302
    %1747 = vmatprep.subr.bf16.mxu0 %v1307
    %1748 = vmatpush1.bf16.msra.mxu0 %v1306
    %1749 = vmatprep.subr.bf16.mxu0 %v1311
    %1750 = vmatpush1.bf16.msra.mxu0 %v1310
    %1751 = vmatprep.subr.bf16.mxu0 %v1315
    %1752 = vmatpush1.bf16.msra.mxu0 %v1314
    %1753 = vmatprep.subr.bf16.mxu0 %v1319
    %1754 = vmatpush1.bf16.msra.mxu0 %v1318
    %1755 = vmatprep.subr.bf16.mxu0 %v1323
    %1756 = vmatpush1.bf16.msra.mxu0 %v1322
    %1757 = vmatprep.subr.bf16.mxu0 %v1327
    %1758 = vmatpush1.bf16.msra.mxu0 %v1326
    %1759 = vmatprep.subr.bf16.mxu0 %v1331
    %1760 = vmatpush1.bf16.msra.mxu0 %v1330
    %1761 = vmatprep.subr.bf16.mxu0 %v1335
    %1762 = vmatpush1.bf16.msra.mxu0 %v1334
    %1763 = vmatprep.subr.bf16.mxu0 %v1339
    %1764 = vmatpush1.bf16.msra.mxu0 %v1338
    %1765 = vmatprep.subr.bf16.mxu0 %v1343
    %1766 = vmatpush1.bf16.msra.mxu0 %v1342
    %1767 = vmatprep.subr.bf16.mxu0 %v1347
    %1768 = vmatpush1.bf16.msra.mxu0 %v1346
    %1769 = vmatprep.subr.bf16.mxu0 %v1351
    %1770 = vmatpush1.bf16.msra.mxu0 %v1350
    %1771 = vmatprep.subr.bf16.mxu0 %v1355
    %1772 = vmatpush1.bf16.msra.mxu0 %v1354
    %1773 = vmatprep.subr.bf16.mxu0 %v1359
    %1774 = vmatpush1.bf16.msra.mxu0 %v1358
    %1775 = vmatprep.subr.bf16.mxu0 %v1363
    %1776 = vmatpush1.bf16.msra.mxu0 %v1362
    %1777 = vmatprep.mubr.bf16.mxu0 %v63
    %1778 = vmatmul.mubr.bf16.gmra.mrb[0].mxu0 %v62
    %v1779 = vpop.f32.mrb[0].mxu0
    %v1780 = vadd.f32 %v1739, %v1779
    %v1781 = vpop.f32.mrb[0].mxu0
    %v1782 = vadd.f32 %v1741, %v1781
    %v1783 = vpop.f32.mrb[0].mxu0
    %v1784 = vpop.f32.mrb[0].mxu0
    %1785 = vdwg.mxu0
    %1786 = vmatprep.subr.bf16.mxu0 %v1113
    %1787 = vmatpush1.bf16.msra.mxu0 %v1112
    %1788 = vmatprep.subr.bf16.mxu0 %v1117
    %1789 = vmatpush1.bf16.msra.mxu0 %v1116
    %1790 = vmatprep.subr.bf16.mxu0 %v1121
    %1791 = vmatpush1.bf16.msra.mxu0 %v1120
    %1792 = vmatprep.subr.bf16.mxu0 %v1125
    %1793 = vmatpush1.bf16.msra.mxu0 %v1124
    %1794 = vmatprep.subr.bf16.mxu0 %v1129
    %1795 = vmatpush1.bf16.msra.mxu0 %v1128
    %1796 = vmatprep.subr.bf16.mxu0 %v1133
    %1797 = vmatpush1.bf16.msra.mxu0 %v1132
    %1798 = vmatprep.subr.bf16.mxu0 %v1137
    %1799 = vmatpush1.bf16.msra.mxu0 %v1136
    %1800 = vmatprep.subr.bf16.mxu0 %v1141
    %1801 = vmatpush1.bf16.msra.mxu0 %v1140
    %1802 = vmatprep.subr.bf16.mxu0 %v1145
    %1803 = vmatpush1.bf16.msra.mxu0 %v1144
    %1804 = vmatprep.subr.bf16.mxu0 %v1149
    %1805 = vmatpush1.bf16.msra.mxu0 %v1148
    %1806 = vmatprep.subr.bf16.mxu0 %v1153
    %1807 = vmatpush1.bf16.msra.mxu0 %v1152
    %1808 = vmatprep.subr.bf16.mxu0 %v1157
    %1809 = vmatpush1.bf16.msra.mxu0 %v1156
    %1810 = vmatprep.subr.bf16.mxu0 %v1161
    %1811 = vmatpush1.bf16.msra.mxu0 %v1160
    %1812 = vmatprep.subr.bf16.mxu0 %v1165
    %1813 = vmatpush1.bf16.msra.mxu0 %v1164
    %1814 = vmatprep.subr.bf16.mxu0 %v1169
    %1815 = vmatpush1.bf16.msra.mxu0 %v1168
    %1816 = vmatprep.subr.bf16.mxu0 %v1173
    %1817 = vmatpush1.bf16.msra.mxu0 %v1172
    %1818 = vmatprep.mubr.bf16.mxu0 %v57
    %1819 = vmatmul.mubr.bf16.gmra.mrb[0].mxu0 %v56
    %v1820 = vpop.f32.mrb[0].mxu0
    %v1821 = vadd.f32 %v333, %v1820
    %v1822 = vpop.f32.mrb[0].mxu0
    %v1823 = vadd.f32 %v337, %v1822
    %v1824 = vpop.f32.mrb[0].mxu0
    %v1825 = vpop.f32.mrb[0].mxu0
    %1826 = vdwg.mxu0
    %1827 = vmatprep.subr.bf16.mxu0 %v1177
    %1828 = vmatpush1.bf16.msra.mxu0 %v1176
    %1829 = vmatprep.subr.bf16.mxu0 %v1181
    %1830 = vmatpush1.bf16.msra.mxu0 %v1180
    %1831 = vmatprep.subr.bf16.mxu0 %v1185
    %1832 = vmatpush1.bf16.msra.mxu0 %v1184
    %1833 = vmatprep.subr.bf16.mxu0 %v1189
    %1834 = vmatpush1.bf16.msra.mxu0 %v1188
    %1835 = vmatprep.subr.bf16.mxu0 %v1193
    %1836 = vmatpush1.bf16.msra.mxu0 %v1192
    %1837 = vmatprep.subr.bf16.mxu0 %v1197
    %1838 = vmatpush1.bf16.msra.mxu0 %v1196
    %1839 = vmatprep.subr.bf16.mxu0 %v1201
    %1840 = vmatpush1.bf16.msra.mxu0 %v1200
    %1841 = vmatprep.subr.bf16.mxu0 %v1205
    %1842 = vmatpush1.bf16.msra.mxu0 %v1204
    %1843 = vmatprep.subr.bf16.mxu0 %v1209
    %1844 = vmatpush1.bf16.msra.mxu0 %v1208
    %1845 = vmatprep.subr.bf16.mxu0 %v1213
    %1846 = vmatpush1.bf16.msra.mxu0 %v1212
    %1847 = vmatprep.subr.bf16.mxu0 %v1217
    %1848 = vmatpush1.bf16.msra.mxu0 %v1216
    %1849 = vmatprep.subr.bf16.mxu0 %v1221
    %1850 = vmatpush1.bf16.msra.mxu0 %v1220
    %1851 = vmatprep.subr.bf16.mxu0 %v1225
    %1852 = vmatpush1.bf16.msra.mxu0 %v1224
    %1853 = vmatprep.subr.bf16.mxu0 %v1229
    %1854 = vmatpush1.bf16.msra.mxu0 %v1228
    %1855 = vmatprep.subr.bf16.mxu0 %v1233
    %1856 = vmatpush1.bf16.msra.mxu0 %v1232
    %1857 = vmatprep.subr.bf16.mxu0 %v1237
    %1858 = vmatpush1.bf16.msra.mxu0 %v1236
    %1859 = vmatprep.mubr.bf16.mxu0 %v59
    %1860 = vmatmul.mubr.bf16.gmra.mrb[0].mxu0 %v58
    %v1861 = vpop.f32.mrb[0].mxu0
    %v1862 = vadd.f32 %v1821, %v1861
    %v1863 = vpop.f32.mrb[0].mxu0
    %v1864 = vadd.f32 %v1823, %v1863
    %v1865 = vpop.f32.mrb[0].mxu0
    %v1866 = vpop.f32.mrb[0].mxu0
    %1867 = vdwg.mxu0
    %1868 = vmatprep.subr.bf16.mxu0 %v1241
    %1869 = vmatpush1.bf16.msra.mxu0 %v1240
    %1870 = vmatprep.subr.bf16.mxu0 %v1245
    %1871 = vmatpush1.bf16.msra.mxu0 %v1244
    %1872 = vmatprep.subr.bf16.mxu0 %v1249
    %1873 = vmatpush1.bf16.msra.mxu0 %v1248
    %1874 = vmatprep.subr.bf16.mxu0 %v1253
    %1875 = vmatpush1.bf16.msra.mxu0 %v1252
    %1876 = vmatprep.subr.bf16.mxu0 %v1257
    %1877 = vmatpush1.bf16.msra.mxu0 %v1256
    %1878 = vmatprep.subr.bf16.mxu0 %v1261
    %1879 = vmatpush1.bf16.msra.mxu0 %v1260
    %1880 = vmatprep.subr.bf16.mxu0 %v1265
    %1881 = vmatpush1.bf16.msra.mxu0 %v1264
    %1882 = vmatprep.subr.bf16.mxu0 %v1269
    %1883 = vmatpush1.bf16.msra.mxu0 %v1268
    %1884 = vmatprep.subr.bf16.mxu0 %v1273
    %1885 = vmatpush1.bf16.msra.mxu0 %v1272
    %1886 = vmatprep.subr.bf16.mxu0 %v1277
    %1887 = vmatpush1.bf16.msra.mxu0 %v1276
    %1888 = vmatprep.subr.bf16.mxu0 %v1281
    %1889 = vmatpush1.bf16.msra.mxu0 %v1280
    %1890 = vmatprep.subr.bf16.mxu0 %v1285
    %1891 = vmatpush1.bf16.msra.mxu0 %v1284
    %1892 = vmatprep.subr.bf16.mxu0 %v1289
    %1893 = vmatpush1.bf16.msra.mxu0 %v1288
    %1894 = vmatprep.subr.bf16.mxu0 %v1293
    %1895 = vmatpush1.bf16.msra.mxu0 %v1292
    %1896 = vmatprep.subr.bf16.mxu0 %v1297
    %1897 = vmatpush1.bf16.msra.mxu0 %v1296
    %1898 = vmatprep.subr.bf16.mxu0 %v1301
    %1899 = vmatpush1.bf16.msra.mxu0 %v1300
    %1900 = vmatprep.mubr.bf16.mxu0 %v61
    %1901 = vmatmul.mubr.bf16.gmra.mrb[0].mxu0 %v60
    %v1902 = vpop.f32.mrb[0].mxu0
    %v1903 = vadd.f32 %v1862, %v1902
    %v1904 = vpop.f32.mrb[0].mxu0
    %v1905 = vadd.f32 %v1864, %v1904
    %v1906 = vpop.f32.mrb[0].mxu0
    %v1907 = vpop.f32.mrb[0].mxu0
    %1908 = vdwg.mxu0
    %1909 = vmatprep.subr.bf16.mxu0 %v1305
    %1910 = vmatpush1.bf16.msra.mxu0 %v1304
    %1911 = vmatprep.subr.bf16.mxu0 %v1309
    %1912 = vmatpush1.bf16.msra.mxu0 %v1308
    %1913 = vmatprep.subr.bf16.mxu0 %v1313
    %1914 = vmatpush1.bf16.msra.mxu0 %v1312
    %1915 = vmatprep.subr.bf16.mxu0 %v1317
    %1916 = vmatpush1.bf16.msra.mxu0 %v1316
    %1917 = vmatprep.subr.bf16.mxu0 %v1321
    %1918 = vmatpush1.bf16.msra.mxu0 %v1320
    %1919 = vmatprep.subr.bf16.mxu0 %v1325
    %1920 = vmatpush1.bf16.msra.mxu0 %v1324
    %1921 = vmatprep.subr.bf16.mxu0 %v1329
    %1922 = vmatpush1.bf16.msra.mxu0 %v1328
    %1923 = vmatprep.subr.bf16.mxu0 %v1333
    %1924 = vmatpush1.bf16.msra.mxu0 %v1332
    %1925 = vmatprep.subr.bf16.mxu0 %v1337
    %1926 = vmatpush1.bf16.msra.mxu0 %v1336
    %1927 = vmatprep.subr.bf16.mxu0 %v1341
    %1928 = vmatpush1.bf16.msra.mxu0 %v1340
    %1929 = vmatprep.subr.bf16.mxu0 %v1345
    %1930 = vmatpush1.bf16.msra.mxu0 %v1344
    %1931 = vmatprep.subr.bf16.mxu0 %v1349
    %1932 = vmatpush1.bf16.msra.mxu0 %v1348
    %1933 = vmatprep.subr.bf16.mxu0 %v1353
    %1934 = vmatpush1.bf16.msra.mxu0 %v1352
    %1935 = vmatprep.subr.bf16.mxu0 %v1357
    %1936 = vmatpush1.bf16.msra.mxu0 %v1356
    %1937 = vmatprep.subr.bf16.mxu0 %v1361
    %1938 = vmatpush1.bf16.msra.mxu0 %v1360
    %1939 = vmatprep.subr.bf16.mxu0 %v1365
    %1940 = vmatpush1.bf16.msra.mxu0 %v1364
    %1941 = vmatprep.mubr.bf16.mxu0 %v63
    %1942 = vmatmul.mubr.bf16.gmra.mrb[0].mxu0 %v62
    %v1943 = vpop.f32.mrb[0].mxu0
    %v1944 = vadd.f32 %v1903, %v1943
    %v1945 = vpop.f32.mrb[0].mxu0
    %v1946 = vadd.f32 %v1905, %v1945
    %v1947 = vpop.f32.mrb[0].mxu0
    %v1948 = vpop.f32.mrb[0].mxu0
    %1949 = vdwg.mxu0
    %v1950 = vmax.f32 %v1780, 0.0
    %v1951 = vmax.f32 %v1782, 0.0
    %v1952 = vmax.f32 %v1944, 0.0
    %v1953 = vmax.f32 %v1946, 0.0
    %v1954 = vpack.c.bf16 %v1950, %v1950
    %v1955 = vpack.c.bf16 %v1951, %v1951
    %v1956 = vpack.c.bf16 %v1952, %v1952
    %v1957 = vpack.c.bf16 %v1953, %v1953
    %v1958 = vld [vmem:[%s3] sm:$0xff]
    %v1959 = vld [vmem:[%s3 + $0x8] sm:$0xff]
    %v1960 = vld [vmem:[%s3 + $0x10] sm:$0xff]
    %v1961 = vld [vmem:[%s3 + $0x18] sm:$0xff]
    %v1962 = vld [vmem:[%s3 + $0x20] sm:$0xff]
    %v1963 = vld [vmem:[%s3 + $0x28] sm:$0xff]
    %v1964 = vld [vmem:[%s3 + $0x30] sm:$0xff]
    %v1965 = vld [vmem:[%s3 + $0x38] sm:$0xff]
    %v1966 = vld [vmem:[%s3 + $0x40] sm:$0xff]
    %v1967 = vld [vmem:[%s3 + $0x48] sm:$0xff]
    %v1968 = vld [vmem:[%s3 + $0x50] sm:$0xff]
    %v1969 = vld [vmem:[%s3 + $0x58] sm:$0xff]
    %v1970 = vld [vmem:[%s3 + $0x60] sm:$0xff]
    %v1971 = vld [vmem:[%s3 + $0x68] sm:$0xff]
    %v1972 = vld [vmem:[%s3 + $0x70] sm:$0xff]
    %v1973 = vld [vmem:[%s3 + $0x78] sm:$0xff]
    %v1974 = vld [vmem:[%s3 + $0x80] sm:$0xff]
    %v1975 = vld [vmem:[%s3 + $0x88] sm:$0xff]
    %v1976 = vld [vmem:[%s3 + $0x90] sm:$0xff]
    %v1977 = vld [vmem:[%s3 + $0x98] sm:$0xff]
    %v1978 = vld [vmem:[%s3 + $0xa0] sm:$0xff]
    %v1979 = vld [vmem:[%s3 + $0xa8] sm:$0xff]
    %v1980 = vld [vmem:[%s3 + $0xb0] sm:$0xff]
    %v1981 = vld [vmem:[%s3 + $0xb8] sm:$0xff]
    %v1982 = vld [vmem:[%s3 + $0xc0] sm:$0xff]
    %v1983 = vld [vmem:[%s3 + $0xc8] sm:$0xff]
    %v1984 = vld [vmem:[%s3 + $0xd0] sm:$0xff]
    %v1985 = vld [vmem:[%s3 + $0xd8] sm:$0xff]
    %v1986 = vld [vmem:[%s3 + $0xe0] sm:$0xff]
    %v1987 = vld [vmem:[%s3 + $0xe8] sm:$0xff]
    %v1988 = vld [vmem:[%s3 + $0xf0] sm:$0xff]
    %v1989 = vld [vmem:[%s3 + $0xf8] sm:$0xff]
    %v1990 = vld [vmem:[%s3 + $0x100] sm:$0xff]
    %v1991 = vld [vmem:[%s3 + $0x108] sm:$0xff]
    %v1992 = vld [vmem:[%s3 + $0x110] sm:$0xff]
    %v1993 = vld [vmem:[%s3 + $0x118] sm:$0xff]
    %v1994 = vld [vmem:[%s3 + $0x120] sm:$0xff]
    %v1995 = vld [vmem:[%s3 + $0x128] sm:$0xff]
    %v1996 = vld [vmem:[%s3 + $0x130] sm:$0xff]
    %v1997 = vld [vmem:[%s3 + $0x138] sm:$0xff]
    %v1998 = vld [vmem:[%s3 + $0x140] sm:$0xff]
    %v1999 = vld [vmem:[%s3 + $0x148] sm:$0xff]
    %v2000 = vld [vmem:[%s3 + $0x150] sm:$0xff]
    %v2001 = vld [vmem:[%s3 + $0x158] sm:$0xff]
    %v2002 = vld [vmem:[%s3 + $0x160] sm:$0xff]
    %v2003 = vld [vmem:[%s3 + $0x168] sm:$0xff]
    %v2004 = vld [vmem:[%s3 + $0x170] sm:$0xff]
    %v2005 = vld [vmem:[%s3 + $0x178] sm:$0xff]
    %v2006 = vld [vmem:[%s3 + $0x180] sm:$0xff]
    %v2007 = vld [vmem:[%s3 + $0x188] sm:$0xff]
    %v2008 = vld [vmem:[%s3 + $0x190] sm:$0xff]
    %v2009 = vld [vmem:[%s3 + $0x198] sm:$0xff]
    %v2010 = vld [vmem:[%s3 + $0x1a0] sm:$0xff]
    %v2011 = vld [vmem:[%s3 + $0x1a8] sm:$0xff]
    %v2012 = vld [vmem:[%s3 + $0x1b0] sm:$0xff]
    %v2013 = vld [vmem:[%s3 + $0x1b8] sm:$0xff]
    %v2014 = vld [vmem:[%s3 + $0x1c0] sm:$0xff]
    %v2015 = vld [vmem:[%s3 + $0x1c8] sm:$0xff]
    %v2016 = vld [vmem:[%s3 + $0x1d0] sm:$0xff]
    %v2017 = vld [vmem:[%s3 + $0x1d8] sm:$0xff]
    %v2018 = vld [vmem:[%s3 + $0x1e0] sm:$0xff]
    %v2019 = vld [vmem:[%s3 + $0x1e8] sm:$0xff]
    %v2020 = vld [vmem:[%s3 + $0x1f0] sm:$0xff]
    %v2021 = vld [vmem:[%s3 + $0x1f8] sm:$0xff]
    %v2022 = vld [vmem:[%s4] sm:$0x3]
    %v2024 = vlaneseq
    %v2025 = vshrl.u32 %v2024, 7
    %v2026 = vsub.s32 0, %v2025
    %v2027 = vrot.slane %v2022, %v2026
    %v2028 = vlaneseq
    %v2029 = vshrl.u32 %v2028, 7
    %v2030 = vsub.s32 1, %v2029
    %v2031 = vrot.slane %v2022, %v2030
    %v2098 = vunpack.c.l.b16 %v1958
    %v2099 = vunpack.c.h.b16 %v1958
    %v2100 = vunpack.c.l.b16 %v1959
    %v2101 = vunpack.c.h.b16 %v1959
    %v2102 = vunpack.c.l.b16 %v1960
    %v2103 = vunpack.c.h.b16 %v1960
    %v2104 = vunpack.c.l.b16 %v1961
    %v2105 = vunpack.c.h.b16 %v1961
    %v2106 = vunpack.c.l.b16 %v1962
    %v2107 = vunpack.c.h.b16 %v1962
    %v2108 = vunpack.c.l.b16 %v1963
    %v2109 = vunpack.c.h.b16 %v1963
    %v2110 = vunpack.c.l.b16 %v1964
    %v2111 = vunpack.c.h.b16 %v1964
    %v2112 = vunpack.c.l.b16 %v1965
    %v2113 = vunpack.c.h.b16 %v1965
    %v2114 = vunpack.c.l.b16 %v1966
    %v2115 = vunpack.c.h.b16 %v1966
    %v2116 = vunpack.c.l.b16 %v1967
    %v2117 = vunpack.c.h.b16 %v1967
    %v2118 = vunpack.c.l.b16 %v1968
    %v2119 = vunpack.c.h.b16 %v1968
    %v2120 = vunpack.c.l.b16 %v1969
    %v2121 = vunpack.c.h.b16 %v1969
    %v2122 = vunpack.c.l.b16 %v1970
    %v2123 = vunpack.c.h.b16 %v1970
    %v2124 = vunpack.c.l.b16 %v1971
    %v2125 = vunpack.c.h.b16 %v1971
    %v2126 = vunpack.c.l.b16 %v1972
    %v2127 = vunpack.c.h.b16 %v1972
    %v2128 = vunpack.c.l.b16 %v1973
    %v2129 = vunpack.c.h.b16 %v1973
    %v2130 = vunpack.c.l.b16 %v1974
    %v2131 = vunpack.c.h.b16 %v1974
    %v2132 = vunpack.c.l.b16 %v1975
    %v2133 = vunpack.c.h.b16 %v1975
    %v2134 = vunpack.c.l.b16 %v1976
    %v2135 = vunpack.c.h.b16 %v1976
    %v2136 = vunpack.c.l.b16 %v1977
    %v2137 = vunpack.c.h.b16 %v1977
    %v2138 = vunpack.c.l.b16 %v1978
    %v2139 = vunpack.c.h.b16 %v1978
    %v2140 = vunpack.c.l.b16 %v1979
    %v2141 = vunpack.c.h.b16 %v1979
    %v2142 = vunpack.c.l.b16 %v1980
    %v2143 = vunpack.c.h.b16 %v1980
    %v2144 = vunpack.c.l.b16 %v1981
    %v2145 = vunpack.c.h.b16 %v1981
    %v2146 = vunpack.c.l.b16 %v1982
    %v2147 = vunpack.c.h.b16 %v1982
    %v2148 = vunpack.c.l.b16 %v1983
    %v2149 = vunpack.c.h.b16 %v1983
    %v2150 = vunpack.c.l.b16 %v1984
    %v2151 = vunpack.c.h.b16 %v1984
    %v2152 = vunpack.c.l.b16 %v1985
    %v2153 = vunpack.c.h.b16 %v1985
    %v2154 = vunpack.c.l.b16 %v1986
    %v2155 = vunpack.c.h.b16 %v1986
    %v2156 = vunpack.c.l.b16 %v1987
    %v2157 = vunpack.c.h.b16 %v1987
    %v2158 = vunpack.c.l.b16 %v1988
    %v2159 = vunpack.c.h.b16 %v1988
    %v2160 = vunpack.c.l.b16 %v1989
    %v2161 = vunpack.c.h.b16 %v1989
    %v2162 = vunpack.c.l.b16 %v1990
    %v2163 = vunpack.c.h.b16 %v1990
    %v2164 = vunpack.c.l.b16 %v1991
    %v2165 = vunpack.c.h.b16 %v1991
    %v2166 = vunpack.c.l.b16 %v1992
    %v2167 = vunpack.c.h.b16 %v1992
    %v2168 = vunpack.c.l.b16 %v1993
    %v2169 = vunpack.c.h.b16 %v1993
    %v2170 = vunpack.c.l.b16 %v1994
    %v2171 = vunpack.c.h.b16 %v1994
    %v2172 = vunpack.c.l.b16 %v1995
    %v2173 = vunpack.c.h.b16 %v1995
    %v2174 = vunpack.c.l.b16 %v1996
    %v2175 = vunpack.c.h.b16 %v1996
    %v2176 = vunpack.c.l.b16 %v1997
    %v2177 = vunpack.c.h.b16 %v1997
    %v2178 = vunpack.c.l.b16 %v1998
    %v2179 = vunpack.c.h.b16 %v1998
    %v2180 = vunpack.c.l.b16 %v1999
    %v2181 = vunpack.c.h.b16 %v1999
    %v2182 = vunpack.c.l.b16 %v2000
    %v2183 = vunpack.c.h.b16 %v2000
    %v2184 = vunpack.c.l.b16 %v2001
    %v2185 = vunpack.c.h.b16 %v2001
    %v2186 = vunpack.c.l.b16 %v2002
    %v2187 = vunpack.c.h.b16 %v2002
    %v2188 = vunpack.c.l.b16 %v2003
    %v2189 = vunpack.c.h.b16 %v2003
    %v2190 = vunpack.c.l.b16 %v2004
    %v2191 = vunpack.c.h.b16 %v2004
    %v2192 = vunpack.c.l.b16 %v2005
    %v2193 = vunpack.c.h.b16 %v2005
    %v2194 = vunpack.c.l.b16 %v2006
    %v2195 = vunpack.c.h.b16 %v2006
    %v2196 = vunpack.c.l.b16 %v2007
    %v2197 = vunpack.c.h.b16 %v2007
    %v2198 = vunpack.c.l.b16 %v2008
    %v2199 = vunpack.c.h.b16 %v2008
    %v2200 = vunpack.c.l.b16 %v2009
    %v2201 = vunpack.c.h.b16 %v2009
    %v2202 = vunpack.c.l.b16 %v2010
    %v2203 = vunpack.c.h.b16 %v2010
    %v2204 = vunpack.c.l.b16 %v2011
    %v2205 = vunpack.c.h.b16 %v2011
    %v2206 = vunpack.c.l.b16 %v2012
    %v2207 = vunpack.c.h.b16 %v2012
    %v2208 = vunpack.c.l.b16 %v2013
    %v2209 = vunpack.c.h.b16 %v2013
    %v2210 = vunpack.c.l.b16 %v2014
    %v2211 = vunpack.c.h.b16 %v2014
    %v2212 = vunpack.c.l.b16 %v2015
    %v2213 = vunpack.c.h.b16 %v2015
    %v2214 = vunpack.c.l.b16 %v2016
    %v2215 = vunpack.c.h.b16 %v2016
    %v2216 = vunpack.c.l.b16 %v2017
    %v2217 = vunpack.c.h.b16 %v2017
    %v2218 = vunpack.c.l.b16 %v2018
    %v2219 = vunpack.c.h.b16 %v2018
    %v2220 = vunpack.c.l.b16 %v2019
    %v2221 = vunpack.c.h.b16 %v2019
    %v2222 = vunpack.c.l.b16 %v2020
    %v2223 = vunpack.c.h.b16 %v2020
    %v2224 = vunpack.c.l.b16 %v2021
    %v2225 = vunpack.c.h.b16 %v2021
    %v2226 = vpack.c.b16 %v2100, %v2098
    %v2227 = vpack.c.b16 %v2101, %v2099
    %v2228 = vpack.c.b16 %v2104, %v2102
    %v2229 = vpack.c.b16 %v2105, %v2103
    %v2230 = vpack.c.b16 %v2108, %v2106
    %v2231 = vpack.c.b16 %v2109, %v2107
    %v2232 = vpack.c.b16 %v2112, %v2110
    %v2233 = vpack.c.b16 %v2113, %v2111
    %v2234 = vpack.c.b16 %v2116, %v2114
    %v2235 = vpack.c.b16 %v2117, %v2115
    %v2236 = vpack.c.b16 %v2120, %v2118
    %v2237 = vpack.c.b16 %v2121, %v2119
    %v2238 = vpack.c.b16 %v2124, %v2122
    %v2239 = vpack.c.b16 %v2125, %v2123
    %v2240 = vpack.c.b16 %v2128, %v2126
    %v2241 = vpack.c.b16 %v2129, %v2127
    %v2242 = vpack.c.b16 %v2132, %v2130
    %v2243 = vpack.c.b16 %v2133, %v2131
    %v2244 = vpack.c.b16 %v2136, %v2134
    %v2245 = vpack.c.b16 %v2137, %v2135
    %v2246 = vpack.c.b16 %v2140, %v2138
    %v2247 = vpack.c.b16 %v2141, %v2139
    %v2248 = vpack.c.b16 %v2144, %v2142
    %v2249 = vpack.c.b16 %v2145, %v2143
    %v2250 = vpack.c.b16 %v2148, %v2146
    %v2251 = vpack.c.b16 %v2149, %v2147
    %v2252 = vpack.c.b16 %v2152, %v2150
    %v2253 = vpack.c.b16 %v2153, %v2151
    %v2254 = vpack.c.b16 %v2156, %v2154
    %v2255 = vpack.c.b16 %v2157, %v2155
    %v2256 = vpack.c.b16 %v2160, %v2158
    %v2257 = vpack.c.b16 %v2161, %v2159
    %v2258 = vpack.c.b16 %v2164, %v2162
    %v2259 = vpack.c.b16 %v2165, %v2163
    %v2260 = vpack.c.b16 %v2168, %v2166
    %v2261 = vpack.c.b16 %v2169, %v2167
    %v2262 = vpack.c.b16 %v2172, %v2170
    %v2263 = vpack.c.b16 %v2173, %v2171
    %v2264 = vpack.c.b16 %v2176, %v2174
    %v2265 = vpack.c.b16 %v2177, %v2175
    %v2266 = vpack.c.b16 %v2180, %v2178
    %v2267 = vpack.c.b16 %v2181, %v2179
    %v2268 = vpack.c.b16 %v2184, %v2182
    %v2269 = vpack.c.b16 %v2185, %v2183
    %v2270 = vpack.c.b16 %v2188, %v2186
    %v2271 = vpack.c.b16 %v2189, %v2187
    %v2272 = vpack.c.b16 %v2192, %v2190
    %v2273 = vpack.c.b16 %v2193, %v2191
    %v2274 = vpack.c.b16 %v2196, %v2194
    %v2275 = vpack.c.b16 %v2197, %v2195
    %v2276 = vpack.c.b16 %v2200, %v2198
    %v2277 = vpack.c.b16 %v2201, %v2199
    %v2278 = vpack.c.b16 %v2204, %v2202
    %v2279 = vpack.c.b16 %v2205, %v2203
    %v2280 = vpack.c.b16 %v2208, %v2206
    %v2281 = vpack.c.b16 %v2209, %v2207
    %v2282 = vpack.c.b16 %v2212, %v2210
    %v2283 = vpack.c.b16 %v2213, %v2211
    %v2284 = vpack.c.b16 %v2216, %v2214
    %v2285 = vpack.c.b16 %v2217, %v2215
    %v2286 = vpack.c.b16 %v2220, %v2218
    %v2287 = vpack.c.b16 %v2221, %v2219
    %v2288 = vpack.c.b16 %v2224, %v2222
    %v2289 = vpack.c.b16 %v2225, %v2223
    %2354 = vmatprep.subr.bf16.mxu0 %v2227
    %2355 = vmatpush1.bf16.msra.mxu0 %v2226
    %2356 = vmatprep.subr.bf16.mxu0 %v2229
    %2357 = vmatpush1.bf16.msra.mxu0 %v2228
    %2358 = vmatprep.subr.bf16.mxu0 %v2231
    %2359 = vmatpush1.bf16.msra.mxu0 %v2230
    %2360 = vmatprep.subr.bf16.mxu0 %v2233
    %2361 = vmatpush1.bf16.msra.mxu0 %v2232
    %2362 = vmatprep.subr.bf16.mxu0 %v2235
    %2363 = vmatpush1.bf16.msra.mxu0 %v2234
    %2364 = vmatprep.subr.bf16.mxu0 %v2237
    %2365 = vmatpush1.bf16.msra.mxu0 %v2236
    %2366 = vmatprep.subr.bf16.mxu0 %v2239
    %2367 = vmatpush1.bf16.msra.mxu0 %v2238
    %2368 = vmatprep.subr.bf16.mxu0 %v2241
    %2369 = vmatpush1.bf16.msra.mxu0 %v2240
    %2370 = vmatprep.subr.bf16.mxu0 %v2243
    %2371 = vmatpush1.bf16.msra.mxu0 %v2242
    %2372 = vmatprep.subr.bf16.mxu0 %v2245
    %2373 = vmatpush1.bf16.msra.mxu0 %v2244
    %2374 = vmatprep.subr.bf16.mxu0 %v2247
    %2375 = vmatpush1.bf16.msra.mxu0 %v2246
    %2376 = vmatprep.subr.bf16.mxu0 %v2249
    %2377 = vmatpush1.bf16.msra.mxu0 %v2248
    %2378 = vmatprep.subr.bf16.mxu0 %v2251
    %2379 = vmatpush1.bf16.msra.mxu0 %v2250
    %2380 = vmatprep.subr.bf16.mxu0 %v2253
    %2381 = vmatpush1.bf16.msra.mxu0 %v2252
    %2382 = vmatprep.subr.bf16.mxu0 %v2255
    %2383 = vmatpush1.bf16.msra.mxu0 %v2254
    %2384 = vmatprep.subr.bf16.mxu0 %v2257
    %2385 = vmatpush1.bf16.msra.mxu0 %v2256
    %2386 = vmatprep.mubr.bf16.mxu0 %v1955
    %2387 = vmatmul.mubr.bf16.gmra.mrb[0].mxu0 %v1954
    %v2388 = vpop.f32.mrb[0].mxu0
    %v2389 = vadd.f32 %v2027, %v2388
    %v2390 = vpop.f32.mrb[0].mxu0
    %v2391 = vadd.f32 %v2031, %v2390
    %v2392 = vpop.f32.mrb[0].mxu0
    %v2393 = vpop.f32.mrb[0].mxu0
    %2394 = vdwg.mxu0
    %2395 = vmatprep.subr.bf16.mxu0 %v2259
    %2396 = vmatpush1.bf16.msra.mxu0 %v2258
    %2397 = vmatprep.subr.bf16.mxu0 %v2261
    %2398 = vmatpush1.bf16.msra.mxu0 %v2260
    %2399 = vmatprep.subr.bf16.mxu0 %v2263
    %2400 = vmatpush1.bf16.msra.mxu0 %v2262
    %2401 = vmatprep.subr.bf16.mxu0 %v2265
    %2402 = vmatpush1.bf16.msra.mxu0 %v2264
    %2403 = vmatprep.subr.bf16.mxu0 %v2267
    %2404 = vmatpush1.bf16.msra.mxu0 %v2266
    %2405 = vmatprep.subr.bf16.mxu0 %v2269
    %2406 = vmatpush1.bf16.msra.mxu0 %v2268
    %2407 = vmatprep.subr.bf16.mxu0 %v2271
    %2408 = vmatpush1.bf16.msra.mxu0 %v2270
    %2409 = vmatprep.subr.bf16.mxu0 %v2273
    %2410 = vmatpush1.bf16.msra.mxu0 %v2272
    %2411 = vmatprep.subr.bf16.mxu0 %v2275
    %2412 = vmatpush1.bf16.msra.mxu0 %v2274
    %2413 = vmatprep.subr.bf16.mxu0 %v2277
    %2414 = vmatpush1.bf16.msra.mxu0 %v2276
    %2415 = vmatprep.subr.bf16.mxu0 %v2279
    %2416 = vmatpush1.bf16.msra.mxu0 %v2278
    %2417 = vmatprep.subr.bf16.mxu0 %v2281
    %2418 = vmatpush1.bf16.msra.mxu0 %v2280
    %2419 = vmatprep.subr.bf16.mxu0 %v2283
    %2420 = vmatpush1.bf16.msra.mxu0 %v2282
    %2421 = vmatprep.subr.bf16.mxu0 %v2285
    %2422 = vmatpush1.bf16.msra.mxu0 %v2284
    %2423 = vmatprep.subr.bf16.mxu0 %v2287
    %2424 = vmatpush1.bf16.msra.mxu0 %v2286
    %2425 = vmatprep.subr.bf16.mxu0 %v2289
    %2426 = vmatpush1.bf16.msra.mxu0 %v2288
    %2427 = vmatprep.mubr.bf16.mxu0 %v1957
    %2428 = vmatmul.mubr.bf16.gmra.mrb[0].mxu0 %v1956
    %v2429 = vpop.f32.mrb[0].mxu0
    %v2430 = vadd.f32 %v2389, %v2429
    %v2431 = vpop.f32.mrb[0].mxu0
    %v2432 = vadd.f32 %v2391, %v2431
    %v2433 = vpop.f32.mrb[0].mxu0
    %v2434 = vpop.f32.mrb[0].mxu0
    %2435 = vdwg.mxu0
    %v2436 = vmax.f32 %v2430, 0.0
    %v2437 = vmax.f32 %v2432, 0.0
    %v2438 = vld [vmem:[%s5] sm:$0xff]
    %v2439 = vld [vmem:[%s5 + $0x8] sm:$0xff]
    %v2440 = vld [vmem:[%s5 + $0x10] sm:$0xff]
    %v2441 = vld [vmem:[%s5 + $0x18] sm:$0xff]
    %v2442 = vld [vmem:[%s5 + $0x20] sm:$0xff]
    %v2443 = vld [vmem:[%s5 + $0x28] sm:$0xff]
    %v2444 = vld [vmem:[%s5 + $0x30] sm:$0xff]
    %v2445 = vld [vmem:[%s5 + $0x38] sm:$0xff]
    %v2446 = vld [vmem:[%s5 + $0x40] sm:$0xff]
    %v2447 = vld [vmem:[%s5 + $0x48] sm:$0xff]
    %v2448 = vld [vmem:[%s5 + $0x50] sm:$0xff]
    %v2449 = vld [vmem:[%s5 + $0x58] sm:$0xff]
    %v2450 = vld [vmem:[%s5 + $0x60] sm:$0xff]
    %v2451 = vld [vmem:[%s5 + $0x68] sm:$0xff]
    %v2452 = vld [vmem:[%s5 + $0x70] sm:$0xff]
    %v2453 = vld [vmem:[%s5 + $0x78] sm:$0xff]
    %v2454 = vld [vmem:[%s5 + $0x80] sm:$0xff]
    %v2455 = vld [vmem:[%s5 + $0x88] sm:$0xff]
    %v2456 = vld [vmem:[%s5 + $0x90] sm:$0xff]
    %v2457 = vld [vmem:[%s5 + $0x98] sm:$0xff]
    %v2458 = vld [vmem:[%s5 + $0xa0] sm:$0xff]
    %v2459 = vld [vmem:[%s5 + $0xa8] sm:$0xff]
    %v2460 = vld [vmem:[%s5 + $0xb0] sm:$0xff]
    %v2461 = vld [vmem:[%s5 + $0xb8] sm:$0xff]
    %v2462 = vld [vmem:[%s5 + $0xc0] sm:$0xff]
    %v2463 = vld [vmem:[%s5 + $0xc8] sm:$0xff]
    %v2464 = vld [vmem:[%s5 + $0xd0] sm:$0xff]
    %v2465 = vld [vmem:[%s5 + $0xd8] sm:$0xff]
    %v2466 = vld [vmem:[%s5 + $0xe0] sm:$0xff]
    %v2467 = vld [vmem:[%s5 + $0xe8] sm:$0xff]
    %v2468 = vld [vmem:[%s5 + $0xf0] sm:$0xff]
    %v2469 = vld [vmem:[%s5 + $0xf8] sm:$0xff]
    %v2470 = vld [vmem:[%s6] sm:$0x1]
    %v2472 = vlaneseq
    %v2473 = vshrl.u32 %v2472, 7
    %v2474 = vsub.s32 0, %v2473
    %v2475 = vrot.slane %v2470, %v2474
    %2477 = vmatprep.subr.mxu0 0.0
    %2478 = vmatpush1.msra.mxu0 %v2438
    %2479 = vmatprep.subr.mxu0 0.0
    %2480 = vmatpush1.msra.mxu0 %v2439
    %2481 = vmatprep.subr.mxu0 0.0
    %2482 = vmatpush1.msra.mxu0 %v2440
    %2483 = vmatprep.subr.mxu0 0.0
    %2484 = vmatpush1.msra.mxu0 %v2441
    %2485 = vmatprep.subr.mxu0 0.0
    %2486 = vmatpush1.msra.mxu0 %v2442
    %2487 = vmatprep.subr.mxu0 0.0
    %2488 = vmatpush1.msra.mxu0 %v2443
    %2489 = vmatprep.subr.mxu0 0.0
    %2490 = vmatpush1.msra.mxu0 %v2444
    %2491 = vmatprep.subr.mxu0 0.0
    %2492 = vmatpush1.msra.mxu0 %v2445
    %2493 = vmatprep.subr.mxu0 0.0
    %2494 = vmatpush1.msra.mxu0 %v2446
    %2495 = vmatprep.subr.mxu0 0.0
    %2496 = vmatpush1.msra.mxu0 %v2447
    %2497 = vmatprep.subr.mxu0 0.0
    %2498 = vmatpush1.msra.mxu0 %v2448
    %2499 = vmatprep.subr.mxu0 0.0
    %2500 = vmatpush1.msra.mxu0 %v2449
    %2501 = vmatprep.subr.mxu0 0.0
    %2502 = vmatpush1.msra.mxu0 %v2450
    %2503 = vmatprep.subr.mxu0 0.0
    %2504 = vmatpush1.msra.mxu0 %v2451
    %2505 = vmatprep.subr.mxu0 0.0
    %2506 = vmatpush1.msra.mxu0 %v2452
    %2507 = vmatprep.subr.mxu0 0.0
    %2508 = vmatpush1.msra.mxu0 %v2453
    %2509 = vmatprep.subr.mxu0 0.0
    %2510 = vmatpush1.msra.mxu0 %v2454
    %2511 = vmatprep.subr.mxu0 0.0
    %2512 = vmatpush1.msra.mxu0 %v2455
    %2513 = vmatprep.subr.mxu0 0.0
    %2514 = vmatpush1.msra.mxu0 %v2456
    %2515 = vmatprep.subr.mxu0 0.0
    %2516 = vmatpush1.msra.mxu0 %v2457
    %2517 = vmatprep.subr.mxu0 0.0
    %2518 = vmatpush1.msra.mxu0 %v2458
    %2519 = vmatprep.subr.mxu0 0.0
    %2520 = vmatpush1.msra.mxu0 %v2459
    %2521 = vmatprep.subr.mxu0 0.0
    %2522 = vmatpush1.msra.mxu0 %v2460
    %2523 = vmatprep.subr.mxu0 0.0
    %2524 = vmatpush1.msra.mxu0 %v2461
    %2525 = vmatprep.subr.mxu0 0.0
    %2526 = vmatpush1.msra.mxu0 %v2462
    %2527 = vmatprep.subr.mxu0 0.0
    %2528 = vmatpush1.msra.mxu0 %v2463
    %2529 = vmatprep.subr.mxu0 0.0
    %2530 = vmatpush1.msra.mxu0 %v2464
    %2531 = vmatprep.subr.mxu0 0.0
    %2532 = vmatpush1.msra.mxu0 %v2465
    %2533 = vmatprep.subr.mxu0 0.0
    %2534 = vmatpush1.msra.mxu0 %v2466
    %2535 = vmatprep.subr.mxu0 0.0
    %2536 = vmatpush1.msra.mxu0 %v2467
    %2537 = vmatprep.subr.mxu0 0.0
    %2538 = vmatpush1.msra.mxu0 %v2468
    %2539 = vmatprep.subr.mxu0 0.0
    %2540 = vmatpush1.msra.mxu0 %v2469
    %2541 = vmatprep.mubr.f32.mxu0 %v2437
    %2542 = vmatmul.mubr.f32.gmra.mrb[0].mxu0 %v2436
    %v2543 = vpop.f32.mrb[0].mxu0
    %v2544 = vadd.f32 %v2475, %v2543
    %v2545 = vpop.f32.mrb[0].mxu0
    %2546 = vdwg.mxu0
    %vm2547 = vcmask 68608
    %2548 = vst.msk [vmem:[%s7] sm:$0xf] %vm2547, %v2544
    // Predicated region
    $region34: #{pointnet_siamese_forward.5} parent=1 // pred_check
      _
    $region35: #{pointnet_siamese_forward.5} parent=1 // pred_check_branch
      %2550 = sbr.rel (0) target = $region37
    $region36: #{pointnet_siamese_forward.5} parent=1 // pred_region
      _
    $region37: #{pointnet_siamese_forward.5} parent=1 // pred_fallthru
      _
    // Predicated region
    $region38: #{pointnet_siamese_forward.5} parent=1 // pred_check
      _
    $region39: #{pointnet_siamese_forward.5} parent=1 // pred_check_branch
      %2552 = sbr.rel (0) target = $region41
    $region40: #{pointnet_siamese_forward.5} parent=1 // pred_region
      _
    $region41: #{pointnet_siamese_forward.5} parent=1 // pred_fallthru
      _
    %2553 = vsyncpa [#allocation3], 1

// kernel: pointnet_siamese_forward.7
$region0: #{pointnet_siamese_forward.7}
  #allocation0 [shape = 'u32[]', space=smem, size = 0x4, offset = 0x4, fixed_abs, tag = 'smem constant byte address 0x4 - core index']
  #allocation1 [shape = 'u32[144,128]{1,0:T(1,128)}', space=vmem, size = 0x12000, scoped, tag = 'internal scratch']
  %s0 = inlined_call_operand.vmem [shape: f32[2,1024], index: 0, kind: input, shape index: {}]
  %s1 = inlined_call_operand.vmem [shape: f32[2,1024], index: 1, kind: input, shape index: {}]
  %s2 = inlined_call_operand.vmem [shape: bf16[1024,512], index: 2, kind: input, shape index: {}]
  %s3 = inlined_call_operand.vmem [shape: f32[1,512], index: 3, kind: input, shape index: {}]
  %s4 = inlined_call_operand.vmem [shape: bf16[512,256], index: 4, kind: input, shape index: {}]
  %s5 = inlined_call_operand.vmem [shape: f32[1,256], index: 5, kind: input, shape index: {}]
  %s6 = inlined_call_operand.vmem [shape: f32[256,2], index: 6, kind: input, shape index: {}]
  %s7 = inlined_call_operand.vmem [shape: f32[1,2], index: 7, kind: input, shape index: {}]
  %s8 = inlined_call_operand.hbm [shape: f32[2,2], index: 8, kind: output, shape index: {}]
  %s9 = sld [smem:[#allocation0]]
  $region42: #{pointnet_siamese_forward.7} parent=0
    _
  %s11 = ssub.s32 1, %s9
  %s12 = scalar_select 0, %s11, %s9
  $region1: #{pointnet_siamese_forward.7} parent=0
    #allocation2 [shape = 'u8[1024]{0}', space=vmem, size = 0x400, scoped, tag = 'output window, operand 0, single buffered']
    #allocation3 [shape = 's32[1]{0}', space=sflag, size = 0x4, scoped, tag = 'scoped memory for pointnet_siamese_forward.7']
    %13 = vsyncpa [#allocation3], 0
    // Predicated region
    $region2: #{pointnet_siamese_forward.7} parent=1 // pred_check
      _
    $region3: #{pointnet_siamese_forward.7} parent=1 // pred_check_branch
      %15 = sbr.rel (0) target = $region5
    $region4: #{pointnet_siamese_forward.7} parent=1 // pred_region
      _
    $region5: #{pointnet_siamese_forward.7} parent=1 // pred_fallthru
      _
    // Predicated region
    $region6: #{pointnet_siamese_forward.7} parent=1 // pred_check
      _
    $region7: #{pointnet_siamese_forward.7} parent=1 // pred_check_branch
      %17 = sbr.rel (0) target = $region9
    $region8: #{pointnet_siamese_forward.7} parent=1 // pred_region
      _
    $region9: #{pointnet_siamese_forward.7} parent=1 // pred_fallthru
      _
    // Predicated region
    $region10: #{pointnet_siamese_forward.7} parent=1 // pred_check
      _
    $region11: #{pointnet_siamese_forward.7} parent=1 // pred_check_branch
      %19 = sbr.rel (0) target = $region13
    $region12: #{pointnet_siamese_forward.7} parent=1 // pred_region
      _
    $region13: #{pointnet_siamese_forward.7} parent=1 // pred_fallthru
      _
    // Predicated region
    $region14: #{pointnet_siamese_forward.7} parent=1 // pred_check
      _
    $region15: #{pointnet_siamese_forward.7} parent=1 // pred_check_branch
      %21 = sbr.rel (0) target = $region17
    $region16: #{pointnet_siamese_forward.7} parent=1 // pred_region
      _
    $region17: #{pointnet_siamese_forward.7} parent=1 // pred_fallthru
      _
    // Predicated region
    $region18: #{pointnet_siamese_forward.7} parent=1 // pred_check
      _
    $region19: #{pointnet_siamese_forward.7} parent=1 // pred_check_branch
      %23 = sbr.rel (0) target = $region21
    $region20: #{pointnet_siamese_forward.7} parent=1 // pred_region
      _
    $region21: #{pointnet_siamese_forward.7} parent=1 // pred_fallthru
      _
    // Predicated region
    $region22: #{pointnet_siamese_forward.7} parent=1 // pred_check
      _
    $region23: #{pointnet_siamese_forward.7} parent=1 // pred_check_branch
      %25 = sbr.rel (0) target = $region25
    $region24: #{pointnet_siamese_forward.7} parent=1 // pred_region
      _
    $region25: #{pointnet_siamese_forward.7} parent=1 // pred_fallthru
      _
    // Predicated region
    $region26: #{pointnet_siamese_forward.7} parent=1 // pred_check
      _
    $region27: #{pointnet_siamese_forward.7} parent=1 // pred_check_branch
      %27 = sbr.rel (0) target = $region29
    $region28: #{pointnet_siamese_forward.7} parent=1 // pred_region
      _
    $region29: #{pointnet_siamese_forward.7} parent=1 // pred_fallthru
      _
    // Predicated region
    $region30: #{pointnet_siamese_forward.7} parent=1 // pred_check
      _
    $region31: #{pointnet_siamese_forward.7} parent=1 // pred_check_branch
      %29 = sbr.rel (0) target = $region33
    $region32: #{pointnet_siamese_forward.7} parent=1 // pred_region
      _
    $region33: #{pointnet_siamese_forward.7} parent=1 // pred_fallthru
      _
    %v30 = vld [vmem:[%s0] sm:$0xff]
    %v31 = vld [vmem:[%s0 + $0x8] sm:$0xff]
    %v34 = vcombine.high %v30, %v30
    %v36 = vunpack.c.l.s4 1983009808
    %v37 = vunpack.c.0.s8 %v36
    %v38 = vlaneseq
    %v39 = vshrl.u32 %v38, 7
    %v40 = vsub.s32 %v37, %v39
    %v41 = vrot.slane %v30, %v40
    %v43 = vunpack.c.l.s4 1983009808
    %v44 = vunpack.c.0.s8 %v43
    %v45 = vlaneseq
    %v46 = vshrl.u32 %v45, 7
    %v47 = vsub.s32 %v44, %v46
    %v48 = vrot.slane %v34, %v47
    %v49 = vcombine.high %v41, %v41
    %v50 = vcombine.high %v48, %v48
    %v51 = vcombine.high %v31, %v31
    %v53 = vunpack.c.l.s4 1983009808
    %v54 = vunpack.c.0.s8 %v53
    %v55 = vlaneseq
    %v56 = vshrl.u32 %v55, 7
    %v57 = vsub.s32 %v54, %v56
    %v58 = vrot.slane %v31, %v57
    %v60 = vunpack.c.l.s4 1983009808
    %v61 = vunpack.c.0.s8 %v60
    %v62 = vlaneseq
    %v63 = vshrl.u32 %v62, 7
    %v64 = vsub.s32 %v61, %v63
    %v65 = vrot.slane %v51, %v64
    %v66 = vcombine.high %v58, %v58
    %v67 = vcombine.high %v65, %v65
    %v76 = vpack.c.bf16 %v41, %v41
    %v77 = vpack.c.bf16 %v49, %v49
    %v78 = vpack.c.bf16 %v48, %v48
    %v79 = vpack.c.bf16 %v50, %v50
    %v80 = vpack.c.bf16 %v58, %v58
    %v81 = vpack.c.bf16 %v66, %v66
    %v82 = vpack.c.bf16 %v65, %v65
    %v83 = vpack.c.bf16 %v67, %v67
    %v84 = vld [vmem:[%s2] sm:$0xff]
    %v85 = vld [vmem:[%s2 + $0x8] sm:$0xff]
    %v86 = vld [vmem:[%s2 + $0x10] sm:$0xff]
    %v87 = vld [vmem:[%s2 + $0x18] sm:$0xff]
    %v88 = vld [vmem:[%s2 + $0x20] sm:$0xff]
    %v89 = vld [vmem:[%s2 + $0x28] sm:$0xff]
    %v90 = vld [vmem:[%s2 + $0x30] sm:$0xff]
    %v91 = vld [vmem:[%s2 + $0x38] sm:$0xff]
    %v92 = vld [vmem:[%s2 + $0x40] sm:$0xff]
    %v93 = vld [vmem:[%s2 + $0x48] sm:$0xff]
    %v94 = vld [vmem:[%s2 + $0x50] sm:$0xff]
    %v95 = vld [vmem:[%s2 + $0x58] sm:$0xff]
    %v96 = vld [vmem:[%s2 + $0x60] sm:$0xff]
    %v97 = vld [vmem:[%s2 + $0x68] sm:$0xff]
    %v98 = vld [vmem:[%s2 + $0x70] sm:$0xff]
    %v99 = vld [vmem:[%s2 + $0x78] sm:$0xff]
    %v100 = vld [vmem:[%s2 + $0x80] sm:$0xff]
    %v101 = vld [vmem:[%s2 + $0x88] sm:$0xff]
    %v102 = vld [vmem:[%s2 + $0x90] sm:$0xff]
    %v103 = vld [vmem:[%s2 + $0x98] sm:$0xff]
    %v104 = vld [vmem:[%s2 + $0xa0] sm:$0xff]
    %v105 = vld [vmem:[%s2 + $0xa8] sm:$0xff]
    %v106 = vld [vmem:[%s2 + $0xb0] sm:$0xff]
    %v107 = vld [vmem:[%s2 + $0xb8] sm:$0xff]
    %v108 = vld [vmem:[%s2 + $0xc0] sm:$0xff]
    %v109 = vld [vmem:[%s2 + $0xc8] sm:$0xff]
    %v110 = vld [vmem:[%s2 + $0xd0] sm:$0xff]
    %v111 = vld [vmem:[%s2 + $0xd8] sm:$0xff]
    %v112 = vld [vmem:[%s2 + $0xe0] sm:$0xff]
    %v113 = vld [vmem:[%s2 + $0xe8] sm:$0xff]
    %v114 = vld [vmem:[%s2 + $0xf0] sm:$0xff]
    %v115 = vld [vmem:[%s2 + $0xf8] sm:$0xff]
    %v116 = vld [vmem:[%s2 + $0x100] sm:$0xff]
    %v117 = vld [vmem:[%s2 + $0x108] sm:$0xff]
    %v118 = vld [vmem:[%s2 + $0x110] sm:$0xff]
    %v119 = vld [vmem:[%s2 + $0x118] sm:$0xff]
    %v120 = vld [vmem:[%s2 + $0x120] sm:$0xff]
    %v121 = vld [vmem:[%s2 + $0x128] sm:$0xff]
    %v122 = vld [vmem:[%s2 + $0x130] sm:$0xff]
    %v123 = vld [vmem:[%s2 + $0x138] sm:$0xff]
    %v124 = vld [vmem:[%s2 + $0x140] sm:$0xff]
    %v125 = vld [vmem:[%s2 + $0x148] sm:$0xff]
    %v126 = vld [vmem:[%s2 + $0x150] sm:$0xff]
    %v127 = vld [vmem:[%s2 + $0x158] sm:$0xff]
    %v128 = vld [vmem:[%s2 + $0x160] sm:$0xff]
    %v129 = vld [vmem:[%s2 + $0x168] sm:$0xff]
    %v130 = vld [vmem:[%s2 + $0x170] sm:$0xff]
    %v131 = vld [vmem:[%s2 + $0x178] sm:$0xff]
    %v132 = vld [vmem:[%s2 + $0x180] sm:$0xff]
    %v133 = vld [vmem:[%s2 + $0x188] sm:$0xff]
    %v134 = vld [vmem:[%s2 + $0x190] sm:$0xff]
    %v135 = vld [vmem:[%s2 + $0x198] sm:$0xff]
    %v136 = vld [vmem:[%s2 + $0x1a0] sm:$0xff]
    %v137 = vld [vmem:[%s2 + $0x1a8] sm:$0xff]
    %v138 = vld [vmem:[%s2 + $0x1b0] sm:$0xff]
    %v139 = vld [vmem:[%s2 + $0x1b8] sm:$0xff]
    %v140 = vld [vmem:[%s2 + $0x1c0] sm:$0xff]
    %v141 = vld [vmem:[%s2 + $0x1c8] sm:$0xff]
    %v142 = vld [vmem:[%s2 + $0x1d0] sm:$0xff]
    %v143 = vld [vmem:[%s2 + $0x1d8] sm:$0xff]
    %v144 = vld [vmem:[%s2 + $0x1e0] sm:$0xff]
    %v145 = vld [vmem:[%s2 + $0x1e8] sm:$0xff]
    %v146 = vld [vmem:[%s2 + $0x1f0] sm:$0xff]
    %v147 = vld [vmem:[%s2 + $0x1f8] sm:$0xff]
    %v148 = vld [vmem:[%s2 + $0x200] sm:$0xff]
    %v149 = vld [vmem:[%s2 + $0x208] sm:$0xff]
    %v150 = vld [vmem:[%s2 + $0x210] sm:$0xff]
    %v151 = vld [vmem:[%s2 + $0x218] sm:$0xff]
    %v152 = vld [vmem:[%s2 + $0x220] sm:$0xff]
    %v153 = vld [vmem:[%s2 + $0x228] sm:$0xff]
    %v154 = vld [vmem:[%s2 + $0x230] sm:$0xff]
    %v155 = vld [vmem:[%s2 + $0x238] sm:$0xff]
    %v156 = vld [vmem:[%s2 + $0x240] sm:$0xff]
    %v157 = vld [vmem:[%s2 + $0x248] sm:$0xff]
    %v158 = vld [vmem:[%s2 + $0x250] sm:$0xff]
    %v159 = vld [vmem:[%s2 + $0x258] sm:$0xff]
    %v160 = vld [vmem:[%s2 + $0x260] sm:$0xff]
    %v161 = vld [vmem:[%s2 + $0x268] sm:$0xff]
    %v162 = vld [vmem:[%s2 + $0x270] sm:$0xff]
    %v163 = vld [vmem:[%s2 + $0x278] sm:$0xff]
    %v164 = vld [vmem:[%s2 + $0x280] sm:$0xff]
    %v165 = vld [vmem:[%s2 + $0x288] sm:$0xff]
    %v166 = vld [vmem:[%s2 + $0x290] sm:$0xff]
    %v167 = vld [vmem:[%s2 + $0x298] sm:$0xff]
    %v168 = vld [vmem:[%s2 + $0x2a0] sm:$0xff]
    %v169 = vld [vmem:[%s2 + $0x2a8] sm:$0xff]
    %v170 = vld [vmem:[%s2 + $0x2b0] sm:$0xff]
    %v171 = vld [vmem:[%s2 + $0x2b8] sm:$0xff]
    %v172 = vld [vmem:[%s2 + $0x2c0] sm:$0xff]
    %v173 = vld [vmem:[%s2 + $0x2c8] sm:$0xff]
    %v174 = vld [vmem:[%s2 + $0x2d0] sm:$0xff]
    %v175 = vld [vmem:[%s2 + $0x2d8] sm:$0xff]
    %v176 = vld [vmem:[%s2 + $0x2e0] sm:$0xff]
    %v177 = vld [vmem:[%s2 + $0x2e8] sm:$0xff]
    %v178 = vld [vmem:[%s2 + $0x2f0] sm:$0xff]
    %v179 = vld [vmem:[%s2 + $0x2f8] sm:$0xff]
    %v180 = vld [vmem:[%s2 + $0x300] sm:$0xff]
    %v181 = vld [vmem:[%s2 + $0x308] sm:$0xff]
    %v182 = vld [vmem:[%s2 + $0x310] sm:$0xff]
    %v183 = vld [vmem:[%s2 + $0x318] sm:$0xff]
    %v184 = vld [vmem:[%s2 + $0x320] sm:$0xff]
    %v185 = vld [vmem:[%s2 + $0x328] sm:$0xff]
    %v186 = vld [vmem:[%s2 + $0x330] sm:$0xff]
    %v187 = vld [vmem:[%s2 + $0x338] sm:$0xff]
    %v188 = vld [vmem:[%s2 + $0x340] sm:$0xff]
    %v189 = vld [vmem:[%s2 + $0x348] sm:$0xff]
    %v190 = vld [vmem:[%s2 + $0x350] sm:$0xff]
    %v191 = vld [vmem:[%s2 + $0x358] sm:$0xff]
    %v192 = vld [vmem:[%s2 + $0x360] sm:$0xff]
    %v193 = vld [vmem:[%s2 + $0x368] sm:$0xff]
    %v194 = vld [vmem:[%s2 + $0x370] sm:$0xff]
    %v195 = vld [vmem:[%s2 + $0x378] sm:$0xff]
    %v196 = vld [vmem:[%s2 + $0x380] sm:$0xff]
    %v197 = vld [vmem:[%s2 + $0x388] sm:$0xff]
    %v198 = vld [vmem:[%s2 + $0x390] sm:$0xff]
    %v199 = vld [vmem:[%s2 + $0x398] sm:$0xff]
    %v200 = vld [vmem:[%s2 + $0x3a0] sm:$0xff]
    %v201 = vld [vmem:[%s2 + $0x3a8] sm:$0xff]
    %v202 = vld [vmem:[%s2 + $0x3b0] sm:$0xff]
    %v203 = vld [vmem:[%s2 + $0x3b8] sm:$0xff]
    %v204 = vld [vmem:[%s2 + $0x3c0] sm:$0xff]
    %v205 = vld [vmem:[%s2 + $0x3c8] sm:$0xff]
    %v206 = vld [vmem:[%s2 + $0x3d0] sm:$0xff]
    %v207 = vld [vmem:[%s2 + $0x3d8] sm:$0xff]
    %v208 = vld [vmem:[%s2 + $0x3e0] sm:$0xff]
    %v209 = vld [vmem:[%s2 + $0x3e8] sm:$0xff]
    %v210 = vld [vmem:[%s2 + $0x3f0] sm:$0xff]
    %v211 = vld [vmem:[%s2 + $0x3f8] sm:$0xff]
    %v212 = vld [vmem:[%s2 + $0x400] sm:$0xff]
    %v213 = vld [vmem:[%s2 + $0x408] sm:$0xff]
    %v214 = vld [vmem:[%s2 + $0x410] sm:$0xff]
    %v215 = vld [vmem:[%s2 + $0x418] sm:$0xff]
    %v216 = vld [vmem:[%s2 + $0x420] sm:$0xff]
    %v217 = vld [vmem:[%s2 + $0x428] sm:$0xff]
    %v218 = vld [vmem:[%s2 + $0x430] sm:$0xff]
    %v219 = vld [vmem:[%s2 + $0x438] sm:$0xff]
    %v220 = vld [vmem:[%s2 + $0x440] sm:$0xff]
    %v221 = vld [vmem:[%s2 + $0x448] sm:$0xff]
    %v222 = vld [vmem:[%s2 + $0x450] sm:$0xff]
    %v223 = vld [vmem:[%s2 + $0x458] sm:$0xff]
    %v224 = vld [vmem:[%s2 + $0x460] sm:$0xff]
    %v225 = vld [vmem:[%s2 + $0x468] sm:$0xff]
    %v226 = vld [vmem:[%s2 + $0x470] sm:$0xff]
    %v227 = vld [vmem:[%s2 + $0x478] sm:$0xff]
    %v228 = vld [vmem:[%s2 + $0x480] sm:$0xff]
    %v229 = vld [vmem:[%s2 + $0x488] sm:$0xff]
    %v230 = vld [vmem:[%s2 + $0x490] sm:$0xff]
    %v231 = vld [vmem:[%s2 + $0x498] sm:$0xff]
    %v232 = vld [vmem:[%s2 + $0x4a0] sm:$0xff]
    %v233 = vld [vmem:[%s2 + $0x4a8] sm:$0xff]
    %v234 = vld [vmem:[%s2 + $0x4b0] sm:$0xff]
    %v235 = vld [vmem:[%s2 + $0x4b8] sm:$0xff]
    %v236 = vld [vmem:[%s2 + $0x4c0] sm:$0xff]
    %v237 = vld [vmem:[%s2 + $0x4c8] sm:$0xff]
    %v238 = vld [vmem:[%s2 + $0x4d0] sm:$0xff]
    %v239 = vld [vmem:[%s2 + $0x4d8] sm:$0xff]
    %v240 = vld [vmem:[%s2 + $0x4e0] sm:$0xff]
    %v241 = vld [vmem:[%s2 + $0x4e8] sm:$0xff]
    %v242 = vld [vmem:[%s2 + $0x4f0] sm:$0xff]
    %v243 = vld [vmem:[%s2 + $0x4f8] sm:$0xff]
    %v244 = vld [vmem:[%s2 + $0x500] sm:$0xff]
    %v245 = vld [vmem:[%s2 + $0x508] sm:$0xff]
    %v246 = vld [vmem:[%s2 + $0x510] sm:$0xff]
    %v247 = vld [vmem:[%s2 + $0x518] sm:$0xff]
    %v248 = vld [vmem:[%s2 + $0x520] sm:$0xff]
    %v249 = vld [vmem:[%s2 + $0x528] sm:$0xff]
    %v250 = vld [vmem:[%s2 + $0x530] sm:$0xff]
    %v251 = vld [vmem:[%s2 + $0x538] sm:$0xff]
    %v252 = vld [vmem:[%s2 + $0x540] sm:$0xff]
    %v253 = vld [vmem:[%s2 + $0x548] sm:$0xff]
    %v254 = vld [vmem:[%s2 + $0x550] sm:$0xff]
    %v255 = vld [vmem:[%s2 + $0x558] sm:$0xff]
    %v256 = vld [vmem:[%s2 + $0x560] sm:$0xff]
    %v257 = vld [vmem:[%s2 + $0x568] sm:$0xff]
    %v258 = vld [vmem:[%s2 + $0x570] sm:$0xff]
    %v259 = vld [vmem:[%s2 + $0x578] sm:$0xff]
    %v260 = vld [vmem:[%s2 + $0x580] sm:$0xff]
    %v261 = vld [vmem:[%s2 + $0x588] sm:$0xff]
    %v262 = vld [vmem:[%s2 + $0x590] sm:$0xff]
    %v263 = vld [vmem:[%s2 + $0x598] sm:$0xff]
    %v264 = vld [vmem:[%s2 + $0x5a0] sm:$0xff]
    %v265 = vld [vmem:[%s2 + $0x5a8] sm:$0xff]
    %v266 = vld [vmem:[%s2 + $0x5b0] sm:$0xff]
    %v267 = vld [vmem:[%s2 + $0x5b8] sm:$0xff]
    %v268 = vld [vmem:[%s2 + $0x5c0] sm:$0xff]
    %v269 = vld [vmem:[%s2 + $0x5c8] sm:$0xff]
    %v270 = vld [vmem:[%s2 + $0x5d0] sm:$0xff]
    %v271 = vld [vmem:[%s2 + $0x5d8] sm:$0xff]
    %v272 = vld [vmem:[%s2 + $0x5e0] sm:$0xff]
    %v273 = vld [vmem:[%s2 + $0x5e8] sm:$0xff]
    %v274 = vld [vmem:[%s2 + $0x5f0] sm:$0xff]
    %v275 = vld [vmem:[%s2 + $0x5f8] sm:$0xff]
    %v276 = vld [vmem:[%s2 + $0x600] sm:$0xff]
    %v277 = vld [vmem:[%s2 + $0x608] sm:$0xff]
    %v278 = vld [vmem:[%s2 + $0x610] sm:$0xff]
    %v279 = vld [vmem:[%s2 + $0x618] sm:$0xff]
    %v280 = vld [vmem:[%s2 + $0x620] sm:$0xff]
    %v281 = vld [vmem:[%s2 + $0x628] sm:$0xff]
    %v282 = vld [vmem:[%s2 + $0x630] sm:$0xff]
    %v283 = vld [vmem:[%s2 + $0x638] sm:$0xff]
    %v284 = vld [vmem:[%s2 + $0x640] sm:$0xff]
    %v285 = vld [vmem:[%s2 + $0x648] sm:$0xff]
    %v286 = vld [vmem:[%s2 + $0x650] sm:$0xff]
    %v287 = vld [vmem:[%s2 + $0x658] sm:$0xff]
    %v288 = vld [vmem:[%s2 + $0x660] sm:$0xff]
    %v289 = vld [vmem:[%s2 + $0x668] sm:$0xff]
    %v290 = vld [vmem:[%s2 + $0x670] sm:$0xff]
    %v291 = vld [vmem:[%s2 + $0x678] sm:$0xff]
    %v292 = vld [vmem:[%s2 + $0x680] sm:$0xff]
    %v293 = vld [vmem:[%s2 + $0x688] sm:$0xff]
    %v294 = vld [vmem:[%s2 + $0x690] sm:$0xff]
    %v295 = vld [vmem:[%s2 + $0x698] sm:$0xff]
    %v296 = vld [vmem:[%s2 + $0x6a0] sm:$0xff]
    %v297 = vld [vmem:[%s2 + $0x6a8] sm:$0xff]
    %v298 = vld [vmem:[%s2 + $0x6b0] sm:$0xff]
    %v299 = vld [vmem:[%s2 + $0x6b8] sm:$0xff]
    %v300 = vld [vmem:[%s2 + $0x6c0] sm:$0xff]
    %v301 = vld [vmem:[%s2 + $0x6c8] sm:$0xff]
    %v302 = vld [vmem:[%s2 + $0x6d0] sm:$0xff]
    %v303 = vld [vmem:[%s2 + $0x6d8] sm:$0xff]
    %v304 = vld [vmem:[%s2 + $0x6e0] sm:$0xff]
    %v305 = vld [vmem:[%s2 + $0x6e8] sm:$0xff]
    %v306 = vld [vmem:[%s2 + $0x6f0] sm:$0xff]
    %v307 = vld [vmem:[%s2 + $0x6f8] sm:$0xff]
    %v308 = vld [vmem:[%s2 + $0x700] sm:$0xff]
    %v309 = vld [vmem:[%s2 + $0x708] sm:$0xff]
    %v310 = vld [vmem:[%s2 + $0x710] sm:$0xff]
    %v311 = vld [vmem:[%s2 + $0x718] sm:$0xff]
    %v312 = vld [vmem:[%s2 + $0x720] sm:$0xff]
    %v313 = vld [vmem:[%s2 + $0x728] sm:$0xff]
    %v314 = vld [vmem:[%s2 + $0x730] sm:$0xff]
    %v315 = vld [vmem:[%s2 + $0x738] sm:$0xff]
    %v316 = vld [vmem:[%s2 + $0x740] sm:$0xff]
    %v317 = vld [vmem:[%s2 + $0x748] sm:$0xff]
    %v318 = vld [vmem:[%s2 + $0x750] sm:$0xff]
    %v319 = vld [vmem:[%s2 + $0x758] sm:$0xff]
    %v320 = vld [vmem:[%s2 + $0x760] sm:$0xff]
    %v321 = vld [vmem:[%s2 + $0x768] sm:$0xff]
    %v322 = vld [vmem:[%s2 + $0x770] sm:$0xff]
    %v323 = vld [vmem:[%s2 + $0x778] sm:$0xff]
    %v324 = vld [vmem:[%s2 + $0x780] sm:$0xff]
    %v325 = vld [vmem:[%s2 + $0x788] sm:$0xff]
    %v326 = vld [vmem:[%s2 + $0x790] sm:$0xff]
    %v327 = vld [vmem:[%s2 + $0x798] sm:$0xff]
    %v328 = vld [vmem:[%s2 + $0x7a0] sm:$0xff]
    %v329 = vld [vmem:[%s2 + $0x7a8] sm:$0xff]
    %v330 = vld [vmem:[%s2 + $0x7b0] sm:$0xff]
    %v331 = vld [vmem:[%s2 + $0x7b8] sm:$0xff]
    %v332 = vld [vmem:[%s2 + $0x7c0] sm:$0xff]
    %v333 = vld [vmem:[%s2 + $0x7c8] sm:$0xff]
    %v334 = vld [vmem:[%s2 + $0x7d0] sm:$0xff]
    %v335 = vld [vmem:[%s2 + $0x7d8] sm:$0xff]
    %v336 = vld [vmem:[%s2 + $0x7e0] sm:$0xff]
    %v337 = vld [vmem:[%s2 + $0x7e8] sm:$0xff]
    %v338 = vld [vmem:[%s2 + $0x7f0] sm:$0xff]
    %v339 = vld [vmem:[%s2 + $0x7f8] sm:$0xff]
    %v340 = vld [vmem:[%s3] sm:$0xf]
    %v342 = vlaneseq
    %v343 = vshrl.u32 %v342, 7
    %v344 = vsub.s32 0, %v343
    %v345 = vrot.slane %v340, %v344
    %v346 = vlaneseq
    %v347 = vshrl.u32 %v346, 7
    %v348 = vsub.s32 1, %v347
    %v349 = vrot.slane %v340, %v348
    %v350 = vlaneseq
    %v351 = vshrl.u32 %v350, 7
    %v352 = vsub.s32 2, %v351
    %v353 = vrot.slane %v340, %v352
    %v354 = vlaneseq
    %v355 = vshrl.u32 %v354, 7
    %v356 = vsub.s32 3, %v355
    %v357 = vrot.slane %v340, %v356
    %v618 = vunpack.c.l.b16 %v84
    %v619 = vunpack.c.h.b16 %v84
    %v620 = vunpack.c.l.b16 %v85
    %v621 = vunpack.c.h.b16 %v85
    %v622 = vunpack.c.l.b16 %v86
    %v623 = vunpack.c.h.b16 %v86
    %v624 = vunpack.c.l.b16 %v87
    %v625 = vunpack.c.h.b16 %v87
    %v626 = vunpack.c.l.b16 %v88
    %v627 = vunpack.c.h.b16 %v88
    %v628 = vunpack.c.l.b16 %v89
    %v629 = vunpack.c.h.b16 %v89
    %v630 = vunpack.c.l.b16 %v90
    %v631 = vunpack.c.h.b16 %v90
    %v632 = vunpack.c.l.b16 %v91
    %v633 = vunpack.c.h.b16 %v91
    %v634 = vunpack.c.l.b16 %v92
    %v635 = vunpack.c.h.b16 %v92
    %v636 = vunpack.c.l.b16 %v93
    %v637 = vunpack.c.h.b16 %v93
    %v638 = vunpack.c.l.b16 %v94
    %v639 = vunpack.c.h.b16 %v94
    %v640 = vunpack.c.l.b16 %v95
    %v641 = vunpack.c.h.b16 %v95
    %v642 = vunpack.c.l.b16 %v96
    %v643 = vunpack.c.h.b16 %v96
    %v644 = vunpack.c.l.b16 %v97
    %v645 = vunpack.c.h.b16 %v97
    %v646 = vunpack.c.l.b16 %v98
    %v647 = vunpack.c.h.b16 %v98
    %v648 = vunpack.c.l.b16 %v99
    %v649 = vunpack.c.h.b16 %v99
    %v650 = vunpack.c.l.b16 %v100
    %v651 = vunpack.c.h.b16 %v100
    %v652 = vunpack.c.l.b16 %v101
    %v653 = vunpack.c.h.b16 %v101
    %v654 = vunpack.c.l.b16 %v102
    %v655 = vunpack.c.h.b16 %v102
    %v656 = vunpack.c.l.b16 %v103
    %v657 = vunpack.c.h.b16 %v103
    %v658 = vunpack.c.l.b16 %v104
    %v659 = vunpack.c.h.b16 %v104
    %v660 = vunpack.c.l.b16 %v105
    %v661 = vunpack.c.h.b16 %v105
    %v662 = vunpack.c.l.b16 %v106
    %v663 = vunpack.c.h.b16 %v106
    %v664 = vunpack.c.l.b16 %v107
    %v665 = vunpack.c.h.b16 %v107
    %v666 = vunpack.c.l.b16 %v108
    %v667 = vunpack.c.h.b16 %v108
    %v668 = vunpack.c.l.b16 %v109
    %v669 = vunpack.c.h.b16 %v109
    %v670 = vunpack.c.l.b16 %v110
    %v671 = vunpack.c.h.b16 %v110
    %v672 = vunpack.c.l.b16 %v111
    %v673 = vunpack.c.h.b16 %v111
    %v674 = vunpack.c.l.b16 %v112
    %v675 = vunpack.c.h.b16 %v112
    %v676 = vunpack.c.l.b16 %v113
    %v677 = vunpack.c.h.b16 %v113
    %v678 = vunpack.c.l.b16 %v114
    %v679 = vunpack.c.h.b16 %v114
    %v680 = vunpack.c.l.b16 %v115
    %v681 = vunpack.c.h.b16 %v115
    %v682 = vunpack.c.l.b16 %v116
    %v683 = vunpack.c.h.b16 %v116
    %v684 = vunpack.c.l.b16 %v117
    %v685 = vunpack.c.h.b16 %v117
    %v686 = vunpack.c.l.b16 %v118
    %v687 = vunpack.c.h.b16 %v118
    %v688 = vunpack.c.l.b16 %v119
    %v689 = vunpack.c.h.b16 %v119
    %v690 = vunpack.c.l.b16 %v120
    %v691 = vunpack.c.h.b16 %v120
    %v692 = vunpack.c.l.b16 %v121
    %v693 = vunpack.c.h.b16 %v121
    %v694 = vunpack.c.l.b16 %v122
    %v695 = vunpack.c.h.b16 %v122
    %v696 = vunpack.c.l.b16 %v123
    %v697 = vunpack.c.h.b16 %v123
    %v698 = vunpack.c.l.b16 %v124
    %v699 = vunpack.c.h.b16 %v124
    %v700 = vunpack.c.l.b16 %v125
    %v701 = vunpack.c.h.b16 %v125
    %v702 = vunpack.c.l.b16 %v126
    %v703 = vunpack.c.h.b16 %v126
    %v704 = vunpack.c.l.b16 %v127
    %v705 = vunpack.c.h.b16 %v127
    %v706 = vunpack.c.l.b16 %v128
    %v707 = vunpack.c.h.b16 %v128
    %v708 = vunpack.c.l.b16 %v129
    %v709 = vunpack.c.h.b16 %v129
    %v710 = vunpack.c.l.b16 %v130
    %v711 = vunpack.c.h.b16 %v130
    %v712 = vunpack.c.l.b16 %v131
    %v713 = vunpack.c.h.b16 %v131
    %v714 = vunpack.c.l.b16 %v132
    %v715 = vunpack.c.h.b16 %v132
    %v716 = vunpack.c.l.b16 %v133
    %v717 = vunpack.c.h.b16 %v133
    %v718 = vunpack.c.l.b16 %v134
    %v719 = vunpack.c.h.b16 %v134
    %v720 = vunpack.c.l.b16 %v135
    %v721 = vunpack.c.h.b16 %v135
    %v722 = vunpack.c.l.b16 %v136
    %v723 = vunpack.c.h.b16 %v136
    %v724 = vunpack.c.l.b16 %v137
    %v725 = vunpack.c.h.b16 %v137
    %v726 = vunpack.c.l.b16 %v138
    %v727 = vunpack.c.h.b16 %v138
    %v728 = vunpack.c.l.b16 %v139
    %v729 = vunpack.c.h.b16 %v139
    %v730 = vunpack.c.l.b16 %v140
    %v731 = vunpack.c.h.b16 %v140
    %v732 = vunpack.c.l.b16 %v141
    %v733 = vunpack.c.h.b16 %v141
    %v734 = vunpack.c.l.b16 %v142
    %v735 = vunpack.c.h.b16 %v142
    %v736 = vunpack.c.l.b16 %v143
    %v737 = vunpack.c.h.b16 %v143
    %v738 = vunpack.c.l.b16 %v144
    %v739 = vunpack.c.h.b16 %v144
    %v740 = vunpack.c.l.b16 %v145
    %v741 = vunpack.c.h.b16 %v145
    %v742 = vunpack.c.l.b16 %v146
    %v743 = vunpack.c.h.b16 %v146
    %v744 = vunpack.c.l.b16 %v147
    %v745 = vunpack.c.h.b16 %v147
    %v746 = vunpack.c.l.b16 %v148
    %v747 = vunpack.c.h.b16 %v148
    %v748 = vunpack.c.l.b16 %v149
    %v749 = vunpack.c.h.b16 %v149
    %v750 = vunpack.c.l.b16 %v150
    %v751 = vunpack.c.h.b16 %v150
    %v752 = vunpack.c.l.b16 %v151
    %v753 = vunpack.c.h.b16 %v151
    %v754 = vunpack.c.l.b16 %v152
    %v755 = vunpack.c.h.b16 %v152
    %v756 = vunpack.c.l.b16 %v153
    %v757 = vunpack.c.h.b16 %v153
    %v758 = vunpack.c.l.b16 %v154
    %v759 = vunpack.c.h.b16 %v154
    %v760 = vunpack.c.l.b16 %v155
    %v761 = vunpack.c.h.b16 %v155
    %v762 = vunpack.c.l.b16 %v156
    %v763 = vunpack.c.h.b16 %v156
    %v764 = vunpack.c.l.b16 %v157
    %v765 = vunpack.c.h.b16 %v157
    %v766 = vunpack.c.l.b16 %v158
    %v767 = vunpack.c.h.b16 %v158
    %v768 = vunpack.c.l.b16 %v159
    %v769 = vunpack.c.h.b16 %v159
    %v770 = vunpack.c.l.b16 %v160
    %v771 = vunpack.c.h.b16 %v160
    %v772 = vunpack.c.l.b16 %v161
    %v773 = vunpack.c.h.b16 %v161
    %v774 = vunpack.c.l.b16 %v162
    %v775 = vunpack.c.h.b16 %v162
    %v776 = vunpack.c.l.b16 %v163
    %v777 = vunpack.c.h.b16 %v163
    %v778 = vunpack.c.l.b16 %v164
    %v779 = vunpack.c.h.b16 %v164
    %v780 = vunpack.c.l.b16 %v165
    %v781 = vunpack.c.h.b16 %v165
    %v782 = vunpack.c.l.b16 %v166
    %v783 = vunpack.c.h.b16 %v166
    %v784 = vunpack.c.l.b16 %v167
    %v785 = vunpack.c.h.b16 %v167
    %v786 = vunpack.c.l.b16 %v168
    %v787 = vunpack.c.h.b16 %v168
    %v788 = vunpack.c.l.b16 %v169
    %v789 = vunpack.c.h.b16 %v169
    %v790 = vunpack.c.l.b16 %v170
    %v791 = vunpack.c.h.b16 %v170
    %v792 = vunpack.c.l.b16 %v171
    %v793 = vunpack.c.h.b16 %v171
    %v794 = vunpack.c.l.b16 %v172
    %v795 = vunpack.c.h.b16 %v172
    %v796 = vunpack.c.l.b16 %v173
    %v797 = vunpack.c.h.b16 %v173
    %v798 = vunpack.c.l.b16 %v174
    %v799 = vunpack.c.h.b16 %v174
    %v800 = vunpack.c.l.b16 %v175
    %v801 = vunpack.c.h.b16 %v175
    %v802 = vunpack.c.l.b16 %v176
    %v803 = vunpack.c.h.b16 %v176
    %v804 = vunpack.c.l.b16 %v177
    %v805 = vunpack.c.h.b16 %v177
    %v806 = vunpack.c.l.b16 %v178
    %v807 = vunpack.c.h.b16 %v178
    %v808 = vunpack.c.l.b16 %v179
    %v809 = vunpack.c.h.b16 %v179
    %v810 = vunpack.c.l.b16 %v180
    %v811 = vunpack.c.h.b16 %v180
    %v812 = vunpack.c.l.b16 %v181
    %v813 = vunpack.c.h.b16 %v181
    %v814 = vunpack.c.l.b16 %v182
    %v815 = vunpack.c.h.b16 %v182
    %v816 = vunpack.c.l.b16 %v183
    %v817 = vunpack.c.h.b16 %v183
    %v818 = vunpack.c.l.b16 %v184
    %v819 = vunpack.c.h.b16 %v184
    %v820 = vunpack.c.l.b16 %v185
    %v821 = vunpack.c.h.b16 %v185
    %v822 = vunpack.c.l.b16 %v186
    %v823 = vunpack.c.h.b16 %v186
    %v824 = vunpack.c.l.b16 %v187
    %v825 = vunpack.c.h.b16 %v187
    %v826 = vunpack.c.l.b16 %v188
    %v827 = vunpack.c.h.b16 %v188
    %v828 = vunpack.c.l.b16 %v189
    %v829 = vunpack.c.h.b16 %v189
    %v830 = vunpack.c.l.b16 %v190
    %v831 = vunpack.c.h.b16 %v190
    %v832 = vunpack.c.l.b16 %v191
    %v833 = vunpack.c.h.b16 %v191
    %v834 = vunpack.c.l.b16 %v192
    %v835 = vunpack.c.h.b16 %v192
    %v836 = vunpack.c.l.b16 %v193
    %v837 = vunpack.c.h.b16 %v193
    %v838 = vunpack.c.l.b16 %v194
    %v839 = vunpack.c.h.b16 %v194
    %v840 = vunpack.c.l.b16 %v195
    %v841 = vunpack.c.h.b16 %v195
    %v842 = vunpack.c.l.b16 %v196
    %v843 = vunpack.c.h.b16 %v196
    %v844 = vunpack.c.l.b16 %v197
    %v845 = vunpack.c.h.b16 %v197
    %v846 = vunpack.c.l.b16 %v198
    %v847 = vunpack.c.h.b16 %v198
    %v848 = vunpack.c.l.b16 %v199
    %v849 = vunpack.c.h.b16 %v199
    %v850 = vunpack.c.l.b16 %v200
    %v851 = vunpack.c.h.b16 %v200
    %v852 = vunpack.c.l.b16 %v201
    %v853 = vunpack.c.h.b16 %v201
    %v854 = vunpack.c.l.b16 %v202
    %v855 = vunpack.c.h.b16 %v202
    %v856 = vunpack.c.l.b16 %v203
    %v857 = vunpack.c.h.b16 %v203
    %v858 = vunpack.c.l.b16 %v204
    %v859 = vunpack.c.h.b16 %v204
    %v860 = vunpack.c.l.b16 %v205
    %v861 = vunpack.c.h.b16 %v205
    %v862 = vunpack.c.l.b16 %v206
    %v863 = vunpack.c.h.b16 %v206
    %v864 = vunpack.c.l.b16 %v207
    %v865 = vunpack.c.h.b16 %v207
    %v866 = vunpack.c.l.b16 %v208
    %v867 = vunpack.c.h.b16 %v208
    %v868 = vunpack.c.l.b16 %v209
    %v869 = vunpack.c.h.b16 %v209
    %v870 = vunpack.c.l.b16 %v210
    %v871 = vunpack.c.h.b16 %v210
    %v872 = vunpack.c.l.b16 %v211
    %v873 = vunpack.c.h.b16 %v211
    %v874 = vunpack.c.l.b16 %v212
    %v875 = vunpack.c.h.b16 %v212
    %v876 = vunpack.c.l.b16 %v213
    %v877 = vunpack.c.h.b16 %v213
    %v878 = vunpack.c.l.b16 %v214
    %v879 = vunpack.c.h.b16 %v214
    %v880 = vunpack.c.l.b16 %v215
    %v881 = vunpack.c.h.b16 %v215
    %v882 = vunpack.c.l.b16 %v216
    %v883 = vunpack.c.h.b16 %v216
    %v884 = vunpack.c.l.b16 %v217
    %v885 = vunpack.c.h.b16 %v217
    %v886 = vunpack.c.l.b16 %v218
    %v887 = vunpack.c.h.b16 %v218
    %v888 = vunpack.c.l.b16 %v219
    %v889 = vunpack.c.h.b16 %v219
    %v890 = vunpack.c.l.b16 %v220
    %v891 = vunpack.c.h.b16 %v220
    %v892 = vunpack.c.l.b16 %v221
    %v893 = vunpack.c.h.b16 %v221
    %v894 = vunpack.c.l.b16 %v222
    %v895 = vunpack.c.h.b16 %v222
    %v896 = vunpack.c.l.b16 %v223
    %v897 = vunpack.c.h.b16 %v223
    %v898 = vunpack.c.l.b16 %v224
    %v899 = vunpack.c.h.b16 %v224
    %v900 = vunpack.c.l.b16 %v225
    %v901 = vunpack.c.h.b16 %v225
    %v902 = vunpack.c.l.b16 %v226
    %v903 = vunpack.c.h.b16 %v226
    %v904 = vunpack.c.l.b16 %v227
    %v905 = vunpack.c.h.b16 %v227
    %v906 = vunpack.c.l.b16 %v228
    %v907 = vunpack.c.h.b16 %v228
    %v908 = vunpack.c.l.b16 %v229
    %v909 = vunpack.c.h.b16 %v229
    %v910 = vunpack.c.l.b16 %v230
    %v911 = vunpack.c.h.b16 %v230
    %v912 = vunpack.c.l.b16 %v231
    %v913 = vunpack.c.h.b16 %v231
    %v914 = vunpack.c.l.b16 %v232
    %v915 = vunpack.c.h.b16 %v232
    %v916 = vunpack.c.l.b16 %v233
    %v917 = vunpack.c.h.b16 %v233
    %v918 = vunpack.c.l.b16 %v234
    %v919 = vunpack.c.h.b16 %v234
    %v920 = vunpack.c.l.b16 %v235
    %v921 = vunpack.c.h.b16 %v235
    %v922 = vunpack.c.l.b16 %v236
    %v923 = vunpack.c.h.b16 %v236
    %v924 = vunpack.c.l.b16 %v237
    %v925 = vunpack.c.h.b16 %v237
    %v926 = vunpack.c.l.b16 %v238
    %v927 = vunpack.c.h.b16 %v238
    %v928 = vunpack.c.l.b16 %v239
    %v929 = vunpack.c.h.b16 %v239
    %v930 = vunpack.c.l.b16 %v240
    %v931 = vunpack.c.h.b16 %v240
    %v932 = vunpack.c.l.b16 %v241
    %v933 = vunpack.c.h.b16 %v241
    %v934 = vunpack.c.l.b16 %v242
    %v935 = vunpack.c.h.b16 %v242
    %v936 = vunpack.c.l.b16 %v243
    %v937 = vunpack.c.h.b16 %v243
    %v938 = vunpack.c.l.b16 %v244
    %v939 = vunpack.c.h.b16 %v244
    %v940 = vunpack.c.l.b16 %v245
    %v941 = vunpack.c.h.b16 %v245
    %v942 = vunpack.c.l.b16 %v246
    %v943 = vunpack.c.h.b16 %v246
    %v944 = vunpack.c.l.b16 %v247
    %v945 = vunpack.c.h.b16 %v247
    %v946 = vunpack.c.l.b16 %v248
    %v947 = vunpack.c.h.b16 %v248
    %v948 = vunpack.c.l.b16 %v249
    %v949 = vunpack.c.h.b16 %v249
    %v950 = vunpack.c.l.b16 %v250
    %v951 = vunpack.c.h.b16 %v250
    %v952 = vunpack.c.l.b16 %v251
    %v953 = vunpack.c.h.b16 %v251
    %v954 = vunpack.c.l.b16 %v252
    %v955 = vunpack.c.h.b16 %v252
    %v956 = vunpack.c.l.b16 %v253
    %v957 = vunpack.c.h.b16 %v253
    %v958 = vunpack.c.l.b16 %v254
    %v959 = vunpack.c.h.b16 %v254
    %v960 = vunpack.c.l.b16 %v255
    %v961 = vunpack.c.h.b16 %v255
    %v962 = vunpack.c.l.b16 %v256
    %v963 = vunpack.c.h.b16 %v256
    %v964 = vunpack.c.l.b16 %v257
    %v965 = vunpack.c.h.b16 %v257
    %v966 = vunpack.c.l.b16 %v258
    %v967 = vunpack.c.h.b16 %v258
    %v968 = vunpack.c.l.b16 %v259
    %v969 = vunpack.c.h.b16 %v259
    %v970 = vunpack.c.l.b16 %v260
    %v971 = vunpack.c.h.b16 %v260
    %v972 = vunpack.c.l.b16 %v261
    %v973 = vunpack.c.h.b16 %v261
    %v974 = vunpack.c.l.b16 %v262
    %v975 = vunpack.c.h.b16 %v262
    %v976 = vunpack.c.l.b16 %v263
    %v977 = vunpack.c.h.b16 %v263
    %v978 = vunpack.c.l.b16 %v264
    %v979 = vunpack.c.h.b16 %v264
    %v980 = vunpack.c.l.b16 %v265
    %v981 = vunpack.c.h.b16 %v265
    %v982 = vunpack.c.l.b16 %v266
    %v983 = vunpack.c.h.b16 %v266
    %v984 = vunpack.c.l.b16 %v267
    %v985 = vunpack.c.h.b16 %v267
    %v986 = vunpack.c.l.b16 %v268
    %v987 = vunpack.c.h.b16 %v268
    %v988 = vunpack.c.l.b16 %v269
    %v989 = vunpack.c.h.b16 %v269
    %v990 = vunpack.c.l.b16 %v270
    %v991 = vunpack.c.h.b16 %v270
    %v992 = vunpack.c.l.b16 %v271
    %v993 = vunpack.c.h.b16 %v271
    %v994 = vunpack.c.l.b16 %v272
    %v995 = vunpack.c.h.b16 %v272
    %v996 = vunpack.c.l.b16 %v273
    %v997 = vunpack.c.h.b16 %v273
    %v998 = vunpack.c.l.b16 %v274
    %v999 = vunpack.c.h.b16 %v274
    %v1000 = vunpack.c.l.b16 %v275
    %v1001 = vunpack.c.h.b16 %v275
    %v1002 = vunpack.c.l.b16 %v276
    %v1003 = vunpack.c.h.b16 %v276
    %v1004 = vunpack.c.l.b16 %v277
    %v1005 = vunpack.c.h.b16 %v277
    %v1006 = vunpack.c.l.b16 %v278
    %v1007 = vunpack.c.h.b16 %v278
    %v1008 = vunpack.c.l.b16 %v279
    %v1009 = vunpack.c.h.b16 %v279
    %v1010 = vunpack.c.l.b16 %v280
    %v1011 = vunpack.c.h.b16 %v280
    %v1012 = vunpack.c.l.b16 %v281
    %v1013 = vunpack.c.h.b16 %v281
    %v1014 = vunpack.c.l.b16 %v282
    %v1015 = vunpack.c.h.b16 %v282
    %v1016 = vunpack.c.l.b16 %v283
    %v1017 = vunpack.c.h.b16 %v283
    %v1018 = vunpack.c.l.b16 %v284
    %v1019 = vunpack.c.h.b16 %v284
    %v1020 = vunpack.c.l.b16 %v285
    %v1021 = vunpack.c.h.b16 %v285
    %v1022 = vunpack.c.l.b16 %v286
    %v1023 = vunpack.c.h.b16 %v286
    %v1024 = vunpack.c.l.b16 %v287
    %v1025 = vunpack.c.h.b16 %v287
    %v1026 = vunpack.c.l.b16 %v288
    %v1027 = vunpack.c.h.b16 %v288
    %v1028 = vunpack.c.l.b16 %v289
    %v1029 = vunpack.c.h.b16 %v289
    %v1030 = vunpack.c.l.b16 %v290
    %v1031 = vunpack.c.h.b16 %v290
    %v1032 = vunpack.c.l.b16 %v291
    %v1033 = vunpack.c.h.b16 %v291
    %v1034 = vunpack.c.l.b16 %v292
    %v1035 = vunpack.c.h.b16 %v292
    %v1036 = vunpack.c.l.b16 %v293
    %v1037 = vunpack.c.h.b16 %v293
    %v1038 = vunpack.c.l.b16 %v294
    %v1039 = vunpack.c.h.b16 %v294
    %v1040 = vunpack.c.l.b16 %v295
    %v1041 = vunpack.c.h.b16 %v295
    %v1042 = vunpack.c.l.b16 %v296
    %v1043 = vunpack.c.h.b16 %v296
    %v1044 = vunpack.c.l.b16 %v297
    %v1045 = vunpack.c.h.b16 %v297
    %v1046 = vunpack.c.l.b16 %v298
    %v1047 = vunpack.c.h.b16 %v298
    %v1048 = vunpack.c.l.b16 %v299
    %v1049 = vunpack.c.h.b16 %v299
    %v1050 = vunpack.c.l.b16 %v300
    %v1051 = vunpack.c.h.b16 %v300
    %v1052 = vunpack.c.l.b16 %v301
    %v1053 = vunpack.c.h.b16 %v301
    %v1054 = vunpack.c.l.b16 %v302
    %v1055 = vunpack.c.h.b16 %v302
    %v1056 = vunpack.c.l.b16 %v303
    %v1057 = vunpack.c.h.b16 %v303
    %v1058 = vunpack.c.l.b16 %v304
    %v1059 = vunpack.c.h.b16 %v304
    %v1060 = vunpack.c.l.b16 %v305
    %v1061 = vunpack.c.h.b16 %v305
    %v1062 = vunpack.c.l.b16 %v306
    %v1063 = vunpack.c.h.b16 %v306
    %v1064 = vunpack.c.l.b16 %v307
    %v1065 = vunpack.c.h.b16 %v307
    %v1066 = vunpack.c.l.b16 %v308
    %v1067 = vunpack.c.h.b16 %v308
    %v1068 = vunpack.c.l.b16 %v309
    %v1069 = vunpack.c.h.b16 %v309
    %v1070 = vunpack.c.l.b16 %v310
    %v1071 = vunpack.c.h.b16 %v310
    %v1072 = vunpack.c.l.b16 %v311
    %v1073 = vunpack.c.h.b16 %v311
    %v1074 = vunpack.c.l.b16 %v312
    %v1075 = vunpack.c.h.b16 %v312
    %v1076 = vunpack.c.l.b16 %v313
    %v1077 = vunpack.c.h.b16 %v313
    %v1078 = vunpack.c.l.b16 %v314
    %v1079 = vunpack.c.h.b16 %v314
    %v1080 = vunpack.c.l.b16 %v315
    %v1081 = vunpack.c.h.b16 %v315
    %v1082 = vunpack.c.l.b16 %v316
    %v1083 = vunpack.c.h.b16 %v316
    %v1084 = vunpack.c.l.b16 %v317
    %v1085 = vunpack.c.h.b16 %v317
    %v1086 = vunpack.c.l.b16 %v318
    %v1087 = vunpack.c.h.b16 %v318
    %v1088 = vunpack.c.l.b16 %v319
    %v1089 = vunpack.c.h.b16 %v319
    %v1090 = vunpack.c.l.b16 %v320
    %v1091 = vunpack.c.h.b16 %v320
    %v1092 = vunpack.c.l.b16 %v321
    %v1093 = vunpack.c.h.b16 %v321
    %v1094 = vunpack.c.l.b16 %v322
    %v1095 = vunpack.c.h.b16 %v322
    %v1096 = vunpack.c.l.b16 %v323
    %v1097 = vunpack.c.h.b16 %v323
    %v1098 = vunpack.c.l.b16 %v324
    %v1099 = vunpack.c.h.b16 %v324
    %v1100 = vunpack.c.l.b16 %v325
    %v1101 = vunpack.c.h.b16 %v325
    %v1102 = vunpack.c.l.b16 %v326
    %v1103 = vunpack.c.h.b16 %v326
    %v1104 = vunpack.c.l.b16 %v327
    %v1105 = vunpack.c.h.b16 %v327
    %v1106 = vunpack.c.l.b16 %v328
    %v1107 = vunpack.c.h.b16 %v328
    %v1108 = vunpack.c.l.b16 %v329
    %v1109 = vunpack.c.h.b16 %v329
    %v1110 = vunpack.c.l.b16 %v330
    %v1111 = vunpack.c.h.b16 %v330
    %v1112 = vunpack.c.l.b16 %v331
    %v1113 = vunpack.c.h.b16 %v331
    %v1114 = vunpack.c.l.b16 %v332
    %v1115 = vunpack.c.h.b16 %v332
    %v1116 = vunpack.c.l.b16 %v333
    %v1117 = vunpack.c.h.b16 %v333
    %v1118 = vunpack.c.l.b16 %v334
    %v1119 = vunpack.c.h.b16 %v334
    %v1120 = vunpack.c.l.b16 %v335
    %v1121 = vunpack.c.h.b16 %v335
    %v1122 = vunpack.c.l.b16 %v336
    %v1123 = vunpack.c.h.b16 %v336
    %v1124 = vunpack.c.l.b16 %v337
    %v1125 = vunpack.c.h.b16 %v337
    %v1126 = vunpack.c.l.b16 %v338
    %v1127 = vunpack.c.h.b16 %v338
    %v1128 = vunpack.c.l.b16 %v339
    %v1129 = vunpack.c.h.b16 %v339
    %v1130 = vpack.c.b16 %v622, %v618
    %v1131 = vpack.c.b16 %v623, %v619
    %v1132 = vpack.c.b16 %v624, %v620
    %v1133 = vpack.c.b16 %v625, %v621
    %v1134 = vpack.c.b16 %v630, %v626
    %v1135 = vpack.c.b16 %v631, %v627
    %v1136 = vpack.c.b16 %v632, %v628
    %v1137 = vpack.c.b16 %v633, %v629
    %v1138 = vpack.c.b16 %v638, %v634
    %v1139 = vpack.c.b16 %v639, %v635
    %v1140 = vpack.c.b16 %v640, %v636
    %v1141 = vpack.c.b16 %v641, %v637
    %v1142 = vpack.c.b16 %v646, %v642
    %v1143 = vpack.c.b16 %v647, %v643
    %v1144 = vpack.c.b16 %v648, %v644
    %v1145 = vpack.c.b16 %v649, %v645
    %v1146 = vpack.c.b16 %v654, %v650
    %v1147 = vpack.c.b16 %v655, %v651
    %v1148 = vpack.c.b16 %v656, %v652
    %v1149 = vpack.c.b16 %v657, %v653
    %v1150 = vpack.c.b16 %v662, %v658
    %v1151 = vpack.c.b16 %v663, %v659
    %v1152 = vpack.c.b16 %v664, %v660
    %v1153 = vpack.c.b16 %v665, %v661
    %v1154 = vpack.c.b16 %v670, %v666
    %v1155 = vpack.c.b16 %v671, %v667
    %v1156 = vpack.c.b16 %v672, %v668
    %v1157 = vpack.c.b16 %v673, %v669
    %v1158 = vpack.c.b16 %v678, %v674
    %v1159 = vpack.c.b16 %v679, %v675
    %v1160 = vpack.c.b16 %v680, %v676
    %v1161 = vpack.c.b16 %v681, %v677
    %v1162 = vpack.c.b16 %v686, %v682
    %v1163 = vpack.c.b16 %v687, %v683
    %v1164 = vpack.c.b16 %v688, %v684
    %v1165 = vpack.c.b16 %v689, %v685
    %v1166 = vpack.c.b16 %v694, %v690
    %v1167 = vpack.c.b16 %v695, %v691
    %v1168 = vpack.c.b16 %v696, %v692
    %v1169 = vpack.c.b16 %v697, %v693
    %v1170 = vpack.c.b16 %v702, %v698
    %v1171 = vpack.c.b16 %v703, %v699
    %v1172 = vpack.c.b16 %v704, %v700
    %v1173 = vpack.c.b16 %v705, %v701
    %v1174 = vpack.c.b16 %v710, %v706
    %v1175 = vpack.c.b16 %v711, %v707
    %v1176 = vpack.c.b16 %v712, %v708
    %v1177 = vpack.c.b16 %v713, %v709
    %v1178 = vpack.c.b16 %v718, %v714
    %v1179 = vpack.c.b16 %v719, %v715
    %v1180 = vpack.c.b16 %v720, %v716
    %v1181 = vpack.c.b16 %v721, %v717
    %v1182 = vpack.c.b16 %v726, %v722
    %v1183 = vpack.c.b16 %v727, %v723
    %v1184 = vpack.c.b16 %v728, %v724
    %v1185 = vpack.c.b16 %v729, %v725
    %v1186 = vpack.c.b16 %v734, %v730
    %v1187 = vpack.c.b16 %v735, %v731
    %v1188 = vpack.c.b16 %v736, %v732
    %v1189 = vpack.c.b16 %v737, %v733
    %v1190 = vpack.c.b16 %v742, %v738
    %v1191 = vpack.c.b16 %v743, %v739
    %v1192 = vpack.c.b16 %v744, %v740
    %v1193 = vpack.c.b16 %v745, %v741
    %v1194 = vpack.c.b16 %v750, %v746
    %v1195 = vpack.c.b16 %v751, %v747
    %v1196 = vpack.c.b16 %v752, %v748
    %v1197 = vpack.c.b16 %v753, %v749
    %v1198 = vpack.c.b16 %v758, %v754
    %v1199 = vpack.c.b16 %v759, %v755
    %v1200 = vpack.c.b16 %v760, %v756
    %v1201 = vpack.c.b16 %v761, %v757
    %v1202 = vpack.c.b16 %v766, %v762
    %v1203 = vpack.c.b16 %v767, %v763
    %v1204 = vpack.c.b16 %v768, %v764
    %v1205 = vpack.c.b16 %v769, %v765
    %v1206 = vpack.c.b16 %v774, %v770
    %v1207 = vpack.c.b16 %v775, %v771
    %v1208 = vpack.c.b16 %v776, %v772
    %v1209 = vpack.c.b16 %v777, %v773
    %v1210 = vpack.c.b16 %v782, %v778
    %v1211 = vpack.c.b16 %v783, %v779
    %v1212 = vpack.c.b16 %v784, %v780
    %v1213 = vpack.c.b16 %v785, %v781
    %v1214 = vpack.c.b16 %v790, %v786
    %v1215 = vpack.c.b16 %v791, %v787
    %v1216 = vpack.c.b16 %v792, %v788
    %v1217 = vpack.c.b16 %v793, %v789
    %v1218 = vpack.c.b16 %v798, %v794
    %v1219 = vpack.c.b16 %v799, %v795
    %v1220 = vpack.c.b16 %v800, %v796
    %v1221 = vpack.c.b16 %v801, %v797
    %v1222 = vpack.c.b16 %v806, %v802
    %v1223 = vpack.c.b16 %v807, %v803
    %v1224 = vpack.c.b16 %v808, %v804
    %v1225 = vpack.c.b16 %v809, %v805
    %v1226 = vpack.c.b16 %v814, %v810
    %v1227 = vpack.c.b16 %v815, %v811
    %v1228 = vpack.c.b16 %v816, %v812
    %v1229 = vpack.c.b16 %v817, %v813
    %v1230 = vpack.c.b16 %v822, %v818
    %v1231 = vpack.c.b16 %v823, %v819
    %v1232 = vpack.c.b16 %v824, %v820
    %v1233 = vpack.c.b16 %v825, %v821
    %v1234 = vpack.c.b16 %v830, %v826
    %v1235 = vpack.c.b16 %v831, %v827
    %v1236 = vpack.c.b16 %v832, %v828
    %v1237 = vpack.c.b16 %v833, %v829
    %v1238 = vpack.c.b16 %v838, %v834
    %v1239 = vpack.c.b16 %v839, %v835
    %v1240 = vpack.c.b16 %v840, %v836
    %v1241 = vpack.c.b16 %v841, %v837
    %v1242 = vpack.c.b16 %v846, %v842
    %v1243 = vpack.c.b16 %v847, %v843
    %v1244 = vpack.c.b16 %v848, %v844
    %v1245 = vpack.c.b16 %v849, %v845
    %v1246 = vpack.c.b16 %v854, %v850
    %v1247 = vpack.c.b16 %v855, %v851
    %v1248 = vpack.c.b16 %v856, %v852
    %v1249 = vpack.c.b16 %v857, %v853
    %v1250 = vpack.c.b16 %v862, %v858
    %v1251 = vpack.c.b16 %v863, %v859
    %v1252 = vpack.c.b16 %v864, %v860
    %v1253 = vpack.c.b16 %v865, %v861
    %v1254 = vpack.c.b16 %v870, %v866
    %v1255 = vpack.c.b16 %v871, %v867
    %v1256 = vpack.c.b16 %v872, %v868
    %v1257 = vpack.c.b16 %v873, %v869
    %v1258 = vpack.c.b16 %v878, %v874
    %v1259 = vpack.c.b16 %v879, %v875
    %v1260 = vpack.c.b16 %v880, %v876
    %v1261 = vpack.c.b16 %v881, %v877
    %v1262 = vpack.c.b16 %v886, %v882
    %v1263 = vpack.c.b16 %v887, %v883
    %v1264 = vpack.c.b16 %v888, %v884
    %v1265 = vpack.c.b16 %v889, %v885
    %v1266 = vpack.c.b16 %v894, %v890
    %v1267 = vpack.c.b16 %v895, %v891
    %v1268 = vpack.c.b16 %v896, %v892
    %v1269 = vpack.c.b16 %v897, %v893
    %v1270 = vpack.c.b16 %v902, %v898
    %v1271 = vpack.c.b16 %v903, %v899
    %v1272 = vpack.c.b16 %v904, %v900
    %v1273 = vpack.c.b16 %v905, %v901
    %v1274 = vpack.c.b16 %v910, %v906
    %v1275 = vpack.c.b16 %v911, %v907
    %v1276 = vpack.c.b16 %v912, %v908
    %v1277 = vpack.c.b16 %v913, %v909
    %v1278 = vpack.c.b16 %v918, %v914
    %v1279 = vpack.c.b16 %v919, %v915
    %v1280 = vpack.c.b16 %v920, %v916
    %v1281 = vpack.c.b16 %v921, %v917
    %v1282 = vpack.c.b16 %v926, %v922
    %v1283 = vpack.c.b16 %v927, %v923
    %v1284 = vpack.c.b16 %v928, %v924
    %v1285 = vpack.c.b16 %v929, %v925
    %v1286 = vpack.c.b16 %v934, %v930
    %v1287 = vpack.c.b16 %v935, %v931
    %v1288 = vpack.c.b16 %v936, %v932
    %v1289 = vpack.c.b16 %v937, %v933
    %v1290 = vpack.c.b16 %v942, %v938
    %v1291 = vpack.c.b16 %v943, %v939
    %v1292 = vpack.c.b16 %v944, %v940
    %v1293 = vpack.c.b16 %v945, %v941
    %v1294 = vpack.c.b16 %v950, %v946
    %v1295 = vpack.c.b16 %v951, %v947
    %v1296 = vpack.c.b16 %v952, %v948
    %v1297 = vpack.c.b16 %v953, %v949
    %v1298 = vpack.c.b16 %v958, %v954
    %v1299 = vpack.c.b16 %v959, %v955
    %v1300 = vpack.c.b16 %v960, %v956
    %v1301 = vpack.c.b16 %v961, %v957
    %v1302 = vpack.c.b16 %v966, %v962
    %v1303 = vpack.c.b16 %v967, %v963
    %v1304 = vpack.c.b16 %v968, %v964
    %v1305 = vpack.c.b16 %v969, %v965
    %v1306 = vpack.c.b16 %v974, %v970
    %v1307 = vpack.c.b16 %v975, %v971
    %v1308 = vpack.c.b16 %v976, %v972
    %v1309 = vpack.c.b16 %v977, %v973
    %v1310 = vpack.c.b16 %v982, %v978
    %v1311 = vpack.c.b16 %v983, %v979
    %v1312 = vpack.c.b16 %v984, %v980
    %v1313 = vpack.c.b16 %v985, %v981
    %v1314 = vpack.c.b16 %v990, %v986
    %v1315 = vpack.c.b16 %v991, %v987
    %v1316 = vpack.c.b16 %v992, %v988
    %v1317 = vpack.c.b16 %v993, %v989
    %v1318 = vpack.c.b16 %v998, %v994
    %v1319 = vpack.c.b16 %v999, %v995
    %v1320 = vpack.c.b16 %v1000, %v996
    %v1321 = vpack.c.b16 %v1001, %v997
    %v1322 = vpack.c.b16 %v1006, %v1002
    %v1323 = vpack.c.b16 %v1007, %v1003
    %v1324 = vpack.c.b16 %v1008, %v1004
    %v1325 = vpack.c.b16 %v1009, %v1005
    %v1326 = vpack.c.b16 %v1014, %v1010
    %v1327 = vpack.c.b16 %v1015, %v1011
    %v1328 = vpack.c.b16 %v1016, %v1012
    %v1329 = vpack.c.b16 %v1017, %v1013
    %v1330 = vpack.c.b16 %v1022, %v1018
    %v1331 = vpack.c.b16 %v1023, %v1019
    %v1332 = vpack.c.b16 %v1024, %v1020
    %v1333 = vpack.c.b16 %v1025, %v1021
    %v1334 = vpack.c.b16 %v1030, %v1026
    %v1335 = vpack.c.b16 %v1031, %v1027
    %v1336 = vpack.c.b16 %v1032, %v1028
    %v1337 = vpack.c.b16 %v1033, %v1029
    %v1338 = vpack.c.b16 %v1038, %v1034
    %v1339 = vpack.c.b16 %v1039, %v1035
    %v1340 = vpack.c.b16 %v1040, %v1036
    %v1341 = vpack.c.b16 %v1041, %v1037
    %v1342 = vpack.c.b16 %v1046, %v1042
    %v1343 = vpack.c.b16 %v1047, %v1043
    %v1344 = vpack.c.b16 %v1048, %v1044
    %v1345 = vpack.c.b16 %v1049, %v1045
    %v1346 = vpack.c.b16 %v1054, %v1050
    %v1347 = vpack.c.b16 %v1055, %v1051
    %v1348 = vpack.c.b16 %v1056, %v1052
    %v1349 = vpack.c.b16 %v1057, %v1053
    %v1350 = vpack.c.b16 %v1062, %v1058
    %v1351 = vpack.c.b16 %v1063, %v1059
    %v1352 = vpack.c.b16 %v1064, %v1060
    %v1353 = vpack.c.b16 %v1065, %v1061
    %v1354 = vpack.c.b16 %v1070, %v1066
    %v1355 = vpack.c.b16 %v1071, %v1067
    %v1356 = vpack.c.b16 %v1072, %v1068
    %v1357 = vpack.c.b16 %v1073, %v1069
    %v1358 = vpack.c.b16 %v1078, %v1074
    %v1359 = vpack.c.b16 %v1079, %v1075
    %v1360 = vpack.c.b16 %v1080, %v1076
    %v1361 = vpack.c.b16 %v1081, %v1077
    %v1362 = vpack.c.b16 %v1086, %v1082
    %v1363 = vpack.c.b16 %v1087, %v1083
    %v1364 = vpack.c.b16 %v1088, %v1084
    %v1365 = vpack.c.b16 %v1089, %v1085
    %v1366 = vpack.c.b16 %v1094, %v1090
    %v1367 = vpack.c.b16 %v1095, %v1091
    %v1368 = vpack.c.b16 %v1096, %v1092
    %v1369 = vpack.c.b16 %v1097, %v1093
    %v1370 = vpack.c.b16 %v1102, %v1098
    %v1371 = vpack.c.b16 %v1103, %v1099
    %v1372 = vpack.c.b16 %v1104, %v1100
    %v1373 = vpack.c.b16 %v1105, %v1101
    %v1374 = vpack.c.b16 %v1110, %v1106
    %v1375 = vpack.c.b16 %v1111, %v1107
    %v1376 = vpack.c.b16 %v1112, %v1108
    %v1377 = vpack.c.b16 %v1113, %v1109
    %v1378 = vpack.c.b16 %v1118, %v1114
    %v1379 = vpack.c.b16 %v1119, %v1115
    %v1380 = vpack.c.b16 %v1120, %v1116
    %v1381 = vpack.c.b16 %v1121, %v1117
    %v1382 = vpack.c.b16 %v1126, %v1122
    %v1383 = vpack.c.b16 %v1127, %v1123
    %v1384 = vpack.c.b16 %v1128, %v1124
    %v1385 = vpack.c.b16 %v1129, %v1125
    %1642 = vmatprep.subr.bf16.mxu0 %v1131
    %1643 = vmatpush1.bf16.msra.mxu0 %v1130
    %1644 = vmatprep.subr.bf16.mxu0 %v1135
    %1645 = vmatpush1.bf16.msra.mxu0 %v1134
    %1646 = vmatprep.subr.bf16.mxu0 %v1139
    %1647 = vmatpush1.bf16.msra.mxu0 %v1138
    %1648 = vmatprep.subr.bf16.mxu0 %v1143
    %1649 = vmatpush1.bf16.msra.mxu0 %v1142
    %1650 = vmatprep.subr.bf16.mxu0 %v1147
    %1651 = vmatpush1.bf16.msra.mxu0 %v1146
    %1652 = vmatprep.subr.bf16.mxu0 %v1151
    %1653 = vmatpush1.bf16.msra.mxu0 %v1150
    %1654 = vmatprep.subr.bf16.mxu0 %v1155
    %1655 = vmatpush1.bf16.msra.mxu0 %v1154
    %1656 = vmatprep.subr.bf16.mxu0 %v1159
    %1657 = vmatpush1.bf16.msra.mxu0 %v1158
    %1658 = vmatprep.subr.bf16.mxu0 %v1163
    %1659 = vmatpush1.bf16.msra.mxu0 %v1162
    %1660 = vmatprep.subr.bf16.mxu0 %v1167
    %1661 = vmatpush1.bf16.msra.mxu0 %v1166
    %1662 = vmatprep.subr.bf16.mxu0 %v1171
    %1663 = vmatpush1.bf16.msra.mxu0 %v1170
    %1664 = vmatprep.subr.bf16.mxu0 %v1175
    %1665 = vmatpush1.bf16.msra.mxu0 %v1174
    %1666 = vmatprep.subr.bf16.mxu0 %v1179
    %1667 = vmatpush1.bf16.msra.mxu0 %v1178
    %1668 = vmatprep.subr.bf16.mxu0 %v1183
    %1669 = vmatpush1.bf16.msra.mxu0 %v1182
    %1670 = vmatprep.subr.bf16.mxu0 %v1187
    %1671 = vmatpush1.bf16.msra.mxu0 %v1186
    %1672 = vmatprep.subr.bf16.mxu0 %v1191
    %1673 = vmatpush1.bf16.msra.mxu0 %v1190
    %1674 = vmatprep.mubr.bf16.mxu0 %v77
    %1675 = vmatmul.mubr.bf16.gmra.mrb[0].mxu0 %v76
    %v1676 = vpop.f32.mrb[0].mxu0
    %v1677 = vadd.f32 %v345, %v1676
    %v1678 = vpop.f32.mrb[0].mxu0
    %v1679 = vadd.f32 %v349, %v1678
    %v1680 = vpop.f32.mrb[0].mxu0
    %v1681 = vpop.f32.mrb[0].mxu0
    %1682 = vdwg.mxu0
    %1683 = vmatprep.subr.bf16.mxu0 %v1195
    %1684 = vmatpush1.bf16.msra.mxu0 %v1194
    %1685 = vmatprep.subr.bf16.mxu0 %v1199
    %1686 = vmatpush1.bf16.msra.mxu0 %v1198
    %1687 = vmatprep.subr.bf16.mxu0 %v1203
    %1688 = vmatpush1.bf16.msra.mxu0 %v1202
    %1689 = vmatprep.subr.bf16.mxu0 %v1207
    %1690 = vmatpush1.bf16.msra.mxu0 %v1206
    %1691 = vmatprep.subr.bf16.mxu0 %v1211
    %1692 = vmatpush1.bf16.msra.mxu0 %v1210
    %1693 = vmatprep.subr.bf16.mxu0 %v1215
    %1694 = vmatpush1.bf16.msra.mxu0 %v1214
    %1695 = vmatprep.subr.bf16.mxu0 %v1219
    %1696 = vmatpush1.bf16.msra.mxu0 %v1218
    %1697 = vmatprep.subr.bf16.mxu0 %v1223
    %1698 = vmatpush1.bf16.msra.mxu0 %v1222
    %1699 = vmatprep.subr.bf16.mxu0 %v1227
    %1700 = vmatpush1.bf16.msra.mxu0 %v1226
    %1701 = vmatprep.subr.bf16.mxu0 %v1231
    %1702 = vmatpush1.bf16.msra.mxu0 %v1230
    %1703 = vmatprep.subr.bf16.mxu0 %v1235
    %1704 = vmatpush1.bf16.msra.mxu0 %v1234
    %1705 = vmatprep.subr.bf16.mxu0 %v1239
    %1706 = vmatpush1.bf16.msra.mxu0 %v1238
    %1707 = vmatprep.subr.bf16.mxu0 %v1243
    %1708 = vmatpush1.bf16.msra.mxu0 %v1242
    %1709 = vmatprep.subr.bf16.mxu0 %v1247
    %1710 = vmatpush1.bf16.msra.mxu0 %v1246
    %1711 = vmatprep.subr.bf16.mxu0 %v1251
    %1712 = vmatpush1.bf16.msra.mxu0 %v1250
    %1713 = vmatprep.subr.bf16.mxu0 %v1255
    %1714 = vmatpush1.bf16.msra.mxu0 %v1254
    %1715 = vmatprep.mubr.bf16.mxu0 %v79
    %1716 = vmatmul.mubr.bf16.gmra.mrb[0].mxu0 %v78
    %v1717 = vpop.f32.mrb[0].mxu0
    %v1718 = vadd.f32 %v1677, %v1717
    %v1719 = vpop.f32.mrb[0].mxu0
    %v1720 = vadd.f32 %v1679, %v1719
    %v1721 = vpop.f32.mrb[0].mxu0
    %v1722 = vpop.f32.mrb[0].mxu0
    %1723 = vdwg.mxu0
    %1724 = vmatprep.subr.bf16.mxu0 %v1259
    %1725 = vmatpush1.bf16.msra.mxu0 %v1258
    %1726 = vmatprep.subr.bf16.mxu0 %v1263
    %1727 = vmatpush1.bf16.msra.mxu0 %v1262
    %1728 = vmatprep.subr.bf16.mxu0 %v1267
    %1729 = vmatpush1.bf16.msra.mxu0 %v1266
    %1730 = vmatprep.subr.bf16.mxu0 %v1271
    %1731 = vmatpush1.bf16.msra.mxu0 %v1270
    %1732 = vmatprep.subr.bf16.mxu0 %v1275
    %1733 = vmatpush1.bf16.msra.mxu0 %v1274
    %1734 = vmatprep.subr.bf16.mxu0 %v1279
    %1735 = vmatpush1.bf16.msra.mxu0 %v1278
    %1736 = vmatprep.subr.bf16.mxu0 %v1283
    %1737 = vmatpush1.bf16.msra.mxu0 %v1282
    %1738 = vmatprep.subr.bf16.mxu0 %v1287
    %1739 = vmatpush1.bf16.msra.mxu0 %v1286
    %1740 = vmatprep.subr.bf16.mxu0 %v1291
    %1741 = vmatpush1.bf16.msra.mxu0 %v1290
    %1742 = vmatprep.subr.bf16.mxu0 %v1295
    %1743 = vmatpush1.bf16.msra.mxu0 %v1294
    %1744 = vmatprep.subr.bf16.mxu0 %v1299
    %1745 = vmatpush1.bf16.msra.mxu0 %v1298
    %1746 = vmatprep.subr.bf16.mxu0 %v1303
    %1747 = vmatpush1.bf16.msra.mxu0 %v1302
    %1748 = vmatprep.subr.bf16.mxu0 %v1307
    %1749 = vmatpush1.bf16.msra.mxu0 %v1306
    %1750 = vmatprep.subr.bf16.mxu0 %v1311
    %1751 = vmatpush1.bf16.msra.mxu0 %v1310
    %1752 = vmatprep.subr.bf16.mxu0 %v1315
    %1753 = vmatpush1.bf16.msra.mxu0 %v1314
    %1754 = vmatprep.subr.bf16.mxu0 %v1319
    %1755 = vmatpush1.bf16.msra.mxu0 %v1318
    %1756 = vmatprep.mubr.bf16.mxu0 %v81
    %1757 = vmatmul.mubr.bf16.gmra.mrb[0].mxu0 %v80
    %v1758 = vpop.f32.mrb[0].mxu0
    %v1759 = vadd.f32 %v1718, %v1758
    %v1760 = vpop.f32.mrb[0].mxu0
    %v1761 = vadd.f32 %v1720, %v1760
    %v1762 = vpop.f32.mrb[0].mxu0
    %v1763 = vpop.f32.mrb[0].mxu0
    %1764 = vdwg.mxu0
    %1765 = vmatprep.subr.bf16.mxu0 %v1323
    %1766 = vmatpush1.bf16.msra.mxu0 %v1322
    %1767 = vmatprep.subr.bf16.mxu0 %v1327
    %1768 = vmatpush1.bf16.msra.mxu0 %v1326
    %1769 = vmatprep.subr.bf16.mxu0 %v1331
    %1770 = vmatpush1.bf16.msra.mxu0 %v1330
    %1771 = vmatprep.subr.bf16.mxu0 %v1335
    %1772 = vmatpush1.bf16.msra.mxu0 %v1334
    %1773 = vmatprep.subr.bf16.mxu0 %v1339
    %1774 = vmatpush1.bf16.msra.mxu0 %v1338
    %1775 = vmatprep.subr.bf16.mxu0 %v1343
    %1776 = vmatpush1.bf16.msra.mxu0 %v1342
    %1777 = vmatprep.subr.bf16.mxu0 %v1347
    %1778 = vmatpush1.bf16.msra.mxu0 %v1346
    %1779 = vmatprep.subr.bf16.mxu0 %v1351
    %1780 = vmatpush1.bf16.msra.mxu0 %v1350
    %1781 = vmatprep.subr.bf16.mxu0 %v1355
    %1782 = vmatpush1.bf16.msra.mxu0 %v1354
    %1783 = vmatprep.subr.bf16.mxu0 %v1359
    %1784 = vmatpush1.bf16.msra.mxu0 %v1358
    %1785 = vmatprep.subr.bf16.mxu0 %v1363
    %1786 = vmatpush1.bf16.msra.mxu0 %v1362
    %1787 = vmatprep.subr.bf16.mxu0 %v1367
    %1788 = vmatpush1.bf16.msra.mxu0 %v1366
    %1789 = vmatprep.subr.bf16.mxu0 %v1371
    %1790 = vmatpush1.bf16.msra.mxu0 %v1370
    %1791 = vmatprep.subr.bf16.mxu0 %v1375
    %1792 = vmatpush1.bf16.msra.mxu0 %v1374
    %1793 = vmatprep.subr.bf16.mxu0 %v1379
    %1794 = vmatpush1.bf16.msra.mxu0 %v1378
    %1795 = vmatprep.subr.bf16.mxu0 %v1383
    %1796 = vmatpush1.bf16.msra.mxu0 %v1382
    %1797 = vmatprep.mubr.bf16.mxu0 %v83
    %1798 = vmatmul.mubr.bf16.gmra.mrb[0].mxu0 %v82
    %v1799 = vpop.f32.mrb[0].mxu0
    %v1800 = vadd.f32 %v1759, %v1799
    %v1801 = vpop.f32.mrb[0].mxu0
    %v1802 = vadd.f32 %v1761, %v1801
    %v1803 = vpop.f32.mrb[0].mxu0
    %v1804 = vpop.f32.mrb[0].mxu0
    %1805 = vdwg.mxu0
    %1806 = vmatprep.subr.bf16.mxu0 %v1133
    %1807 = vmatpush1.bf16.msra.mxu0 %v1132
    %1808 = vmatprep.subr.bf16.mxu0 %v1137
    %1809 = vmatpush1.bf16.msra.mxu0 %v1136
    %1810 = vmatprep.subr.bf16.mxu0 %v1141
    %1811 = vmatpush1.bf16.msra.mxu0 %v1140
    %1812 = vmatprep.subr.bf16.mxu0 %v1145
    %1813 = vmatpush1.bf16.msra.mxu0 %v1144
    %1814 = vmatprep.subr.bf16.mxu0 %v1149
    %1815 = vmatpush1.bf16.msra.mxu0 %v1148
    %1816 = vmatprep.subr.bf16.mxu0 %v1153
    %1817 = vmatpush1.bf16.msra.mxu0 %v1152
    %1818 = vmatprep.subr.bf16.mxu0 %v1157
    %1819 = vmatpush1.bf16.msra.mxu0 %v1156
    %1820 = vmatprep.subr.bf16.mxu0 %v1161
    %1821 = vmatpush1.bf16.msra.mxu0 %v1160
    %1822 = vmatprep.subr.bf16.mxu0 %v1165
    %1823 = vmatpush1.bf16.msra.mxu0 %v1164
    %1824 = vmatprep.subr.bf16.mxu0 %v1169
    %1825 = vmatpush1.bf16.msra.mxu0 %v1168
    %1826 = vmatprep.subr.bf16.mxu0 %v1173
    %1827 = vmatpush1.bf16.msra.mxu0 %v1172
    %1828 = vmatprep.subr.bf16.mxu0 %v1177
    %1829 = vmatpush1.bf16.msra.mxu0 %v1176
    %1830 = vmatprep.subr.bf16.mxu0 %v1181
    %1831 = vmatpush1.bf16.msra.mxu0 %v1180
    %1832 = vmatprep.subr.bf16.mxu0 %v1185
    %1833 = vmatpush1.bf16.msra.mxu0 %v1184
    %1834 = vmatprep.subr.bf16.mxu0 %v1189
    %1835 = vmatpush1.bf16.msra.mxu0 %v1188
    %1836 = vmatprep.subr.bf16.mxu0 %v1193
    %1837 = vmatpush1.bf16.msra.mxu0 %v1192
    %1838 = vmatprep.mubr.bf16.mxu0 %v77
    %1839 = vmatmul.mubr.bf16.gmra.mrb[0].mxu0 %v76
    %v1840 = vpop.f32.mrb[0].mxu0
    %v1841 = vadd.f32 %v353, %v1840
    %v1842 = vpop.f32.mrb[0].mxu0
    %v1843 = vadd.f32 %v357, %v1842
    %v1844 = vpop.f32.mrb[0].mxu0
    %v1845 = vpop.f32.mrb[0].mxu0
    %1846 = vdwg.mxu0
    %1847 = vmatprep.subr.bf16.mxu0 %v1197
    %1848 = vmatpush1.bf16.msra.mxu0 %v1196
    %1849 = vmatprep.subr.bf16.mxu0 %v1201
    %1850 = vmatpush1.bf16.msra.mxu0 %v1200
    %1851 = vmatprep.subr.bf16.mxu0 %v1205
    %1852 = vmatpush1.bf16.msra.mxu0 %v1204
    %1853 = vmatprep.subr.bf16.mxu0 %v1209
    %1854 = vmatpush1.bf16.msra.mxu0 %v1208
    %1855 = vmatprep.subr.bf16.mxu0 %v1213
    %1856 = vmatpush1.bf16.msra.mxu0 %v1212
    %1857 = vmatprep.subr.bf16.mxu0 %v1217
    %1858 = vmatpush1.bf16.msra.mxu0 %v1216
    %1859 = vmatprep.subr.bf16.mxu0 %v1221
    %1860 = vmatpush1.bf16.msra.mxu0 %v1220
    %1861 = vmatprep.subr.bf16.mxu0 %v1225
    %1862 = vmatpush1.bf16.msra.mxu0 %v1224
    %1863 = vmatprep.subr.bf16.mxu0 %v1229
    %1864 = vmatpush1.bf16.msra.mxu0 %v1228
    %1865 = vmatprep.subr.bf16.mxu0 %v1233
    %1866 = vmatpush1.bf16.msra.mxu0 %v1232
    %1867 = vmatprep.subr.bf16.mxu0 %v1237
    %1868 = vmatpush1.bf16.msra.mxu0 %v1236
    %1869 = vmatprep.subr.bf16.mxu0 %v1241
    %1870 = vmatpush1.bf16.msra.mxu0 %v1240
    %1871 = vmatprep.subr.bf16.mxu0 %v1245
    %1872 = vmatpush1.bf16.msra.mxu0 %v1244
    %1873 = vmatprep.subr.bf16.mxu0 %v1249
    %1874 = vmatpush1.bf16.msra.mxu0 %v1248
    %1875 = vmatprep.subr.bf16.mxu0 %v1253
    %1876 = vmatpush1.bf16.msra.mxu0 %v1252
    %1877 = vmatprep.subr.bf16.mxu0 %v1257
    %1878 = vmatpush1.bf16.msra.mxu0 %v1256
    %1879 = vmatprep.mubr.bf16.mxu0 %v79
    %1880 = vmatmul.mubr.bf16.gmra.mrb[0].mxu0 %v78
    %v1881 = vpop.f32.mrb[0].mxu0
    %v1882 = vadd.f32 %v1841, %v1881
    %v1883 = vpop.f32.mrb[0].mxu0
    %v1884 = vadd.f32 %v1843, %v1883
    %v1885 = vpop.f32.mrb[0].mxu0
    %v1886 = vpop.f32.mrb[0].mxu0
    %1887 = vdwg.mxu0
    %1888 = vmatprep.subr.bf16.mxu0 %v1261
    %1889 = vmatpush1.bf16.msra.mxu0 %v1260
    %1890 = vmatprep.subr.bf16.mxu0 %v1265
    %1891 = vmatpush1.bf16.msra.mxu0 %v1264
    %1892 = vmatprep.subr.bf16.mxu0 %v1269
    %1893 = vmatpush1.bf16.msra.mxu0 %v1268
    %1894 = vmatprep.subr.bf16.mxu0 %v1273
    %1895 = vmatpush1.bf16.msra.mxu0 %v1272
    %1896 = vmatprep.subr.bf16.mxu0 %v1277
    %1897 = vmatpush1.bf16.msra.mxu0 %v1276
    %1898 = vmatprep.subr.bf16.mxu0 %v1281
    %1899 = vmatpush1.bf16.msra.mxu0 %v1280
    %1900 = vmatprep.subr.bf16.mxu0 %v1285
    %1901 = vmatpush1.bf16.msra.mxu0 %v1284
    %1902 = vmatprep.subr.bf16.mxu0 %v1289
    %1903 = vmatpush1.bf16.msra.mxu0 %v1288
    %1904 = vmatprep.subr.bf16.mxu0 %v1293
    %1905 = vmatpush1.bf16.msra.mxu0 %v1292
    %1906 = vmatprep.subr.bf16.mxu0 %v1297
    %1907 = vmatpush1.bf16.msra.mxu0 %v1296
    %1908 = vmatprep.subr.bf16.mxu0 %v1301
    %1909 = vmatpush1.bf16.msra.mxu0 %v1300
    %1910 = vmatprep.subr.bf16.mxu0 %v1305
    %1911 = vmatpush1.bf16.msra.mxu0 %v1304
    %1912 = vmatprep.subr.bf16.mxu0 %v1309
    %1913 = vmatpush1.bf16.msra.mxu0 %v1308
    %1914 = vmatprep.subr.bf16.mxu0 %v1313
    %1915 = vmatpush1.bf16.msra.mxu0 %v1312
    %1916 = vmatprep.subr.bf16.mxu0 %v1317
    %1917 = vmatpush1.bf16.msra.mxu0 %v1316
    %1918 = vmatprep.subr.bf16.mxu0 %v1321
    %1919 = vmatpush1.bf16.msra.mxu0 %v1320
    %1920 = vmatprep.mubr.bf16.mxu0 %v81
    %1921 = vmatmul.mubr.bf16.gmra.mrb[0].mxu0 %v80
    %v1922 = vpop.f32.mrb[0].mxu0
    %v1923 = vadd.f32 %v1882, %v1922
    %v1924 = vpop.f32.mrb[0].mxu0
    %v1925 = vadd.f32 %v1884, %v1924
    %v1926 = vpop.f32.mrb[0].mxu0
    %v1927 = vpop.f32.mrb[0].mxu0
    %1928 = vdwg.mxu0
    %1929 = vmatprep.subr.bf16.mxu0 %v1325
    %1930 = vmatpush1.bf16.msra.mxu0 %v1324
    %1931 = vmatprep.subr.bf16.mxu0 %v1329
    %1932 = vmatpush1.bf16.msra.mxu0 %v1328
    %1933 = vmatprep.subr.bf16.mxu0 %v1333
    %1934 = vmatpush1.bf16.msra.mxu0 %v1332
    %1935 = vmatprep.subr.bf16.mxu0 %v1337
    %1936 = vmatpush1.bf16.msra.mxu0 %v1336
    %1937 = vmatprep.subr.bf16.mxu0 %v1341
    %1938 = vmatpush1.bf16.msra.mxu0 %v1340
    %1939 = vmatprep.subr.bf16.mxu0 %v1345
    %1940 = vmatpush1.bf16.msra.mxu0 %v1344
    %1941 = vmatprep.subr.bf16.mxu0 %v1349
    %1942 = vmatpush1.bf16.msra.mxu0 %v1348
    %1943 = vmatprep.subr.bf16.mxu0 %v1353
    %1944 = vmatpush1.bf16.msra.mxu0 %v1352
    %1945 = vmatprep.subr.bf16.mxu0 %v1357
    %1946 = vmatpush1.bf16.msra.mxu0 %v1356
    %1947 = vmatprep.subr.bf16.mxu0 %v1361
    %1948 = vmatpush1.bf16.msra.mxu0 %v1360
    %1949 = vmatprep.subr.bf16.mxu0 %v1365
    %1950 = vmatpush1.bf16.msra.mxu0 %v1364
    %1951 = vmatprep.subr.bf16.mxu0 %v1369
    %1952 = vmatpush1.bf16.msra.mxu0 %v1368
    %1953 = vmatprep.subr.bf16.mxu0 %v1373
    %1954 = vmatpush1.bf16.msra.mxu0 %v1372
    %1955 = vmatprep.subr.bf16.mxu0 %v1377
    %1956 = vmatpush1.bf16.msra.mxu0 %v1376
    %1957 = vmatprep.subr.bf16.mxu0 %v1381
    %1958 = vmatpush1.bf16.msra.mxu0 %v1380
    %1959 = vmatprep.subr.bf16.mxu0 %v1385
    %1960 = vmatpush1.bf16.msra.mxu0 %v1384
    %1961 = vmatprep.mubr.bf16.mxu0 %v83
    %1962 = vmatmul.mubr.bf16.gmra.mrb[0].mxu0 %v82
    %v1963 = vpop.f32.mrb[0].mxu0
    %v1964 = vadd.f32 %v1923, %v1963
    %v1965 = vpop.f32.mrb[0].mxu0
    %v1966 = vadd.f32 %v1925, %v1965
    %v1967 = vpop.f32.mrb[0].mxu0
    %v1968 = vpop.f32.mrb[0].mxu0
    %1969 = vdwg.mxu0
    %v1970 = vmax.f32 %v1800, 0.0
    %v1971 = vmax.f32 %v1802, 0.0
    %v1972 = vmax.f32 %v1964, 0.0
    %v1973 = vmax.f32 %v1966, 0.0
    %v1974 = vpack.c.bf16 %v1970, %v1970
    %v1975 = vpack.c.bf16 %v1971, %v1971
    %v1976 = vpack.c.bf16 %v1972, %v1972
    %v1977 = vpack.c.bf16 %v1973, %v1973
    %v1978 = vld [vmem:[%s4] sm:$0xff]
    %v1979 = vld [vmem:[%s4 + $0x8] sm:$0xff]
    %v1980 = vld [vmem:[%s4 + $0x10] sm:$0xff]
    %v1981 = vld [vmem:[%s4 + $0x18] sm:$0xff]
    %v1982 = vld [vmem:[%s4 + $0x20] sm:$0xff]
    %v1983 = vld [vmem:[%s4 + $0x28] sm:$0xff]
    %v1984 = vld [vmem:[%s4 + $0x30] sm:$0xff]
    %v1985 = vld [vmem:[%s4 + $0x38] sm:$0xff]
    %v1986 = vld [vmem:[%s4 + $0x40] sm:$0xff]
    %v1987 = vld [vmem:[%s4 + $0x48] sm:$0xff]
    %v1988 = vld [vmem:[%s4 + $0x50] sm:$0xff]
    %v1989 = vld [vmem:[%s4 + $0x58] sm:$0xff]
    %v1990 = vld [vmem:[%s4 + $0x60] sm:$0xff]
    %v1991 = vld [vmem:[%s4 + $0x68] sm:$0xff]
    %v1992 = vld [vmem:[%s4 + $0x70] sm:$0xff]
    %v1993 = vld [vmem:[%s4 + $0x78] sm:$0xff]
    %v1994 = vld [vmem:[%s4 + $0x80] sm:$0xff]
    %v1995 = vld [vmem:[%s4 + $0x88] sm:$0xff]
    %v1996 = vld [vmem:[%s4 + $0x90] sm:$0xff]
    %v1997 = vld [vmem:[%s4 + $0x98] sm:$0xff]
    %v1998 = vld [vmem:[%s4 + $0xa0] sm:$0xff]
    %v1999 = vld [vmem:[%s4 + $0xa8] sm:$0xff]
    %v2000 = vld [vmem:[%s4 + $0xb0] sm:$0xff]
    %v2001 = vld [vmem:[%s4 + $0xb8] sm:$0xff]
    %v2002 = vld [vmem:[%s4 + $0xc0] sm:$0xff]
    %v2003 = vld [vmem:[%s4 + $0xc8] sm:$0xff]
    %v2004 = vld [vmem:[%s4 + $0xd0] sm:$0xff]
    %v2005 = vld [vmem:[%s4 + $0xd8] sm:$0xff]
    %v2006 = vld [vmem:[%s4 + $0xe0] sm:$0xff]
    %v2007 = vld [vmem:[%s4 + $0xe8] sm:$0xff]
    %v2008 = vld [vmem:[%s4 + $0xf0] sm:$0xff]
    %v2009 = vld [vmem:[%s4 + $0xf8] sm:$0xff]
    %v2010 = vld [vmem:[%s4 + $0x100] sm:$0xff]
    %v2011 = vld [vmem:[%s4 + $0x108] sm:$0xff]
    %v2012 = vld [vmem:[%s4 + $0x110] sm:$0xff]
    %v2013 = vld [vmem:[%s4 + $0x118] sm:$0xff]
    %v2014 = vld [vmem:[%s4 + $0x120] sm:$0xff]
    %v2015 = vld [vmem:[%s4 + $0x128] sm:$0xff]
    %v2016 = vld [vmem:[%s4 + $0x130] sm:$0xff]
    %v2017 = vld [vmem:[%s4 + $0x138] sm:$0xff]
    %v2018 = vld [vmem:[%s4 + $0x140] sm:$0xff]
    %v2019 = vld [vmem:[%s4 + $0x148] sm:$0xff]
    %v2020 = vld [vmem:[%s4 + $0x150] sm:$0xff]
    %v2021 = vld [vmem:[%s4 + $0x158] sm:$0xff]
    %v2022 = vld [vmem:[%s4 + $0x160] sm:$0xff]
    %v2023 = vld [vmem:[%s4 + $0x168] sm:$0xff]
    %v2024 = vld [vmem:[%s4 + $0x170] sm:$0xff]
    %v2025 = vld [vmem:[%s4 + $0x178] sm:$0xff]
    %v2026 = vld [vmem:[%s4 + $0x180] sm:$0xff]
    %v2027 = vld [vmem:[%s4 + $0x188] sm:$0xff]
    %v2028 = vld [vmem:[%s4 + $0x190] sm:$0xff]
    %v2029 = vld [vmem:[%s4 + $0x198] sm:$0xff]
    %v2030 = vld [vmem:[%s4 + $0x1a0] sm:$0xff]
    %v2031 = vld [vmem:[%s4 + $0x1a8] sm:$0xff]
    %v2032 = vld [vmem:[%s4 + $0x1b0] sm:$0xff]
    %v2033 = vld [vmem:[%s4 + $0x1b8] sm:$0xff]
    %v2034 = vld [vmem:[%s4 + $0x1c0] sm:$0xff]
    %v2035 = vld [vmem:[%s4 + $0x1c8] sm:$0xff]
    %v2036 = vld [vmem:[%s4 + $0x1d0] sm:$0xff]
    %v2037 = vld [vmem:[%s4 + $0x1d8] sm:$0xff]
    %v2038 = vld [vmem:[%s4 + $0x1e0] sm:$0xff]
    %v2039 = vld [vmem:[%s4 + $0x1e8] sm:$0xff]
    %v2040 = vld [vmem:[%s4 + $0x1f0] sm:$0xff]
    %v2041 = vld [vmem:[%s4 + $0x1f8] sm:$0xff]
    %v2042 = vld [vmem:[%s5] sm:$0x3]
    %v2044 = vlaneseq
    %v2045 = vshrl.u32 %v2044, 7
    %v2046 = vsub.s32 0, %v2045
    %v2047 = vrot.slane %v2042, %v2046
    %v2048 = vlaneseq
    %v2049 = vshrl.u32 %v2048, 7
    %v2050 = vsub.s32 1, %v2049
    %v2051 = vrot.slane %v2042, %v2050
    %v2118 = vunpack.c.l.b16 %v1978
    %v2119 = vunpack.c.h.b16 %v1978
    %v2120 = vunpack.c.l.b16 %v1979
    %v2121 = vunpack.c.h.b16 %v1979
    %v2122 = vunpack.c.l.b16 %v1980
    %v2123 = vunpack.c.h.b16 %v1980
    %v2124 = vunpack.c.l.b16 %v1981
    %v2125 = vunpack.c.h.b16 %v1981
    %v2126 = vunpack.c.l.b16 %v1982
    %v2127 = vunpack.c.h.b16 %v1982
    %v2128 = vunpack.c.l.b16 %v1983
    %v2129 = vunpack.c.h.b16 %v1983
    %v2130 = vunpack.c.l.b16 %v1984
    %v2131 = vunpack.c.h.b16 %v1984
    %v2132 = vunpack.c.l.b16 %v1985
    %v2133 = vunpack.c.h.b16 %v1985
    %v2134 = vunpack.c.l.b16 %v1986
    %v2135 = vunpack.c.h.b16 %v1986
    %v2136 = vunpack.c.l.b16 %v1987
    %v2137 = vunpack.c.h.b16 %v1987
    %v2138 = vunpack.c.l.b16 %v1988
    %v2139 = vunpack.c.h.b16 %v1988
    %v2140 = vunpack.c.l.b16 %v1989
    %v2141 = vunpack.c.h.b16 %v1989
    %v2142 = vunpack.c.l.b16 %v1990
    %v2143 = vunpack.c.h.b16 %v1990
    %v2144 = vunpack.c.l.b16 %v1991
    %v2145 = vunpack.c.h.b16 %v1991
    %v2146 = vunpack.c.l.b16 %v1992
    %v2147 = vunpack.c.h.b16 %v1992
    %v2148 = vunpack.c.l.b16 %v1993
    %v2149 = vunpack.c.h.b16 %v1993
    %v2150 = vunpack.c.l.b16 %v1994
    %v2151 = vunpack.c.h.b16 %v1994
    %v2152 = vunpack.c.l.b16 %v1995
    %v2153 = vunpack.c.h.b16 %v1995
    %v2154 = vunpack.c.l.b16 %v1996
    %v2155 = vunpack.c.h.b16 %v1996
    %v2156 = vunpack.c.l.b16 %v1997
    %v2157 = vunpack.c.h.b16 %v1997
    %v2158 = vunpack.c.l.b16 %v1998
    %v2159 = vunpack.c.h.b16 %v1998
    %v2160 = vunpack.c.l.b16 %v1999
    %v2161 = vunpack.c.h.b16 %v1999
    %v2162 = vunpack.c.l.b16 %v2000
    %v2163 = vunpack.c.h.b16 %v2000
    %v2164 = vunpack.c.l.b16 %v2001
    %v2165 = vunpack.c.h.b16 %v2001
    %v2166 = vunpack.c.l.b16 %v2002
    %v2167 = vunpack.c.h.b16 %v2002
    %v2168 = vunpack.c.l.b16 %v2003
    %v2169 = vunpack.c.h.b16 %v2003
    %v2170 = vunpack.c.l.b16 %v2004
    %v2171 = vunpack.c.h.b16 %v2004
    %v2172 = vunpack.c.l.b16 %v2005
    %v2173 = vunpack.c.h.b16 %v2005
    %v2174 = vunpack.c.l.b16 %v2006
    %v2175 = vunpack.c.h.b16 %v2006
    %v2176 = vunpack.c.l.b16 %v2007
    %v2177 = vunpack.c.h.b16 %v2007
    %v2178 = vunpack.c.l.b16 %v2008
    %v2179 = vunpack.c.h.b16 %v2008
    %v2180 = vunpack.c.l.b16 %v2009
    %v2181 = vunpack.c.h.b16 %v2009
    %v2182 = vunpack.c.l.b16 %v2010
    %v2183 = vunpack.c.h.b16 %v2010
    %v2184 = vunpack.c.l.b16 %v2011
    %v2185 = vunpack.c.h.b16 %v2011
    %v2186 = vunpack.c.l.b16 %v2012
    %v2187 = vunpack.c.h.b16 %v2012
    %v2188 = vunpack.c.l.b16 %v2013
    %v2189 = vunpack.c.h.b16 %v2013
    %v2190 = vunpack.c.l.b16 %v2014
    %v2191 = vunpack.c.h.b16 %v2014
    %v2192 = vunpack.c.l.b16 %v2015
    %v2193 = vunpack.c.h.b16 %v2015
    %v2194 = vunpack.c.l.b16 %v2016
    %v2195 = vunpack.c.h.b16 %v2016
    %v2196 = vunpack.c.l.b16 %v2017
    %v2197 = vunpack.c.h.b16 %v2017
    %v2198 = vunpack.c.l.b16 %v2018
    %v2199 = vunpack.c.h.b16 %v2018
    %v2200 = vunpack.c.l.b16 %v2019
    %v2201 = vunpack.c.h.b16 %v2019
    %v2202 = vunpack.c.l.b16 %v2020
    %v2203 = vunpack.c.h.b16 %v2020
    %v2204 = vunpack.c.l.b16 %v2021
    %v2205 = vunpack.c.h.b16 %v2021
    %v2206 = vunpack.c.l.b16 %v2022
    %v2207 = vunpack.c.h.b16 %v2022
    %v2208 = vunpack.c.l.b16 %v2023
    %v2209 = vunpack.c.h.b16 %v2023
    %v2210 = vunpack.c.l.b16 %v2024
    %v2211 = vunpack.c.h.b16 %v2024
    %v2212 = vunpack.c.l.b16 %v2025
    %v2213 = vunpack.c.h.b16 %v2025
    %v2214 = vunpack.c.l.b16 %v2026
    %v2215 = vunpack.c.h.b16 %v2026
    %v2216 = vunpack.c.l.b16 %v2027
    %v2217 = vunpack.c.h.b16 %v2027
    %v2218 = vunpack.c.l.b16 %v2028
    %v2219 = vunpack.c.h.b16 %v2028
    %v2220 = vunpack.c.l.b16 %v2029
    %v2221 = vunpack.c.h.b16 %v2029
    %v2222 = vunpack.c.l.b16 %v2030
    %v2223 = vunpack.c.h.b16 %v2030
    %v2224 = vunpack.c.l.b16 %v2031
    %v2225 = vunpack.c.h.b16 %v2031
    %v2226 = vunpack.c.l.b16 %v2032
    %v2227 = vunpack.c.h.b16 %v2032
    %v2228 = vunpack.c.l.b16 %v2033
    %v2229 = vunpack.c.h.b16 %v2033
    %v2230 = vunpack.c.l.b16 %v2034
    %v2231 = vunpack.c.h.b16 %v2034
    %v2232 = vunpack.c.l.b16 %v2035
    %v2233 = vunpack.c.h.b16 %v2035
    %v2234 = vunpack.c.l.b16 %v2036
    %v2235 = vunpack.c.h.b16 %v2036
    %v2236 = vunpack.c.l.b16 %v2037
    %v2237 = vunpack.c.h.b16 %v2037
    %v2238 = vunpack.c.l.b16 %v2038
    %v2239 = vunpack.c.h.b16 %v2038
    %v2240 = vunpack.c.l.b16 %v2039
    %v2241 = vunpack.c.h.b16 %v2039
    %v2242 = vunpack.c.l.b16 %v2040
    %v2243 = vunpack.c.h.b16 %v2040
    %v2244 = vunpack.c.l.b16 %v2041
    %v2245 = vunpack.c.h.b16 %v2041
    %v2246 = vpack.c.b16 %v2120, %v2118
    %v2247 = vpack.c.b16 %v2121, %v2119
    %v2248 = vpack.c.b16 %v2124, %v2122
    %v2249 = vpack.c.b16 %v2125, %v2123
    %v2250 = vpack.c.b16 %v2128, %v2126
    %v2251 = vpack.c.b16 %v2129, %v2127
    %v2252 = vpack.c.b16 %v2132, %v2130
    %v2253 = vpack.c.b16 %v2133, %v2131
    %v2254 = vpack.c.b16 %v2136, %v2134
    %v2255 = vpack.c.b16 %v2137, %v2135
    %v2256 = vpack.c.b16 %v2140, %v2138
    %v2257 = vpack.c.b16 %v2141, %v2139
    %v2258 = vpack.c.b16 %v2144, %v2142
    %v2259 = vpack.c.b16 %v2145, %v2143
    %v2260 = vpack.c.b16 %v2148, %v2146
    %v2261 = vpack.c.b16 %v2149, %v2147
    %v2262 = vpack.c.b16 %v2152, %v2150
    %v2263 = vpack.c.b16 %v2153, %v2151
    %v2264 = vpack.c.b16 %v2156, %v2154
    %v2265 = vpack.c.b16 %v2157, %v2155
    %v2266 = vpack.c.b16 %v2160, %v2158
    %v2267 = vpack.c.b16 %v2161, %v2159
    %v2268 = vpack.c.b16 %v2164, %v2162
    %v2269 = vpack.c.b16 %v2165, %v2163
    %v2270 = vpack.c.b16 %v2168, %v2166
    %v2271 = vpack.c.b16 %v2169, %v2167
    %v2272 = vpack.c.b16 %v2172, %v2170
    %v2273 = vpack.c.b16 %v2173, %v2171
    %v2274 = vpack.c.b16 %v2176, %v2174
    %v2275 = vpack.c.b16 %v2177, %v2175
    %v2276 = vpack.c.b16 %v2180, %v2178
    %v2277 = vpack.c.b16 %v2181, %v2179
    %v2278 = vpack.c.b16 %v2184, %v2182
    %v2279 = vpack.c.b16 %v2185, %v2183
    %v2280 = vpack.c.b16 %v2188, %v2186
    %v2281 = vpack.c.b16 %v2189, %v2187
    %v2282 = vpack.c.b16 %v2192, %v2190
    %v2283 = vpack.c.b16 %v2193, %v2191
    %v2284 = vpack.c.b16 %v2196, %v2194
    %v2285 = vpack.c.b16 %v2197, %v2195
    %v2286 = vpack.c.b16 %v2200, %v2198
    %v2287 = vpack.c.b16 %v2201, %v2199
    %v2288 = vpack.c.b16 %v2204, %v2202
    %v2289 = vpack.c.b16 %v2205, %v2203
    %v2290 = vpack.c.b16 %v2208, %v2206
    %v2291 = vpack.c.b16 %v2209, %v2207
    %v2292 = vpack.c.b16 %v2212, %v2210
    %v2293 = vpack.c.b16 %v2213, %v2211
    %v2294 = vpack.c.b16 %v2216, %v2214
    %v2295 = vpack.c.b16 %v2217, %v2215
    %v2296 = vpack.c.b16 %v2220, %v2218
    %v2297 = vpack.c.b16 %v2221, %v2219
    %v2298 = vpack.c.b16 %v2224, %v2222
    %v2299 = vpack.c.b16 %v2225, %v2223
    %v2300 = vpack.c.b16 %v2228, %v2226
    %v2301 = vpack.c.b16 %v2229, %v2227
    %v2302 = vpack.c.b16 %v2232, %v2230
    %v2303 = vpack.c.b16 %v2233, %v2231
    %v2304 = vpack.c.b16 %v2236, %v2234
    %v2305 = vpack.c.b16 %v2237, %v2235
    %v2306 = vpack.c.b16 %v2240, %v2238
    %v2307 = vpack.c.b16 %v2241, %v2239
    %v2308 = vpack.c.b16 %v2244, %v2242
    %v2309 = vpack.c.b16 %v2245, %v2243
    %2374 = vmatprep.subr.bf16.mxu0 %v2247
    %2375 = vmatpush1.bf16.msra.mxu0 %v2246
    %2376 = vmatprep.subr.bf16.mxu0 %v2249
    %2377 = vmatpush1.bf16.msra.mxu0 %v2248
    %2378 = vmatprep.subr.bf16.mxu0 %v2251
    %2379 = vmatpush1.bf16.msra.mxu0 %v2250
    %2380 = vmatprep.subr.bf16.mxu0 %v2253
    %2381 = vmatpush1.bf16.msra.mxu0 %v2252
    %2382 = vmatprep.subr.bf16.mxu0 %v2255
    %2383 = vmatpush1.bf16.msra.mxu0 %v2254
    %2384 = vmatprep.subr.bf16.mxu0 %v2257
    %2385 = vmatpush1.bf16.msra.mxu0 %v2256
    %2386 = vmatprep.subr.bf16.mxu0 %v2259
    %2387 = vmatpush1.bf16.msra.mxu0 %v2258
    %2388 = vmatprep.subr.bf16.mxu0 %v2261
    %2389 = vmatpush1.bf16.msra.mxu0 %v2260
    %2390 = vmatprep.subr.bf16.mxu0 %v2263
    %2391 = vmatpush1.bf16.msra.mxu0 %v2262
    %2392 = vmatprep.subr.bf16.mxu0 %v2265
    %2393 = vmatpush1.bf16.msra.mxu0 %v2264
    %2394 = vmatprep.subr.bf16.mxu0 %v2267
    %2395 = vmatpush1.bf16.msra.mxu0 %v2266
    %2396 = vmatprep.subr.bf16.mxu0 %v2269
    %2397 = vmatpush1.bf16.msra.mxu0 %v2268
    %2398 = vmatprep.subr.bf16.mxu0 %v2271
    %2399 = vmatpush1.bf16.msra.mxu0 %v2270
    %2400 = vmatprep.subr.bf16.mxu0 %v2273
    %2401 = vmatpush1.bf16.msra.mxu0 %v2272
    %2402 = vmatprep.subr.bf16.mxu0 %v2275
    %2403 = vmatpush1.bf16.msra.mxu0 %v2274
    %2404 = vmatprep.subr.bf16.mxu0 %v2277
    %2405 = vmatpush1.bf16.msra.mxu0 %v2276
    %2406 = vmatprep.mubr.bf16.mxu0 %v1975
    %2407 = vmatmul.mubr.bf16.gmra.mrb[0].mxu0 %v1974
    %v2408 = vpop.f32.mrb[0].mxu0
    %v2409 = vadd.f32 %v2047, %v2408
    %v2410 = vpop.f32.mrb[0].mxu0
    %v2411 = vadd.f32 %v2051, %v2410
    %v2412 = vpop.f32.mrb[0].mxu0
    %v2413 = vpop.f32.mrb[0].mxu0
    %2414 = vdwg.mxu0
    %2415 = vmatprep.subr.bf16.mxu0 %v2279
    %2416 = vmatpush1.bf16.msra.mxu0 %v2278
    %2417 = vmatprep.subr.bf16.mxu0 %v2281
    %2418 = vmatpush1.bf16.msra.mxu0 %v2280
    %2419 = vmatprep.subr.bf16.mxu0 %v2283
    %2420 = vmatpush1.bf16.msra.mxu0 %v2282
    %2421 = vmatprep.subr.bf16.mxu0 %v2285
    %2422 = vmatpush1.bf16.msra.mxu0 %v2284
    %2423 = vmatprep.subr.bf16.mxu0 %v2287
    %2424 = vmatpush1.bf16.msra.mxu0 %v2286
    %2425 = vmatprep.subr.bf16.mxu0 %v2289
    %2426 = vmatpush1.bf16.msra.mxu0 %v2288
    %2427 = vmatprep.subr.bf16.mxu0 %v2291
    %2428 = vmatpush1.bf16.msra.mxu0 %v2290
    %2429 = vmatprep.subr.bf16.mxu0 %v2293
    %2430 = vmatpush1.bf16.msra.mxu0 %v2292
    %2431 = vmatprep.subr.bf16.mxu0 %v2295
    %2432 = vmatpush1.bf16.msra.mxu0 %v2294
    %2433 = vmatprep.subr.bf16.mxu0 %v2297
    %2434 = vmatpush1.bf16.msra.mxu0 %v2296
    %2435 = vmatprep.subr.bf16.mxu0 %v2299
    %2436 = vmatpush1.bf16.msra.mxu0 %v2298
    %2437 = vmatprep.subr.bf16.mxu0 %v2301
    %2438 = vmatpush1.bf16.msra.mxu0 %v2300
    %2439 = vmatprep.subr.bf16.mxu0 %v2303
    %2440 = vmatpush1.bf16.msra.mxu0 %v2302
    %2441 = vmatprep.subr.bf16.mxu0 %v2305
    %2442 = vmatpush1.bf16.msra.mxu0 %v2304
    %2443 = vmatprep.subr.bf16.mxu0 %v2307
    %2444 = vmatpush1.bf16.msra.mxu0 %v2306
    %2445 = vmatprep.subr.bf16.mxu0 %v2309
    %2446 = vmatpush1.bf16.msra.mxu0 %v2308
    %2447 = vmatprep.mubr.bf16.mxu0 %v1977
    %2448 = vmatmul.mubr.bf16.gmra.mrb[0].mxu0 %v1976
    %v2449 = vpop.f32.mrb[0].mxu0
    %v2450 = vadd.f32 %v2409, %v2449
    %v2451 = vpop.f32.mrb[0].mxu0
    %v2452 = vadd.f32 %v2411, %v2451
    %v2453 = vpop.f32.mrb[0].mxu0
    %v2454 = vpop.f32.mrb[0].mxu0
    %2455 = vdwg.mxu0
    %v2456 = vmax.f32 %v2450, 0.0
    %v2457 = vmax.f32 %v2452, 0.0
    %v2458 = vld [vmem:[%s1] sm:$0xff]
    %v2459 = vld [vmem:[%s1 + $0x8] sm:$0xff]
    %v2462 = vcombine.high %v2458, %v2458
    %v2464 = vunpack.c.l.s4 1983009808
    %v2465 = vunpack.c.0.s8 %v2464
    %v2466 = vlaneseq
    %v2467 = vshrl.u32 %v2466, 7
    %v2468 = vsub.s32 %v2465, %v2467
    %v2469 = vrot.slane %v2458, %v2468
    %v2471 = vunpack.c.l.s4 1983009808
    %v2472 = vunpack.c.0.s8 %v2471
    %v2473 = vlaneseq
    %v2474 = vshrl.u32 %v2473, 7
    %v2475 = vsub.s32 %v2472, %v2474
    %v2476 = vrot.slane %v2462, %v2475
    %v2477 = vcombine.high %v2469, %v2469
    %v2478 = vcombine.high %v2476, %v2476
    %v2479 = vcombine.high %v2459, %v2459
    %v2481 = vunpack.c.l.s4 1983009808
    %v2482 = vunpack.c.0.s8 %v2481
    %v2483 = vlaneseq
    %v2484 = vshrl.u32 %v2483, 7
    %v2485 = vsub.s32 %v2482, %v2484
    %v2486 = vrot.slane %v2459, %v2485
    %v2488 = vunpack.c.l.s4 1983009808
    %v2489 = vunpack.c.0.s8 %v2488
    %v2490 = vlaneseq
    %v2491 = vshrl.u32 %v2490, 7
    %v2492 = vsub.s32 %v2489, %v2491
    %v2493 = vrot.slane %v2479, %v2492
    %v2494 = vcombine.high %v2486, %v2486
    %v2495 = vcombine.high %v2493, %v2493
    %v2504 = vpack.c.bf16 %v2469, %v2469
    %v2505 = vpack.c.bf16 %v2477, %v2477
    %v2506 = vpack.c.bf16 %v2476, %v2476
    %v2507 = vpack.c.bf16 %v2478, %v2478
    %v2508 = vpack.c.bf16 %v2486, %v2486
    %v2509 = vpack.c.bf16 %v2494, %v2494
    %v2510 = vpack.c.bf16 %v2493, %v2493
    %v2511 = vpack.c.bf16 %v2495, %v2495
    %2512 = vmatprep.subr.bf16.mxu0 %v1131
    %2513 = vmatpush1.bf16.msra.mxu0 %v1130
    %2514 = vmatprep.subr.bf16.mxu0 %v1135
    %2515 = vmatpush1.bf16.msra.mxu0 %v1134
    %2516 = vmatprep.subr.bf16.mxu0 %v1139
    %2517 = vmatpush1.bf16.msra.mxu0 %v1138
    %2518 = vmatprep.subr.bf16.mxu0 %v1143
    %2519 = vmatpush1.bf16.msra.mxu0 %v1142
    %2520 = vmatprep.subr.bf16.mxu0 %v1147
    %2521 = vmatpush1.bf16.msra.mxu0 %v1146
    %2522 = vmatprep.subr.bf16.mxu0 %v1151
    %2523 = vmatpush1.bf16.msra.mxu0 %v1150
    %2524 = vmatprep.subr.bf16.mxu0 %v1155
    %2525 = vmatpush1.bf16.msra.mxu0 %v1154
    %2526 = vmatprep.subr.bf16.mxu0 %v1159
    %2527 = vmatpush1.bf16.msra.mxu0 %v1158
    %2528 = vmatprep.subr.bf16.mxu0 %v1163
    %2529 = vmatpush1.bf16.msra.mxu0 %v1162
    %2530 = vmatprep.subr.bf16.mxu0 %v1167
    %2531 = vmatpush1.bf16.msra.mxu0 %v1166
    %2532 = vmatprep.subr.bf16.mxu0 %v1171
    %2533 = vmatpush1.bf16.msra.mxu0 %v1170
    %2534 = vmatprep.subr.bf16.mxu0 %v1175
    %2535 = vmatpush1.bf16.msra.mxu0 %v1174
    %2536 = vmatprep.subr.bf16.mxu0 %v1179
    %2537 = vmatpush1.bf16.msra.mxu0 %v1178
    %2538 = vmatprep.subr.bf16.mxu0 %v1183
    %2539 = vmatpush1.bf16.msra.mxu0 %v1182
    %2540 = vmatprep.subr.bf16.mxu0 %v1187
    %2541 = vmatpush1.bf16.msra.mxu0 %v1186
    %2542 = vmatprep.subr.bf16.mxu0 %v1191
    %2543 = vmatpush1.bf16.msra.mxu0 %v1190
    %2544 = vmatprep.mubr.bf16.mxu0 %v2505
    %2545 = vmatmul.mubr.bf16.gmra.mrb[0].mxu0 %v2504
    %v2546 = vpop.f32.mrb[0].mxu0
    %v2547 = vadd.f32 %v345, %v2546
    %v2548 = vpop.f32.mrb[0].mxu0
    %v2549 = vadd.f32 %v349, %v2548
    %v2550 = vpop.f32.mrb[0].mxu0
    %v2551 = vpop.f32.mrb[0].mxu0
    %2552 = vdwg.mxu0
    %2553 = vmatprep.subr.bf16.mxu0 %v1195
    %2554 = vmatpush1.bf16.msra.mxu0 %v1194
    %2555 = vmatprep.subr.bf16.mxu0 %v1199
    %2556 = vmatpush1.bf16.msra.mxu0 %v1198
    %2557 = vmatprep.subr.bf16.mxu0 %v1203
    %2558 = vmatpush1.bf16.msra.mxu0 %v1202
    %2559 = vmatprep.subr.bf16.mxu0 %v1207
    %2560 = vmatpush1.bf16.msra.mxu0 %v1206
    %2561 = vmatprep.subr.bf16.mxu0 %v1211
    %2562 = vmatpush1.bf16.msra.mxu0 %v1210
    %2563 = vmatprep.subr.bf16.mxu0 %v1215
    %2564 = vmatpush1.bf16.msra.mxu0 %v1214
    %2565 = vmatprep.subr.bf16.mxu0 %v1219
    %2566 = vmatpush1.bf16.msra.mxu0 %v1218
    %2567 = vmatprep.subr.bf16.mxu0 %v1223
    %2568 = vmatpush1.bf16.msra.mxu0 %v1222
    %2569 = vmatprep.subr.bf16.mxu0 %v1227
    %2570 = vmatpush1.bf16.msra.mxu0 %v1226
    %2571 = vmatprep.subr.bf16.mxu0 %v1231
    %2572 = vmatpush1.bf16.msra.mxu0 %v1230
    %2573 = vmatprep.subr.bf16.mxu0 %v1235
    %2574 = vmatpush1.bf16.msra.mxu0 %v1234
    %2575 = vmatprep.subr.bf16.mxu0 %v1239
    %2576 = vmatpush1.bf16.msra.mxu0 %v1238
    %2577 = vmatprep.subr.bf16.mxu0 %v1243
    %2578 = vmatpush1.bf16.msra.mxu0 %v1242
    %2579 = vmatprep.subr.bf16.mxu0 %v1247
    %2580 = vmatpush1.bf16.msra.mxu0 %v1246
    %2581 = vmatprep.subr.bf16.mxu0 %v1251
    %2582 = vmatpush1.bf16.msra.mxu0 %v1250
    %2583 = vmatprep.subr.bf16.mxu0 %v1255
    %2584 = vmatpush1.bf16.msra.mxu0 %v1254
    %2585 = vmatprep.mubr.bf16.mxu0 %v2507
    %2586 = vmatmul.mubr.bf16.gmra.mrb[0].mxu0 %v2506
    %v2587 = vpop.f32.mrb[0].mxu0
    %v2588 = vadd.f32 %v2547, %v2587
    %v2589 = vpop.f32.mrb[0].mxu0
    %v2590 = vadd.f32 %v2549, %v2589
    %v2591 = vpop.f32.mrb[0].mxu0
    %v2592 = vpop.f32.mrb[0].mxu0
    %2593 = vdwg.mxu0
    %2594 = vmatprep.subr.bf16.mxu0 %v1259
    %2595 = vmatpush1.bf16.msra.mxu0 %v1258
    %2596 = vmatprep.subr.bf16.mxu0 %v1263
    %2597 = vmatpush1.bf16.msra.mxu0 %v1262
    %2598 = vmatprep.subr.bf16.mxu0 %v1267
    %2599 = vmatpush1.bf16.msra.mxu0 %v1266
    %2600 = vmatprep.subr.bf16.mxu0 %v1271
    %2601 = vmatpush1.bf16.msra.mxu0 %v1270
    %2602 = vmatprep.subr.bf16.mxu0 %v1275
    %2603 = vmatpush1.bf16.msra.mxu0 %v1274
    %2604 = vmatprep.subr.bf16.mxu0 %v1279
    %2605 = vmatpush1.bf16.msra.mxu0 %v1278
    %2606 = vmatprep.subr.bf16.mxu0 %v1283
    %2607 = vmatpush1.bf16.msra.mxu0 %v1282
    %2608 = vmatprep.subr.bf16.mxu0 %v1287
    %2609 = vmatpush1.bf16.msra.mxu0 %v1286
    %2610 = vmatprep.subr.bf16.mxu0 %v1291
    %2611 = vmatpush1.bf16.msra.mxu0 %v1290
    %2612 = vmatprep.subr.bf16.mxu0 %v1295
    %2613 = vmatpush1.bf16.msra.mxu0 %v1294
    %2614 = vmatprep.subr.bf16.mxu0 %v1299
    %2615 = vmatpush1.bf16.msra.mxu0 %v1298
    %2616 = vmatprep.subr.bf16.mxu0 %v1303
    %2617 = vmatpush1.bf16.msra.mxu0 %v1302
    %2618 = vmatprep.subr.bf16.mxu0 %v1307
    %2619 = vmatpush1.bf16.msra.mxu0 %v1306
    %2620 = vmatprep.subr.bf16.mxu0 %v1311
    %2621 = vmatpush1.bf16.msra.mxu0 %v1310
    %2622 = vmatprep.subr.bf16.mxu0 %v1315
    %2623 = vmatpush1.bf16.msra.mxu0 %v1314
    %2624 = vmatprep.subr.bf16.mxu0 %v1319
    %2625 = vmatpush1.bf16.msra.mxu0 %v1318
    %2626 = vmatprep.mubr.bf16.mxu0 %v2509
    %2627 = vmatmul.mubr.bf16.gmra.mrb[0].mxu0 %v2508
    %v2628 = vpop.f32.mrb[0].mxu0
    %v2629 = vadd.f32 %v2588, %v2628
    %v2630 = vpop.f32.mrb[0].mxu0
    %v2631 = vadd.f32 %v2590, %v2630
    %v2632 = vpop.f32.mrb[0].mxu0
    %v2633 = vpop.f32.mrb[0].mxu0
    %2634 = vdwg.mxu0
    %2635 = vmatprep.subr.bf16.mxu0 %v1323
    %2636 = vmatpush1.bf16.msra.mxu0 %v1322
    %2637 = vmatprep.subr.bf16.mxu0 %v1327
    %2638 = vmatpush1.bf16.msra.mxu0 %v1326
    %2639 = vmatprep.subr.bf16.mxu0 %v1331
    %2640 = vmatpush1.bf16.msra.mxu0 %v1330
    %2641 = vmatprep.subr.bf16.mxu0 %v1335
    %2642 = vmatpush1.bf16.msra.mxu0 %v1334
    %2643 = vmatprep.subr.bf16.mxu0 %v1339
    %2644 = vmatpush1.bf16.msra.mxu0 %v1338
    %2645 = vmatprep.subr.bf16.mxu0 %v1343
    %2646 = vmatpush1.bf16.msra.mxu0 %v1342
    %2647 = vmatprep.subr.bf16.mxu0 %v1347
    %2648 = vmatpush1.bf16.msra.mxu0 %v1346
    %2649 = vmatprep.subr.bf16.mxu0 %v1351
    %2650 = vmatpush1.bf16.msra.mxu0 %v1350
    %2651 = vmatprep.subr.bf16.mxu0 %v1355
    %2652 = vmatpush1.bf16.msra.mxu0 %v1354
    %2653 = vmatprep.subr.bf16.mxu0 %v1359
    %2654 = vmatpush1.bf16.msra.mxu0 %v1358
    %2655 = vmatprep.subr.bf16.mxu0 %v1363
    %2656 = vmatpush1.bf16.msra.mxu0 %v1362
    %2657 = vmatprep.subr.bf16.mxu0 %v1367
    %2658 = vmatpush1.bf16.msra.mxu0 %v1366
    %2659 = vmatprep.subr.bf16.mxu0 %v1371
    %2660 = vmatpush1.bf16.msra.mxu0 %v1370
    %2661 = vmatprep.subr.bf16.mxu0 %v1375
    %2662 = vmatpush1.bf16.msra.mxu0 %v1374
    %2663 = vmatprep.subr.bf16.mxu0 %v1379
    %2664 = vmatpush1.bf16.msra.mxu0 %v1378
    %2665 = vmatprep.subr.bf16.mxu0 %v1383
    %2666 = vmatpush1.bf16.msra.mxu0 %v1382
    %2667 = vmatprep.mubr.bf16.mxu0 %v2511
    %2668 = vmatmul.mubr.bf16.gmra.mrb[0].mxu0 %v2510
    %v2669 = vpop.f32.mrb[0].mxu0
    %v2670 = vadd.f32 %v2629, %v2669
    %v2671 = vpop.f32.mrb[0].mxu0
    %v2672 = vadd.f32 %v2631, %v2671
    %v2673 = vpop.f32.mrb[0].mxu0
    %v2674 = vpop.f32.mrb[0].mxu0
    %2675 = vdwg.mxu0
    %2676 = vmatprep.subr.bf16.mxu0 %v1133
    %2677 = vmatpush1.bf16.msra.mxu0 %v1132
    %2678 = vmatprep.subr.bf16.mxu0 %v1137
    %2679 = vmatpush1.bf16.msra.mxu0 %v1136
    %2680 = vmatprep.subr.bf16.mxu0 %v1141
    %2681 = vmatpush1.bf16.msra.mxu0 %v1140
    %2682 = vmatprep.subr.bf16.mxu0 %v1145
    %2683 = vmatpush1.bf16.msra.mxu0 %v1144
    %2684 = vmatprep.subr.bf16.mxu0 %v1149
    %2685 = vmatpush1.bf16.msra.mxu0 %v1148
    %2686 = vmatprep.subr.bf16.mxu0 %v1153
    %2687 = vmatpush1.bf16.msra.mxu0 %v1152
    %2688 = vmatprep.subr.bf16.mxu0 %v1157
    %2689 = vmatpush1.bf16.msra.mxu0 %v1156
    %2690 = vmatprep.subr.bf16.mxu0 %v1161
    %2691 = vmatpush1.bf16.msra.mxu0 %v1160
    %2692 = vmatprep.subr.bf16.mxu0 %v1165
    %2693 = vmatpush1.bf16.msra.mxu0 %v1164
    %2694 = vmatprep.subr.bf16.mxu0 %v1169
    %2695 = vmatpush1.bf16.msra.mxu0 %v1168
    %2696 = vmatprep.subr.bf16.mxu0 %v1173
    %2697 = vmatpush1.bf16.msra.mxu0 %v1172
    %2698 = vmatprep.subr.bf16.mxu0 %v1177
    %2699 = vmatpush1.bf16.msra.mxu0 %v1176
    %2700 = vmatprep.subr.bf16.mxu0 %v1181
    %2701 = vmatpush1.bf16.msra.mxu0 %v1180
    %2702 = vmatprep.subr.bf16.mxu0 %v1185
    %2703 = vmatpush1.bf16.msra.mxu0 %v1184
    %2704 = vmatprep.subr.bf16.mxu0 %v1189
    %2705 = vmatpush1.bf16.msra.mxu0 %v1188
    %2706 = vmatprep.subr.bf16.mxu0 %v1193
    %2707 = vmatpush1.bf16.msra.mxu0 %v1192
    %2708 = vmatprep.mubr.bf16.mxu0 %v2505
    %2709 = vmatmul.mubr.bf16.gmra.mrb[0].mxu0 %v2504
    %v2710 = vpop.f32.mrb[0].mxu0
    %v2711 = vadd.f32 %v353, %v2710
    %v2712 = vpop.f32.mrb[0].mxu0
    %v2713 = vadd.f32 %v357, %v2712
    %v2714 = vpop.f32.mrb[0].mxu0
    %v2715 = vpop.f32.mrb[0].mxu0
    %2716 = vdwg.mxu0
    %2717 = vmatprep.subr.bf16.mxu0 %v1197
    %2718 = vmatpush1.bf16.msra.mxu0 %v1196
    %2719 = vmatprep.subr.bf16.mxu0 %v1201
    %2720 = vmatpush1.bf16.msra.mxu0 %v1200
    %2721 = vmatprep.subr.bf16.mxu0 %v1205
    %2722 = vmatpush1.bf16.msra.mxu0 %v1204
    %2723 = vmatprep.subr.bf16.mxu0 %v1209
    %2724 = vmatpush1.bf16.msra.mxu0 %v1208
    %2725 = vmatprep.subr.bf16.mxu0 %v1213
    %2726 = vmatpush1.bf16.msra.mxu0 %v1212
    %2727 = vmatprep.subr.bf16.mxu0 %v1217
    %2728 = vmatpush1.bf16.msra.mxu0 %v1216
    %2729 = vmatprep.subr.bf16.mxu0 %v1221
    %2730 = vmatpush1.bf16.msra.mxu0 %v1220
    %2731 = vmatprep.subr.bf16.mxu0 %v1225
    %2732 = vmatpush1.bf16.msra.mxu0 %v1224
    %2733 = vmatprep.subr.bf16.mxu0 %v1229
    %2734 = vmatpush1.bf16.msra.mxu0 %v1228
    %2735 = vmatprep.subr.bf16.mxu0 %v1233
    %2736 = vmatpush1.bf16.msra.mxu0 %v1232
    %2737 = vmatprep.subr.bf16.mxu0 %v1237
    %2738 = vmatpush1.bf16.msra.mxu0 %v1236
    %2739 = vmatprep.subr.bf16.mxu0 %v1241
    %2740 = vmatpush1.bf16.msra.mxu0 %v1240
    %2741 = vmatprep.subr.bf16.mxu0 %v1245
    %2742 = vmatpush1.bf16.msra.mxu0 %v1244
    %2743 = vmatprep.subr.bf16.mxu0 %v1249
    %2744 = vmatpush1.bf16.msra.mxu0 %v1248
    %2745 = vmatprep.subr.bf16.mxu0 %v1253
    %2746 = vmatpush1.bf16.msra.mxu0 %v1252
    %2747 = vmatprep.subr.bf16.mxu0 %v1257
    %2748 = vmatpush1.bf16.msra.mxu0 %v1256
    %2749 = vmatprep.mubr.bf16.mxu0 %v2507
    %2750 = vmatmul.mubr.bf16.gmra.mrb[0].mxu0 %v2506
    %v2751 = vpop.f32.mrb[0].mxu0
    %v2752 = vadd.f32 %v2711, %v2751
    %v2753 = vpop.f32.mrb[0].mxu0
    %v2754 = vadd.f32 %v2713, %v2753
    %v2755 = vpop.f32.mrb[0].mxu0
    %v2756 = vpop.f32.mrb[0].mxu0
    %2757 = vdwg.mxu0
    %2758 = vmatprep.subr.bf16.mxu0 %v1261
    %2759 = vmatpush1.bf16.msra.mxu0 %v1260
    %2760 = vmatprep.subr.bf16.mxu0 %v1265
    %2761 = vmatpush1.bf16.msra.mxu0 %v1264
    %2762 = vmatprep.subr.bf16.mxu0 %v1269
    %2763 = vmatpush1.bf16.msra.mxu0 %v1268
    %2764 = vmatprep.subr.bf16.mxu0 %v1273
    %2765 = vmatpush1.bf16.msra.mxu0 %v1272
    %2766 = vmatprep.subr.bf16.mxu0 %v1277
    %2767 = vmatpush1.bf16.msra.mxu0 %v1276
    %2768 = vmatprep.subr.bf16.mxu0 %v1281
    %2769 = vmatpush1.bf16.msra.mxu0 %v1280
    %2770 = vmatprep.subr.bf16.mxu0 %v1285
    %2771 = vmatpush1.bf16.msra.mxu0 %v1284
    %2772 = vmatprep.subr.bf16.mxu0 %v1289
    %2773 = vmatpush1.bf16.msra.mxu0 %v1288
    %2774 = vmatprep.subr.bf16.mxu0 %v1293
    %2775 = vmatpush1.bf16.msra.mxu0 %v1292
    %2776 = vmatprep.subr.bf16.mxu0 %v1297
    %2777 = vmatpush1.bf16.msra.mxu0 %v1296
    %2778 = vmatprep.subr.bf16.mxu0 %v1301
    %2779 = vmatpush1.bf16.msra.mxu0 %v1300
    %2780 = vmatprep.subr.bf16.mxu0 %v1305
    %2781 = vmatpush1.bf16.msra.mxu0 %v1304
    %2782 = vmatprep.subr.bf16.mxu0 %v1309
    %2783 = vmatpush1.bf16.msra.mxu0 %v1308
    %2784 = vmatprep.subr.bf16.mxu0 %v1313
    %2785 = vmatpush1.bf16.msra.mxu0 %v1312
    %2786 = vmatprep.subr.bf16.mxu0 %v1317
    %2787 = vmatpush1.bf16.msra.mxu0 %v1316
    %2788 = vmatprep.subr.bf16.mxu0 %v1321
    %2789 = vmatpush1.bf16.msra.mxu0 %v1320
    %2790 = vmatprep.mubr.bf16.mxu0 %v2509
    %2791 = vmatmul.mubr.bf16.gmra.mrb[0].mxu0 %v2508
    %v2792 = vpop.f32.mrb[0].mxu0
    %v2793 = vadd.f32 %v2752, %v2792
    %v2794 = vpop.f32.mrb[0].mxu0
    %v2795 = vadd.f32 %v2754, %v2794
    %v2796 = vpop.f32.mrb[0].mxu0
    %v2797 = vpop.f32.mrb[0].mxu0
    %2798 = vdwg.mxu0
    %2799 = vmatprep.subr.bf16.mxu0 %v1325
    %2800 = vmatpush1.bf16.msra.mxu0 %v1324
    %2801 = vmatprep.subr.bf16.mxu0 %v1329
    %2802 = vmatpush1.bf16.msra.mxu0 %v1328
    %2803 = vmatprep.subr.bf16.mxu0 %v1333
    %2804 = vmatpush1.bf16.msra.mxu0 %v1332
    %2805 = vmatprep.subr.bf16.mxu0 %v1337
    %2806 = vmatpush1.bf16.msra.mxu0 %v1336
    %2807 = vmatprep.subr.bf16.mxu0 %v1341
    %2808 = vmatpush1.bf16.msra.mxu0 %v1340
    %2809 = vmatprep.subr.bf16.mxu0 %v1345
    %2810 = vmatpush1.bf16.msra.mxu0 %v1344
    %2811 = vmatprep.subr.bf16.mxu0 %v1349
    %2812 = vmatpush1.bf16.msra.mxu0 %v1348
    %2813 = vmatprep.subr.bf16.mxu0 %v1353
    %2814 = vmatpush1.bf16.msra.mxu0 %v1352
    %2815 = vmatprep.subr.bf16.mxu0 %v1357
    %2816 = vmatpush1.bf16.msra.mxu0 %v1356
    %2817 = vmatprep.subr.bf16.mxu0 %v1361
    %2818 = vmatpush1.bf16.msra.mxu0 %v1360
    %2819 = vmatprep.subr.bf16.mxu0 %v1365
    %2820 = vmatpush1.bf16.msra.mxu0 %v1364
    %2821 = vmatprep.subr.bf16.mxu0 %v1369
    %2822 = vmatpush1.bf16.msra.mxu0 %v1368
    %2823 = vmatprep.subr.bf16.mxu0 %v1373
    %2824 = vmatpush1.bf16.msra.mxu0 %v1372
    %2825 = vmatprep.subr.bf16.mxu0 %v1377
    %2826 = vmatpush1.bf16.msra.mxu0 %v1376
    %2827 = vmatprep.subr.bf16.mxu0 %v1381
    %2828 = vmatpush1.bf16.msra.mxu0 %v1380
    %2829 = vmatprep.subr.bf16.mxu0 %v1385
    %2830 = vmatpush1.bf16.msra.mxu0 %v1384
    %2831 = vmatprep.mubr.bf16.mxu0 %v2511
    %2832 = vmatmul.mubr.bf16.gmra.mrb[0].mxu0 %v2510
    %v2833 = vpop.f32.mrb[0].mxu0
    %v2834 = vadd.f32 %v2793, %v2833
    %v2835 = vpop.f32.mrb[0].mxu0
    %v2836 = vadd.f32 %v2795, %v2835
    %v2837 = vpop.f32.mrb[0].mxu0
    %v2838 = vpop.f32.mrb[0].mxu0
    %2839 = vdwg.mxu0
    %v2840 = vmax.f32 %v2670, 0.0
    %v2841 = vmax.f32 %v2672, 0.0
    %v2842 = vmax.f32 %v2834, 0.0
    %v2843 = vmax.f32 %v2836, 0.0
    %v2844 = vpack.c.bf16 %v2840, %v2840
    %v2845 = vpack.c.bf16 %v2841, %v2841
    %v2846 = vpack.c.bf16 %v2842, %v2842
    %v2847 = vpack.c.bf16 %v2843, %v2843
    %2848 = vmatprep.subr.bf16.mxu0 %v2247
    %2849 = vmatpush1.bf16.msra.mxu0 %v2246
    %2850 = vmatprep.subr.bf16.mxu0 %v2249
    %2851 = vmatpush1.bf16.msra.mxu0 %v2248
    %2852 = vmatprep.subr.bf16.mxu0 %v2251
    %2853 = vmatpush1.bf16.msra.mxu0 %v2250
    %2854 = vmatprep.subr.bf16.mxu0 %v2253
    %2855 = vmatpush1.bf16.msra.mxu0 %v2252
    %2856 = vmatprep.subr.bf16.mxu0 %v2255
    %2857 = vmatpush1.bf16.msra.mxu0 %v2254
    %2858 = vmatprep.subr.bf16.mxu0 %v2257
    %2859 = vmatpush1.bf16.msra.mxu0 %v2256
    %2860 = vmatprep.subr.bf16.mxu0 %v2259
    %2861 = vmatpush1.bf16.msra.mxu0 %v2258
    %2862 = vmatprep.subr.bf16.mxu0 %v2261
    %2863 = vmatpush1.bf16.msra.mxu0 %v2260
    %2864 = vmatprep.subr.bf16.mxu0 %v2263
    %2865 = vmatpush1.bf16.msra.mxu0 %v2262
    %2866 = vmatprep.subr.bf16.mxu0 %v2265
    %2867 = vmatpush1.bf16.msra.mxu0 %v2264
    %2868 = vmatprep.subr.bf16.mxu0 %v2267
    %2869 = vmatpush1.bf16.msra.mxu0 %v2266
    %2870 = vmatprep.subr.bf16.mxu0 %v2269
    %2871 = vmatpush1.bf16.msra.mxu0 %v2268
    %2872 = vmatprep.subr.bf16.mxu0 %v2271
    %2873 = vmatpush1.bf16.msra.mxu0 %v2270
    %2874 = vmatprep.subr.bf16.mxu0 %v2273
    %2875 = vmatpush1.bf16.msra.mxu0 %v2272
    %2876 = vmatprep.subr.bf16.mxu0 %v2275
    %2877 = vmatpush1.bf16.msra.mxu0 %v2274
    %2878 = vmatprep.subr.bf16.mxu0 %v2277
    %2879 = vmatpush1.bf16.msra.mxu0 %v2276
    %2880 = vmatprep.mubr.bf16.mxu0 %v2845
    %2881 = vmatmul.mubr.bf16.gmra.mrb[0].mxu0 %v2844
    %v2882 = vpop.f32.mrb[0].mxu0
    %v2883 = vadd.f32 %v2047, %v2882
    %v2884 = vpop.f32.mrb[0].mxu0
    %v2885 = vadd.f32 %v2051, %v2884
    %v2886 = vpop.f32.mrb[0].mxu0
    %v2887 = vpop.f32.mrb[0].mxu0
    %2888 = vdwg.mxu0
    %2889 = vmatprep.subr.bf16.mxu0 %v2279
    %2890 = vmatpush1.bf16.msra.mxu0 %v2278
    %2891 = vmatprep.subr.bf16.mxu0 %v2281
    %2892 = vmatpush1.bf16.msra.mxu0 %v2280
    %2893 = vmatprep.subr.bf16.mxu0 %v2283
    %2894 = vmatpush1.bf16.msra.mxu0 %v2282
    %2895 = vmatprep.subr.bf16.mxu0 %v2285
    %2896 = vmatpush1.bf16.msra.mxu0 %v2284
    %2897 = vmatprep.subr.bf16.mxu0 %v2287
    %2898 = vmatpush1.bf16.msra.mxu0 %v2286
    %2899 = vmatprep.subr.bf16.mxu0 %v2289
    %2900 = vmatpush1.bf16.msra.mxu0 %v2288
    %2901 = vmatprep.subr.bf16.mxu0 %v2291
    %2902 = vmatpush1.bf16.msra.mxu0 %v2290
    %2903 = vmatprep.subr.bf16.mxu0 %v2293
    %2904 = vmatpush1.bf16.msra.mxu0 %v2292
    %2905 = vmatprep.subr.bf16.mxu0 %v2295
    %2906 = vmatpush1.bf16.msra.mxu0 %v2294
    %2907 = vmatprep.subr.bf16.mxu0 %v2297
    %2908 = vmatpush1.bf16.msra.mxu0 %v2296
    %2909 = vmatprep.subr.bf16.mxu0 %v2299
    %2910 = vmatpush1.bf16.msra.mxu0 %v2298
    %2911 = vmatprep.subr.bf16.mxu0 %v2301
    %2912 = vmatpush1.bf16.msra.mxu0 %v2300
    %2913 = vmatprep.subr.bf16.mxu0 %v2303
    %2914 = vmatpush1.bf16.msra.mxu0 %v2302
    %2915 = vmatprep.subr.bf16.mxu0 %v2305
    %2916 = vmatpush1.bf16.msra.mxu0 %v2304
    %2917 = vmatprep.subr.bf16.mxu0 %v2307
    %2918 = vmatpush1.bf16.msra.mxu0 %v2306
    %2919 = vmatprep.subr.bf16.mxu0 %v2309
    %2920 = vmatpush1.bf16.msra.mxu0 %v2308
    %2921 = vmatprep.mubr.bf16.mxu0 %v2847
    %2922 = vmatmul.mubr.bf16.gmra.mrb[0].mxu0 %v2846
    %v2923 = vpop.f32.mrb[0].mxu0
    %v2924 = vadd.f32 %v2883, %v2923
    %v2925 = vpop.f32.mrb[0].mxu0
    %v2926 = vadd.f32 %v2885, %v2925
    %v2927 = vpop.f32.mrb[0].mxu0
    %v2928 = vpop.f32.mrb[0].mxu0
    %2929 = vdwg.mxu0
    %v2930 = vmax.f32 %v2924, 0.0
    %v2931 = vmax.f32 %v2926, 0.0
    %v2932 = vsub.f32 %v2456, %v2930
    %v2933 = vsub.f32 %v2457, %v2931
    %v2934 = vand.u32 2147483647, %v2932
    %v2935 = vand.u32 2147483647, %v2933
    %v2936 = vld [vmem:[%s6] sm:$0xff]
    %v2937 = vld [vmem:[%s6 + $0x8] sm:$0xff]
    %v2938 = vld [vmem:[%s6 + $0x10] sm:$0xff]
    %v2939 = vld [vmem:[%s6 + $0x18] sm:$0xff]
    %v2940 = vld [vmem:[%s6 + $0x20] sm:$0xff]
    %v2941 = vld [vmem:[%s6 + $0x28] sm:$0xff]
    %v2942 = vld [vmem:[%s6 + $0x30] sm:$0xff]
    %v2943 = vld [vmem:[%s6 + $0x38] sm:$0xff]
    %v2944 = vld [vmem:[%s6 + $0x40] sm:$0xff]
    %v2945 = vld [vmem:[%s6 + $0x48] sm:$0xff]
    %v2946 = vld [vmem:[%s6 + $0x50] sm:$0xff]
    %v2947 = vld [vmem:[%s6 + $0x58] sm:$0xff]
    %v2948 = vld [vmem:[%s6 + $0x60] sm:$0xff]
    %v2949 = vld [vmem:[%s6 + $0x68] sm:$0xff]
    %v2950 = vld [vmem:[%s6 + $0x70] sm:$0xff]
    %v2951 = vld [vmem:[%s6 + $0x78] sm:$0xff]
    %v2952 = vld [vmem:[%s6 + $0x80] sm:$0xff]
    %v2953 = vld [vmem:[%s6 + $0x88] sm:$0xff]
    %v2954 = vld [vmem:[%s6 + $0x90] sm:$0xff]
    %v2955 = vld [vmem:[%s6 + $0x98] sm:$0xff]
    %v2956 = vld [vmem:[%s6 + $0xa0] sm:$0xff]
    %v2957 = vld [vmem:[%s6 + $0xa8] sm:$0xff]
    %v2958 = vld [vmem:[%s6 + $0xb0] sm:$0xff]
    %v2959 = vld [vmem:[%s6 + $0xb8] sm:$0xff]
    %v2960 = vld [vmem:[%s6 + $0xc0] sm:$0xff]
    %v2961 = vld [vmem:[%s6 + $0xc8] sm:$0xff]
    %v2962 = vld [vmem:[%s6 + $0xd0] sm:$0xff]
    %v2963 = vld [vmem:[%s6 + $0xd8] sm:$0xff]
    %v2964 = vld [vmem:[%s6 + $0xe0] sm:$0xff]
    %v2965 = vld [vmem:[%s6 + $0xe8] sm:$0xff]
    %v2966 = vld [vmem:[%s6 + $0xf0] sm:$0xff]
    %v2967 = vld [vmem:[%s6 + $0xf8] sm:$0xff]
    %v2968 = vld [vmem:[%s7] sm:$0x1]
    %v2970 = vlaneseq
    %v2971 = vshrl.u32 %v2970, 7
    %v2972 = vsub.s32 0, %v2971
    %v2973 = vrot.slane %v2968, %v2972
    %2975 = vmatprep.subr.mxu0 0.0
    %2976 = vmatpush1.msra.mxu0 %v2936
    %2977 = vmatprep.subr.mxu0 0.0
    %2978 = vmatpush1.msra.mxu0 %v2937
    %2979 = vmatprep.subr.mxu0 0.0
    %2980 = vmatpush1.msra.mxu0 %v2938
    %2981 = vmatprep.subr.mxu0 0.0
    %2982 = vmatpush1.msra.mxu0 %v2939
    %2983 = vmatprep.subr.mxu0 0.0
    %2984 = vmatpush1.msra.mxu0 %v2940
    %2985 = vmatprep.subr.mxu0 0.0
    %2986 = vmatpush1.msra.mxu0 %v2941
    %2987 = vmatprep.subr.mxu0 0.0
    %2988 = vmatpush1.msra.mxu0 %v2942
    %2989 = vmatprep.subr.mxu0 0.0
    %2990 = vmatpush1.msra.mxu0 %v2943
    %2991 = vmatprep.subr.mxu0 0.0
    %2992 = vmatpush1.msra.mxu0 %v2944
    %2993 = vmatprep.subr.mxu0 0.0
    %2994 = vmatpush1.msra.mxu0 %v2945
    %2995 = vmatprep.subr.mxu0 0.0
    %2996 = vmatpush1.msra.mxu0 %v2946
    %2997 = vmatprep.subr.mxu0 0.0
    %2998 = vmatpush1.msra.mxu0 %v2947
    %2999 = vmatprep.subr.mxu0 0.0
    %3000 = vmatpush1.msra.mxu0 %v2948
    %3001 = vmatprep.subr.mxu0 0.0
    %3002 = vmatpush1.msra.mxu0 %v2949
    %3003 = vmatprep.subr.mxu0 0.0
    %3004 = vmatpush1.msra.mxu0 %v2950
    %3005 = vmatprep.subr.mxu0 0.0
    %3006 = vmatpush1.msra.mxu0 %v2951
    %3007 = vmatprep.subr.mxu0 0.0
    %3008 = vmatpush1.msra.mxu0 %v2952
    %3009 = vmatprep.subr.mxu0 0.0
    %3010 = vmatpush1.msra.mxu0 %v2953
    %3011 = vmatprep.subr.mxu0 0.0
    %3012 = vmatpush1.msra.mxu0 %v2954
    %3013 = vmatprep.subr.mxu0 0.0
    %3014 = vmatpush1.msra.mxu0 %v2955
    %3015 = vmatprep.subr.mxu0 0.0
    %3016 = vmatpush1.msra.mxu0 %v2956
    %3017 = vmatprep.subr.mxu0 0.0
    %3018 = vmatpush1.msra.mxu0 %v2957
    %3019 = vmatprep.subr.mxu0 0.0
    %3020 = vmatpush1.msra.mxu0 %v2958
    %3021 = vmatprep.subr.mxu0 0.0
    %3022 = vmatpush1.msra.mxu0 %v2959
    %3023 = vmatprep.subr.mxu0 0.0
    %3024 = vmatpush1.msra.mxu0 %v2960
    %3025 = vmatprep.subr.mxu0 0.0
    %3026 = vmatpush1.msra.mxu0 %v2961
    %3027 = vmatprep.subr.mxu0 0.0
    %3028 = vmatpush1.msra.mxu0 %v2962
    %3029 = vmatprep.subr.mxu0 0.0
    %3030 = vmatpush1.msra.mxu0 %v2963
    %3031 = vmatprep.subr.mxu0 0.0
    %3032 = vmatpush1.msra.mxu0 %v2964
    %3033 = vmatprep.subr.mxu0 0.0
    %3034 = vmatpush1.msra.mxu0 %v2965
    %3035 = vmatprep.subr.mxu0 0.0
    %3036 = vmatpush1.msra.mxu0 %v2966
    %3037 = vmatprep.subr.mxu0 0.0
    %3038 = vmatpush1.msra.mxu0 %v2967
    %3039 = vmatprep.mubr.f32.mxu0 %v2935
    %3040 = vmatmul.mubr.f32.gmra.mrb[0].mxu0 %v2934
    %v3041 = vpop.f32.mrb[0].mxu0
    %v3042 = vadd.f32 %v2973, %v3041
    %v3043 = vpop.f32.mrb[0].mxu0
    %3044 = vdwg.mxu0
    %v3045 = vxor.u32 %v3042, 2147483648
    %v3046 = vmul.f32 %v3045, 1.442695
    %v3047 = vpow.pop %v3046
    %v3048 = vadd.f32 %v3047, 1.0
    %v3049 = vrcp.pop %v3048
    %v3050 = vmul.f32 1.0, %v3049
    %vm3051 = vcmask 9216
    %3052 = vst.msk [vmem:[#allocation2] sm:$0x3] %vm3051, %v3050
    // Predicated region
    $region34: #{pointnet_siamese_forward.7} parent=1 // pred_check
      _
    $region35: #{pointnet_siamese_forward.7} parent=1 // pred_check_branch
      %3054 = sbr.rel (0) target = $region37
    $region36: #{pointnet_siamese_forward.7} parent=1 // pred_region
      %s3056 = ssub.s32 32, 32
      %3057 = vsyncadd [#allocation3], %s3056
      %s3059 = sshll.u32 [#allocation2], 4
      %s3060 = int_to_ptr.vmem [resolvable:$true] %s3059
      %3062 = dma.vmem_to_hbm [thread:$0]  %s3060, 32, %s8, [#allocation3]
    $region37: #{pointnet_siamese_forward.7} parent=1 // pred_fallthru
      _
    // Predicated region
    $region38: #{pointnet_siamese_forward.7} parent=1 // pred_check
      _
    $region39: #{pointnet_siamese_forward.7} parent=1 // pred_check_branch
      %3064 = sbr.rel (0) target = $region41
    $region40: #{pointnet_siamese_forward.7} parent=1 // pred_region
      %3065 = dma.done [#allocation3], 32
    $region41: #{pointnet_siamese_forward.7} parent=1 // pred_fallthru
      _
    %3066 = vsyncpa [#allocation3], 1

</llo_original>
